<compile_context>
chip_gen: v7x
topology: tpu7x:2x2x1
jax: 0.10.0
libtpu: 0.0.40
codegen_flags: <defaults>
</compile_context>

<pallas_src>
import functools

import jax
import jax.numpy as jnp
from jax import lax
from jax.experimental import pallas as pl
from jax.experimental.pallas import tpu as pltpu

NEG_SLOPE = 0.2
BN_EPS = 1e-5
OC_TILE = 128                        # lane-dense output-channel tile


# --------------------------------- helpers ----------------------------------

def _round_up(x, m):
    return (x + m - 1) // m * m


def _vmem_limit_bytes():
    """Scoped-VMEM limit derived from physical VMEM (v7x: 64 MiB, else 128)."""
    try:
        cap = int(pltpu.get_tpu_info().vmem_capacity_bytes)
    except Exception:
        cap = 128 << 20
    return int(min(96 << 20, max(32 << 20, cap // 2)))


def _pick_batch_tile(n, per_sample_bytes, budget, n_oc):
    """Largest divisor of n fitting the VMEM budget; keep >=2 grid steps when
    the oc axis is degenerate (2-TC megacore on v7x)."""
    best = 1
    for bt in range(1, n + 1):
        if n % bt == 0 and bt * per_sample_bytes <= budget:
            best = bt
    if n_oc == 1 and best == n and n >= 2:
        for bt in range(n // 2, 0, -1):
            if n % bt == 0:
                best = bt
                break
    return best


# ----------------------------- fused conv kernel -----------------------------

def _conv_kernel(n_ph, stride, kh, kw, oh, ow, ow_pad, bt, cin,
                 valid_bounds, in_affine, out_lrelu, need_stats, *refs):
    ph_refs = refs[:n_ph]
    pos = n_ph
    w_ref = refs[pos]
    pos += 1
    if in_affine:
        sc_ref = refs[pos]
        sh_ref = refs[pos + 1]
        pos += 2
    o_ref = refs[pos]
    st_ref = refs[pos + 1]
    pos += 2
    im_ref = refs[pos]                      # bf16 (m_pad, kh*kw*cin) scratch
    pos += 1
    pscr = refs[pos] if in_affine else None  # bf16 phase scratch

    m_pad = bt * oh * ow_pad

    if in_affine:
        scale = sc_ref[...].reshape(1, 1, 1, cin)
        shift = sh_ref[...].reshape(1, 1, 1, cin)

    for p in range(n_ph):
        pr = ph_refs[p]
        a, b = p // stride, p % stride
        if in_affine:
            # fused BatchNorm affine + LeakyReLU of the *previous* layer,
            # applied once per (disjoint) phase block; static validity mask
            # keeps the conv's zero padding exactly zero.
            x = pr[...].astype(jnp.float32)
            x = x * scale + shift
            x = jnp.where(x >= 0.0, x, NEG_SLOPE * x)
            r0, r1, c0, c1 = valid_bounds[p]
            ph_h, ph_w = pr.shape[1], pr.shape[2]
            if r0 > 0 or r1 < ph_h or c0 > 0 or c1 < ph_w:
                ri = lax.broadcasted_iota(jnp.int32, (1, ph_h, ph_w, cin), 1)
                ci = lax.broadcasted_iota(jnp.int32, (1, ph_h, ph_w, cin), 2)
                ok = (ri >= r0) & (ri < r1) & (ci >= c0) & (ci < c1)
                x = jnp.where(ok, x, 0.0)
            pscr[...] = x.astype(jnp.bfloat16)
            src = pscr
        else:
            src = pr
        # gather this phase's taps into the fused-K im2col scratch
        for i in range(kh):
            for j in range(kw):
                if (i % stride) != a or (j % stride) != b:
                    continue
                hi, wi = i // stride, j // stride
                t = i * kw + j
                win = src[:, pl.ds(hi, oh), pl.ds(wi, ow_pad), :]
                im_ref[:, t * cin:(t + 1) * cin] = (
                    win.reshape(m_pad, cin).astype(jnp.bfloat16))

    # single MXU contraction over K = kh*kw*cin (no accumulator RMW)
    y = jnp.dot(im_ref[...], w_ref[...], preferred_element_type=jnp.float32)
    y = y.reshape(bt, oh, ow_pad, OC_TILE)

    if ow_pad != ow:
        # keep pad columns exactly zero (dense store + exact BN partial sums)
        ci = lax.broadcasted_iota(jnp.int32, (1, 1, ow_pad, OC_TILE), 2)
        y = jnp.where(ci < ow, y, 0.0)

    if need_stats:
        st_ref[:, 0:1, :] = jnp.sum(y, axis=(0, 1, 2),
                                    keepdims=True).reshape(1, 1, OC_TILE)
        st_ref[:, 1:2, :] = jnp.sum(y * y, axis=(0, 1, 2),
                                    keepdims=True).reshape(1, 1, OC_TILE)
    else:
        st_ref[...] = jnp.zeros_like(st_ref)

    if out_lrelu:
        y = jnp.where(y >= 0.0, y, NEG_SLOPE * y)
    o_ref[...] = y.astype(o_ref.dtype)


def _phase_decompose(x, kh, kw, stride, pad, oh, ow_pad):
    """Split the spatially padded NHWC input into stride x stride phase arrays
    (total bytes == padded activation bytes, no im2col amplification)."""
    if pad:
        x = jnp.pad(x, ((0, 0), (pad, pad), (pad, pad), (0, 0)))
    ph_req = oh + (kh - 1) // stride
    pw_req = ow_pad + (kw - 1) // stride
    phases = []
    for a in range(stride):
        for b in range(stride):
            p = x[:, a::stride, b::stride, :]
            dh = max(0, ph_req - p.shape[1])
            dw = max(0, pw_req - p.shape[2])
            if dh or dw:
                p = jnp.pad(p, ((0, 0), (0, dh), (0, dw), (0, 0)))
            phases.append(p[:, :ph_req, :pw_req, :])
    return phases


def fused_conv(x, w_mat, stride, pad, kh, kw, w_true, *,
               in_scale=None, in_shift=None, out_lrelu=False,
               need_stats=True, out_dtype=jnp.bfloat16):
    """4x4 conv (bias=False) with the previous layer's BN affine + LeakyReLU
    fused into the input path, a single fused-K bf16 MXU dot, exact per-channel
    BN partial stats and optional fused output LeakyReLU."""
    n, h_true, w_store, cin = x.shape        # width may carry zero pad cols
    K, oc_pad = w_mat.shape
    assert K == kh * kw * cin
    in_affine = in_scale is not None

    oh = (h_true + 2 * pad - kh) // stride + 1
    ow = (w_true + 2 * pad - kw) // stride + 1
    ow_pad = _round_up(ow, 8)

    phases = _phase_decompose(x, kh, kw, stride, pad, oh, ow_pad)
    ph_sh = phases[0].shape                   # (n, PH, PW, cin)
    PH, PW = ph_sh[1], ph_sh[2]
    n_ph = len(phases)

    # static per-phase bounds of the real (non zero-pad) region
    bounds = []
    for a in range(stride):
        for b in range(stride):
            r0 = max(0, -((a - pad) // stride))
            r1 = min(PH, (pad + h_true - 1 - a) // stride + 1)
            c0 = max(0, -((b - pad) // stride))
            c1 = min(PW, (pad + w_true - 1 - b) // stride + 1)
            bounds.append((r0, r1, c0, c1))
    bounds = tuple(bounds)

    n_oc = oc_pad // OC_TILE
    out_isize = jnp.dtype(out_dtype).itemsize
    vmem_limit = _vmem_limit_bytes()

    ph_bytes = n_ph * PH * PW * cin * 2                      # per sample, bf16
    per_sample = (2 * ph_bytes                               # dbl-buf phases
                  + 2 * oh * ow_pad * OC_TILE * out_isize    # dbl-buf output
                  + oh * ow_pad * K * 2                      # im2col scratch
                  + 2 * oh * ow_pad * OC_TILE * 4)           # f32 temps
    if in_affine:
        per_sample += PH * PW * cin * (2 + 4)                # phase scratch+f32
    wt_bytes = K * OC_TILE * 2
    budget = vmem_limit - 2 * wt_bytes - (6 << 20)
    bt = _pick_batch_tile(n, per_sample, max(per_sample, budget), n_oc)
    n_bt = n // bt

    # grid order: keep the bigger operand resident on the outer axis
    ph_tile_bytes = bt * ph_bytes
    oc_outer = (n_oc > 1 and n_bt > 1 and
                (n_oc * wt_bytes + n_oc * n_bt * ph_tile_bytes)
                < (n_bt * ph_tile_bytes + n_bt * n_oc * wt_bytes))

    if oc_outer:
        grid = (n_oc, n_bt)
        ph_map = lambda o, b: (b, 0, 0, 0)
        w_map = lambda o, b: (0, o)
        vec_map = lambda o, b: (0, 0)
        out_map = lambda o, b: (b, 0, 0, o)
        st_map = lambda o, b: (b, 0, o)
    else:
        grid = (n_bt, n_oc)
        ph_map = lambda b, o: (b, 0, 0, 0)
        w_map = lambda b, o: (0, o)
        vec_map = lambda b, o: (0, 0)
        out_map = lambda b, o: (b, 0, 0, o)
        st_map = lambda b, o: (b, 0, o)

    in_specs = [pl.BlockSpec((bt, PH, PW, cin), ph_map)] * n_ph
    in_specs.append(pl.BlockSpec((K, OC_TILE), w_map))
    args = list(phases) + [w_mat]
    if in_affine:
        in_specs += [pl.BlockSpec((1, cin), vec_map),
                     pl.BlockSpec((1, cin), vec_map)]
        args += [in_scale, in_shift]

    scratch = [pltpu.VMEM((bt * oh * ow_pad, K), jnp.bfloat16)]
    if in_affine:
        scratch.append(pltpu.VMEM((bt, PH, PW, cin), jnp.bfloat16))

    kernel = functools.partial(_conv_kernel, n_ph, stride, kh, kw, oh, ow,
                               ow_pad, bt, cin, bounds, in_affine, out_lrelu,
                               need_stats)

    out, stats = pl.pallas_call(
        kernel,
        grid=grid,
        in_specs=in_specs,
        out_specs=(pl.BlockSpec((bt, oh, ow_pad, OC_TILE), out_map),
                   pl.BlockSpec((1, 2, OC_TILE), st_map)),
        out_shape=(jax.ShapeDtypeStruct((n, oh, ow_pad, oc_pad), out_dtype),
                   jax.ShapeDtypeStruct((n_bt, 2, oc_pad), jnp.float32)),
        scratch_shapes=scratch,
        compiler_params=pltpu.CompilerParams(
            dimension_semantics=("parallel", "parallel"),
            vmem_limit_bytes=vmem_limit),
    )(*args)
    return out, stats, oh, ow


def _bn_scale_shift(stats, count, gamma_pad, beta_pad):
    """Fold exact sum / sum-of-squares partials into per-channel scale/shift
    (training-mode, biased batch variance, like torch's default)."""
    s = jnp.sum(stats[:, 0, :], axis=0)
    ss = jnp.sum(stats[:, 1, :], axis=0)
    mean = s / count
    var = jnp.maximum(ss / count - mean * mean, 0.0)
    inv = lax.rsqrt(var + BN_EPS)
    scale = gamma_pad * inv
    shift = beta_pad - mean * scale
    return scale.reshape(1, -1), shift.reshape(1, -1)


# ------------------------------- Encoder model -------------------------------

class EncoderPallas:
    """Mirror of the PyTorch Encoder(isize, nc, k, ndf) forward pass."""

    def __init__(self, isize, nc, k=100, ndf=64, seed=0):
        assert isize % 16 == 0, 'isize has to be a multiple of 16'
        key = jax.random.PRNGKey(seed)
        self.nc, self.k = nc, k
        self.nc_pad = _round_up(nc, 8)
        self.layers = []

        def conv_w(key, oc, ic):
            # deterministic synthetic init (DCGAN-style N(0, 0.02))
            return 0.02 * jax.random.normal(key, (oc, ic, 4, 4), jnp.float32)

        def add_layer(key, oc, ic, ic_pad, stride, pad, bn, act):
            w = conv_w(key, oc, ic)
            oc_pad = _round_up(oc, OC_TILE)
            wm = jnp.transpose(w, (2, 3, 1, 0)).reshape(16, ic, oc)
            wm = jnp.pad(wm, ((0, 0), (0, ic_pad - ic), (0, oc_pad - oc)))
            wm = wm.reshape(16 * ic_pad, oc_pad).astype(jnp.bfloat16)
            lyr = dict(w=w, w_mat=wm, stride=stride, pad=pad, bn=bn, act=act,
                       oc=oc, oc_pad=oc_pad)
            if bn:
                lyr['gamma'] = jnp.ones((oc,), jnp.float32)
                lyr['beta'] = jnp.zeros((oc,), jnp.float32)
                lyr['gamma_pad'] = jnp.pad(lyr['gamma'], (0, oc_pad - oc),
                                           constant_values=1.0)
                lyr['beta_pad'] = jnp.pad(lyr['beta'], (0, oc_pad - oc))
            self.layers.append(lyr)
            return oc_pad

        # initial conv + LeakyReLU (LeakyReLU fused into the conv epilogue)
        key, sub = jax.random.split(key)
        ic_pad = add_layer(sub, ndf, nc, self.nc_pad, 2, 1, False, True)
        csize, cndf = isize // 2, ndf
        # pyramid conv + BN + LeakyReLU (BN+LeakyReLU fused into NEXT conv)
        while csize > 4:
            key, sub = jax.random.split(key)
            ic_pad = add_layer(sub, cndf * 2, cndf, ic_pad, 2, 1, True, True)
            cndf, csize = cndf * 2, csize // 2
        # final conv, no activation
        key, sub = jax.random.split(key)
        add_layer(sub, k, cndf, ic_pad, 1, 0, False, False)
        # TODO(synk): BatchNorm running-mean/var bookkeeping (training-state
        # update) is not modeled; forward uses batch statistics exactly like
        # torch's default training mode.

    def __call__(self, x_nchw):
        x = jnp.transpose(x_nchw, (0, 2, 3, 1)).astype(jnp.bfloat16)  # NHWC
        # pad input channels once; padded channels stay exactly zero end-to-end
        x = jnp.pad(x, ((0, 0), (0, 0), (0, 0), (0, self.nc_pad - self.nc)))
        n = x.shape[0]
        w_true = x.shape[2]
        pending = None      # (stats, count, gamma_pad, beta_pad) from prev BN
        for li, lyr in enumerate(self.layers):
            if pending is not None:
                in_scale, in_shift = _bn_scale_shift(*pending)
            else:
                in_scale = in_shift = None
            last = li == len(self.layers) - 1
            out, stats, oh, ow = fused_conv(
                x, lyr['w_mat'], lyr['stride'], lyr['pad'], 4, 4, w_true,
                in_scale=in_scale, in_shift=in_shift,
                out_lrelu=(lyr['act'] and not lyr['bn']),
                need_stats=lyr['bn'],
                out_dtype=jnp.float32 if last else jnp.bfloat16)
            if lyr['bn']:
                pending = (stats, n * oh * ow, lyr['gamma_pad'],
                           lyr['beta_pad'])
            else:
                pending = None
            x = out
            w_true = ow
        x = x[:, :, :w_true, :self.k].astype(jnp.float32)   # drop padding
        return jnp.transpose(x, (0, 3, 1, 2))                # NCHW: (N,k,1,1)


# ------------------------------ pure-JAX reference ---------------------------

def ref_forward(x_nchw, layers):
    y = x_nchw.astype(jnp.float32)
    for lyr in layers:
        y = lax.conv_general_dilated(
            y.astype(jnp.bfloat16), lyr['w'].astype(jnp.bfloat16),
            (lyr['stride'],) * 2, ((lyr['pad'], lyr['pad']),) * 2,
            dimension_numbers=('NCHW', 'OIHW', 'NCHW'),
            preferred_element_type=jnp.float32)
        if lyr['bn']:
            mean = y.mean((0, 2, 3), keepdims=True)
            var = ((y - mean) ** 2).mean((0, 2, 3), keepdims=True)
            y = (y - mean) / jnp.sqrt(var + BN_EPS)
            y = y * lyr['gamma'].reshape(1, -1, 1, 1) \
                + lyr['beta'].reshape(1, -1, 1, 1)
        if lyr['act']:
            y = jnp.where(y >= 0, y, NEG_SLOPE * y)
    return y


# ----------------------------------- main ------------------------------------

if __name__ == "__main__":
    batch, nc, isize, ndf, k = 2, 3, 16, 8, 16
    key = jax.random.PRNGKey(0)
    x = jax.random.normal(key, (batch, nc, isize, isize), dtype=jnp.float32)

    enc = EncoderPallas(isize, nc, k=k, ndf=ndf, seed=0)
    out = jax.block_until_ready(jax.jit(lambda v: enc(v))(x))
    assert out.shape == (batch, k, 1, 1), out.shape

    ref = jax.block_until_ready(ref_forward(x, enc.layers))
    # bf16 activation storage (as in the reference conv inputs) -> ~1e-3 level
    # differences; 1e-2 still catches any structural/masking bug.
    err = float(jnp.max(jnp.abs(out - ref)))
    assert jnp.allclose(out, ref, rtol=1e-2, atol=1e-2), err

    print("KERNEL_OK")
</pallas_src>

<mosaic_0001>
module attributes {stable_mosaic.version = 11 : i64} {
  func.func @_conv_kernel(%arg0: i32, %arg1: i32, %arg2: memref<1x9x9x8xbf16, #tpu.memory_space<vmem>>, %arg3: memref<1x9x9x8xbf16, #tpu.memory_space<vmem>>, %arg4: memref<1x9x9x8xbf16, #tpu.memory_space<vmem>>, %arg5: memref<1x9x9x8xbf16, #tpu.memory_space<vmem>>, %arg6: memref<128x128xbf16, #tpu.memory_space<vmem>>, %arg7: memref<1x8x8x128xbf16, #tpu.memory_space<vmem>>, %arg8: memref<1x2x128xf32, #tpu.memory_space<vmem>>, %arg9: memref<64x128xbf16, #tpu.memory_space<vmem>>) attributes {dimension_semantics = [#tpu.dimension_semantics<parallel>, #tpu.dimension_semantics<parallel>], iteration_bounds = array<i64: 2, 1>, scalar_prefetch = 0 : i64, scratch_operands = 1 : i64, tpu.core_type = #tpu.core_type<tc>, window_params = [{transform_indices = @transform_0, window_bounds = array<i64: 1, 9, 9, 8>}, {transform_indices = @transform_1, window_bounds = array<i64: 1, 9, 9, 8>}, {transform_indices = @transform_2, window_bounds = array<i64: 1, 9, 9, 8>}, {transform_indices = @transform_3, window_bounds = array<i64: 1, 9, 9, 8>}, {transform_indices = @transform_4, window_bounds = array<i64: 128, 128>}, {transform_indices = @transform_5, window_bounds = array<i64: 1, 8, 8, 128>}, {transform_indices = @transform_6, window_bounds = array<i64: 1, 2, 128>}]} {
    %c0 = arith.constant 0 : index
    %c0_0 = arith.constant 0 : index
    %c0_1 = arith.constant 0 : index
    %c0_2 = arith.constant 0 : index
    %0 = vector.load %arg2[%c0, %c0_0, %c0_1, %c0_2] : memref<1x9x9x8xbf16, #tpu.memory_space<vmem>>, vector<1x8x8x8xbf16>
    %1 = vector.shape_cast %0 : vector<1x8x8x8xbf16> to vector<64x8xbf16>
    %c0_3 = arith.constant 0 : index
    %c0_4 = arith.constant 0 : index
    %2 = vector.load %arg9[%c0_3, %c0_4] : memref<64x128xbf16, #tpu.memory_space<vmem>>, vector<64x8xbf16>
    tpu.vector_store %arg9[%c0_3, %c0_4], %1 {strides = array<i32>} : memref<64x128xbf16, #tpu.memory_space<vmem>>, vector<64x8xbf16>,
    %c0_5 = arith.constant 0 : index
    %c0_6 = arith.constant 0 : index
    %c1 = arith.constant 1 : index
    %c0_7 = arith.constant 0 : index
    %3 = vector.load %arg2[%c0_5, %c0_6, %c1, %c0_7] : memref<1x9x9x8xbf16, #tpu.memory_space<vmem>>, vector<1x8x8x8xbf16>
    %4 = vector.shape_cast %3 : vector<1x8x8x8xbf16> to vector<64x8xbf16>
    %c0_8 = arith.constant 0 : index
    %c16 = arith.constant 16 : index
    %5 = vector.load %arg9[%c0_8, %c16] : memref<64x128xbf16, #tpu.memory_space<vmem>>, vector<64x8xbf16>
    tpu.vector_store %arg9[%c0_8, %c16], %4 {strides = array<i32>} : memref<64x128xbf16, #tpu.memory_space<vmem>>, vector<64x8xbf16>,
    %c0_9 = arith.constant 0 : index
    %c1_10 = arith.constant 1 : index
    %c0_11 = arith.constant 0 : index
    %c0_12 = arith.constant 0 : index
    %6 = vector.load %arg2[%c0_9, %c1_10, %c0_11, %c0_12] : memref<1x9x9x8xbf16, #tpu.memory_space<vmem>>, vector<1x8x8x8xbf16>
    %7 = vector.shape_cast %6 : vector<1x8x8x8xbf16> to vector<64x8xbf16>
    %c0_13 = arith.constant 0 : index
    %c64 = arith.constant 64 : index
    %8 = vector.load %arg9[%c0_13, %c64] : memref<64x128xbf16, #tpu.memory_space<vmem>>, vector<64x8xbf16>
    tpu.vector_store %arg9[%c0_13, %c64], %7 {strides = array<i32>} : memref<64x128xbf16, #tpu.memory_space<vmem>>, vector<64x8xbf16>,
    %c0_14 = arith.constant 0 : index
    %c1_15 = arith.constant 1 : index
    %c1_16 = arith.constant 1 : index
    %c0_17 = arith.constant 0 : index
    %9 = vector.load %arg2[%c0_14, %c1_15, %c1_16, %c0_17] : memref<1x9x9x8xbf16, #tpu.memory_space<vmem>>, vector<1x8x8x8xbf16>
    %10 = vector.shape_cast %9 : vector<1x8x8x8xbf16> to vector<64x8xbf16>
    %c0_18 = arith.constant 0 : index
    %c80 = arith.constant 80 : index
    %11 = vector.load %arg9[%c0_18, %c80] : memref<64x128xbf16, #tpu.memory_space<vmem>>, vector<64x8xbf16>
    tpu.vector_store %arg9[%c0_18, %c80], %10 {strides = array<i32>} : memref<64x128xbf16, #tpu.memory_space<vmem>>, vector<64x8xbf16>,
    %c0_19 = arith.constant 0 : index
    %c0_20 = arith.constant 0 : index
    %c0_21 = arith.constant 0 : index
    %c0_22 = arith.constant 0 : index
    %12 = vector.load %arg3[%c0_19, %c0_20, %c0_21, %c0_22] : memref<1x9x9x8xbf16, #tpu.memory_space<vmem>>, vector<1x8x8x8xbf16>
    %13 = vector.shape_cast %12 : vector<1x8x8x8xbf16> to vector<64x8xbf16>
    %c0_23 = arith.constant 0 : index
    %c8 = arith.constant 8 : index
    %14 = vector.load %arg9[%c0_23, %c8] : memref<64x128xbf16, #tpu.memory_space<vmem>>, vector<64x8xbf16>
    tpu.vector_store %arg9[%c0_23, %c8], %13 {strides = array<i32>} : memref<64x128xbf16, #tpu.memory_space<vmem>>, vector<64x8xbf16>,
    %c0_24 = arith.constant 0 : index
    %c0_25 = arith.constant 0 : index
    %c1_26 = arith.constant 1 : index
    %c0_27 = arith.constant 0 : index
    %15 = vector.load %arg3[%c0_24, %c0_25, %c1_26, %c0_27] : memref<1x9x9x8xbf16, #tpu.memory_space<vmem>>, vector<1x8x8x8xbf16>
    %16 = vector.shape_cast %15 : vector<1x8x8x8xbf16> to vector<64x8xbf16>
    %c0_28 = arith.constant 0 : index
    %c24 = arith.constant 24 : index
    %17 = vector.load %arg9[%c0_28, %c24] : memref<64x128xbf16, #tpu.memory_space<vmem>>, vector<64x8xbf16>
    tpu.vector_store %arg9[%c0_28, %c24], %16 {strides = array<i32>} : memref<64x128xbf16, #tpu.memory_space<vmem>>, vector<64x8xbf16>,
    %c0_29 = arith.constant 0 : index
    %c1_30 = arith.constant 1 : index
    %c0_31 = arith.constant 0 : index
    %c0_32 = arith.constant 0 : index
    %18 = vector.load %arg3[%c0_29, %c1_30, %c0_31, %c0_32] : memref<1x9x9x8xbf16, #tpu.memory_space<vmem>>, vector<1x8x8x8xbf16>
    %19 = vector.shape_cast %18 : vector<1x8x8x8xbf16> to vector<64x8xbf16>
    %c0_33 = arith.constant 0 : index
    %c72 = arith.constant 72 : index
    %20 = vector.load %arg9[%c0_33, %c72] : memref<64x128xbf16, #tpu.memory_space<vmem>>, vector<64x8xbf16>
    tpu.vector_store %arg9[%c0_33, %c72], %19 {strides = array<i32>} : memref<64x128xbf16, #tpu.memory_space<vmem>>, vector<64x8xbf16>,
    %c0_34 = arith.constant 0 : index
    %c1_35 = arith.constant 1 : index
    %c1_36 = arith.constant 1 : index
    %c0_37 = arith.constant 0 : index
    %21 = vector.load %arg3[%c0_34, %c1_35, %c1_36, %c0_37] : memref<1x9x9x8xbf16, #tpu.memory_space<vmem>>, vector<1x8x8x8xbf16>
    %22 = vector.shape_cast %21 : vector<1x8x8x8xbf16> to vector<64x8xbf16>
    %c0_38 = arith.constant 0 : index
    %c88 = arith.constant 88 : index
    %23 = vector.load %arg9[%c0_38, %c88] : memref<64x128xbf16, #tpu.memory_space<vmem>>, vector<64x8xbf16>
    tpu.vector_store %arg9[%c0_38, %c88], %22 {strides = array<i32>} : memref<64x128xbf16, #tpu.memory_space<vmem>>, vector<64x8xbf16>,
    %c0_39 = arith.constant 0 : index
    %c0_40 = arith.constant 0 : index
    %c0_41 = arith.constant 0 : index
    %c0_42 = arith.constant 0 : index
    %24 = vector.load %arg4[%c0_39, %c0_40, %c0_41, %c0_42] : memref<1x9x9x8xbf16, #tpu.memory_space<vmem>>, vector<1x8x8x8xbf16>
    %25 = vector.shape_cast %24 : vector<1x8x8x8xbf16> to vector<64x8xbf16>
    %c0_43 = arith.constant 0 : index
    %c32 = arith.constant 32 : index
    %26 = vector.load %arg9[%c0_43, %c32] : memref<64x128xbf16, #tpu.memory_space<vmem>>, vector<64x8xbf16>
    tpu.vector_store %arg9[%c0_43, %c32], %25 {strides = array<i32>} : memref<64x128xbf16, #tpu.memory_space<vmem>>, vector<64x8xbf16>,
    %c0_44 = arith.constant 0 : index
    %c0_45 = arith.constant 0 : index
    %c1_46 = arith.constant 1 : index
    %c0_47 = arith.constant 0 : index
    %27 = vector.load %arg4[%c0_44, %c0_45, %c1_46, %c0_47] : memref<1x9x9x8xbf16, #tpu.memory_space<vmem>>, vector<1x8x8x8xbf16>
    %28 = vector.shape_cast %27 : vector<1x8x8x8xbf16> to vector<64x8xbf16>
    %c0_48 = arith.constant 0 : index
    %c48 = arith.constant 48 : index
    %29 = vector.load %arg9[%c0_48, %c48] : memref<64x128xbf16, #tpu.memory_space<vmem>>, vector<64x8xbf16>
    tpu.vector_store %arg9[%c0_48, %c48], %28 {strides = array<i32>} : memref<64x128xbf16, #tpu.memory_space<vmem>>, vector<64x8xbf16>,
    %c0_49 = arith.constant 0 : index
    %c1_50 = arith.constant 1 : index
    %c0_51 = arith.constant 0 : index
    %c0_52 = arith.constant 0 : index
    %30 = vector.load %arg4[%c0_49, %c1_50, %c0_51, %c0_52] : memref<1x9x9x8xbf16, #tpu.memory_space<vmem>>, vector<1x8x8x8xbf16>
    %31 = vector.shape_cast %30 : vector<1x8x8x8xbf16> to vector<64x8xbf16>
    %c0_53 = arith.constant 0 : index
    %c96 = arith.constant 96 : index
    %32 = vector.load %arg9[%c0_53, %c96] : memref<64x128xbf16, #tpu.memory_space<vmem>>, vector<64x8xbf16>
    tpu.vector_store %arg9[%c0_53, %c96], %31 {strides = array<i32>} : memref<64x128xbf16, #tpu.memory_space<vmem>>, vector<64x8xbf16>,
    %c0_54 = arith.constant 0 : index
    %c1_55 = arith.constant 1 : index
    %c1_56 = arith.constant 1 : index
    %c0_57 = arith.constant 0 : index
    %33 = vector.load %arg4[%c0_54, %c1_55, %c1_56, %c0_57] : memref<1x9x9x8xbf16, #tpu.memory_space<vmem>>, vector<1x8x8x8xbf16>
    %34 = vector.shape_cast %33 : vector<1x8x8x8xbf16> to vector<64x8xbf16>
    %c0_58 = arith.constant 0 : index
    %c112 = arith.constant 112 : index
    %35 = vector.load %arg9[%c0_58, %c112] : memref<64x128xbf16, #tpu.memory_space<vmem>>, vector<64x8xbf16>
    tpu.vector_store %arg9[%c0_58, %c112], %34 {strides = array<i32>} : memref<64x128xbf16, #tpu.memory_space<vmem>>, vector<64x8xbf16>,
    %c0_59 = arith.constant 0 : index
    %c0_60 = arith.constant 0 : index
    %c0_61 = arith.constant 0 : index
    %c0_62 = arith.constant 0 : index
    %36 = vector.load %arg5[%c0_59, %c0_60, %c0_61, %c0_62] : memref<1x9x9x8xbf16, #tpu.memory_space<vmem>>, vector<1x8x8x8xbf16>
    %37 = vector.shape_cast %36 : vector<1x8x8x8xbf16> to vector<64x8xbf16>
    %c0_63 = arith.constant 0 : index
    %c40 = arith.constant 40 : index
    %38 = vector.load %arg9[%c0_63, %c40] : memref<64x128xbf16, #tpu.memory_space<vmem>>, vector<64x8xbf16>
    tpu.vector_store %arg9[%c0_63, %c40], %37 {strides = array<i32>} : memref<64x128xbf16, #tpu.memory_space<vmem>>, vector<64x8xbf16>,
    %c0_64 = arith.constant 0 : index
    %c0_65 = arith.constant 0 : index
    %c1_66 = arith.constant 1 : index
    %c0_67 = arith.constant 0 : index
    %39 = vector.load %arg5[%c0_64, %c0_65, %c1_66, %c0_67] : memref<1x9x9x8xbf16, #tpu.memory_space<vmem>>, vector<1x8x8x8xbf16>
    %40 = vector.shape_cast %39 : vector<1x8x8x8xbf16> to vector<64x8xbf16>
    %c0_68 = arith.constant 0 : index
    %c56 = arith.constant 56 : index
    %41 = vector.load %arg9[%c0_68, %c56] : memref<64x128xbf16, #tpu.memory_space<vmem>>, vector<64x8xbf16>
    tpu.vector_store %arg9[%c0_68, %c56], %40 {strides = array<i32>} : memref<64x128xbf16, #tpu.memory_space<vmem>>, vector<64x8xbf16>,
    %c0_69 = arith.constant 0 : index
    %c1_70 = arith.constant 1 : index
    %c0_71 = arith.constant 0 : index
    %c0_72 = arith.constant 0 : index
    %42 = vector.load %arg5[%c0_69, %c1_70, %c0_71, %c0_72] : memref<1x9x9x8xbf16, #tpu.memory_space<vmem>>, vector<1x8x8x8xbf16>
    %43 = vector.shape_cast %42 : vector<1x8x8x8xbf16> to vector<64x8xbf16>
    %c0_73 = arith.constant 0 : index
    %c104 = arith.constant 104 : index
    %44 = vector.load %arg9[%c0_73, %c104] : memref<64x128xbf16, #tpu.memory_space<vmem>>, vector<64x8xbf16>
    tpu.vector_store %arg9[%c0_73, %c104], %43 {strides = array<i32>} : memref<64x128xbf16, #tpu.memory_space<vmem>>, vector<64x8xbf16>,
    %c0_74 = arith.constant 0 : index
    %c1_75 = arith.constant 1 : index
    %c1_76 = arith.constant 1 : index
    %c0_77 = arith.constant 0 : index
    %45 = vector.load %arg5[%c0_74, %c1_75, %c1_76, %c0_77] : memref<1x9x9x8xbf16, #tpu.memory_space<vmem>>, vector<1x8x8x8xbf16>
    %46 = vector.shape_cast %45 : vector<1x8x8x8xbf16> to vector<64x8xbf16>
    %c0_78 = arith.constant 0 : index
    %c120 = arith.constant 120 : index
    %47 = vector.load %arg9[%c0_78, %c120] : memref<64x128xbf16, #tpu.memory_space<vmem>>, vector<64x8xbf16>
    tpu.vector_store %arg9[%c0_78, %c120], %46 {strides = array<i32>} : memref<64x128xbf16, #tpu.memory_space<vmem>>, vector<64x8xbf16>,
    %c0_79 = arith.constant 0 : index
    %c0_80 = arith.constant 0 : index
    %48 = vector.load %arg9[%c0_79, %c0_80] : memref<64x128xbf16, #tpu.memory_space<vmem>>, vector<64x128xbf16>
    %c0_81 = arith.constant 0 : index
    %c0_82 = arith.constant 0 : index
    %49 = vector.load %arg6[%c0_81, %c0_82] : memref<128x128xbf16, #tpu.memory_space<vmem>>, vector<128x128xbf16>
    %cst = arith.constant dense<0.000000e+00> : vector<64x128xf32>
    %50 = tpu.matmul %48, %49, %cst {dimension_numbers = #tpu.dot_dimension_numbers<[1], [0], [0], [1], [0, 0, 1, 1], [], []>} : vector<64x128xbf16>, vector<128x128xbf16>, vector<64x128xf32> -> vector<64x128xf32>
    %51 = vector.shape_cast %50 : vector<64x128xf32> to vector<1x8x8x128xf32>
    %cst_83 = arith.constant 0.000000e+00 : f32
    %52 = vector.broadcast %cst_83 : f32 to vector<1x2x128xf32>
    %c0_84 = arith.constant 0 : index
    %c0_85 = arith.constant 0 : index
    %c0_86 = arith.constant 0 : index
    %53 = vector.load %arg8[%c0_84, %c0_85, %c0_86] : memref<1x2x128xf32, #tpu.memory_space<vmem>>, vector<1x2x128xf32>
    tpu.vector_store %arg8[%c0_84, %c0_85, %c0_86], %52 {strides = array<i32>} : memref<1x2x128xf32, #tpu.memory_space<vmem>>, vector<1x2x128xf32>,
    %cst_87 = arith.constant 0.000000e+00 : f32
    %54 = vector.broadcast %cst_87 : f32 to vector<1x8x8x128xf32>
    %55 = arith.cmpf oge, %51, %54 : vector<1x8x8x128xf32>
    %cst_88 = arith.constant 2.000000e-01 : f32
    %56 = vector.broadcast %cst_88 : f32 to vector<1x8x8x128xf32>
    %57 = arith.mulf %56, %51 : vector<1x8x8x128xf32>
    %58 = arith.select %55, %51, %57 : vector<1x8x8x128xi1>, vector<1x8x8x128xf32>
    %59 = arith.truncf %58 : vector<1x8x8x128xf32> to vector<1x8x8x128xbf16>
    %c0_89 = arith.constant 0 : index
    %c0_90 = arith.constant 0 : index
    %c0_91 = arith.constant 0 : index
    %c0_92 = arith.constant 0 : index
    %60 = vector.load %arg7[%c0_89, %c0_90, %c0_91, %c0_92] : memref<1x8x8x128xbf16, #tpu.memory_space<vmem>>, vector<1x8x8x128xbf16>
    tpu.vector_store %arg7[%c0_89, %c0_90, %c0_91, %c0_92], %59 {strides = array<i32>} : memref<1x8x8x128xbf16, #tpu.memory_space<vmem>>, vector<1x8x8x128xbf16>,
    return
  }
  func.func @transform_0(%arg0: i32, %arg1: i32) -> (i32, i32, i32, i32) {
    %c0_i32 = arith.constant 0 : i32
    %c0_i32_0 = arith.constant 0 : i32
    %c0_i32_1 = arith.constant 0 : i32
    %c0_i32_2 = arith.constant 0 : i32
    return %arg0, %c0_i32, %c0_i32_0, %c0_i32_1 : i32, i32, i32, i32
  }
  func.func @transform_1(%arg0: i32, %arg1: i32) -> (i32, i32, i32, i32) {
    %c0_i32 = arith.constant 0 : i32
    %c0_i32_0 = arith.constant 0 : i32
    %c0_i32_1 = arith.constant 0 : i32
    %c0_i32_2 = arith.constant 0 : i32
    return %arg0, %c0_i32, %c0_i32_0, %c0_i32_1 : i32, i32, i32, i32
  }
  func.func @transform_2(%arg0: i32, %arg1: i32) -> (i32, i32, i32, i32) {
    %c0_i32 = arith.constant 0 : i32
    %c0_i32_0 = arith.constant 0 : i32
    %c0_i32_1 = arith.constant 0 : i32
    %c0_i32_2 = arith.constant 0 : i32
    return %arg0, %c0_i32, %c0_i32_0, %c0_i32_1 : i32, i32, i32, i32
  }
  func.func @transform_3(%arg0: i32, %arg1: i32) -> (i32, i32, i32, i32) {
    %c0_i32 = arith.constant 0 : i32
    %c0_i32_0 = arith.constant 0 : i32
    %c0_i32_1 = arith.constant 0 : i32
    %c0_i32_2 = arith.constant 0 : i32
    return %arg0, %c0_i32, %c0_i32_0, %c0_i32_1 : i32, i32, i32, i32
  }
  func.func @transform_4(%arg0: i32, %arg1: i32) -> (i32, i32) {
    %c0_i32 = arith.constant 0 : i32
    %c0_i32_0 = arith.constant 0 : i32
    return %c0_i32, %arg1 : i32, i32
  }
  func.func @transform_5(%arg0: i32, %arg1: i32) -> (i32, i32, i32, i32) {
    %c0_i32 = arith.constant 0 : i32
    %c0_i32_0 = arith.constant 0 : i32
    %c0_i32_1 = arith.constant 0 : i32
    return %arg0, %c0_i32, %c0_i32_0, %arg1 : i32, i32, i32, i32
  }
  func.func @transform_6(%arg0: i32, %arg1: i32) -> (i32, i32, i32) {
    %c0_i32 = arith.constant 0 : i32
    %c0_i32_0 = arith.constant 0 : i32
    return %arg0, %c0_i32, %arg1 : i32, i32, i32
  }
}

module attributes {stable_mosaic.version = 11 : i64} {
  func.func @_conv_kernel(%arg0: i32, %arg1: i32, %arg2: memref<1x5x9x128xbf16, #tpu.memory_space<vmem>>, %arg3: memref<1x5x9x128xbf16, #tpu.memory_space<vmem>>, %arg4: memref<1x5x9x128xbf16, #tpu.memory_space<vmem>>, %arg5: memref<1x5x9x128xbf16, #tpu.memory_space<vmem>>, %arg6: memref<2048x128xbf16, #tpu.memory_space<vmem>>, %arg7: memref<1x4x8x128xbf16, #tpu.memory_space<vmem>>, %arg8: memref<1x2x128xf32, #tpu.memory_space<vmem>>, %arg9: memref<32x2048xbf16, #tpu.memory_space<vmem>>) attributes {dimension_semantics = [#tpu.dimension_semantics<parallel>, #tpu.dimension_semantics<parallel>], iteration_bounds = array<i64: 2, 1>, scalar_prefetch = 0 : i64, scratch_operands = 1 : i64, tpu.core_type = #tpu.core_type<tc>, window_params = [{transform_indices = @transform_0, window_bounds = array<i64: 1, 5, 9, 128>}, {transform_indices = @transform_1, window_bounds = array<i64: 1, 5, 9, 128>}, {transform_indices = @transform_2, window_bounds = array<i64: 1, 5, 9, 128>}, {transform_indices = @transform_3, window_bounds = array<i64: 1, 5, 9, 128>}, {transform_indices = @transform_4, window_bounds = array<i64: 2048, 128>}, {transform_indices = @transform_5, window_bounds = array<i64: 1, 4, 8, 128>}, {transform_indices = @transform_6, window_bounds = array<i64: 1, 2, 128>}]} {
    %c0 = arith.constant 0 : index
    %c0_0 = arith.constant 0 : index
    %c0_1 = arith.constant 0 : index
    %c0_2 = arith.constant 0 : index
    %0 = vector.load %arg2[%c0, %c0_0, %c0_1, %c0_2] : memref<1x5x9x128xbf16, #tpu.memory_space<vmem>>, vector<1x4x8x128xbf16>
    %1 = vector.shape_cast %0 : vector<1x4x8x128xbf16> to vector<32x128xbf16>
    %c0_3 = arith.constant 0 : index
    %c0_4 = arith.constant 0 : index
    %2 = vector.load %arg9[%c0_3, %c0_4] : memref<32x2048xbf16, #tpu.memory_space<vmem>>, vector<32x128xbf16>
    tpu.vector_store %arg9[%c0_3, %c0_4], %1 {strides = array<i32>} : memref<32x2048xbf16, #tpu.memory_space<vmem>>, vector<32x128xbf16>,
    %c0_5 = arith.constant 0 : index
    %c0_6 = arith.constant 0 : index
    %c1 = arith.constant 1 : index
    %c0_7 = arith.constant 0 : index
    %3 = vector.load %arg2[%c0_5, %c0_6, %c1, %c0_7] : memref<1x5x9x128xbf16, #tpu.memory_space<vmem>>, vector<1x4x8x128xbf16>
    %4 = vector.shape_cast %3 : vector<1x4x8x128xbf16> to vector<32x128xbf16>
    %c0_8 = arith.constant 0 : index
    %c256 = arith.constant 256 : index
    %5 = vector.load %arg9[%c0_8, %c256] : memref<32x2048xbf16, #tpu.memory_space<vmem>>, vector<32x128xbf16>
    tpu.vector_store %arg9[%c0_8, %c256], %4 {strides = array<i32>} : memref<32x2048xbf16, #tpu.memory_space<vmem>>, vector<32x128xbf16>,
    %c0_9 = arith.constant 0 : index
    %c1_10 = arith.constant 1 : index
    %c0_11 = arith.constant 0 : index
    %c0_12 = arith.constant 0 : index
    %6 = vector.load %arg2[%c0_9, %c1_10, %c0_11, %c0_12] : memref<1x5x9x128xbf16, #tpu.memory_space<vmem>>, vector<1x4x8x128xbf16>
    %7 = vector.shape_cast %6 : vector<1x4x8x128xbf16> to vector<32x128xbf16>
    %c0_13 = arith.constant 0 : index
    %c1024 = arith.constant 1024 : index
    %8 = vector.load %arg9[%c0_13, %c1024] : memref<32x2048xbf16, #tpu.memory_space<vmem>>, vector<32x128xbf16>
    tpu.vector_store %arg9[%c0_13, %c1024], %7 {strides = array<i32>} : memref<32x2048xbf16, #tpu.memory_space<vmem>>, vector<32x128xbf16>,
    %c0_14 = arith.constant 0 : index
    %c1_15 = arith.constant 1 : index
    %c1_16 = arith.constant 1 : index
    %c0_17 = arith.constant 0 : index
    %9 = vector.load %arg2[%c0_14, %c1_15, %c1_16, %c0_17] : memref<1x5x9x128xbf16, #tpu.memory_space<vmem>>, vector<1x4x8x128xbf16>
    %10 = vector.shape_cast %9 : vector<1x4x8x128xbf16> to vector<32x128xbf16>
    %c0_18 = arith.constant 0 : index
    %c1280 = arith.constant 1280 : index
    %11 = vector.load %arg9[%c0_18, %c1280] : memref<32x2048xbf16, #tpu.memory_space<vmem>>, vector<32x128xbf16>
    tpu.vector_store %arg9[%c0_18, %c1280], %10 {strides = array<i32>} : memref<32x2048xbf16, #tpu.memory_space<vmem>>, vector<32x128xbf16>,
    %c0_19 = arith.constant 0 : index
    %c0_20 = arith.constant 0 : index
    %c0_21 = arith.constant 0 : index
    %c0_22 = arith.constant 0 : index
    %12 = vector.load %arg3[%c0_19, %c0_20, %c0_21, %c0_22] : memref<1x5x9x128xbf16, #tpu.memory_space<vmem>>, vector<1x4x8x128xbf16>
    %13 = vector.shape_cast %12 : vector<1x4x8x128xbf16> to vector<32x128xbf16>
    %c0_23 = arith.constant 0 : index
    %c128 = arith.constant 128 : index
    %14 = vector.load %arg9[%c0_23, %c128] : memref<32x2048xbf16, #tpu.memory_space<vmem>>, vector<32x128xbf16>
    tpu.vector_store %arg9[%c0_23, %c128], %13 {strides = array<i32>} : memref<32x2048xbf16, #tpu.memory_space<vmem>>, vector<32x128xbf16>,
    %c0_24 = arith.constant 0 : index
    %c0_25 = arith.constant 0 : index
    %c1_26 = arith.constant 1 : index
    %c0_27 = arith.constant 0 : index
    %15 = vector.load %arg3[%c0_24, %c0_25, %c1_26, %c0_27] : memref<1x5x9x128xbf16, #tpu.memory_space<vmem>>, vector<1x4x8x128xbf16>
    %16 = vector.shape_cast %15 : vector<1x4x8x128xbf16> to vector<32x128xbf16>
    %c0_28 = arith.constant 0 : index
    %c384 = arith.constant 384 : index
    %17 = vector.load %arg9[%c0_28, %c384] : memref<32x2048xbf16, #tpu.memory_space<vmem>>, vector<32x128xbf16>
    tpu.vector_store %arg9[%c0_28, %c384], %16 {strides = array<i32>} : memref<32x2048xbf16, #tpu.memory_space<vmem>>, vector<32x128xbf16>,
    %c0_29 = arith.constant 0 : index
    %c1_30 = arith.constant 1 : index
    %c0_31 = arith.constant 0 : index
    %c0_32 = arith.constant 0 : index
    %18 = vector.load %arg3[%c0_29, %c1_30, %c0_31, %c0_32] : memref<1x5x9x128xbf16, #tpu.memory_space<vmem>>, vector<1x4x8x128xbf16>
    %19 = vector.shape_cast %18 : vector<1x4x8x128xbf16> to vector<32x128xbf16>
    %c0_33 = arith.constant 0 : index
    %c1152 = arith.constant 1152 : index
    %20 = vector.load %arg9[%c0_33, %c1152] : memref<32x2048xbf16, #tpu.memory_space<vmem>>, vector<32x128xbf16>
    tpu.vector_store %arg9[%c0_33, %c1152], %19 {strides = array<i32>} : memref<32x2048xbf16, #tpu.memory_space<vmem>>, vector<32x128xbf16>,
    %c0_34 = arith.constant 0 : index
    %c1_35 = arith.constant 1 : index
    %c1_36 = arith.constant 1 : index
    %c0_37 = arith.constant 0 : index
    %21 = vector.load %arg3[%c0_34, %c1_35, %c1_36, %c0_37] : memref<1x5x9x128xbf16, #tpu.memory_space<vmem>>, vector<1x4x8x128xbf16>
    %22 = vector.shape_cast %21 : vector<1x4x8x128xbf16> to vector<32x128xbf16>
    %c0_38 = arith.constant 0 : index
    %c1408 = arith.constant 1408 : index
    %23 = vector.load %arg9[%c0_38, %c1408] : memref<32x2048xbf16, #tpu.memory_space<vmem>>, vector<32x128xbf16>
    tpu.vector_store %arg9[%c0_38, %c1408], %22 {strides = array<i32>} : memref<32x2048xbf16, #tpu.memory_space<vmem>>, vector<32x128xbf16>,
    %c0_39 = arith.constant 0 : index
    %c0_40 = arith.constant 0 : index
    %c0_41 = arith.constant 0 : index
    %c0_42 = arith.constant 0 : index
    %24 = vector.load %arg4[%c0_39, %c0_40, %c0_41, %c0_42] : memref<1x5x9x128xbf16, #tpu.memory_space<vmem>>, vector<1x4x8x128xbf16>
    %25 = vector.shape_cast %24 : vector<1x4x8x128xbf16> to vector<32x128xbf16>
    %c0_43 = arith.constant 0 : index
    %c512 = arith.constant 512 : index
    %26 = vector.load %arg9[%c0_43, %c512] : memref<32x2048xbf16, #tpu.memory_space<vmem>>, vector<32x128xbf16>
    tpu.vector_store %arg9[%c0_43, %c512], %25 {strides = array<i32>} : memref<32x2048xbf16, #tpu.memory_space<vmem>>, vector<32x128xbf16>,
    %c0_44 = arith.constant 0 : index
    %c0_45 = arith.constant 0 : index
    %c1_46 = arith.constant 1 : index
    %c0_47 = arith.constant 0 : index
    %27 = vector.load %arg4[%c0_44, %c0_45, %c1_46, %c0_47] : memref<1x5x9x128xbf16, #tpu.memory_space<vmem>>, vector<1x4x8x128xbf16>
    %28 = vector.shape_cast %27 : vector<1x4x8x128xbf16> to vector<32x128xbf16>
    %c0_48 = arith.constant 0 : index
    %c768 = arith.constant 768 : index
    %29 = vector.load %arg9[%c0_48, %c768] : memref<32x2048xbf16, #tpu.memory_space<vmem>>, vector<32x128xbf16>
    tpu.vector_store %arg9[%c0_48, %c768], %28 {strides = array<i32>} : memref<32x2048xbf16, #tpu.memory_space<vmem>>, vector<32x128xbf16>,
    %c0_49 = arith.constant 0 : index
    %c1_50 = arith.constant 1 : index
    %c0_51 = arith.constant 0 : index
    %c0_52 = arith.constant 0 : index
    %30 = vector.load %arg4[%c0_49, %c1_50, %c0_51, %c0_52] : memref<1x5x9x128xbf16, #tpu.memory_space<vmem>>, vector<1x4x8x128xbf16>
    %31 = vector.shape_cast %30 : vector<1x4x8x128xbf16> to vector<32x128xbf16>
    %c0_53 = arith.constant 0 : index
    %c1536 = arith.constant 1536 : index
    %32 = vector.load %arg9[%c0_53, %c1536] : memref<32x2048xbf16, #tpu.memory_space<vmem>>, vector<32x128xbf16>
    tpu.vector_store %arg9[%c0_53, %c1536], %31 {strides = array<i32>} : memref<32x2048xbf16, #tpu.memory_space<vmem>>, vector<32x128xbf16>,
    %c0_54 = arith.constant 0 : index
    %c1_55 = arith.constant 1 : index
    %c1_56 = arith.constant 1 : index
    %c0_57 = arith.constant 0 : index
    %33 = vector.load %arg4[%c0_54, %c1_55, %c1_56, %c0_57] : memref<1x5x9x128xbf16, #tpu.memory_space<vmem>>, vector<1x4x8x128xbf16>
    %34 = vector.shape_cast %33 : vector<1x4x8x128xbf16> to vector<32x128xbf16>
    %c0_58 = arith.constant 0 : index
    %c1792 = arith.constant 1792 : index
    %35 = vector.load %arg9[%c0_58, %c1792] : memref<32x2048xbf16, #tpu.memory_space<vmem>>, vector<32x128xbf16>
    tpu.vector_store %arg9[%c0_58, %c1792], %34 {strides = array<i32>} : memref<32x2048xbf16, #tpu.memory_space<vmem>>, vector<32x128xbf16>,
    %c0_59 = arith.constant 0 : index
    %c0_60 = arith.constant 0 : index
    %c0_61 = arith.constant 0 : index
    %c0_62 = arith.constant 0 : index
    %36 = vector.load %arg5[%c0_59, %c0_60, %c0_61, %c0_62] : memref<1x5x9x128xbf16, #tpu.memory_space<vmem>>, vector<1x4x8x128xbf16>
    %37 = vector.shape_cast %36 : vector<1x4x8x128xbf16> to vector<32x128xbf16>
    %c0_63 = arith.constant 0 : index
    %c640 = arith.constant 640 : index
    %38 = vector.load %arg9[%c0_63, %c640] : memref<32x2048xbf16, #tpu.memory_space<vmem>>, vector<32x128xbf16>
    tpu.vector_store %arg9[%c0_63, %c640], %37 {strides = array<i32>} : memref<32x2048xbf16, #tpu.memory_space<vmem>>, vector<32x128xbf16>,
    %c0_64 = arith.constant 0 : index
    %c0_65 = arith.constant 0 : index
    %c1_66 = arith.constant 1 : index
    %c0_67 = arith.constant 0 : index
    %39 = vector.load %arg5[%c0_64, %c0_65, %c1_66, %c0_67] : memref<1x5x9x128xbf16, #tpu.memory_space<vmem>>, vector<1x4x8x128xbf16>
    %40 = vector.shape_cast %39 : vector<1x4x8x128xbf16> to vector<32x128xbf16>
    %c0_68 = arith.constant 0 : index
    %c896 = arith.constant 896 : index
    %41 = vector.load %arg9[%c0_68, %c896] : memref<32x2048xbf16, #tpu.memory_space<vmem>>, vector<32x128xbf16>
    tpu.vector_store %arg9[%c0_68, %c896], %40 {strides = array<i32>} : memref<32x2048xbf16, #tpu.memory_space<vmem>>, vector<32x128xbf16>,
    %c0_69 = arith.constant 0 : index
    %c1_70 = arith.constant 1 : index
    %c0_71 = arith.constant 0 : index
    %c0_72 = arith.constant 0 : index
    %42 = vector.load %arg5[%c0_69, %c1_70, %c0_71, %c0_72] : memref<1x5x9x128xbf16, #tpu.memory_space<vmem>>, vector<1x4x8x128xbf16>
    %43 = vector.shape_cast %42 : vector<1x4x8x128xbf16> to vector<32x128xbf16>
    %c0_73 = arith.constant 0 : index
    %c1664 = arith.constant 1664 : index
    %44 = vector.load %arg9[%c0_73, %c1664] : memref<32x2048xbf16, #tpu.memory_space<vmem>>, vector<32x128xbf16>
    tpu.vector_store %arg9[%c0_73, %c1664], %43 {strides = array<i32>} : memref<32x2048xbf16, #tpu.memory_space<vmem>>, vector<32x128xbf16>,
    %c0_74 = arith.constant 0 : index
    %c1_75 = arith.constant 1 : index
    %c1_76 = arith.constant 1 : index
    %c0_77 = arith.constant 0 : index
    %45 = vector.load %arg5[%c0_74, %c1_75, %c1_76, %c0_77] : memref<1x5x9x128xbf16, #tpu.memory_space<vmem>>, vector<1x4x8x128xbf16>
    %46 = vector.shape_cast %45 : vector<1x4x8x128xbf16> to vector<32x128xbf16>
    %c0_78 = arith.constant 0 : index
    %c1920 = arith.constant 1920 : index
    %47 = vector.load %arg9[%c0_78, %c1920] : memref<32x2048xbf16, #tpu.memory_space<vmem>>, vector<32x128xbf16>
    tpu.vector_store %arg9[%c0_78, %c1920], %46 {strides = array<i32>} : memref<32x2048xbf16, #tpu.memory_space<vmem>>, vector<32x128xbf16>,
    %c0_79 = arith.constant 0 : index
    %c0_80 = arith.constant 0 : index
    %48 = vector.load %arg9[%c0_79, %c0_80] : memref<32x2048xbf16, #tpu.memory_space<vmem>>, vector<32x2048xbf16>
    %c0_81 = arith.constant 0 : index
    %c0_82 = arith.constant 0 : index
    %49 = vector.load %arg6[%c0_81, %c0_82] : memref<2048x128xbf16, #tpu.memory_space<vmem>>, vector<2048x128xbf16>
    %cst = arith.constant dense<0.000000e+00> : vector<32x128xf32>
    %50 = tpu.matmul %48, %49, %cst {dimension_numbers = #tpu.dot_dimension_numbers<[1], [0], [0], [1], [0, 0, 1, 1], [], []>} : vector<32x2048xbf16>, vector<2048x128xbf16>, vector<32x128xf32> -> vector<32x128xf32>
    %51 = vector.shape_cast %50 : vector<32x128xf32> to vector<1x4x8x128xf32>
    %52 = tpu.iota {dimensions = array<i32: 2>} : vector<1x1x8x128xi32>
    %c4_i32 = arith.constant 4 : i32
    %53 = vector.broadcast %c4_i32 : i32 to vector<1x1x8x128xi32>
    %54 = arith.cmpi slt, %52, %53 : vector<1x1x8x128xi32>
    %cst_83 = arith.constant 0.000000e+00 : f32
    %55 = vector.shape_cast %54 : vector<1x1x8x128xi1> to vector<1x1x8x128xi1>
    %56 = vector.broadcast %55 : vector<1x1x8x128xi1> to vector<1x4x8x128xi1>
    %57 = vector.broadcast %cst_83 : f32 to vector<1x4x8x128xf32>
    %58 = arith.select %56, %51, %57 : vector<1x4x8x128xi1>, vector<1x4x8x128xf32>
    %cst_84 = arith.constant dense<0.000000e+00> : vector<128xf32>
    %59 = vector.multi_reduction <add>, %58, %cst_84 [0, 1, 2] : vector<1x4x8x128xf32> to vector<128xf32>
    %60 = vector.shape_cast %59 : vector<128xf32> to vector<1x1x1x128xf32>
    %61 = vector.shape_cast %60 : vector<1x1x1x128xf32> to vector<1x1x128xf32>
    %c0_85 = arith.constant 0 : index
    %c0_86 = arith.constant 0 : index
    %c0_87 = arith.constant 0 : index
    %62 = vector.load %arg8[%c0_85, %c0_86, %c0_87] : memref<1x2x128xf32, #tpu.memory_space<vmem>>, vector<1x1x128xf32>
    tpu.vector_store %arg8[%c0_85, %c0_86, %c0_87], %61 {strides = array<i32>} : memref<1x2x128xf32, #tpu.memory_space<vmem>>, vector<1x1x128xf32>,
    %63 = arith.mulf %58, %58 : vector<1x4x8x128xf32>
    %cst_88 = arith.constant dense<0.000000e+00> : vector<128xf32>
    %64 = vector.multi_reduction <add>, %63, %cst_88 [0, 1, 2] : vector<1x4x8x128xf32> to vector<128xf32>
    %65 = vector.shape_cast %64 : vector<128xf32> to vector<1x1x1x128xf32>
    %66 = vector.shape_cast %65 : vector<1x1x1x128xf32> to vector<1x1x128xf32>
    %c0_89 = arith.constant 0 : index
    %c1_90 = arith.constant 1 : index
    %c0_91 = arith.constant 0 : index
    %67 = vector.load %arg8[%c0_89, %c1_90, %c0_91] : memref<1x2x128xf32, #tpu.memory_space<vmem>>, vector<1x1x128xf32>
    tpu.vector_store %arg8[%c0_89, %c1_90, %c0_91], %66 {strides = array<i32>} : memref<1x2x128xf32, #tpu.memory_space<vmem>>, vector<1x1x128xf32>,
    %68 = arith.truncf %58 : vector<1x4x8x128xf32> to vector<1x4x8x128xbf16>
    %c0_92 = arith.constant 0 : index
    %c0_93 = arith.constant 0 : index
    %c0_94 = arith.constant 0 : index
    %c0_95 = arith.constant 0 : index
    %69 = vector.load %arg7[%c0_92, %c0_93, %c0_94, %c0_95] : memref<1x4x8x128xbf16, #tpu.memory_space<vmem>>, vector<1x4x8x128xbf16>
    tpu.vector_store %arg7[%c0_92, %c0_93, %c0_94, %c0_95], %68 {strides = array<i32>} : memref<1x4x8x128xbf16, #tpu.memory_space<vmem>>, vector<1x4x8x128xbf16>,
    return
  }
  func.func @transform_0(%arg0: i32, %arg1: i32) -> (i32, i32, i32, i32) {
    %c0_i32 = arith.constant 0 : i32
    %c0_i32_0 = arith.constant 0 : i32
    %c0_i32_1 = arith.constant 0 : i32
    %c0_i32_2 = arith.constant 0 : i32
    return %arg0, %c0_i32, %c0_i32_0, %c0_i32_1 : i32, i32, i32, i32
  }
  func.func @transform_1(%arg0: i32, %arg1: i32) -> (i32, i32, i32, i32) {
    %c0_i32 = arith.constant 0 : i32
    %c0_i32_0 = arith.constant 0 : i32
    %c0_i32_1 = arith.constant 0 : i32
    %c0_i32_2 = arith.constant 0 : i32
    return %arg0, %c0_i32, %c0_i32_0, %c0_i32_1 : i32, i32, i32, i32
  }
  func.func @transform_2(%arg0: i32, %arg1: i32) -> (i32, i32, i32, i32) {
    %c0_i32 = arith.constant 0 : i32
    %c0_i32_0 = arith.constant 0 : i32
    %c0_i32_1 = arith.constant 0 : i32
    %c0_i32_2 = arith.constant 0 : i32
    return %arg0, %c0_i32, %c0_i32_0, %c0_i32_1 : i32, i32, i32, i32
  }
  func.func @transform_3(%arg0: i32, %arg1: i32) -> (i32, i32, i32, i32) {
    %c0_i32 = arith.constant 0 : i32
    %c0_i32_0 = arith.constant 0 : i32
    %c0_i32_1 = arith.constant 0 : i32
    %c0_i32_2 = arith.constant 0 : i32
    return %arg0, %c0_i32, %c0_i32_0, %c0_i32_1 : i32, i32, i32, i32
  }
  func.func @transform_4(%arg0: i32, %arg1: i32) -> (i32, i32) {
    %c0_i32 = arith.constant 0 : i32
    %c0_i32_0 = arith.constant 0 : i32
    return %c0_i32, %arg1 : i32, i32
  }
  func.func @transform_5(%arg0: i32, %arg1: i32) -> (i32, i32, i32, i32) {
    %c0_i32 = arith.constant 0 : i32
    %c0_i32_0 = arith.constant 0 : i32
    %c0_i32_1 = arith.constant 0 : i32
    return %arg0, %c0_i32, %c0_i32_0, %arg1 : i32, i32, i32, i32
  }
  func.func @transform_6(%arg0: i32, %arg1: i32) -> (i32, i32, i32) {
    %c0_i32 = arith.constant 0 : i32
    %c0_i32_0 = arith.constant 0 : i32
    return %arg0, %c0_i32, %arg1 : i32, i32, i32
  }
}

module attributes {stable_mosaic.version = 11 : i64} {
  func.func @_conv_kernel(%arg0: i32, %arg1: i32, %arg2: memref<1x4x11x128xbf16, #tpu.memory_space<vmem>>, %arg3: memref<2048x128xbf16, #tpu.memory_space<vmem>>, %arg4: memref<1x128xf32, #tpu.memory_space<vmem>>, %arg5: memref<1x128xf32, #tpu.memory_space<vmem>>, %arg6: memref<1x1x8x128xf32, #tpu.memory_space<vmem>>, %arg7: memref<1x2x128xf32, #tpu.memory_space<vmem>>, %arg8: memref<8x2048xbf16, #tpu.memory_space<vmem>>, %arg9: memref<1x4x11x128xbf16, #tpu.memory_space<vmem>>) attributes {dimension_semantics = [#tpu.dimension_semantics<parallel>, #tpu.dimension_semantics<parallel>], iteration_bounds = array<i64: 2, 1>, scalar_prefetch = 0 : i64, scratch_operands = 2 : i64, tpu.core_type = #tpu.core_type<tc>, window_params = [{transform_indices = @transform_0, window_bounds = array<i64: 1, 4, 11, 128>}, {transform_indices = @transform_1, window_bounds = array<i64: 2048, 128>}, {pipeline_mode = #tpu.pipeline_mode<synchronous>, transform_indices = @transform_2, window_bounds = array<i64: 1, 128>}, {pipeline_mode = #tpu.pipeline_mode<synchronous>, transform_indices = @transform_3, window_bounds = array<i64: 1, 128>}, {transform_indices = @transform_4, window_bounds = array<i64: 1, 1, 8, 128>}, {transform_indices = @transform_5, window_bounds = array<i64: 1, 2, 128>}]} {
    %c0 = arith.constant 0 : index
    %c0_0 = arith.constant 0 : index
    %0 = vector.load %arg4[%c0, %c0_0] : memref<1x128xf32, #tpu.memory_space<vmem>>, vector<1x128xf32>
    %1 = vector.shape_cast %0 : vector<1x128xf32> to vector<1x1x1x128xf32>
    %c0_1 = arith.constant 0 : index
    %c0_2 = arith.constant 0 : index
    %2 = vector.load %arg5[%c0_1, %c0_2] : memref<1x128xf32, #tpu.memory_space<vmem>>, vector<1x128xf32>
    %3 = vector.shape_cast %2 : vector<1x128xf32> to vector<1x1x1x128xf32>
    %c0_3 = arith.constant 0 : index
    %c0_4 = arith.constant 0 : index
    %c0_5 = arith.constant 0 : index
    %c0_6 = arith.constant 0 : index
    %4 = vector.load %arg2[%c0_3, %c0_4, %c0_5, %c0_6] : memref<1x4x11x128xbf16, #tpu.memory_space<vmem>>, vector<1x4x11x128xbf16>
    %5 = arith.extf %4 : vector<1x4x11x128xbf16> to vector<1x4x11x128xf32>
    %6 = vector.broadcast %1 : vector<1x1x1x128xf32> to vector<1x4x11x128xf32>
    %7 = arith.mulf %5, %6 : vector<1x4x11x128xf32>
    %8 = vector.broadcast %3 : vector<1x1x1x128xf32> to vector<1x4x11x128xf32>
    %9 = arith.addf %7, %8 : vector<1x4x11x128xf32>
    %cst = arith.constant 0.000000e+00 : f32
    %10 = vector.broadcast %cst : f32 to vector<1x4x11x128xf32>
    %11 = arith.cmpf oge, %9, %10 : vector<1x4x11x128xf32>
    %cst_7 = arith.constant 2.000000e-01 : f32
    %12 = vector.broadcast %cst_7 : f32 to vector<1x4x11x128xf32>
    %13 = arith.mulf %12, %9 : vector<1x4x11x128xf32>
    %14 = arith.select %11, %9, %13 : vector<1x4x11x128xi1>, vector<1x4x11x128xf32>
    %15 = tpu.iota {dimensions = array<i32: 1>} : vector<1x4x11x128xi32>
    %16 = tpu.iota {dimensions = array<i32: 2>} : vector<1x4x11x128xi32>
    %c0_i32 = arith.constant 0 : i32
    %17 = vector.broadcast %c0_i32 : i32 to vector<1x4x11x128xi32>
    %18 = arith.cmpi sge, %15, %17 : vector<1x4x11x128xi32>
    %c4_i32 = arith.constant 4 : i32
    %19 = vector.broadcast %c4_i32 : i32 to vector<1x4x11x128xi32>
    %20 = arith.cmpi slt, %15, %19 : vector<1x4x11x128xi32>
    %21 = arith.andi %18, %20 : vector<1x4x11x128xi1>
    %c0_i32_8 = arith.constant 0 : i32
    %22 = vector.broadcast %c0_i32_8 : i32 to vector<1x4x11x128xi32>
    %23 = arith.cmpi sge, %16, %22 : vector<1x4x11x128xi32>
    %24 = arith.andi %21, %23 : vector<1x4x11x128xi1>
    %c4_i32_9 = arith.constant 4 : i32
    %25 = vector.broadcast %c4_i32_9 : i32 to vector<1x4x11x128xi32>
    %26 = arith.cmpi slt, %16, %25 : vector<1x4x11x128xi32>
    %27 = arith.andi %24, %26 : vector<1x4x11x128xi1>
    %cst_10 = arith.constant 0.000000e+00 : f32
    %28 = vector.broadcast %cst_10 : f32 to vector<1x4x11x128xf32>
    %29 = arith.select %27, %14, %28 : vector<1x4x11x128xi1>, vector<1x4x11x128xf32>
    %30 = arith.truncf %29 : vector<1x4x11x128xf32> to vector<1x4x11x128xbf16>
    %c0_11 = arith.constant 0 : index
    %c0_12 = arith.constant 0 : index
    %c0_13 = arith.constant 0 : index
    %c0_14 = arith.constant 0 : index
    %31 = vector.load %arg9[%c0_11, %c0_12, %c0_13, %c0_14] : memref<1x4x11x128xbf16, #tpu.memory_space<vmem>>, vector<1x4x11x128xbf16>
    tpu.vector_store %arg9[%c0_11, %c0_12, %c0_13, %c0_14], %30 {strides = array<i32>} : memref<1x4x11x128xbf16, #tpu.memory_space<vmem>>, vector<1x4x11x128xbf16>,
    %c0_15 = arith.constant 0 : index
    %c0_16 = arith.constant 0 : index
    %c0_17 = arith.constant 0 : index
    %c0_18 = arith.constant 0 : index
    %32 = vector.load %arg9[%c0_15, %c0_16, %c0_17, %c0_18] : memref<1x4x11x128xbf16, #tpu.memory_space<vmem>>, vector<1x1x8x128xbf16>
    %33 = vector.shape_cast %32 : vector<1x1x8x128xbf16> to vector<8x128xbf16>
    %c0_19 = arith.constant 0 : index
    %c0_20 = arith.constant 0 : index
    %34 = vector.load %arg8[%c0_19, %c0_20] : memref<8x2048xbf16, #tpu.memory_space<vmem>>, vector<8x128xbf16>
    tpu.vector_store %arg8[%c0_19, %c0_20], %33 {strides = array<i32>} : memref<8x2048xbf16, #tpu.memory_space<vmem>>, vector<8x128xbf16>,
    %c0_21 = arith.constant 0 : index
    %c0_22 = arith.constant 0 : index
    %c1 = arith.constant 1 : index
    %c0_23 = arith.constant 0 : index
    %35 = vector.load %arg9[%c0_21, %c0_22, %c1, %c0_23] : memref<1x4x11x128xbf16, #tpu.memory_space<vmem>>, vector<1x1x8x128xbf16>
    %36 = vector.shape_cast %35 : vector<1x1x8x128xbf16> to vector<8x128xbf16>
    %c0_24 = arith.constant 0 : index
    %c128 = arith.constant 128 : index
    %37 = vector.load %arg8[%c0_24, %c128] : memref<8x2048xbf16, #tpu.memory_space<vmem>>, vector<8x128xbf16>
    tpu.vector_store %arg8[%c0_24, %c128], %36 {strides = array<i32>} : memref<8x2048xbf16, #tpu.memory_space<vmem>>, vector<8x128xbf16>,
    %c0_25 = arith.constant 0 : index
    %c0_26 = arith.constant 0 : index
    %c2 = arith.constant 2 : index
    %c0_27 = arith.constant 0 : index
    %38 = vector.load %arg9[%c0_25, %c0_26, %c2, %c0_27] : memref<1x4x11x128xbf16, #tpu.memory_space<vmem>>, vector<1x1x8x128xbf16>
    %39 = vector.shape_cast %38 : vector<1x1x8x128xbf16> to vector<8x128xbf16>
    %c0_28 = arith.constant 0 : index
    %c256 = arith.constant 256 : index
    %40 = vector.load %arg8[%c0_28, %c256] : memref<8x2048xbf16, #tpu.memory_space<vmem>>, vector<8x128xbf16>
    tpu.vector_store %arg8[%c0_28, %c256], %39 {strides = array<i32>} : memref<8x2048xbf16, #tpu.memory_space<vmem>>, vector<8x128xbf16>,
    %c0_29 = arith.constant 0 : index
    %c0_30 = arith.constant 0 : index
    %c3 = arith.constant 3 : index
    %c0_31 = arith.constant 0 : index
    %41 = vector.load %arg9[%c0_29, %c0_30, %c3, %c0_31] : memref<1x4x11x128xbf16, #tpu.memory_space<vmem>>, vector<1x1x8x128xbf16>
    %42 = vector.shape_cast %41 : vector<1x1x8x128xbf16> to vector<8x128xbf16>
    %c0_32 = arith.constant 0 : index
    %c384 = arith.constant 384 : index
    %43 = vector.load %arg8[%c0_32, %c384] : memref<8x2048xbf16, #tpu.memory_space<vmem>>, vector<8x128xbf16>
    tpu.vector_store %arg8[%c0_32, %c384], %42 {strides = array<i32>} : memref<8x2048xbf16, #tpu.memory_space<vmem>>, vector<8x128xbf16>,
    %c0_33 = arith.constant 0 : index
    %c1_34 = arith.constant 1 : index
    %c0_35 = arith.constant 0 : index
    %c0_36 = arith.constant 0 : index
    %44 = vector.load %arg9[%c0_33, %c1_34, %c0_35, %c0_36] : memref<1x4x11x128xbf16, #tpu.memory_space<vmem>>, vector<1x1x8x128xbf16>
    %45 = vector.shape_cast %44 : vector<1x1x8x128xbf16> to vector<8x128xbf16>
    %c0_37 = arith.constant 0 : index
    %c512 = arith.constant 512 : index
    %46 = vector.load %arg8[%c0_37, %c512] : memref<8x2048xbf16, #tpu.memory_space<vmem>>, vector<8x128xbf16>
    tpu.vector_store %arg8[%c0_37, %c512], %45 {strides = array<i32>} : memref<8x2048xbf16, #tpu.memory_space<vmem>>, vector<8x128xbf16>,
    %c0_38 = arith.constant 0 : index
    %c1_39 = arith.constant 1 : index
    %c1_40 = arith.constant 1 : index
    %c0_41 = arith.constant 0 : index
    %47 = vector.load %arg9[%c0_38, %c1_39, %c1_40, %c0_41] : memref<1x4x11x128xbf16, #tpu.memory_space<vmem>>, vector<1x1x8x128xbf16>
    %48 = vector.shape_cast %47 : vector<1x1x8x128xbf16> to vector<8x128xbf16>
    %c0_42 = arith.constant 0 : index
    %c640 = arith.constant 640 : index
    %49 = vector.load %arg8[%c0_42, %c640] : memref<8x2048xbf16, #tpu.memory_space<vmem>>, vector<8x128xbf16>
    tpu.vector_store %arg8[%c0_42, %c640], %48 {strides = array<i32>} : memref<8x2048xbf16, #tpu.memory_space<vmem>>, vector<8x128xbf16>,
    %c0_43 = arith.constant 0 : index
    %c1_44 = arith.constant 1 : index
    %c2_45 = arith.constant 2 : index
    %c0_46 = arith.constant 0 : index
    %50 = vector.load %arg9[%c0_43, %c1_44, %c2_45, %c0_46] : memref<1x4x11x128xbf16, #tpu.memory_space<vmem>>, vector<1x1x8x128xbf16>
    %51 = vector.shape_cast %50 : vector<1x1x8x128xbf16> to vector<8x128xbf16>
    %c0_47 = arith.constant 0 : index
    %c768 = arith.constant 768 : index
    %52 = vector.load %arg8[%c0_47, %c768] : memref<8x2048xbf16, #tpu.memory_space<vmem>>, vector<8x128xbf16>
    tpu.vector_store %arg8[%c0_47, %c768], %51 {strides = array<i32>} : memref<8x2048xbf16, #tpu.memory_space<vmem>>, vector<8x128xbf16>,
    %c0_48 = arith.constant 0 : index
    %c1_49 = arith.constant 1 : index
    %c3_50 = arith.constant 3 : index
    %c0_51 = arith.constant 0 : index
    %53 = vector.load %arg9[%c0_48, %c1_49, %c3_50, %c0_51] : memref<1x4x11x128xbf16, #tpu.memory_space<vmem>>, vector<1x1x8x128xbf16>
    %54 = vector.shape_cast %53 : vector<1x1x8x128xbf16> to vector<8x128xbf16>
    %c0_52 = arith.constant 0 : index
    %c896 = arith.constant 896 : index
    %55 = vector.load %arg8[%c0_52, %c896] : memref<8x2048xbf16, #tpu.memory_space<vmem>>, vector<8x128xbf16>
    tpu.vector_store %arg8[%c0_52, %c896], %54 {strides = array<i32>} : memref<8x2048xbf16, #tpu.memory_space<vmem>>, vector<8x128xbf16>,
    %c0_53 = arith.constant 0 : index
    %c2_54 = arith.constant 2 : index
    %c0_55 = arith.constant 0 : index
    %c0_56 = arith.constant 0 : index
    %56 = vector.load %arg9[%c0_53, %c2_54, %c0_55, %c0_56] : memref<1x4x11x128xbf16, #tpu.memory_space<vmem>>, vector<1x1x8x128xbf16>
    %57 = vector.shape_cast %56 : vector<1x1x8x128xbf16> to vector<8x128xbf16>
    %c0_57 = arith.constant 0 : index
    %c1024 = arith.constant 1024 : index
    %58 = vector.load %arg8[%c0_57, %c1024] : memref<8x2048xbf16, #tpu.memory_space<vmem>>, vector<8x128xbf16>
    tpu.vector_store %arg8[%c0_57, %c1024], %57 {strides = array<i32>} : memref<8x2048xbf16, #tpu.memory_space<vmem>>, vector<8x128xbf16>,
    %c0_58 = arith.constant 0 : index
    %c2_59 = arith.constant 2 : index
    %c1_60 = arith.constant 1 : index
    %c0_61 = arith.constant 0 : index
    %59 = vector.load %arg9[%c0_58, %c2_59, %c1_60, %c0_61] : memref<1x4x11x128xbf16, #tpu.memory_space<vmem>>, vector<1x1x8x128xbf16>
    %60 = vector.shape_cast %59 : vector<1x1x8x128xbf16> to vector<8x128xbf16>
    %c0_62 = arith.constant 0 : index
    %c1152 = arith.constant 1152 : index
    %61 = vector.load %arg8[%c0_62, %c1152] : memref<8x2048xbf16, #tpu.memory_space<vmem>>, vector<8x128xbf16>
    tpu.vector_store %arg8[%c0_62, %c1152], %60 {strides = array<i32>} : memref<8x2048xbf16, #tpu.memory_space<vmem>>, vector<8x128xbf16>,
    %c0_63 = arith.constant 0 : index
    %c2_64 = arith.constant 2 : index
    %c2_65 = arith.constant 2 : index
    %c0_66 = arith.constant 0 : index
    %62 = vector.load %arg9[%c0_63, %c2_64, %c2_65, %c0_66] : memref<1x4x11x128xbf16, #tpu.memory_space<vmem>>, vector<1x1x8x128xbf16>
    %63 = vector.shape_cast %62 : vector<1x1x8x128xbf16> to vector<8x128xbf16>
    %c0_67 = arith.constant 0 : index
    %c1280 = arith.constant 1280 : index
    %64 = vector.load %arg8[%c0_67, %c1280] : memref<8x2048xbf16, #tpu.memory_space<vmem>>, vector<8x128xbf16>
    tpu.vector_store %arg8[%c0_67, %c1280], %63 {strides = array<i32>} : memref<8x2048xbf16, #tpu.memory_space<vmem>>, vector<8x128xbf16>,
    %c0_68 = arith.constant 0 : index
    %c2_69 = arith.constant 2 : index
    %c3_70 = arith.constant 3 : index
    %c0_71 = arith.constant 0 : index
    %65 = vector.load %arg9[%c0_68, %c2_69, %c3_70, %c0_71] : memref<1x4x11x128xbf16, #tpu.memory_space<vmem>>, vector<1x1x8x128xbf16>
    %66 = vector.shape_cast %65 : vector<1x1x8x128xbf16> to vector<8x128xbf16>
    %c0_72 = arith.constant 0 : index
    %c1408 = arith.constant 1408 : index
    %67 = vector.load %arg8[%c0_72, %c1408] : memref<8x2048xbf16, #tpu.memory_space<vmem>>, vector<8x128xbf16>
    tpu.vector_store %arg8[%c0_72, %c1408], %66 {strides = array<i32>} : memref<8x2048xbf16, #tpu.memory_space<vmem>>, vector<8x128xbf16>,
    %c0_73 = arith.constant 0 : index
    %c3_74 = arith.constant 3 : index
    %c0_75 = arith.constant 0 : index
    %c0_76 = arith.constant 0 : index
    %68 = vector.load %arg9[%c0_73, %c3_74, %c0_75, %c0_76] : memref<1x4x11x128xbf16, #tpu.memory_space<vmem>>, vector<1x1x8x128xbf16>
    %69 = vector.shape_cast %68 : vector<1x1x8x128xbf16> to vector<8x128xbf16>
    %c0_77 = arith.constant 0 : index
    %c1536 = arith.constant 1536 : index
    %70 = vector.load %arg8[%c0_77, %c1536] : memref<8x2048xbf16, #tpu.memory_space<vmem>>, vector<8x128xbf16>
    tpu.vector_store %arg8[%c0_77, %c1536], %69 {strides = array<i32>} : memref<8x2048xbf16, #tpu.memory_space<vmem>>, vector<8x128xbf16>,
    %c0_78 = arith.constant 0 : index
    %c3_79 = arith.constant 3 : index
    %c1_80 = arith.constant 1 : index
    %c0_81 = arith.constant 0 : index
    %71 = vector.load %arg9[%c0_78, %c3_79, %c1_80, %c0_81] : memref<1x4x11x128xbf16, #tpu.memory_space<vmem>>, vector<1x1x8x128xbf16>
    %72 = vector.shape_cast %71 : vector<1x1x8x128xbf16> to vector<8x128xbf16>
    %c0_82 = arith.constant 0 : index
    %c1664 = arith.constant 1664 : index
    %73 = vector.load %arg8[%c0_82, %c1664] : memref<8x2048xbf16, #tpu.memory_space<vmem>>, vector<8x128xbf16>
    tpu.vector_store %arg8[%c0_82, %c1664], %72 {strides = array<i32>} : memref<8x2048xbf16, #tpu.memory_space<vmem>>, vector<8x128xbf16>,
    %c0_83 = arith.constant 0 : index
    %c3_84 = arith.constant 3 : index
    %c2_85 = arith.constant 2 : index
    %c0_86 = arith.constant 0 : index
    %74 = vector.load %arg9[%c0_83, %c3_84, %c2_85, %c0_86] : memref<1x4x11x128xbf16, #tpu.memory_space<vmem>>, vector<1x1x8x128xbf16>
    %75 = vector.shape_cast %74 : vector<1x1x8x128xbf16> to vector<8x128xbf16>
    %c0_87 = arith.constant 0 : index
    %c1792 = arith.constant 1792 : index
    %76 = vector.load %arg8[%c0_87, %c1792] : memref<8x2048xbf16, #tpu.memory_space<vmem>>, vector<8x128xbf16>
    tpu.vector_store %arg8[%c0_87, %c1792], %75 {strides = array<i32>} : memref<8x2048xbf16, #tpu.memory_space<vmem>>, vector<8x128xbf16>,
    %c0_88 = arith.constant 0 : index
    %c3_89 = arith.constant 3 : index
    %c3_90 = arith.constant 3 : index
    %c0_91 = arith.constant 0 : index
    %77 = vector.load %arg9[%c0_88, %c3_89, %c3_90, %c0_91] : memref<1x4x11x128xbf16, #tpu.memory_space<vmem>>, vector<1x1x8x128xbf16>
    %78 = vector.shape_cast %77 : vector<1x1x8x128xbf16> to vector<8x128xbf16>
    %c0_92 = arith.constant 0 : index
    %c1920 = arith.constant 1920 : index
    %79 = vector.load %arg8[%c0_92, %c1920] : memref<8x2048xbf16, #tpu.memory_space<vmem>>, vector<8x128xbf16>
    tpu.vector_store %arg8[%c0_92, %c1920], %78 {strides = array<i32>} : memref<8x2048xbf16, #tpu.memory_space<vmem>>, vector<8x128xbf16>,
    %c0_93 = arith.constant 0 : index
    %c0_94 = arith.constant 0 : index
    %80 = vector.load %arg8[%c0_93, %c0_94] : memref<8x2048xbf16, #tpu.memory_space<vmem>>, vector<8x2048xbf16>
    %c0_95 = arith.constant 0 : index
    %c0_96 = arith.constant 0 : index
    %81 = vector.load %arg3[%c0_95, %c0_96] : memref<2048x128xbf16, #tpu.memory_space<vmem>>, vector<2048x128xbf16>
    %cst_97 = arith.constant dense<0.000000e+00> : vector<8x128xf32>
    %82 = tpu.matmul %80, %81, %cst_97 {dimension_numbers = #tpu.dot_dimension_numbers<[1], [0], [0], [1], [0, 0, 1, 1], [], []>} : vector<8x2048xbf16>, vector<2048x128xbf16>, vector<8x128xf32> -> vector<8x128xf32>
    %83 = vector.shape_cast %82 : vector<8x128xf32> to vector<1x1x8x128xf32>
    %84 = tpu.iota {dimensions = array<i32: 2>} : vector<1x1x8x128xi32>
    %c1_i32 = arith.constant 1 : i32
    %85 = vector.broadcast %c1_i32 : i32 to vector<1x1x8x128xi32>
    %86 = arith.cmpi slt, %84, %85 : vector<1x1x8x128xi32>
    %cst_98 = arith.constant 0.000000e+00 : f32
    %87 = vector.broadcast %cst_98 : f32 to vector<1x1x8x128xf32>
    %88 = arith.select %86, %83, %87 : vector<1x1x8x128xi1>, vector<1x1x8x128xf32>
    %cst_99 = arith.constant 0.000000e+00 : f32
    %89 = vector.broadcast %cst_99 : f32 to vector<1x2x128xf32>
    %c0_100 = arith.constant 0 : index
    %c0_101 = arith.constant 0 : index
    %c0_102 = arith.constant 0 : index
    %90 = vector.load %arg7[%c0_100, %c0_101, %c0_102] : memref<1x2x128xf32, #tpu.memory_space<vmem>>, vector<1x2x128xf32>
    tpu.vector_store %arg7[%c0_100, %c0_101, %c0_102], %89 {strides = array<i32>} : memref<1x2x128xf32, #tpu.memory_space<vmem>>, vector<1x2x128xf32>,
    %c0_103 = arith.constant 0 : index
    %c0_104 = arith.constant 0 : index
    %c0_105 = arith.constant 0 : index
    %c0_106 = arith.constant 0 : index
    %91 = vector.load %arg6[%c0_103, %c0_104, %c0_105, %c0_106] : memref<1x1x8x128xf32, #tpu.memory_space<vmem>>, vector<1x1x8x128xf32>
    tpu.vector_store %arg6[%c0_103, %c0_104, %c0_105, %c0_106], %88 {strides = array<i32>} : memref<1x1x8x128xf32, #tpu.memory_space<vmem>>, vector<1x1x8x128xf32>,
    return
  }
  func.func @transform_0(%arg0: i32, %arg1: i32) -> (i32, i32, i32, i32) {
    %c0_i32 = arith.constant 0 : i32
    %c0_i32_0 = arith.constant 0 : i32
    %c0_i32_1 = arith.constant 0 : i32
    %c0_i32_2 = arith.constant 0 : i32
    return %arg0, %c0_i32, %c0_i32_0, %c0_i32_1 : i32, i32, i32, i32
  }
  func.func @transform_1(%arg0: i32, %arg1: i32) -> (i32, i32) {
    %c0_i32 = arith.constant 0 : i32
    %c0_i32_0 = arith.constant 0 : i32
    return %c0_i32, %arg1 : i32, i32
  }
  func.func @transform_2(%arg0: i32, %arg1: i32) -> (i32, i32) {
    %c0_i32 = arith.constant 0 : i32
    %c0_i32_0 = arith.constant 0 : i32
    %c0_i32_1 = arith.constant 0 : i32
    return %c0_i32, %c0_i32_0 : i32, i32
  }
  func.func @transform_3(%arg0: i32, %arg1: i32) -> (i32, i32) {
    %c0_i32 = arith.constant 0 : i32
    %c0_i32_0 = arith.constant 0 : i32
    %c0_i32_1 = arith.constant 0 : i32
    return %c0_i32, %c0_i32_0 : i32, i32
  }
  func.func @transform_4(%arg0: i32, %arg1: i32) -> (i32, i32, i32, i32) {
    %c0_i32 = arith.constant 0 : i32
    %c0_i32_0 = arith.constant 0 : i32
    %c0_i32_1 = arith.constant 0 : i32
    return %arg0, %c0_i32, %c0_i32_0, %arg1 : i32, i32, i32, i32
  }
  func.func @transform_5(%arg0: i32, %arg1: i32) -> (i32, i32, i32) {
    %c0_i32 = arith.constant 0 : i32
    %c0_i32_0 = arith.constant 0 : i32
    return %arg0, %c0_i32, %arg1 : i32, i32, i32
  }
}

</mosaic_0001>

<llo_original>
// kernel: _lambda_.3
$region0: #{_lambda_.3}
  #allocation0 [shape = 'u32[]', space=smem, size = 0x4, offset = 0x4, fixed_abs, tag = 'smem constant byte address 0x4 - core index']
  #allocation1 [shape = 'u32[144,128]{1,0:T(1,128)}', space=vmem, size = 0x12000, scoped, tag = 'internal scratch']
  #allocation2 [shape = 'bf16[64,128]{1,0:T(16,128)(2,1)}', space=vmem, size = 0x4000, scoped, tag = 'scratch operand']
  %s0 = inlined_call_operand.hbm [shape: bf16[2,9,9,8], index: 0, kind: input, shape index: {}]
  %s1 = inlined_call_operand.hbm [shape: bf16[2,9,9,8], index: 1, kind: input, shape index: {}]
  %s2 = inlined_call_operand.hbm [shape: bf16[2,9,9,8], index: 2, kind: input, shape index: {}]
  %s3 = inlined_call_operand.hbm [shape: bf16[2,9,9,8], index: 3, kind: input, shape index: {}]
  %s4 = inlined_call_operand.hbm [shape: bf16[128,128], index: 4, kind: input, shape index: {}]
  %s5 = inlined_call_operand.hbm [shape: bf16[2,8,8,128], index: 5, kind: output, shape index: {0}]
  %s6 = inlined_call_operand.hbm [shape: f32[2,2,128], index: 6, kind: output, shape index: {1}]
  %7 = xla_tuple %s5, %s6
  %s8 = sld [smem:[#allocation0]]
  $region81: #{_lambda_.3} parent=0
    _
  %s10 = ssub.s32 1, %s8
  %s11 = scalar_select 0, %s10, %s8
  $region1: #{_lambda_.3} parent=0
    #allocation3 [shape = 'u8[73728]{0}', space=vmem, size = 0x12000, scoped, tag = 'input window, operand 0']
    #allocation4 [shape = 's32[2]{0}', space=sflag, size = 0x8, scoped, tag = 'scoped memory for _lambda_.3']
    #allocation5 [shape = 's32[2]{0}', space=sflag, size = 0x8, scoped, tag = 'scoped memory for _lambda_.3']
    #allocation6 [shape = 'u8[73728]{0}', space=vmem, size = 0x12000, scoped, tag = 'input window, operand 1']
    #allocation7 [shape = 's32[2]{0}', space=sflag, size = 0x8, scoped, tag = 'scoped memory for _lambda_.3']
    #allocation8 [shape = 'u8[73728]{0}', space=vmem, size = 0x12000, scoped, tag = 'input window, operand 2']
    #allocation9 [shape = 'u8[73728]{0}', space=vmem, size = 0x12000, scoped, tag = 'input window, operand 3']
    #allocation10 [shape = 's32[2]{0}', space=sflag, size = 0x8, scoped, tag = 'scoped memory for _lambda_.3']
    #allocation11 [shape = 'u8[32768]{0}', space=vmem, size = 0x8000, scoped, tag = 'input window, operand 4, single buffered']
    #allocation12 [shape = 'u8[32768]{0}', space=vmem, size = 0x8000, scoped, tag = 'output window, operand 0']
    #allocation13 [shape = 'u8[2048]{0}', space=vmem, size = 0x800, scoped, tag = 'output window, operand 1']
    #allocation14 [shape = 's32[2]{0}', space=sflag, size = 0x8, scoped, tag = 'scoped memory for _lambda_.3']
    %12 = vsyncpa [#allocation4], 0
    %s13 = scalar_lea.sflag [#allocation4], 1
    %14 = vsyncpa %s13, 0
    %15 = vsyncpa [#allocation7], 0
    %s16 = scalar_lea.sflag [#allocation7], 1
    %17 = vsyncpa %s16, 0
    %18 = vsyncpa [#allocation10], 0
    %s19 = scalar_lea.sflag [#allocation10], 1
    %20 = vsyncpa %s19, 0
    %21 = vsyncpa [#allocation5], 0
    %s22 = scalar_lea.sflag [#allocation5], 1
    %23 = vsyncpa %s22, 0
    %24 = vsyncpa [#allocation14], 0
    %s25 = scalar_lea.sflag [#allocation14], 1
    %26 = vsyncpa %s25, 0
    loop: start=0, step=1, limit=4
    $region2: #{_lambda_.3} parent=1 // loop_pre_header
      _
    $region3: #{_lambda_.3} parent=1 // loop_header
      %s28 = sphi 0, %s32
      %p29 = scmp.ge.s32.totalorder %s28, 4
      %s35 = sphi 0, %s47
      %s36 = sphi 0, %s43
      %s37 = sphi 0, %s35
      %s38 = sphi 0, %s36
      %s39 = sphi 0, %s37
      %s40 = sphi 0, %s38
      %s50 = sphi 0, %s52
      %s53 = sphi 0, %s50
      %s54 = sphi 0, %s53
      %s70 = sphi 0, %s54
      %s76 = sphi 0, %s78
      %s79 = sphi 0, %s76
      %s80 = sphi 0, %s79
      %s96 = sphi 0, %s80
      %s102 = sphi 0, %s104
      %s105 = sphi 0, %s102
      %s106 = sphi 0, %s105
      %s122 = sphi 0, %s106
      %s128 = sphi 0, %s130
      %s131 = sphi 0, %s128
      %s132 = sphi 0, %s131
      %s148 = sphi 0, %s132
      %s154 = sphi 0, %s156
      %s157 = sphi 0, %s154
      %s158 = sphi 0, %s157
      %s174 = sphi 0, %s158
      %s182 = sphi 0, %s184
      %s185 = sphi 0, %s182
      %s186 = sphi 0, %s185
      %s202 = sphi 0, %s186
      %s210 = sphi 0, %s212
      %s213 = sphi 0, %s210
      %s214 = sphi 0, %s213
      %s230 = sphi 0, %s214
    $region4: #{_lambda_.3} parent=1 // loop_header_branch
      %31 = sbr.rel (%p29) target = $region8
    $region5: #{_lambda_.3} parent=1 // loop_body
      %s33 = ssub.s32 %s28, 1
      %s34 = ssub.s32 %s28, 2
      %s41 = sadd.s32 1, %s36
      %p42 = scmp.ge.s32.totalorder %s41, 1
      %s43 = scalar_select %p42, 0, %s41
      %s44 = sadd.s32 1, %s35
      %s45 = scalar_select %p42, %s44, %s35
      %p46 = scmp.ge.s32.totalorder %s45, 2
      %s47 = scalar_select %p46, 0, %s45
      %s48 = ssub.s32 %s35, %s47
      %p49 = scmp.eq.s32.totalorder %s48, 0
      %s51 = sadd.s32 %s50, 1
      %s52 = scalar_select %p49, %s50, %s51
      %p55 = pneg %p49
      %p56 = scmp.eq.s32.totalorder %s28, 1
      %p57 = por %p55, %p56
      %p58 = scmp.ne.s32.totalorder %s50, %s53
      %p59 = scmp.eq.s32.totalorder %s28, 0
      %p60 = por %p58, %p59
      %p61 = scmp.ne.s32.totalorder %s50, %s53
      %p62 = scmp.eq.s32.totalorder %s33, 1
      %p63 = por %p61, %p62
      %p64 = scmp.ne.s32.totalorder %s53, %s54
      %p65 = scmp.eq.s32.totalorder %s33, 0
      %p66 = por %p64, %p65
      %p67 = scmp.ne.s32.totalorder %s53, %s54
      %p68 = scmp.eq.s32.totalorder %s34, 1
      %p69 = por %p67, %p68
      %p71 = scmp.ne.s32.totalorder %s54, %s70
      %p72 = scmp.eq.s32.totalorder %s34, 0
      %p73 = por %p71, %p72
      %s74 = ssub.s32 %s35, %s47
      %p75 = scmp.eq.s32.totalorder %s74, 0
      %s77 = sadd.s32 %s76, 1
      %s78 = scalar_select %p75, %s76, %s77
      %p81 = pneg %p75
      %p82 = scmp.eq.s32.totalorder %s28, 1
      %p83 = por %p81, %p82
      %p84 = scmp.ne.s32.totalorder %s76, %s79
      %p85 = scmp.eq.s32.totalorder %s28, 0
      %p86 = por %p84, %p85
      %p87 = scmp.ne.s32.totalorder %s76, %s79
      %p88 = scmp.eq.s32.totalorder %s33, 1
      %p89 = por %p87, %p88
      %p90 = scmp.ne.s32.totalorder %s79, %s80
      %p91 = scmp.eq.s32.totalorder %s33, 0
      %p92 = por %p90, %p91
      %p93 = scmp.ne.s32.totalorder %s79, %s80
      %p94 = scmp.eq.s32.totalorder %s34, 1
      %p95 = por %p93, %p94
      %p97 = scmp.ne.s32.totalorder %s80, %s96
      %p98 = scmp.eq.s32.totalorder %s34, 0
      %p99 = por %p97, %p98
      %s100 = ssub.s32 %s35, %s47
      %p101 = scmp.eq.s32.totalorder %s100, 0
      %s103 = sadd.s32 %s102, 1
      %s104 = scalar_select %p101, %s102, %s103
      %p107 = pneg %p101
      %p108 = scmp.eq.s32.totalorder %s28, 1
      %p109 = por %p107, %p108
      %p110 = scmp.ne.s32.totalorder %s102, %s105
      %p111 = scmp.eq.s32.totalorder %s28, 0
      %p112 = por %p110, %p111
      %p113 = scmp.ne.s32.totalorder %s102, %s105
      %p114 = scmp.eq.s32.totalorder %s33, 1
      %p115 = por %p113, %p114
      %p116 = scmp.ne.s32.totalorder %s105, %s106
      %p117 = scmp.eq.s32.totalorder %s33, 0
      %p118 = por %p116, %p117
      %p119 = scmp.ne.s32.totalorder %s105, %s106
      %p120 = scmp.eq.s32.totalorder %s34, 1
      %p121 = por %p119, %p120
      %p123 = scmp.ne.s32.totalorder %s106, %s122
      %p124 = scmp.eq.s32.totalorder %s34, 0
      %p125 = por %p123, %p124
      %s126 = ssub.s32 %s35, %s47
      %p127 = scmp.eq.s32.totalorder %s126, 0
      %s129 = sadd.s32 %s128, 1
      %s130 = scalar_select %p127, %s128, %s129
      %p133 = pneg %p127
      %p134 = scmp.eq.s32.totalorder %s28, 1
      %p135 = por %p133, %p134
      %p136 = scmp.ne.s32.totalorder %s128, %s131
      %p137 = scmp.eq.s32.totalorder %s28, 0
      %p138 = por %p136, %p137
      %p139 = scmp.ne.s32.totalorder %s128, %s131
      %p140 = scmp.eq.s32.totalorder %s33, 1
      %p141 = por %p139, %p140
      %p142 = scmp.ne.s32.totalorder %s131, %s132
      %p143 = scmp.eq.s32.totalorder %s33, 0
      %p144 = por %p142, %p143
      %p145 = scmp.ne.s32.totalorder %s131, %s132
      %p146 = scmp.eq.s32.totalorder %s34, 1
      %p147 = por %p145, %p146
      %p149 = scmp.ne.s32.totalorder %s132, %s148
      %p150 = scmp.eq.s32.totalorder %s34, 0
      %p151 = por %p149, %p150
      %s152 = ssub.s32 %s36, %s43
      %p153 = scmp.eq.s32.totalorder %s152, 0
      %s155 = sadd.s32 %s154, 1
      %s156 = scalar_select %p153, %s154, %s155
      %p159 = pneg %p153
      %p160 = scmp.eq.s32.totalorder %s28, 1
      %p161 = por %p159, %p160
      %p162 = scmp.ne.s32.totalorder %s154, %s157
      %p163 = scmp.eq.s32.totalorder %s28, 0
      %p164 = por %p162, %p163
      %p165 = scmp.ne.s32.totalorder %s154, %s157
      %p166 = scmp.eq.s32.totalorder %s33, 1
      %p167 = por %p165, %p166
      %p168 = scmp.ne.s32.totalorder %s157, %s158
      %p169 = scmp.eq.s32.totalorder %s33, 0
      %p170 = por %p168, %p169
      %p171 = scmp.ne.s32.totalorder %s157, %s158
      %p172 = scmp.eq.s32.totalorder %s34, 1
      %p173 = por %p171, %p172
      %p175 = scmp.ne.s32.totalorder %s158, %s174
      %p176 = scmp.eq.s32.totalorder %s34, 0
      %p177 = por %p175, %p176
      %s178 = ssub.s32 %s35, %s47
      %s179 = ssub.s32 %s36, %s43
      %s180 = sor.u32 %s178, %s179
      %p181 = scmp.eq.s32.totalorder %s180, 0
      %s183 = sadd.s32 %s182, 1
      %s184 = scalar_select %p181, %s182, %s183
      %p187 = pneg %p181
      %p188 = scmp.eq.s32.totalorder %s28, 1
      %p189 = por %p187, %p188
      %p190 = scmp.ne.s32.totalorder %s182, %s185
      %p191 = scmp.eq.s32.totalorder %s28, 0
      %p192 = por %p190, %p191
      %p193 = scmp.ne.s32.totalorder %s182, %s185
      %p194 = scmp.eq.s32.totalorder %s33, 1
      %p195 = por %p193, %p194
      %p196 = scmp.ne.s32.totalorder %s185, %s186
      %p197 = scmp.eq.s32.totalorder %s33, 0
      %p198 = por %p196, %p197
      %p199 = scmp.ne.s32.totalorder %s185, %s186
      %p200 = scmp.eq.s32.totalorder %s34, 1
      %p201 = por %p199, %p200
      %p203 = scmp.ne.s32.totalorder %s186, %s202
      %p204 = scmp.eq.s32.totalorder %s34, 0
      %p205 = por %p203, %p204
      %s206 = ssub.s32 %s35, %s47
      %s207 = ssub.s32 %s36, %s43
      %s208 = sor.u32 %s206, %s207
      %p209 = scmp.eq.s32.totalorder %s208, 0
      %s211 = sadd.s32 %s210, 1
      %s212 = scalar_select %p209, %s210, %s211
      %p215 = pneg %p209
      %p216 = scmp.eq.s32.totalorder %s28, 1
      %p217 = por %p215, %p216
      %p218 = scmp.ne.s32.totalorder %s210, %s213
      %p219 = scmp.eq.s32.totalorder %s28, 0
      %p220 = por %p218, %p219
      %p221 = scmp.ne.s32.totalorder %s210, %s213
      %p222 = scmp.eq.s32.totalorder %s33, 1
      %p223 = por %p221, %p222
      %p224 = scmp.ne.s32.totalorder %s213, %s214
      %p225 = scmp.eq.s32.totalorder %s33, 0
      %p226 = por %p224, %p225
      %p227 = scmp.ne.s32.totalorder %s213, %s214
      %p228 = scmp.eq.s32.totalorder %s34, 1
      %p229 = por %p227, %p228
      %p231 = scmp.ne.s32.totalorder %s214, %s230
      %p232 = scmp.eq.s32.totalorder %s34, 0
      %p233 = por %p231, %p232
      %p234 = scmp.le.s32.totalorder 1, %s28
      %p235 = scmp.lt.s32.totalorder %s28, 3
      %p236 = pnand %p234, %p235
      %p237 = pneg %p236
      // Predicated region
      $region9: #{_lambda_.3} parent=5 // pred_check
        _
      $region10: #{_lambda_.3} parent=5 // pred_check_branch
        %239 = sbr.rel (%p236) target = $region12
      $region11: #{_lambda_.3} parent=5 // pred_region
        %s240 = ssub.s32 %s28, 1
        // Predicated region
        $region13: #{_lambda_.3} parent=11 // pred_check
          %p241 = pneg %p170
        $region14: #{_lambda_.3} parent=11 // pred_check_branch
          %243 = sbr.rel (%p241) target = $region16
        $region15: #{_lambda_.3} parent=11 // pred_region
          %s245 = ssub.s32 1024, 1024
          %246 = vsyncadd [#allocation10], %s245
          %s247 = smul.addr %s38, 64
          %s248 = scalar_lea.hbm %s4, %s247
          %s249 = sshll.u32 [#allocation11], 4
          %s250 = int_to_ptr.vmem [resolvable:$true] %s249
          %255 = dma.hbm_to_vmem [thread:$0]  %s248, 1024, %s250, [#allocation10], 64, 64, 4
        $region16: #{_lambda_.3} parent=11 // pred_fallthru
          _
      $region12: #{_lambda_.3} parent=5 // pred_fallthru
        _
      %p256 = scmp.lt.s32.totalorder %s28, 2
      // Predicated region
      $region17: #{_lambda_.3} parent=5 // pred_check
        %p257 = pneg %p256
      $region18: #{_lambda_.3} parent=5 // pred_check_branch
        %259 = sbr.rel (%p257) target = $region20
      $region19: #{_lambda_.3} parent=5 // pred_region
        // Predicated region
        $region21: #{_lambda_.3} parent=19 // pred_check
          %p260 = pneg %p60
        $region22: #{_lambda_.3} parent=19 // pred_check_branch
          %262 = sbr.rel (%p260) target = $region24
        $region23: #{_lambda_.3} parent=19 // pred_region
          %s263 = sand.u32 %s50, 1
          %s264 = scalar_lea.sflag [#allocation4], %s263
          %s265 = sand.u32 %s50, 1
          %s266 = smul.addr %s265, 72
          %s267 = scalar_lea.vmem [#allocation3], %s266
          %s269 = ssub.s32 1152, 1152
          %270 = vsyncadd %s264, %s269
          %s271 = smul.addr %s35, 18
          %s272 = smul.addr %s271, 64
          %s273 = scalar_lea.hbm %s0, %s272
          %s274 = sshll.u32 %s267, 4
          %s275 = int_to_ptr.vmem [resolvable:$true] %s274
          %280 = dma.hbm_to_vmem [thread:$0]  %s273, 1152, %s275, %s264, 64, 64, 4
        $region24: #{_lambda_.3} parent=19 // pred_fallthru
          _
        // Predicated region
        $region25: #{_lambda_.3} parent=19 // pred_check
          %p281 = pneg %p86
        $region26: #{_lambda_.3} parent=19 // pred_check_branch
          %283 = sbr.rel (%p281) target = $region28
        $region27: #{_lambda_.3} parent=19 // pred_region
          %s284 = sand.u32 %s28, 1
          %s285 = scalar_lea.sflag [#allocation7], %s284
          %s286 = sand.u32 %s76, 1
          %s287 = smul.addr %s286, 72
          %s288 = scalar_lea.vmem [#allocation6], %s287
          %s290 = ssub.s32 1152, 1152
          %291 = vsyncadd %s285, %s290
          %s292 = smul.addr %s35, 18
          %s293 = smul.addr %s292, 64
          %s294 = scalar_lea.hbm %s1, %s293
          %s295 = sshll.u32 %s288, 4
          %s296 = int_to_ptr.vmem [resolvable:$true] %s295
          %301 = dma.hbm_to_vmem [thread:$0]  %s294, 1152, %s296, %s285, 64, 64, 4
        $region28: #{_lambda_.3} parent=19 // pred_fallthru
          _
        // Predicated region
        $region29: #{_lambda_.3} parent=19 // pred_check
          %p302 = pneg %p112
        $region30: #{_lambda_.3} parent=19 // pred_check_branch
          %304 = sbr.rel (%p302) target = $region32
        $region31: #{_lambda_.3} parent=19 // pred_region
          %s305 = sand.u32 %s28, 1
          %s306 = scalar_lea.sflag [#allocation7], %s305
          %s307 = sand.u32 %s102, 1
          %s308 = smul.addr %s307, 72
          %s309 = scalar_lea.vmem [#allocation8], %s308
          %s311 = ssub.s32 1152, 1152
          %312 = vsyncadd %s306, %s311
          %s313 = smul.addr %s35, 18
          %s314 = smul.addr %s313, 64
          %s315 = scalar_lea.hbm %s2, %s314
          %s316 = sshll.u32 %s309, 4
          %s317 = int_to_ptr.vmem [resolvable:$true] %s316
          %322 = dma.hbm_to_vmem [thread:$0]  %s315, 1152, %s317, %s306, 64, 64, 4
        $region32: #{_lambda_.3} parent=19 // pred_fallthru
          _
        // Predicated region
        $region33: #{_lambda_.3} parent=19 // pred_check
          %p323 = pneg %p138
        $region34: #{_lambda_.3} parent=19 // pred_check_branch
          %325 = sbr.rel (%p323) target = $region36
        $region35: #{_lambda_.3} parent=19 // pred_region
          %s326 = sand.u32 %s28, 1
          %s327 = scalar_lea.sflag [#allocation10], %s326
          %s328 = sand.u32 %s128, 1
          %s329 = smul.addr %s328, 72
          %s330 = scalar_lea.vmem [#allocation9], %s329
          %s332 = ssub.s32 1152, 1152
          %333 = vsyncadd %s327, %s332
          %s334 = smul.addr %s35, 18
          %s335 = smul.addr %s334, 64
          %s336 = scalar_lea.hbm %s3, %s335
          %s337 = sshll.u32 %s330, 4
          %s338 = int_to_ptr.vmem [resolvable:$true] %s337
          %343 = dma.hbm_to_vmem [thread:$0]  %s336, 1152, %s338, %s327, 64, 64, 4
        $region36: #{_lambda_.3} parent=19 // pred_fallthru
          _
      $region20: #{_lambda_.3} parent=5 // pred_fallthru
        _
      %p344 = scmp.le.s32.totalorder 1, %s28
      %p345 = scmp.lt.s32.totalorder %s28, 3
      %p346 = pnand %p344, %p345
      %p347 = pneg %p346
      // Predicated region
      $region37: #{_lambda_.3} parent=5 // pred_check
        _
      $region38: #{_lambda_.3} parent=5 // pred_check_branch
        %349 = sbr.rel (%p346) target = $region40
      $region39: #{_lambda_.3} parent=5 // pred_region
        %s350 = ssub.s32 %s28, 1
        %s351 = sand.u32 %s53, 1
        %s352 = scalar_lea.sflag [#allocation4], %s351
        %s353 = sand.u32 %s53, 1
        %s354 = smul.addr %s353, 72
        %s355 = scalar_lea.vmem [#allocation3], %s354
        // Predicated region
        $region41: #{_lambda_.3} parent=39 // pred_check
          %p356 = pneg %p66
        $region42: #{_lambda_.3} parent=39 // pred_check_branch
          %358 = sbr.rel (%p356) target = $region44
        $region43: #{_lambda_.3} parent=39 // pred_region
          %359 = dma.done %s352, 1152
        $region44: #{_lambda_.3} parent=39 // pred_fallthru
          _
        %s360 = sand.u32 %s33, 1
        %s361 = scalar_lea.sflag [#allocation7], %s360
        %s362 = sand.u32 %s79, 1
        %s363 = smul.addr %s362, 72
        %s364 = scalar_lea.vmem [#allocation6], %s363
        // Predicated region
        $region45: #{_lambda_.3} parent=39 // pred_check
          %p365 = pneg %p92
        $region46: #{_lambda_.3} parent=39 // pred_check_branch
          %367 = sbr.rel (%p365) target = $region48
        $region47: #{_lambda_.3} parent=39 // pred_region
          %368 = dma.done %s361, 1152
        $region48: #{_lambda_.3} parent=39 // pred_fallthru
          _
        %s369 = sand.u32 %s33, 1
        %s370 = scalar_lea.sflag [#allocation7], %s369
        %s371 = sand.u32 %s105, 1
        %s372 = smul.addr %s371, 72
        %s373 = scalar_lea.vmem [#allocation8], %s372
        // Predicated region
        $region49: #{_lambda_.3} parent=39 // pred_check
          %p374 = pneg %p118
        $region50: #{_lambda_.3} parent=39 // pred_check_branch
          %376 = sbr.rel (%p374) target = $region52
        $region51: #{_lambda_.3} parent=39 // pred_region
          %377 = dma.done %s370, 1152
        $region52: #{_lambda_.3} parent=39 // pred_fallthru
          _
        %s378 = sand.u32 %s33, 1
        %s379 = scalar_lea.sflag [#allocation10], %s378
        %s380 = sand.u32 %s131, 1
        %s381 = smul.addr %s380, 72
        %s382 = scalar_lea.vmem [#allocation9], %s381
        // Predicated region
        $region53: #{_lambda_.3} parent=39 // pred_check
          %p383 = pneg %p144
        $region54: #{_lambda_.3} parent=39 // pred_check_branch
          %385 = sbr.rel (%p383) target = $region56
        $region55: #{_lambda_.3} parent=39 // pred_region
          %386 = dma.done %s379, 1152
        $region56: #{_lambda_.3} parent=39 // pred_fallthru
          _
        // Predicated region
        $region57: #{_lambda_.3} parent=39 // pred_check
          %p387 = pneg %p170
        $region58: #{_lambda_.3} parent=39 // pred_check_branch
          %389 = sbr.rel (%p387) target = $region60
        $region59: #{_lambda_.3} parent=39 // pred_region
          %390 = dma.done [#allocation10], 1024
        $region60: #{_lambda_.3} parent=39 // pred_fallthru
          _
        %s391 = sand.u32 %s53, 1
        %s392 = scalar_lea.sflag [#allocation4], %s391
        %s393 = sand.u32 %s53, 1
        %s394 = smul.addr %s393, 72
        %s395 = scalar_lea.vmem [#allocation3], %s394
        %p396 = pneg %p66
        %p397 = pneg %p63
        %s398 = sand.u32 %s33, 1
        %s399 = scalar_lea.sflag [#allocation7], %s398
        %s400 = sand.u32 %s79, 1
        %s401 = smul.addr %s400, 72
        %s402 = scalar_lea.vmem [#allocation6], %s401
        %p403 = pneg %p92
        %p404 = pneg %p89
        %s405 = sand.u32 %s33, 1
        %s406 = scalar_lea.sflag [#allocation7], %s405
        %s407 = sand.u32 %s105, 1
        %s408 = smul.addr %s407, 72
        %s409 = scalar_lea.vmem [#allocation8], %s408
        %p410 = pneg %p118
        %p411 = pneg %p115
        %s412 = sand.u32 %s33, 1
        %s413 = scalar_lea.sflag [#allocation10], %s412
        %s414 = sand.u32 %s131, 1
        %s415 = smul.addr %s414, 72
        %s416 = scalar_lea.vmem [#allocation9], %s415
        %p417 = pneg %p144
        %p418 = pneg %p141
        %p419 = pneg %p170
        %p420 = pneg %p167
        %p421 = pneg %p198
        %p422 = pneg %p195
        %s423 = sand.u32 %s185, 1
        %s424 = scalar_lea.sflag [#allocation5], %s423
        %s425 = sand.u32 %s185, 1
        %s426 = smul.addr %s425, 32
        %s427 = scalar_lea.vmem [#allocation12], %s426
        %p428 = pneg %p226
        %p429 = pneg %p223
        %s430 = sand.u32 %s213, 1
        %s431 = scalar_lea.sflag [#allocation14], %s430
        %s432 = sand.u32 %s213, 1
        %s433 = smul.addr %s432, 2
        %s434 = scalar_lea.vmem [#allocation13], %s433
        %v436 = vld [vmem:[%s355] sm:$0xf]
        %v437 = vld [vmem:[%s355 + $0x8] sm:$0xf]
        %v438 = vld [vmem:[%s355 + $0x10] sm:$0xf]
        %v439 = vld [vmem:[%s355 + $0x18] sm:$0xf]
        %v440 = vld [vmem:[%s355 + $0x20] sm:$0xf]
        %v441 = vld [vmem:[%s355 + $0x28] sm:$0xf]
        %v442 = vld [vmem:[%s355 + $0x30] sm:$0xf]
        %v443 = vld [vmem:[%s355 + $0x38] sm:$0xf]
        %v452 = vunpack.c.l.b16 %v436
        %v453 = vunpack.c.l.b16 %v437
        %v454 = vunpack.c.l.b16 %v438
        %v455 = vunpack.c.l.b16 %v439
        %v456 = vunpack.c.l.b16 %v440
        %v457 = vunpack.c.l.b16 %v441
        %v458 = vunpack.c.l.b16 %v442
        %v459 = vunpack.c.l.b16 %v443
        %v460 = vpack.c.b16 %v453, %v452
        %v461 = vpack.c.b16 %v455, %v454
        %v462 = vpack.c.b16 %v457, %v456
        %v463 = vpack.c.b16 %v459, %v458
        %vm468 = vcmask 64512
        %469 = vst.msk [vmem:[#allocation2] sm:$0xff] %vm468, %v460
        %470 = vst.msk [vmem:[#allocation2 + $0x8] sm:$0xff] %vm468, %v461
        %471 = vst.msk [vmem:[#allocation2 + $0x10] sm:$0xff] %vm468, %v462
        %472 = vst.msk [vmem:[#allocation2 + $0x18] sm:$0xff] %vm468, %v463
        %v473 = vld [vmem:[%s355] sm:$0xf]
        %v474 = vld [vmem:[%s355 + $0x4] sm:$0x1]
        %v475 = vld [vmem:[%s355 + $0x8] sm:$0xf]
        %v476 = vld [vmem:[%s355 + $0xc] sm:$0x1]
        %v477 = vld [vmem:[%s355 + $0x10] sm:$0xf]
        %v478 = vld [vmem:[%s355 + $0x14] sm:$0x1]
        %v479 = vld [vmem:[%s355 + $0x18] sm:$0xf]
        %v480 = vld [vmem:[%s355 + $0x1c] sm:$0x1]
        %v481 = vld [vmem:[%s355 + $0x20] sm:$0xf]
        %v482 = vld [vmem:[%s355 + $0x24] sm:$0x1]
        %v483 = vld [vmem:[%s355 + $0x28] sm:$0xf]
        %v484 = vld [vmem:[%s355 + $0x2c] sm:$0x1]
        %v485 = vld [vmem:[%s355 + $0x30] sm:$0xf]
        %v486 = vld [vmem:[%s355 + $0x34] sm:$0x1]
        %v487 = vld [vmem:[%s355 + $0x38] sm:$0xf]
        %v488 = vld [vmem:[%s355 + $0x3c] sm:$0x1]
        %vm489 = vsmask.f32 3328
        %vm490 = vsmask.f32 7440
        %vm491 = vmor %vm489, %vm490
        %v493 = vshrl.u32 %v473, 16
        %v495 = vrot.slane %v493, 4
        %v496 = vshll.u32 %v473, 16
        %v498 = vrot.slane %v496, 5
        %v499 = vor.u32 %v495, %v498
        %v500 = vrot.slane %v499, 4
        %v502 = vshll.u32 %v474, 16
        %v504 = vrot.slane %v502, 5
        %v505 = vsel %vm491, %v500, %v504
        %v507 = vshrl.u32 %v475, 16
        %v509 = vrot.slane %v507, 4
        %v510 = vshll.u32 %v475, 16
        %v512 = vrot.slane %v510, 5
        %v513 = vor.u32 %v509, %v512
        %v514 = vrot.slane %v513, 4
        %v516 = vshll.u32 %v476, 16
        %v518 = vrot.slane %v516, 5
        %v519 = vsel %vm491, %v514, %v518
        %v521 = vshrl.u32 %v477, 16
        %v523 = vrot.slane %v521, 4
        %v524 = vshll.u32 %v477, 16
        %v526 = vrot.slane %v524, 5
        %v527 = vor.u32 %v523, %v526
        %v528 = vrot.slane %v527, 4
        %v530 = vshll.u32 %v478, 16
        %v532 = vrot.slane %v530, 5
        %v533 = vsel %vm491, %v528, %v532
        %v535 = vshrl.u32 %v479, 16
        %v537 = vrot.slane %v535, 4
        %v538 = vshll.u32 %v479, 16
        %v540 = vrot.slane %v538, 5
        %v541 = vor.u32 %v537, %v540
        %v542 = vrot.slane %v541, 4
        %v544 = vshll.u32 %v480, 16
        %v546 = vrot.slane %v544, 5
        %v547 = vsel %vm491, %v542, %v546
        %v549 = vshrl.u32 %v481, 16
        %v551 = vrot.slane %v549, 4
        %v552 = vshll.u32 %v481, 16
        %v554 = vrot.slane %v552, 5
        %v555 = vor.u32 %v551, %v554
        %v556 = vrot.slane %v555, 4
        %v558 = vshll.u32 %v482, 16
        %v560 = vrot.slane %v558, 5
        %v561 = vsel %vm491, %v556, %v560
        %v563 = vshrl.u32 %v483, 16
        %v565 = vrot.slane %v563, 4
        %v566 = vshll.u32 %v483, 16
        %v568 = vrot.slane %v566, 5
        %v569 = vor.u32 %v565, %v568
        %v570 = vrot.slane %v569, 4
        %v572 = vshll.u32 %v484, 16
        %v574 = vrot.slane %v572, 5
        %v575 = vsel %vm491, %v570, %v574
        %v577 = vshrl.u32 %v485, 16
        %v579 = vrot.slane %v577, 4
        %v580 = vshll.u32 %v485, 16
        %v582 = vrot.slane %v580, 5
        %v583 = vor.u32 %v579, %v582
        %v584 = vrot.slane %v583, 4
        %v586 = vshll.u32 %v486, 16
        %v588 = vrot.slane %v586, 5
        %v589 = vsel %vm491, %v584, %v588
        %v591 = vshrl.u32 %v487, 16
        %v593 = vrot.slane %v591, 4
        %v594 = vshll.u32 %v487, 16
        %v596 = vrot.slane %v594, 5
        %v597 = vor.u32 %v593, %v596
        %v598 = vrot.slane %v597, 4
        %v600 = vshll.u32 %v488, 16
        %v602 = vrot.slane %v600, 5
        %v603 = vsel %vm491, %v598, %v602
        %v604 = vunpack.c.l.b16 %v505
        %v605 = vunpack.c.l.b16 %v519
        %v606 = vunpack.c.l.b16 %v533
        %v607 = vunpack.c.l.b16 %v547
        %v608 = vunpack.c.l.b16 %v561
        %v609 = vunpack.c.l.b16 %v575
        %v610 = vunpack.c.l.b16 %v589
        %v611 = vunpack.c.l.b16 %v603
        %v612 = vpack.c.b16 %v605, %v604
        %v613 = vpack.c.b16 %v607, %v606
        %v614 = vpack.c.b16 %v609, %v608
        %v615 = vpack.c.b16 %v611, %v610
        %616 = vrot.lane.b32.xlu0 %v612, 16
        %v617 = vpop.permute.xlu0 %616
        %618 = vrot.lane.b32.xlu0 %v613, 16
        %v619 = vpop.permute.xlu0 %618
        %620 = vrot.lane.b32.xlu0 %v614, 16
        %v621 = vpop.permute.xlu0 %620
        %622 = vrot.lane.b32.xlu0 %v615, 16
        %v623 = vpop.permute.xlu0 %622
        %vm628 = vcmask 195712
        %629 = vst.msk [vmem:[#allocation2] sm:$0xff] %vm628, %v617
        %630 = vst.msk [vmem:[#allocation2 + $0x8] sm:$0xff] %vm628, %v619
        %631 = vst.msk [vmem:[#allocation2 + $0x10] sm:$0xff] %vm628, %v621
        %632 = vst.msk [vmem:[#allocation2 + $0x18] sm:$0xff] %vm628, %v623
        %s633 = scalar_lea.vmem %s355, 8 [#allocation3]
        %v634 = vld [vmem:[%s633] sm:$0xf]
        %v635 = vld [vmem:[%s633 + $0x8] sm:$0xf]
        %v636 = vld [vmem:[%s633 + $0x10] sm:$0xf]
        %v637 = vld [vmem:[%s633 + $0x18] sm:$0xf]
        %v638 = vld [vmem:[%s633 + $0x20] sm:$0xf]
        %v639 = vld [vmem:[%s633 + $0x28] sm:$0xf]
        %v640 = vld [vmem:[%s633 + $0x30] sm:$0xf]
        %v641 = vld [vmem:[%s633 + $0x38] sm:$0xf]
        %v650 = vunpack.c.l.b16 %v634
        %v651 = vunpack.c.l.b16 %v635
        %v652 = vunpack.c.l.b16 %v636
        %v653 = vunpack.c.l.b16 %v637
        %v654 = vunpack.c.l.b16 %v638
        %v655 = vunpack.c.l.b16 %v639
        %v656 = vunpack.c.l.b16 %v640
        %v657 = vunpack.c.l.b16 %v641
        %v658 = vpack.c.b16 %v651, %v650
        %v659 = vpack.c.b16 %v653, %v652
        %v660 = vpack.c.b16 %v655, %v654
        %v661 = vpack.c.b16 %v657, %v656
        %662 = vrot.lane.b32.xlu0 %v658, 64
        %v663 = vpop.permute.xlu0 %662
        %664 = vrot.lane.b32.xlu0 %v659, 64
        %v665 = vpop.permute.xlu0 %664
        %666 = vrot.lane.b32.xlu0 %v660, 64
        %v667 = vpop.permute.xlu0 %666
        %668 = vrot.lane.b32.xlu0 %v661, 64
        %v669 = vpop.permute.xlu0 %668
        %vm674 = vcmask 589312
        %675 = vst.msk [vmem:[#allocation2] sm:$0xff] %vm674, %v663
        %676 = vst.msk [vmem:[#allocation2 + $0x8] sm:$0xff] %vm674, %v665
        %677 = vst.msk [vmem:[#allocation2 + $0x10] sm:$0xff] %vm674, %v667
        %678 = vst.msk [vmem:[#allocation2 + $0x18] sm:$0xff] %vm674, %v669
        %v679 = vld [vmem:[%s633] sm:$0xf]
        %v680 = vld [vmem:[%s633 + $0x4] sm:$0x1]
        %v681 = vld [vmem:[%s633 + $0x8] sm:$0xf]
        %v682 = vld [vmem:[%s633 + $0xc] sm:$0x1]
        %v683 = vld [vmem:[%s633 + $0x10] sm:$0xf]
        %v684 = vld [vmem:[%s633 + $0x14] sm:$0x1]
        %v685 = vld [vmem:[%s633 + $0x18] sm:$0xf]
        %v686 = vld [vmem:[%s633 + $0x1c] sm:$0x1]
        %v687 = vld [vmem:[%s633 + $0x20] sm:$0xf]
        %v688 = vld [vmem:[%s633 + $0x24] sm:$0x1]
        %v689 = vld [vmem:[%s633 + $0x28] sm:$0xf]
        %v690 = vld [vmem:[%s633 + $0x2c] sm:$0x1]
        %v691 = vld [vmem:[%s633 + $0x30] sm:$0xf]
        %v692 = vld [vmem:[%s633 + $0x34] sm:$0x1]
        %v693 = vld [vmem:[%s633 + $0x38] sm:$0xf]
        %v694 = vld [vmem:[%s633 + $0x3c] sm:$0x1]
        %v696 = vshrl.u32 %v679, 16
        %v698 = vrot.slane %v696, 4
        %v699 = vshll.u32 %v679, 16
        %v701 = vrot.slane %v699, 5
        %v702 = vor.u32 %v698, %v701
        %v703 = vrot.slane %v702, 4
        %v705 = vshll.u32 %v680, 16
        %v707 = vrot.slane %v705, 5
        %v708 = vsel %vm491, %v703, %v707
        %v710 = vshrl.u32 %v681, 16
        %v712 = vrot.slane %v710, 4
        %v713 = vshll.u32 %v681, 16
        %v715 = vrot.slane %v713, 5
        %v716 = vor.u32 %v712, %v715
        %v717 = vrot.slane %v716, 4
        %v719 = vshll.u32 %v682, 16
        %v721 = vrot.slane %v719, 5
        %v722 = vsel %vm491, %v717, %v721
        %v724 = vshrl.u32 %v683, 16
        %v726 = vrot.slane %v724, 4
        %v727 = vshll.u32 %v683, 16
        %v729 = vrot.slane %v727, 5
        %v730 = vor.u32 %v726, %v729
        %v731 = vrot.slane %v730, 4
        %v733 = vshll.u32 %v684, 16
        %v735 = vrot.slane %v733, 5
        %v736 = vsel %vm491, %v731, %v735
        %v738 = vshrl.u32 %v685, 16
        %v740 = vrot.slane %v738, 4
        %v741 = vshll.u32 %v685, 16
        %v743 = vrot.slane %v741, 5
        %v744 = vor.u32 %v740, %v743
        %v745 = vrot.slane %v744, 4
        %v747 = vshll.u32 %v686, 16
        %v749 = vrot.slane %v747, 5
        %v750 = vsel %vm491, %v745, %v749
        %v752 = vshrl.u32 %v687, 16
        %v754 = vrot.slane %v752, 4
        %v755 = vshll.u32 %v687, 16
        %v757 = vrot.slane %v755, 5
        %v758 = vor.u32 %v754, %v757
        %v759 = vrot.slane %v758, 4
        %v761 = vshll.u32 %v688, 16
        %v763 = vrot.slane %v761, 5
        %v764 = vsel %vm491, %v759, %v763
        %v766 = vshrl.u32 %v689, 16
        %v768 = vrot.slane %v766, 4
        %v769 = vshll.u32 %v689, 16
        %v771 = vrot.slane %v769, 5
        %v772 = vor.u32 %v768, %v771
        %v773 = vrot.slane %v772, 4
        %v775 = vshll.u32 %v690, 16
        %v777 = vrot.slane %v775, 5
        %v778 = vsel %vm491, %v773, %v777
        %v780 = vshrl.u32 %v691, 16
        %v782 = vrot.slane %v780, 4
        %v783 = vshll.u32 %v691, 16
        %v785 = vrot.slane %v783, 5
        %v786 = vor.u32 %v782, %v785
        %v787 = vrot.slane %v786, 4
        %v789 = vshll.u32 %v692, 16
        %v791 = vrot.slane %v789, 5
        %v792 = vsel %vm491, %v787, %v791
        %v794 = vshrl.u32 %v693, 16
        %v796 = vrot.slane %v794, 4
        %v797 = vshll.u32 %v693, 16
        %v799 = vrot.slane %v797, 5
        %v800 = vor.u32 %v796, %v799
        %v801 = vrot.slane %v800, 4
        %v803 = vshll.u32 %v694, 16
        %v805 = vrot.slane %v803, 5
        %v806 = vsel %vm491, %v801, %v805
        %v807 = vunpack.c.l.b16 %v708
        %v808 = vunpack.c.l.b16 %v722
        %v809 = vunpack.c.l.b16 %v736
        %v810 = vunpack.c.l.b16 %v750
        %v811 = vunpack.c.l.b16 %v764
        %v812 = vunpack.c.l.b16 %v778
        %v813 = vunpack.c.l.b16 %v792
        %v814 = vunpack.c.l.b16 %v806
        %v815 = vpack.c.b16 %v808, %v807
        %v816 = vpack.c.b16 %v810, %v809
        %v817 = vpack.c.b16 %v812, %v811
        %v818 = vpack.c.b16 %v814, %v813
        %819 = vrot.lane.b32.xlu0 %v815, 80
        %v820 = vpop.permute.xlu0 %819
        %821 = vrot.lane.b32.xlu0 %v816, 80
        %v822 = vpop.permute.xlu0 %821
        %823 = vrot.lane.b32.xlu0 %v817, 80
        %v824 = vpop.permute.xlu0 %823
        %825 = vrot.lane.b32.xlu0 %v818, 80
        %v826 = vpop.permute.xlu0 %825
        %vm831 = vcmask 720512
        %832 = vst.msk [vmem:[#allocation2] sm:$0xff] %vm831, %v820
        %833 = vst.msk [vmem:[#allocation2 + $0x8] sm:$0xff] %vm831, %v822
        %834 = vst.msk [vmem:[#allocation2 + $0x10] sm:$0xff] %vm831, %v824
        %835 = vst.msk [vmem:[#allocation2 + $0x18] sm:$0xff] %vm831, %v826
        %v836 = vld [vmem:[%s364] sm:$0xf]
        %v837 = vld [vmem:[%s364 + $0x8] sm:$0xf]
        %v838 = vld [vmem:[%s364 + $0x10] sm:$0xf]
        %v839 = vld [vmem:[%s364 + $0x18] sm:$0xf]
        %v840 = vld [vmem:[%s364 + $0x20] sm:$0xf]
        %v841 = vld [vmem:[%s364 + $0x28] sm:$0xf]
        %v842 = vld [vmem:[%s364 + $0x30] sm:$0xf]
        %v843 = vld [vmem:[%s364 + $0x38] sm:$0xf]
        %v852 = vunpack.c.l.b16 %v836
        %v853 = vunpack.c.l.b16 %v837
        %v854 = vunpack.c.l.b16 %v838
        %v855 = vunpack.c.l.b16 %v839
        %v856 = vunpack.c.l.b16 %v840
        %v857 = vunpack.c.l.b16 %v841
        %v858 = vunpack.c.l.b16 %v842
        %v859 = vunpack.c.l.b16 %v843
        %v860 = vpack.c.b16 %v853, %v852
        %v861 = vpack.c.b16 %v855, %v854
        %v862 = vpack.c.b16 %v857, %v856
        %v863 = vpack.c.b16 %v859, %v858
        %864 = vrot.lane.b32.xlu0 %v860, 8
        %v865 = vpop.permute.xlu0 %864
        %866 = vrot.lane.b32.xlu0 %v861, 8
        %v867 = vpop.permute.xlu0 %866
        %868 = vrot.lane.b32.xlu0 %v862, 8
        %v869 = vpop.permute.xlu0 %868
        %870 = vrot.lane.b32.xlu0 %v863, 8
        %v871 = vpop.permute.xlu0 %870
        %vm876 = vcmask 130112
        %877 = vst.msk [vmem:[#allocation2] sm:$0xff] %vm876, %v865
        %878 = vst.msk [vmem:[#allocation2 + $0x8] sm:$0xff] %vm876, %v867
        %879 = vst.msk [vmem:[#allocation2 + $0x10] sm:$0xff] %vm876, %v869
        %880 = vst.msk [vmem:[#allocation2 + $0x18] sm:$0xff] %vm876, %v871
        %v881 = vld [vmem:[%s364] sm:$0xf]
        %v882 = vld [vmem:[%s364 + $0x4] sm:$0x1]
        %v883 = vld [vmem:[%s364 + $0x8] sm:$0xf]
        %v884 = vld [vmem:[%s364 + $0xc] sm:$0x1]
        %v885 = vld [vmem:[%s364 + $0x10] sm:$0xf]
        %v886 = vld [vmem:[%s364 + $0x14] sm:$0x1]
        %v887 = vld [vmem:[%s364 + $0x18] sm:$0xf]
        %v888 = vld [vmem:[%s364 + $0x1c] sm:$0x1]
        %v889 = vld [vmem:[%s364 + $0x20] sm:$0xf]
        %v890 = vld [vmem:[%s364 + $0x24] sm:$0x1]
        %v891 = vld [vmem:[%s364 + $0x28] sm:$0xf]
        %v892 = vld [vmem:[%s364 + $0x2c] sm:$0x1]
        %v893 = vld [vmem:[%s364 + $0x30] sm:$0xf]
        %v894 = vld [vmem:[%s364 + $0x34] sm:$0x1]
        %v895 = vld [vmem:[%s364 + $0x38] sm:$0xf]
        %v896 = vld [vmem:[%s364 + $0x3c] sm:$0x1]
        %v898 = vshrl.u32 %v881, 16
        %v900 = vrot.slane %v898, 4
        %v901 = vshll.u32 %v881, 16
        %v903 = vrot.slane %v901, 5
        %v904 = vor.u32 %v900, %v903
        %v905 = vrot.slane %v904, 4
        %v907 = vshll.u32 %v882, 16
        %v909 = vrot.slane %v907, 5
        %v910 = vsel %vm491, %v905, %v909
        %v912 = vshrl.u32 %v883, 16
        %v914 = vrot.slane %v912, 4
        %v915 = vshll.u32 %v883, 16
        %v917 = vrot.slane %v915, 5
        %v918 = vor.u32 %v914, %v917
        %v919 = vrot.slane %v918, 4
        %v921 = vshll.u32 %v884, 16
        %v923 = vrot.slane %v921, 5
        %v924 = vsel %vm491, %v919, %v923
        %v926 = vshrl.u32 %v885, 16
        %v928 = vrot.slane %v926, 4
        %v929 = vshll.u32 %v885, 16
        %v931 = vrot.slane %v929, 5
        %v932 = vor.u32 %v928, %v931
        %v933 = vrot.slane %v932, 4
        %v935 = vshll.u32 %v886, 16
        %v937 = vrot.slane %v935, 5
        %v938 = vsel %vm491, %v933, %v937
        %v940 = vshrl.u32 %v887, 16
        %v942 = vrot.slane %v940, 4
        %v943 = vshll.u32 %v887, 16
        %v945 = vrot.slane %v943, 5
        %v946 = vor.u32 %v942, %v945
        %v947 = vrot.slane %v946, 4
        %v949 = vshll.u32 %v888, 16
        %v951 = vrot.slane %v949, 5
        %v952 = vsel %vm491, %v947, %v951
        %v954 = vshrl.u32 %v889, 16
        %v956 = vrot.slane %v954, 4
        %v957 = vshll.u32 %v889, 16
        %v959 = vrot.slane %v957, 5
        %v960 = vor.u32 %v956, %v959
        %v961 = vrot.slane %v960, 4
        %v963 = vshll.u32 %v890, 16
        %v965 = vrot.slane %v963, 5
        %v966 = vsel %vm491, %v961, %v965
        %v968 = vshrl.u32 %v891, 16
        %v970 = vrot.slane %v968, 4
        %v971 = vshll.u32 %v891, 16
        %v973 = vrot.slane %v971, 5
        %v974 = vor.u32 %v970, %v973
        %v975 = vrot.slane %v974, 4
        %v977 = vshll.u32 %v892, 16
        %v979 = vrot.slane %v977, 5
        %v980 = vsel %vm491, %v975, %v979
        %v982 = vshrl.u32 %v893, 16
        %v984 = vrot.slane %v982, 4
        %v985 = vshll.u32 %v893, 16
        %v987 = vrot.slane %v985, 5
        %v988 = vor.u32 %v984, %v987
        %v989 = vrot.slane %v988, 4
        %v991 = vshll.u32 %v894, 16
        %v993 = vrot.slane %v991, 5
        %v994 = vsel %vm491, %v989, %v993
        %v996 = vshrl.u32 %v895, 16
        %v998 = vrot.slane %v996, 4
        %v999 = vshll.u32 %v895, 16
        %v1001 = vrot.slane %v999, 5
        %v1002 = vor.u32 %v998, %v1001
        %v1003 = vrot.slane %v1002, 4
        %v1005 = vshll.u32 %v896, 16
        %v1007 = vrot.slane %v1005, 5
        %v1008 = vsel %vm491, %v1003, %v1007
        %v1009 = vunpack.c.l.b16 %v910
        %v1010 = vunpack.c.l.b16 %v924
        %v1011 = vunpack.c.l.b16 %v938
        %v1012 = vunpack.c.l.b16 %v952
        %v1013 = vunpack.c.l.b16 %v966
        %v1014 = vunpack.c.l.b16 %v980
        %v1015 = vunpack.c.l.b16 %v994
        %v1016 = vunpack.c.l.b16 %v1008
        %v1017 = vpack.c.b16 %v1010, %v1009
        %v1018 = vpack.c.b16 %v1012, %v1011
        %v1019 = vpack.c.b16 %v1014, %v1013
        %v1020 = vpack.c.b16 %v1016, %v1015
        %1021 = vrot.lane.b32.xlu0 %v1017, 24
        %v1022 = vpop.permute.xlu0 %1021
        %1023 = vrot.lane.b32.xlu0 %v1018, 24
        %v1024 = vpop.permute.xlu0 %1023
        %1025 = vrot.lane.b32.xlu0 %v1019, 24
        %v1026 = vpop.permute.xlu0 %1025
        %1027 = vrot.lane.b32.xlu0 %v1020, 24
        %v1028 = vpop.permute.xlu0 %1027
        %vm1033 = vcmask 261312
        %1034 = vst.msk [vmem:[#allocation2] sm:$0xff] %vm1033, %v1022
        %1035 = vst.msk [vmem:[#allocation2 + $0x8] sm:$0xff] %vm1033, %v1024
        %1036 = vst.msk [vmem:[#allocation2 + $0x10] sm:$0xff] %vm1033, %v1026
        %1037 = vst.msk [vmem:[#allocation2 + $0x18] sm:$0xff] %vm1033, %v1028
        %s1038 = scalar_lea.vmem %s364, 8 [#allocation6]
        %v1039 = vld [vmem:[%s1038] sm:$0xf]
        %v1040 = vld [vmem:[%s1038 + $0x8] sm:$0xf]
        %v1041 = vld [vmem:[%s1038 + $0x10] sm:$0xf]
        %v1042 = vld [vmem:[%s1038 + $0x18] sm:$0xf]
        %v1043 = vld [vmem:[%s1038 + $0x20] sm:$0xf]
        %v1044 = vld [vmem:[%s1038 + $0x28] sm:$0xf]
        %v1045 = vld [vmem:[%s1038 + $0x30] sm:$0xf]
        %v1046 = vld [vmem:[%s1038 + $0x38] sm:$0xf]
        %v1055 = vunpack.c.l.b16 %v1039
        %v1056 = vunpack.c.l.b16 %v1040
        %v1057 = vunpack.c.l.b16 %v1041
        %v1058 = vunpack.c.l.b16 %v1042
        %v1059 = vunpack.c.l.b16 %v1043
        %v1060 = vunpack.c.l.b16 %v1044
        %v1061 = vunpack.c.l.b16 %v1045
        %v1062 = vunpack.c.l.b16 %v1046
        %v1063 = vpack.c.b16 %v1056, %v1055
        %v1064 = vpack.c.b16 %v1058, %v1057
        %v1065 = vpack.c.b16 %v1060, %v1059
        %v1066 = vpack.c.b16 %v1062, %v1061
        %1067 = vrot.lane.b32.xlu0 %v1063, 72
        %v1068 = vpop.permute.xlu0 %1067
        %1069 = vrot.lane.b32.xlu0 %v1064, 72
        %v1070 = vpop.permute.xlu0 %1069
        %1071 = vrot.lane.b32.xlu0 %v1065, 72
        %v1072 = vpop.permute.xlu0 %1071
        %1073 = vrot.lane.b32.xlu0 %v1066, 72
        %v1074 = vpop.permute.xlu0 %1073
        %vm1079 = vcmask 654912
        %1080 = vst.msk [vmem:[#allocation2] sm:$0xff] %vm1079, %v1068
        %1081 = vst.msk [vmem:[#allocation2 + $0x8] sm:$0xff] %vm1079, %v1070
        %1082 = vst.msk [vmem:[#allocation2 + $0x10] sm:$0xff] %vm1079, %v1072
        %1083 = vst.msk [vmem:[#allocation2 + $0x18] sm:$0xff] %vm1079, %v1074
        %v1084 = vld [vmem:[%s1038] sm:$0xf]
        %v1085 = vld [vmem:[%s1038 + $0x4] sm:$0x1]
        %v1086 = vld [vmem:[%s1038 + $0x8] sm:$0xf]
        %v1087 = vld [vmem:[%s1038 + $0xc] sm:$0x1]
        %v1088 = vld [vmem:[%s1038 + $0x10] sm:$0xf]
        %v1089 = vld [vmem:[%s1038 + $0x14] sm:$0x1]
        %v1090 = vld [vmem:[%s1038 + $0x18] sm:$0xf]
        %v1091 = vld [vmem:[%s1038 + $0x1c] sm:$0x1]
        %v1092 = vld [vmem:[%s1038 + $0x20] sm:$0xf]
        %v1093 = vld [vmem:[%s1038 + $0x24] sm:$0x1]
        %v1094 = vld [vmem:[%s1038 + $0x28] sm:$0xf]
        %v1095 = vld [vmem:[%s1038 + $0x2c] sm:$0x1]
        %v1096 = vld [vmem:[%s1038 + $0x30] sm:$0xf]
        %v1097 = vld [vmem:[%s1038 + $0x34] sm:$0x1]
        %v1098 = vld [vmem:[%s1038 + $0x38] sm:$0xf]
        %v1099 = vld [vmem:[%s1038 + $0x3c] sm:$0x1]
        %v1101 = vshrl.u32 %v1084, 16
        %v1103 = vrot.slane %v1101, 4
        %v1104 = vshll.u32 %v1084, 16
        %v1106 = vrot.slane %v1104, 5
        %v1107 = vor.u32 %v1103, %v1106
        %v1108 = vrot.slane %v1107, 4
        %v1110 = vshll.u32 %v1085, 16
        %v1112 = vrot.slane %v1110, 5
        %v1113 = vsel %vm491, %v1108, %v1112
        %v1115 = vshrl.u32 %v1086, 16
        %v1117 = vrot.slane %v1115, 4
        %v1118 = vshll.u32 %v1086, 16
        %v1120 = vrot.slane %v1118, 5
        %v1121 = vor.u32 %v1117, %v1120
        %v1122 = vrot.slane %v1121, 4
        %v1124 = vshll.u32 %v1087, 16
        %v1126 = vrot.slane %v1124, 5
        %v1127 = vsel %vm491, %v1122, %v1126
        %v1129 = vshrl.u32 %v1088, 16
        %v1131 = vrot.slane %v1129, 4
        %v1132 = vshll.u32 %v1088, 16
        %v1134 = vrot.slane %v1132, 5
        %v1135 = vor.u32 %v1131, %v1134
        %v1136 = vrot.slane %v1135, 4
        %v1138 = vshll.u32 %v1089, 16
        %v1140 = vrot.slane %v1138, 5
        %v1141 = vsel %vm491, %v1136, %v1140
        %v1143 = vshrl.u32 %v1090, 16
        %v1145 = vrot.slane %v1143, 4
        %v1146 = vshll.u32 %v1090, 16
        %v1148 = vrot.slane %v1146, 5
        %v1149 = vor.u32 %v1145, %v1148
        %v1150 = vrot.slane %v1149, 4
        %v1152 = vshll.u32 %v1091, 16
        %v1154 = vrot.slane %v1152, 5
        %v1155 = vsel %vm491, %v1150, %v1154
        %v1157 = vshrl.u32 %v1092, 16
        %v1159 = vrot.slane %v1157, 4
        %v1160 = vshll.u32 %v1092, 16
        %v1162 = vrot.slane %v1160, 5
        %v1163 = vor.u32 %v1159, %v1162
        %v1164 = vrot.slane %v1163, 4
        %v1166 = vshll.u32 %v1093, 16
        %v1168 = vrot.slane %v1166, 5
        %v1169 = vsel %vm491, %v1164, %v1168
        %v1171 = vshrl.u32 %v1094, 16
        %v1173 = vrot.slane %v1171, 4
        %v1174 = vshll.u32 %v1094, 16
        %v1176 = vrot.slane %v1174, 5
        %v1177 = vor.u32 %v1173, %v1176
        %v1178 = vrot.slane %v1177, 4
        %v1180 = vshll.u32 %v1095, 16
        %v1182 = vrot.slane %v1180, 5
        %v1183 = vsel %vm491, %v1178, %v1182
        %v1185 = vshrl.u32 %v1096, 16
        %v1187 = vrot.slane %v1185, 4
        %v1188 = vshll.u32 %v1096, 16
        %v1190 = vrot.slane %v1188, 5
        %v1191 = vor.u32 %v1187, %v1190
        %v1192 = vrot.slane %v1191, 4
        %v1194 = vshll.u32 %v1097, 16
        %v1196 = vrot.slane %v1194, 5
        %v1197 = vsel %vm491, %v1192, %v1196
        %v1199 = vshrl.u32 %v1098, 16
        %v1201 = vrot.slane %v1199, 4
        %v1202 = vshll.u32 %v1098, 16
        %v1204 = vrot.slane %v1202, 5
        %v1205 = vor.u32 %v1201, %v1204
        %v1206 = vrot.slane %v1205, 4
        %v1208 = vshll.u32 %v1099, 16
        %v1210 = vrot.slane %v1208, 5
        %v1211 = vsel %vm491, %v1206, %v1210
        %v1212 = vunpack.c.l.b16 %v1113
        %v1213 = vunpack.c.l.b16 %v1127
        %v1214 = vunpack.c.l.b16 %v1141
        %v1215 = vunpack.c.l.b16 %v1155
        %v1216 = vunpack.c.l.b16 %v1169
        %v1217 = vunpack.c.l.b16 %v1183
        %v1218 = vunpack.c.l.b16 %v1197
        %v1219 = vunpack.c.l.b16 %v1211
        %v1220 = vpack.c.b16 %v1213, %v1212
        %v1221 = vpack.c.b16 %v1215, %v1214
        %v1222 = vpack.c.b16 %v1217, %v1216
        %v1223 = vpack.c.b16 %v1219, %v1218
        %1224 = vrot.lane.b32.xlu0 %v1220, 88
        %v1225 = vpop.permute.xlu0 %1224
        %1226 = vrot.lane.b32.xlu0 %v1221, 88
        %v1227 = vpop.permute.xlu0 %1226
        %1228 = vrot.lane.b32.xlu0 %v1222, 88
        %v1229 = vpop.permute.xlu0 %1228
        %1230 = vrot.lane.b32.xlu0 %v1223, 88
        %v1231 = vpop.permute.xlu0 %1230
        %vm1236 = vcmask 786112
        %1237 = vst.msk [vmem:[#allocation2] sm:$0xff] %vm1236, %v1225
        %1238 = vst.msk [vmem:[#allocation2 + $0x8] sm:$0xff] %vm1236, %v1227
        %1239 = vst.msk [vmem:[#allocation2 + $0x10] sm:$0xff] %vm1236, %v1229
        %1240 = vst.msk [vmem:[#allocation2 + $0x18] sm:$0xff] %vm1236, %v1231
        %v1241 = vld [vmem:[%s373] sm:$0xf]
        %v1242 = vld [vmem:[%s373 + $0x8] sm:$0xf]
        %v1243 = vld [vmem:[%s373 + $0x10] sm:$0xf]
        %v1244 = vld [vmem:[%s373 + $0x18] sm:$0xf]
        %v1245 = vld [vmem:[%s373 + $0x20] sm:$0xf]
        %v1246 = vld [vmem:[%s373 + $0x28] sm:$0xf]
        %v1247 = vld [vmem:[%s373 + $0x30] sm:$0xf]
        %v1248 = vld [vmem:[%s373 + $0x38] sm:$0xf]
        %v1257 = vunpack.c.l.b16 %v1241
        %v1258 = vunpack.c.l.b16 %v1242
        %v1259 = vunpack.c.l.b16 %v1243
        %v1260 = vunpack.c.l.b16 %v1244
        %v1261 = vunpack.c.l.b16 %v1245
        %v1262 = vunpack.c.l.b16 %v1246
        %v1263 = vunpack.c.l.b16 %v1247
        %v1264 = vunpack.c.l.b16 %v1248
        %v1265 = vpack.c.b16 %v1258, %v1257
        %v1266 = vpack.c.b16 %v1260, %v1259
        %v1267 = vpack.c.b16 %v1262, %v1261
        %v1268 = vpack.c.b16 %v1264, %v1263
        %1269 = vrot.lane.b32.xlu0 %v1265, 32
        %v1270 = vpop.permute.xlu0 %1269
        %1271 = vrot.lane.b32.xlu0 %v1266, 32
        %v1272 = vpop.permute.xlu0 %1271
        %1273 = vrot.lane.b32.xlu0 %v1267, 32
        %v1274 = vpop.permute.xlu0 %1273
        %1275 = vrot.lane.b32.xlu0 %v1268, 32
        %v1276 = vpop.permute.xlu0 %1275
        %vm1281 = vcmask 326912
        %1282 = vst.msk [vmem:[#allocation2] sm:$0xff] %vm1281, %v1270
        %1283 = vst.msk [vmem:[#allocation2 + $0x8] sm:$0xff] %vm1281, %v1272
        %1284 = vst.msk [vmem:[#allocation2 + $0x10] sm:$0xff] %vm1281, %v1274
        %1285 = vst.msk [vmem:[#allocation2 + $0x18] sm:$0xff] %vm1281, %v1276
        %v1286 = vld [vmem:[%s373] sm:$0xf]
        %v1287 = vld [vmem:[%s373 + $0x4] sm:$0x1]
        %v1288 = vld [vmem:[%s373 + $0x8] sm:$0xf]
        %v1289 = vld [vmem:[%s373 + $0xc] sm:$0x1]
        %v1290 = vld [vmem:[%s373 + $0x10] sm:$0xf]
        %v1291 = vld [vmem:[%s373 + $0x14] sm:$0x1]
        %v1292 = vld [vmem:[%s373 + $0x18] sm:$0xf]
        %v1293 = vld [vmem:[%s373 + $0x1c] sm:$0x1]
        %v1294 = vld [vmem:[%s373 + $0x20] sm:$0xf]
        %v1295 = vld [vmem:[%s373 + $0x24] sm:$0x1]
        %v1296 = vld [vmem:[%s373 + $0x28] sm:$0xf]
        %v1297 = vld [vmem:[%s373 + $0x2c] sm:$0x1]
        %v1298 = vld [vmem:[%s373 + $0x30] sm:$0xf]
        %v1299 = vld [vmem:[%s373 + $0x34] sm:$0x1]
        %v1300 = vld [vmem:[%s373 + $0x38] sm:$0xf]
        %v1301 = vld [vmem:[%s373 + $0x3c] sm:$0x1]
        %v1303 = vshrl.u32 %v1286, 16
        %v1305 = vrot.slane %v1303, 4
        %v1306 = vshll.u32 %v1286, 16
        %v1308 = vrot.slane %v1306, 5
        %v1309 = vor.u32 %v1305, %v1308
        %v1310 = vrot.slane %v1309, 4
        %v1312 = vshll.u32 %v1287, 16
        %v1314 = vrot.slane %v1312, 5
        %v1315 = vsel %vm491, %v1310, %v1314
        %v1317 = vshrl.u32 %v1288, 16
        %v1319 = vrot.slane %v1317, 4
        %v1320 = vshll.u32 %v1288, 16
        %v1322 = vrot.slane %v1320, 5
        %v1323 = vor.u32 %v1319, %v1322
        %v1324 = vrot.slane %v1323, 4
        %v1326 = vshll.u32 %v1289, 16
        %v1328 = vrot.slane %v1326, 5
        %v1329 = vsel %vm491, %v1324, %v1328
        %v1331 = vshrl.u32 %v1290, 16
        %v1333 = vrot.slane %v1331, 4
        %v1334 = vshll.u32 %v1290, 16
        %v1336 = vrot.slane %v1334, 5
        %v1337 = vor.u32 %v1333, %v1336
        %v1338 = vrot.slane %v1337, 4
        %v1340 = vshll.u32 %v1291, 16
        %v1342 = vrot.slane %v1340, 5
        %v1343 = vsel %vm491, %v1338, %v1342
        %v1345 = vshrl.u32 %v1292, 16
        %v1347 = vrot.slane %v1345, 4
        %v1348 = vshll.u32 %v1292, 16
        %v1350 = vrot.slane %v1348, 5
        %v1351 = vor.u32 %v1347, %v1350
        %v1352 = vrot.slane %v1351, 4
        %v1354 = vshll.u32 %v1293, 16
        %v1356 = vrot.slane %v1354, 5
        %v1357 = vsel %vm491, %v1352, %v1356
        %v1359 = vshrl.u32 %v1294, 16
        %v1361 = vrot.slane %v1359, 4
        %v1362 = vshll.u32 %v1294, 16
        %v1364 = vrot.slane %v1362, 5
        %v1365 = vor.u32 %v1361, %v1364
        %v1366 = vrot.slane %v1365, 4
        %v1368 = vshll.u32 %v1295, 16
        %v1370 = vrot.slane %v1368, 5
        %v1371 = vsel %vm491, %v1366, %v1370
        %v1373 = vshrl.u32 %v1296, 16
        %v1375 = vrot.slane %v1373, 4
        %v1376 = vshll.u32 %v1296, 16
        %v1378 = vrot.slane %v1376, 5
        %v1379 = vor.u32 %v1375, %v1378
        %v1380 = vrot.slane %v1379, 4
        %v1382 = vshll.u32 %v1297, 16
        %v1384 = vrot.slane %v1382, 5
        %v1385 = vsel %vm491, %v1380, %v1384
        %v1387 = vshrl.u32 %v1298, 16
        %v1389 = vrot.slane %v1387, 4
        %v1390 = vshll.u32 %v1298, 16
        %v1392 = vrot.slane %v1390, 5
        %v1393 = vor.u32 %v1389, %v1392
        %v1394 = vrot.slane %v1393, 4
        %v1396 = vshll.u32 %v1299, 16
        %v1398 = vrot.slane %v1396, 5
        %v1399 = vsel %vm491, %v1394, %v1398
        %v1401 = vshrl.u32 %v1300, 16
        %v1403 = vrot.slane %v1401, 4
        %v1404 = vshll.u32 %v1300, 16
        %v1406 = vrot.slane %v1404, 5
        %v1407 = vor.u32 %v1403, %v1406
        %v1408 = vrot.slane %v1407, 4
        %v1410 = vshll.u32 %v1301, 16
        %v1412 = vrot.slane %v1410, 5
        %v1413 = vsel %vm491, %v1408, %v1412
        %v1414 = vunpack.c.l.b16 %v1315
        %v1415 = vunpack.c.l.b16 %v1329
        %v1416 = vunpack.c.l.b16 %v1343
        %v1417 = vunpack.c.l.b16 %v1357
        %v1418 = vunpack.c.l.b16 %v1371
        %v1419 = vunpack.c.l.b16 %v1385
        %v1420 = vunpack.c.l.b16 %v1399
        %v1421 = vunpack.c.l.b16 %v1413
        %v1422 = vpack.c.b16 %v1415, %v1414
        %v1423 = vpack.c.b16 %v1417, %v1416
        %v1424 = vpack.c.b16 %v1419, %v1418
        %v1425 = vpack.c.b16 %v1421, %v1420
        %1426 = vrot.lane.b32.xlu0 %v1422, 48
        %v1427 = vpop.permute.xlu0 %1426
        %1428 = vrot.lane.b32.xlu0 %v1423, 48
        %v1429 = vpop.permute.xlu0 %1428
        %1430 = vrot.lane.b32.xlu0 %v1424, 48
        %v1431 = vpop.permute.xlu0 %1430
        %1432 = vrot.lane.b32.xlu0 %v1425, 48
        %v1433 = vpop.permute.xlu0 %1432
        %vm1438 = vcmask 458112
        %1439 = vst.msk [vmem:[#allocation2] sm:$0xff] %vm1438, %v1427
        %1440 = vst.msk [vmem:[#allocation2 + $0x8] sm:$0xff] %vm1438, %v1429
        %1441 = vst.msk [vmem:[#allocation2 + $0x10] sm:$0xff] %vm1438, %v1431
        %1442 = vst.msk [vmem:[#allocation2 + $0x18] sm:$0xff] %vm1438, %v1433
        %s1443 = scalar_lea.vmem %s373, 8 [#allocation8]
        %v1444 = vld [vmem:[%s1443] sm:$0xf]
        %v1445 = vld [vmem:[%s1443 + $0x8] sm:$0xf]
        %v1446 = vld [vmem:[%s1443 + $0x10] sm:$0xf]
        %v1447 = vld [vmem:[%s1443 + $0x18] sm:$0xf]
        %v1448 = vld [vmem:[%s1443 + $0x20] sm:$0xf]
        %v1449 = vld [vmem:[%s1443 + $0x28] sm:$0xf]
        %v1450 = vld [vmem:[%s1443 + $0x30] sm:$0xf]
        %v1451 = vld [vmem:[%s1443 + $0x38] sm:$0xf]
        %v1460 = vunpack.c.l.b16 %v1444
        %v1461 = vunpack.c.l.b16 %v1445
        %v1462 = vunpack.c.l.b16 %v1446
        %v1463 = vunpack.c.l.b16 %v1447
        %v1464 = vunpack.c.l.b16 %v1448
        %v1465 = vunpack.c.l.b16 %v1449
        %v1466 = vunpack.c.l.b16 %v1450
        %v1467 = vunpack.c.l.b16 %v1451
        %v1468 = vpack.c.b16 %v1461, %v1460
        %v1469 = vpack.c.b16 %v1463, %v1462
        %v1470 = vpack.c.b16 %v1465, %v1464
        %v1471 = vpack.c.b16 %v1467, %v1466
        %1472 = vrot.lane.b32.xlu0 %v1468, 96
        %v1473 = vpop.permute.xlu0 %1472
        %1474 = vrot.lane.b32.xlu0 %v1469, 96
        %v1475 = vpop.permute.xlu0 %1474
        %1476 = vrot.lane.b32.xlu0 %v1470, 96
        %v1477 = vpop.permute.xlu0 %1476
        %1478 = vrot.lane.b32.xlu0 %v1471, 96
        %v1479 = vpop.permute.xlu0 %1478
        %vm1484 = vcmask 851712
        %1485 = vst.msk [vmem:[#allocation2] sm:$0xff] %vm1484, %v1473
        %1486 = vst.msk [vmem:[#allocation2 + $0x8] sm:$0xff] %vm1484, %v1475
        %1487 = vst.msk [vmem:[#allocation2 + $0x10] sm:$0xff] %vm1484, %v1477
        %1488 = vst.msk [vmem:[#allocation2 + $0x18] sm:$0xff] %vm1484, %v1479
        %v1489 = vld [vmem:[%s1443] sm:$0xf]
        %v1490 = vld [vmem:[%s1443 + $0x4] sm:$0x1]
        %v1491 = vld [vmem:[%s1443 + $0x8] sm:$0xf]
        %v1492 = vld [vmem:[%s1443 + $0xc] sm:$0x1]
        %v1493 = vld [vmem:[%s1443 + $0x10] sm:$0xf]
        %v1494 = vld [vmem:[%s1443 + $0x14] sm:$0x1]
        %v1495 = vld [vmem:[%s1443 + $0x18] sm:$0xf]
        %v1496 = vld [vmem:[%s1443 + $0x1c] sm:$0x1]
        %v1497 = vld [vmem:[%s1443 + $0x20] sm:$0xf]
        %v1498 = vld [vmem:[%s1443 + $0x24] sm:$0x1]
        %v1499 = vld [vmem:[%s1443 + $0x28] sm:$0xf]
        %v1500 = vld [vmem:[%s1443 + $0x2c] sm:$0x1]
        %v1501 = vld [vmem:[%s1443 + $0x30] sm:$0xf]
        %v1502 = vld [vmem:[%s1443 + $0x34] sm:$0x1]
        %v1503 = vld [vmem:[%s1443 + $0x38] sm:$0xf]
        %v1504 = vld [vmem:[%s1443 + $0x3c] sm:$0x1]
        %v1506 = vshrl.u32 %v1489, 16
        %v1508 = vrot.slane %v1506, 4
        %v1509 = vshll.u32 %v1489, 16
        %v1511 = vrot.slane %v1509, 5
        %v1512 = vor.u32 %v1508, %v1511
        %v1513 = vrot.slane %v1512, 4
        %v1515 = vshll.u32 %v1490, 16
        %v1517 = vrot.slane %v1515, 5
        %v1518 = vsel %vm491, %v1513, %v1517
        %v1520 = vshrl.u32 %v1491, 16
        %v1522 = vrot.slane %v1520, 4
        %v1523 = vshll.u32 %v1491, 16
        %v1525 = vrot.slane %v1523, 5
        %v1526 = vor.u32 %v1522, %v1525
        %v1527 = vrot.slane %v1526, 4
        %v1529 = vshll.u32 %v1492, 16
        %v1531 = vrot.slane %v1529, 5
        %v1532 = vsel %vm491, %v1527, %v1531
        %v1534 = vshrl.u32 %v1493, 16
        %v1536 = vrot.slane %v1534, 4
        %v1537 = vshll.u32 %v1493, 16
        %v1539 = vrot.slane %v1537, 5
        %v1540 = vor.u32 %v1536, %v1539
        %v1541 = vrot.slane %v1540, 4
        %v1543 = vshll.u32 %v1494, 16
        %v1545 = vrot.slane %v1543, 5
        %v1546 = vsel %vm491, %v1541, %v1545
        %v1548 = vshrl.u32 %v1495, 16
        %v1550 = vrot.slane %v1548, 4
        %v1551 = vshll.u32 %v1495, 16
        %v1553 = vrot.slane %v1551, 5
        %v1554 = vor.u32 %v1550, %v1553
        %v1555 = vrot.slane %v1554, 4
        %v1557 = vshll.u32 %v1496, 16
        %v1559 = vrot.slane %v1557, 5
        %v1560 = vsel %vm491, %v1555, %v1559
        %v1562 = vshrl.u32 %v1497, 16
        %v1564 = vrot.slane %v1562, 4
        %v1565 = vshll.u32 %v1497, 16
        %v1567 = vrot.slane %v1565, 5
        %v1568 = vor.u32 %v1564, %v1567
        %v1569 = vrot.slane %v1568, 4
        %v1571 = vshll.u32 %v1498, 16
        %v1573 = vrot.slane %v1571, 5
        %v1574 = vsel %vm491, %v1569, %v1573
        %v1576 = vshrl.u32 %v1499, 16
        %v1578 = vrot.slane %v1576, 4
        %v1579 = vshll.u32 %v1499, 16
        %v1581 = vrot.slane %v1579, 5
        %v1582 = vor.u32 %v1578, %v1581
        %v1583 = vrot.slane %v1582, 4
        %v1585 = vshll.u32 %v1500, 16
        %v1587 = vrot.slane %v1585, 5
        %v1588 = vsel %vm491, %v1583, %v1587
        %v1590 = vshrl.u32 %v1501, 16
        %v1592 = vrot.slane %v1590, 4
        %v1593 = vshll.u32 %v1501, 16
        %v1595 = vrot.slane %v1593, 5
        %v1596 = vor.u32 %v1592, %v1595
        %v1597 = vrot.slane %v1596, 4
        %v1599 = vshll.u32 %v1502, 16
        %v1601 = vrot.slane %v1599, 5
        %v1602 = vsel %vm491, %v1597, %v1601
        %v1604 = vshrl.u32 %v1503, 16
        %v1606 = vrot.slane %v1604, 4
        %v1607 = vshll.u32 %v1503, 16
        %v1609 = vrot.slane %v1607, 5
        %v1610 = vor.u32 %v1606, %v1609
        %v1611 = vrot.slane %v1610, 4
        %v1613 = vshll.u32 %v1504, 16
        %v1615 = vrot.slane %v1613, 5
        %v1616 = vsel %vm491, %v1611, %v1615
        %v1617 = vunpack.c.l.b16 %v1518
        %v1618 = vunpack.c.l.b16 %v1532
        %v1619 = vunpack.c.l.b16 %v1546
        %v1620 = vunpack.c.l.b16 %v1560
        %v1621 = vunpack.c.l.b16 %v1574
        %v1622 = vunpack.c.l.b16 %v1588
        %v1623 = vunpack.c.l.b16 %v1602
        %v1624 = vunpack.c.l.b16 %v1616
        %v1625 = vpack.c.b16 %v1618, %v1617
        %v1626 = vpack.c.b16 %v1620, %v1619
        %v1627 = vpack.c.b16 %v1622, %v1621
        %v1628 = vpack.c.b16 %v1624, %v1623
        %1629 = vrot.lane.b32.xlu0 %v1625, 112
        %v1630 = vpop.permute.xlu0 %1629
        %1631 = vrot.lane.b32.xlu0 %v1626, 112
        %v1632 = vpop.permute.xlu0 %1631
        %1633 = vrot.lane.b32.xlu0 %v1627, 112
        %v1634 = vpop.permute.xlu0 %1633
        %1635 = vrot.lane.b32.xlu0 %v1628, 112
        %v1636 = vpop.permute.xlu0 %1635
        %vm1641 = vcmask 982912
        %1642 = vst.msk [vmem:[#allocation2] sm:$0xff] %vm1641, %v1630
        %1643 = vst.msk [vmem:[#allocation2 + $0x8] sm:$0xff] %vm1641, %v1632
        %1644 = vst.msk [vmem:[#allocation2 + $0x10] sm:$0xff] %vm1641, %v1634
        %1645 = vst.msk [vmem:[#allocation2 + $0x18] sm:$0xff] %vm1641, %v1636
        %v1646 = vld [vmem:[%s382] sm:$0xf]
        %v1647 = vld [vmem:[%s382 + $0x8] sm:$0xf]
        %v1648 = vld [vmem:[%s382 + $0x10] sm:$0xf]
        %v1649 = vld [vmem:[%s382 + $0x18] sm:$0xf]
        %v1650 = vld [vmem:[%s382 + $0x20] sm:$0xf]
        %v1651 = vld [vmem:[%s382 + $0x28] sm:$0xf]
        %v1652 = vld [vmem:[%s382 + $0x30] sm:$0xf]
        %v1653 = vld [vmem:[%s382 + $0x38] sm:$0xf]
        %v1662 = vunpack.c.l.b16 %v1646
        %v1663 = vunpack.c.l.b16 %v1647
        %v1664 = vunpack.c.l.b16 %v1648
        %v1665 = vunpack.c.l.b16 %v1649
        %v1666 = vunpack.c.l.b16 %v1650
        %v1667 = vunpack.c.l.b16 %v1651
        %v1668 = vunpack.c.l.b16 %v1652
        %v1669 = vunpack.c.l.b16 %v1653
        %v1670 = vpack.c.b16 %v1663, %v1662
        %v1671 = vpack.c.b16 %v1665, %v1664
        %v1672 = vpack.c.b16 %v1667, %v1666
        %v1673 = vpack.c.b16 %v1669, %v1668
        %1674 = vrot.lane.b32.xlu0 %v1670, 40
        %v1675 = vpop.permute.xlu0 %1674
        %1676 = vrot.lane.b32.xlu0 %v1671, 40
        %v1677 = vpop.permute.xlu0 %1676
        %1678 = vrot.lane.b32.xlu0 %v1672, 40
        %v1679 = vpop.permute.xlu0 %1678
        %1680 = vrot.lane.b32.xlu0 %v1673, 40
        %v1681 = vpop.permute.xlu0 %1680
        %vm1686 = vcmask 392512
        %1687 = vst.msk [vmem:[#allocation2] sm:$0xff] %vm1686, %v1675
        %1688 = vst.msk [vmem:[#allocation2 + $0x8] sm:$0xff] %vm1686, %v1677
        %1689 = vst.msk [vmem:[#allocation2 + $0x10] sm:$0xff] %vm1686, %v1679
        %1690 = vst.msk [vmem:[#allocation2 + $0x18] sm:$0xff] %vm1686, %v1681
        %v1691 = vld [vmem:[%s382] sm:$0xf]
        %v1692 = vld [vmem:[%s382 + $0x4] sm:$0x1]
        %v1693 = vld [vmem:[%s382 + $0x8] sm:$0xf]
        %v1694 = vld [vmem:[%s382 + $0xc] sm:$0x1]
        %v1695 = vld [vmem:[%s382 + $0x10] sm:$0xf]
        %v1696 = vld [vmem:[%s382 + $0x14] sm:$0x1]
        %v1697 = vld [vmem:[%s382 + $0x18] sm:$0xf]
        %v1698 = vld [vmem:[%s382 + $0x1c] sm:$0x1]
        %v1699 = vld [vmem:[%s382 + $0x20] sm:$0xf]
        %v1700 = vld [vmem:[%s382 + $0x24] sm:$0x1]
        %v1701 = vld [vmem:[%s382 + $0x28] sm:$0xf]
        %v1702 = vld [vmem:[%s382 + $0x2c] sm:$0x1]
        %v1703 = vld [vmem:[%s382 + $0x30] sm:$0xf]
        %v1704 = vld [vmem:[%s382 + $0x34] sm:$0x1]
        %v1705 = vld [vmem:[%s382 + $0x38] sm:$0xf]
        %v1706 = vld [vmem:[%s382 + $0x3c] sm:$0x1]
        %v1708 = vshrl.u32 %v1691, 16
        %v1710 = vrot.slane %v1708, 4
        %v1711 = vshll.u32 %v1691, 16
        %v1713 = vrot.slane %v1711, 5
        %v1714 = vor.u32 %v1710, %v1713
        %v1715 = vrot.slane %v1714, 4
        %v1717 = vshll.u32 %v1692, 16
        %v1719 = vrot.slane %v1717, 5
        %v1720 = vsel %vm491, %v1715, %v1719
        %v1722 = vshrl.u32 %v1693, 16
        %v1724 = vrot.slane %v1722, 4
        %v1725 = vshll.u32 %v1693, 16
        %v1727 = vrot.slane %v1725, 5
        %v1728 = vor.u32 %v1724, %v1727
        %v1729 = vrot.slane %v1728, 4
        %v1731 = vshll.u32 %v1694, 16
        %v1733 = vrot.slane %v1731, 5
        %v1734 = vsel %vm491, %v1729, %v1733
        %v1736 = vshrl.u32 %v1695, 16
        %v1738 = vrot.slane %v1736, 4
        %v1739 = vshll.u32 %v1695, 16
        %v1741 = vrot.slane %v1739, 5
        %v1742 = vor.u32 %v1738, %v1741
        %v1743 = vrot.slane %v1742, 4
        %v1745 = vshll.u32 %v1696, 16
        %v1747 = vrot.slane %v1745, 5
        %v1748 = vsel %vm491, %v1743, %v1747
        %v1750 = vshrl.u32 %v1697, 16
        %v1752 = vrot.slane %v1750, 4
        %v1753 = vshll.u32 %v1697, 16
        %v1755 = vrot.slane %v1753, 5
        %v1756 = vor.u32 %v1752, %v1755
        %v1757 = vrot.slane %v1756, 4
        %v1759 = vshll.u32 %v1698, 16
        %v1761 = vrot.slane %v1759, 5
        %v1762 = vsel %vm491, %v1757, %v1761
        %v1764 = vshrl.u32 %v1699, 16
        %v1766 = vrot.slane %v1764, 4
        %v1767 = vshll.u32 %v1699, 16
        %v1769 = vrot.slane %v1767, 5
        %v1770 = vor.u32 %v1766, %v1769
        %v1771 = vrot.slane %v1770, 4
        %v1773 = vshll.u32 %v1700, 16
        %v1775 = vrot.slane %v1773, 5
        %v1776 = vsel %vm491, %v1771, %v1775
        %v1778 = vshrl.u32 %v1701, 16
        %v1780 = vrot.slane %v1778, 4
        %v1781 = vshll.u32 %v1701, 16
        %v1783 = vrot.slane %v1781, 5
        %v1784 = vor.u32 %v1780, %v1783
        %v1785 = vrot.slane %v1784, 4
        %v1787 = vshll.u32 %v1702, 16
        %v1789 = vrot.slane %v1787, 5
        %v1790 = vsel %vm491, %v1785, %v1789
        %v1792 = vshrl.u32 %v1703, 16
        %v1794 = vrot.slane %v1792, 4
        %v1795 = vshll.u32 %v1703, 16
        %v1797 = vrot.slane %v1795, 5
        %v1798 = vor.u32 %v1794, %v1797
        %v1799 = vrot.slane %v1798, 4
        %v1801 = vshll.u32 %v1704, 16
        %v1803 = vrot.slane %v1801, 5
        %v1804 = vsel %vm491, %v1799, %v1803
        %v1806 = vshrl.u32 %v1705, 16
        %v1808 = vrot.slane %v1806, 4
        %v1809 = vshll.u32 %v1705, 16
        %v1811 = vrot.slane %v1809, 5
        %v1812 = vor.u32 %v1808, %v1811
        %v1813 = vrot.slane %v1812, 4
        %v1815 = vshll.u32 %v1706, 16
        %v1817 = vrot.slane %v1815, 5
        %v1818 = vsel %vm491, %v1813, %v1817
        %v1819 = vunpack.c.l.b16 %v1720
        %v1820 = vunpack.c.l.b16 %v1734
        %v1821 = vunpack.c.l.b16 %v1748
        %v1822 = vunpack.c.l.b16 %v1762
        %v1823 = vunpack.c.l.b16 %v1776
        %v1824 = vunpack.c.l.b16 %v1790
        %v1825 = vunpack.c.l.b16 %v1804
        %v1826 = vunpack.c.l.b16 %v1818
        %v1827 = vpack.c.b16 %v1820, %v1819
        %v1828 = vpack.c.b16 %v1822, %v1821
        %v1829 = vpack.c.b16 %v1824, %v1823
        %v1830 = vpack.c.b16 %v1826, %v1825
        %1831 = vrot.lane.b32.xlu0 %v1827, 56
        %v1832 = vpop.permute.xlu0 %1831
        %1833 = vrot.lane.b32.xlu0 %v1828, 56
        %v1834 = vpop.permute.xlu0 %1833
        %1835 = vrot.lane.b32.xlu0 %v1829, 56
        %v1836 = vpop.permute.xlu0 %1835
        %1837 = vrot.lane.b32.xlu0 %v1830, 56
        %v1838 = vpop.permute.xlu0 %1837
        %vm1843 = vcmask 523712
        %1844 = vst.msk [vmem:[#allocation2] sm:$0xff] %vm1843, %v1832
        %1845 = vst.msk [vmem:[#allocation2 + $0x8] sm:$0xff] %vm1843, %v1834
        %1846 = vst.msk [vmem:[#allocation2 + $0x10] sm:$0xff] %vm1843, %v1836
        %1847 = vst.msk [vmem:[#allocation2 + $0x18] sm:$0xff] %vm1843, %v1838
        %s1848 = scalar_lea.vmem %s382, 8 [#allocation9]
        %v1849 = vld [vmem:[%s1848] sm:$0xf]
        %v1850 = vld [vmem:[%s1848 + $0x8] sm:$0xf]
        %v1851 = vld [vmem:[%s1848 + $0x10] sm:$0xf]
        %v1852 = vld [vmem:[%s1848 + $0x18] sm:$0xf]
        %v1853 = vld [vmem:[%s1848 + $0x20] sm:$0xf]
        %v1854 = vld [vmem:[%s1848 + $0x28] sm:$0xf]
        %v1855 = vld [vmem:[%s1848 + $0x30] sm:$0xf]
        %v1856 = vld [vmem:[%s1848 + $0x38] sm:$0xf]
        %v1865 = vunpack.c.l.b16 %v1849
        %v1866 = vunpack.c.l.b16 %v1850
        %v1867 = vunpack.c.l.b16 %v1851
        %v1868 = vunpack.c.l.b16 %v1852
        %v1869 = vunpack.c.l.b16 %v1853
        %v1870 = vunpack.c.l.b16 %v1854
        %v1871 = vunpack.c.l.b16 %v1855
        %v1872 = vunpack.c.l.b16 %v1856
        %v1873 = vpack.c.b16 %v1866, %v1865
        %v1874 = vpack.c.b16 %v1868, %v1867
        %v1875 = vpack.c.b16 %v1870, %v1869
        %v1876 = vpack.c.b16 %v1872, %v1871
        %1877 = vrot.lane.b32.xlu0 %v1873, 104
        %v1878 = vpop.permute.xlu0 %1877
        %1879 = vrot.lane.b32.xlu0 %v1874, 104
        %v1880 = vpop.permute.xlu0 %1879
        %1881 = vrot.lane.b32.xlu0 %v1875, 104
        %v1882 = vpop.permute.xlu0 %1881
        %1883 = vrot.lane.b32.xlu0 %v1876, 104
        %v1884 = vpop.permute.xlu0 %1883
        %vm1889 = vcmask 917312
        %1890 = vst.msk [vmem:[#allocation2] sm:$0xff] %vm1889, %v1878
        %1891 = vst.msk [vmem:[#allocation2 + $0x8] sm:$0xff] %vm1889, %v1880
        %1892 = vst.msk [vmem:[#allocation2 + $0x10] sm:$0xff] %vm1889, %v1882
        %1893 = vst.msk [vmem:[#allocation2 + $0x18] sm:$0xff] %vm1889, %v1884
        %v1894 = vld [vmem:[%s1848] sm:$0xf]
        %v1895 = vld [vmem:[%s1848 + $0x4] sm:$0x1]
        %v1896 = vld [vmem:[%s1848 + $0x8] sm:$0xf]
        %v1897 = vld [vmem:[%s1848 + $0xc] sm:$0x1]
        %v1898 = vld [vmem:[%s1848 + $0x10] sm:$0xf]
        %v1899 = vld [vmem:[%s1848 + $0x14] sm:$0x1]
        %v1900 = vld [vmem:[%s1848 + $0x18] sm:$0xf]
        %v1901 = vld [vmem:[%s1848 + $0x1c] sm:$0x1]
        %v1902 = vld [vmem:[%s1848 + $0x20] sm:$0xf]
        %v1903 = vld [vmem:[%s1848 + $0x24] sm:$0x1]
        %v1904 = vld [vmem:[%s1848 + $0x28] sm:$0xf]
        %v1905 = vld [vmem:[%s1848 + $0x2c] sm:$0x1]
        %v1906 = vld [vmem:[%s1848 + $0x30] sm:$0xf]
        %v1907 = vld [vmem:[%s1848 + $0x34] sm:$0x1]
        %v1908 = vld [vmem:[%s1848 + $0x38] sm:$0xf]
        %v1909 = vld [vmem:[%s1848 + $0x3c] sm:$0x1]
        %v1911 = vshrl.u32 %v1894, 16
        %v1913 = vrot.slane %v1911, 4
        %v1914 = vshll.u32 %v1894, 16
        %v1916 = vrot.slane %v1914, 5
        %v1917 = vor.u32 %v1913, %v1916
        %v1918 = vrot.slane %v1917, 4
        %v1920 = vshll.u32 %v1895, 16
        %v1922 = vrot.slane %v1920, 5
        %v1923 = vsel %vm491, %v1918, %v1922
        %v1925 = vshrl.u32 %v1896, 16
        %v1927 = vrot.slane %v1925, 4
        %v1928 = vshll.u32 %v1896, 16
        %v1930 = vrot.slane %v1928, 5
        %v1931 = vor.u32 %v1927, %v1930
        %v1932 = vrot.slane %v1931, 4
        %v1934 = vshll.u32 %v1897, 16
        %v1936 = vrot.slane %v1934, 5
        %v1937 = vsel %vm491, %v1932, %v1936
        %v1939 = vshrl.u32 %v1898, 16
        %v1941 = vrot.slane %v1939, 4
        %v1942 = vshll.u32 %v1898, 16
        %v1944 = vrot.slane %v1942, 5
        %v1945 = vor.u32 %v1941, %v1944
        %v1946 = vrot.slane %v1945, 4
        %v1948 = vshll.u32 %v1899, 16
        %v1950 = vrot.slane %v1948, 5
        %v1951 = vsel %vm491, %v1946, %v1950
        %v1953 = vshrl.u32 %v1900, 16
        %v1955 = vrot.slane %v1953, 4
        %v1956 = vshll.u32 %v1900, 16
        %v1958 = vrot.slane %v1956, 5
        %v1959 = vor.u32 %v1955, %v1958
        %v1960 = vrot.slane %v1959, 4
        %v1962 = vshll.u32 %v1901, 16
        %v1964 = vrot.slane %v1962, 5
        %v1965 = vsel %vm491, %v1960, %v1964
        %v1967 = vshrl.u32 %v1902, 16
        %v1969 = vrot.slane %v1967, 4
        %v1970 = vshll.u32 %v1902, 16
        %v1972 = vrot.slane %v1970, 5
        %v1973 = vor.u32 %v1969, %v1972
        %v1974 = vrot.slane %v1973, 4
        %v1976 = vshll.u32 %v1903, 16
        %v1978 = vrot.slane %v1976, 5
        %v1979 = vsel %vm491, %v1974, %v1978
        %v1981 = vshrl.u32 %v1904, 16
        %v1983 = vrot.slane %v1981, 4
        %v1984 = vshll.u32 %v1904, 16
        %v1986 = vrot.slane %v1984, 5
        %v1987 = vor.u32 %v1983, %v1986
        %v1988 = vrot.slane %v1987, 4
        %v1990 = vshll.u32 %v1905, 16
        %v1992 = vrot.slane %v1990, 5
        %v1993 = vsel %vm491, %v1988, %v1992
        %v1995 = vshrl.u32 %v1906, 16
        %v1997 = vrot.slane %v1995, 4
        %v1998 = vshll.u32 %v1906, 16
        %v2000 = vrot.slane %v1998, 5
        %v2001 = vor.u32 %v1997, %v2000
        %v2002 = vrot.slane %v2001, 4
        %v2004 = vshll.u32 %v1907, 16
        %v2006 = vrot.slane %v2004, 5
        %v2007 = vsel %vm491, %v2002, %v2006
        %v2009 = vshrl.u32 %v1908, 16
        %v2011 = vrot.slane %v2009, 4
        %v2012 = vshll.u32 %v1908, 16
        %v2014 = vrot.slane %v2012, 5
        %v2015 = vor.u32 %v2011, %v2014
        %v2016 = vrot.slane %v2015, 4
        %v2018 = vshll.u32 %v1909, 16
        %v2020 = vrot.slane %v2018, 5
        %v2021 = vsel %vm491, %v2016, %v2020
        %v2022 = vunpack.c.l.b16 %v1923
        %v2023 = vunpack.c.l.b16 %v1937
        %v2024 = vunpack.c.l.b16 %v1951
        %v2025 = vunpack.c.l.b16 %v1965
        %v2026 = vunpack.c.l.b16 %v1979
        %v2027 = vunpack.c.l.b16 %v1993
        %v2028 = vunpack.c.l.b16 %v2007
        %v2029 = vunpack.c.l.b16 %v2021
        %v2030 = vpack.c.b16 %v2023, %v2022
        %v2031 = vpack.c.b16 %v2025, %v2024
        %v2032 = vpack.c.b16 %v2027, %v2026
        %v2033 = vpack.c.b16 %v2029, %v2028
        %2034 = vrot.lane.b32.xlu0 %v2030, 120
        %v2035 = vpop.permute.xlu0 %2034
        %2036 = vrot.lane.b32.xlu0 %v2031, 120
        %v2037 = vpop.permute.xlu0 %2036
        %2038 = vrot.lane.b32.xlu0 %v2032, 120
        %v2039 = vpop.permute.xlu0 %2038
        %2040 = vrot.lane.b32.xlu0 %v2033, 120
        %v2041 = vpop.permute.xlu0 %2040
        %vm2046 = vcmask 1048512
        %2047 = vst.msk [vmem:[#allocation2] sm:$0xff] %vm2046, %v2035
        %2048 = vst.msk [vmem:[#allocation2 + $0x8] sm:$0xff] %vm2046, %v2037
        %2049 = vst.msk [vmem:[#allocation2 + $0x10] sm:$0xff] %vm2046, %v2039
        %2050 = vst.msk [vmem:[#allocation2 + $0x18] sm:$0xff] %vm2046, %v2041
        %v2051 = vld [vmem:[#allocation2] sm:$0xff]
        %v2052 = vld [vmem:[#allocation2 + $0x8] sm:$0xff]
        %v2053 = vld [vmem:[#allocation2 + $0x10] sm:$0xff]
        %v2054 = vld [vmem:[#allocation2 + $0x18] sm:$0xff]
        %v2055 = vld [vmem:[#allocation11] sm:$0xf]
        %v2056 = vld [vmem:[#allocation11 + $0x4] sm:$0xf]
        %v2057 = vld [vmem:[#allocation11 + $0x8] sm:$0xf]
        %v2058 = vld [vmem:[#allocation11 + $0xc] sm:$0xf]
        %v2059 = vld [vmem:[#allocation11 + $0x10] sm:$0xf]
        %v2060 = vld [vmem:[#allocation11 + $0x14] sm:$0xf]
        %v2061 = vld [vmem:[#allocation11 + $0x18] sm:$0xf]
        %v2062 = vld [vmem:[#allocation11 + $0x1c] sm:$0xf]
        %v2063 = vld [vmem:[#allocation11 + $0x20] sm:$0xf]
        %v2064 = vld [vmem:[#allocation11 + $0x24] sm:$0xf]
        %v2065 = vld [vmem:[#allocation11 + $0x28] sm:$0xf]
        %v2066 = vld [vmem:[#allocation11 + $0x2c] sm:$0xf]
        %v2067 = vld [vmem:[#allocation11 + $0x30] sm:$0xf]
        %v2068 = vld [vmem:[#allocation11 + $0x34] sm:$0xf]
        %v2069 = vld [vmem:[#allocation11 + $0x38] sm:$0xf]
        %v2070 = vld [vmem:[#allocation11 + $0x3c] sm:$0xf]
        %v2087 = vunpack.c.l.b16 %v2055
        %v2088 = vunpack.c.l.b16 %v2056
        %v2089 = vunpack.c.l.b16 %v2057
        %v2090 = vunpack.c.l.b16 %v2058
        %v2091 = vunpack.c.l.b16 %v2059
        %v2092 = vunpack.c.l.b16 %v2060
        %v2093 = vunpack.c.l.b16 %v2061
        %v2094 = vunpack.c.l.b16 %v2062
        %v2095 = vunpack.c.l.b16 %v2063
        %v2096 = vunpack.c.l.b16 %v2064
        %v2097 = vunpack.c.l.b16 %v2065
        %v2098 = vunpack.c.l.b16 %v2066
        %v2099 = vunpack.c.l.b16 %v2067
        %v2100 = vunpack.c.l.b16 %v2068
        %v2101 = vunpack.c.l.b16 %v2069
        %v2102 = vunpack.c.l.b16 %v2070
        %v2103 = vpack.c.b16 %v2088, %v2087
        %v2104 = vpack.c.b16 %v2090, %v2089
        %v2105 = vpack.c.b16 %v2092, %v2091
        %v2106 = vpack.c.b16 %v2094, %v2093
        %v2107 = vpack.c.b16 %v2096, %v2095
        %v2108 = vpack.c.b16 %v2098, %v2097
        %v2109 = vpack.c.b16 %v2100, %v2099
        %v2110 = vpack.c.b16 %v2102, %v2101
        %2119 = vmatprep.subr.bf16.mxu0 0
        %2120 = vmatpush1.bf16.msra.mxu0 %v2103
        %2121 = vmatprep.subr.bf16.mxu0 0
        %2122 = vmatpush1.bf16.msra.mxu0 %v2104
        %2123 = vmatprep.subr.bf16.mxu0 0
        %2124 = vmatpush1.bf16.msra.mxu0 %v2105
        %2125 = vmatprep.subr.bf16.mxu0 0
        %2126 = vmatpush1.bf16.msra.mxu0 %v2106
        %2127 = vmatprep.subr.bf16.mxu0 0
        %2128 = vmatpush1.bf16.msra.mxu0 %v2107
        %2129 = vmatprep.subr.bf16.mxu0 0
        %2130 = vmatpush1.bf16.msra.mxu0 %v2108
        %2131 = vmatprep.subr.bf16.mxu0 0
        %2132 = vmatpush1.bf16.msra.mxu0 %v2109
        %2133 = vmatprep.subr.bf16.mxu0 0
        %2134 = vmatpush1.bf16.msra.mxu0 %v2110
        %2135 = vmatprep.subr.bf16.mxu0 0
        %2136 = vmatpush1.bf16.msra.mxu0 0
        %2137 = vmatprep.subr.bf16.mxu0 0
        %2138 = vmatpush1.bf16.msra.mxu0 0
        %2139 = vmatprep.subr.bf16.mxu0 0
        %2140 = vmatpush1.bf16.msra.mxu0 0
        %2141 = vmatprep.subr.bf16.mxu0 0
        %2142 = vmatpush1.bf16.msra.mxu0 0
        %2143 = vmatprep.subr.bf16.mxu0 0
        %2144 = vmatpush1.bf16.msra.mxu0 0
        %2145 = vmatprep.subr.bf16.mxu0 0
        %2146 = vmatpush1.bf16.msra.mxu0 0
        %2147 = vmatprep.subr.bf16.mxu0 0
        %2148 = vmatpush1.bf16.msra.mxu0 0
        %2149 = vmatprep.subr.bf16.mxu0 0
        %2150 = vmatpush1.bf16.msra.mxu0 0
        %2151 = vmatprep.mubr.bf16.mxu0 0
        %2152 = vmatmul.mubr.bf16.gmra.mrb[0].mxu0 %v2051
        %v2153 = vpop.f32.mrb[0].mxu0
        %v2154 = vadd.f32 0.0, %v2153
        %v2155 = vpop.f32.mrb[0].mxu0
        %v2156 = vpop.f32.mrb[0].mxu0
        %v2157 = vadd.f32 0.0, %v2156
        %v2158 = vpop.f32.mrb[0].mxu0
        %2159 = vmatprep.mubr.bf16.mxu0 0
        %2160 = vmatmul.mubr.bf16.gmra.mrb[0].mxu0 %v2052
        %v2161 = vpop.f32.mrb[0].mxu0
        %v2162 = vadd.f32 0.0, %v2161
        %v2163 = vpop.f32.mrb[0].mxu0
        %v2164 = vpop.f32.mrb[0].mxu0
        %v2165 = vadd.f32 0.0, %v2164
        %v2166 = vpop.f32.mrb[0].mxu0
        %2167 = vmatprep.mubr.bf16.mxu0 0
        %2168 = vmatmul.mubr.bf16.gmra.mrb[0].mxu0 %v2053
        %v2169 = vpop.f32.mrb[0].mxu0
        %v2170 = vadd.f32 0.0, %v2169
        %v2171 = vpop.f32.mrb[0].mxu0
        %v2172 = vpop.f32.mrb[0].mxu0
        %v2173 = vadd.f32 0.0, %v2172
        %v2174 = vpop.f32.mrb[0].mxu0
        %2175 = vmatprep.mubr.bf16.mxu0 0
        %2176 = vmatmul.mubr.bf16.gmra.mrb[0].mxu0 %v2054
        %v2177 = vpop.f32.mrb[0].mxu0
        %v2178 = vadd.f32 0.0, %v2177
        %v2179 = vpop.f32.mrb[0].mxu0
        %v2180 = vpop.f32.mrb[0].mxu0
        %v2181 = vadd.f32 0.0, %v2180
        %v2182 = vpop.f32.mrb[0].mxu0
        %2183 = vdwg.mxu0
        %2184 = vst [vmem:[%s434] sm:$0x3] 0.0
        %vm2185 = vcmp.ge.f32.partialorder %v2154, 0.0
        %vm2186 = vcmp.ge.f32.partialorder %v2157, 0.0
        %vm2187 = vcmp.ge.f32.partialorder %v2162, 0.0
        %vm2188 = vcmp.ge.f32.partialorder %v2165, 0.0
        %vm2189 = vcmp.ge.f32.partialorder %v2170, 0.0
        %vm2190 = vcmp.ge.f32.partialorder %v2173, 0.0
        %vm2191 = vcmp.ge.f32.partialorder %v2178, 0.0
        %vm2192 = vcmp.ge.f32.partialorder %v2181, 0.0
        %v2193 = vmul.f32 %v2154, 0.2
        %v2194 = vmul.f32 %v2157, 0.2
        %v2195 = vmul.f32 %v2162, 0.2
        %v2196 = vmul.f32 %v2165, 0.2
        %v2197 = vmul.f32 %v2170, 0.2
        %v2198 = vmul.f32 %v2173, 0.2
        %v2199 = vmul.f32 %v2178, 0.2
        %v2200 = vmul.f32 %v2181, 0.2
        %v2201 = vsel %vm2185, %v2154, %v2193
        %v2202 = vsel %vm2186, %v2157, %v2194
        %v2203 = vsel %vm2187, %v2162, %v2195
        %v2204 = vsel %vm2188, %v2165, %v2196
        %v2205 = vsel %vm2189, %v2170, %v2197
        %v2206 = vsel %vm2190, %v2173, %v2198
        %v2207 = vsel %vm2191, %v2178, %v2199
        %v2208 = vsel %vm2192, %v2181, %v2200
        %v2209 = vpack.c.bf16 %v2201, %v2201
        %v2210 = vpack.c.bf16 %v2202, %v2202
        %v2211 = vpack.c.bf16 %v2203, %v2203
        %v2212 = vpack.c.bf16 %v2204, %v2204
        %v2213 = vpack.c.bf16 %v2205, %v2205
        %v2214 = vpack.c.bf16 %v2206, %v2206
        %v2215 = vpack.c.bf16 %v2207, %v2207
        %v2216 = vpack.c.bf16 %v2208, %v2208
        %2217 = vst [vmem:[%s427] sm:$0xf] %v2209
        %2218 = vst [vmem:[%s427 + $0x4] sm:$0xf] %v2210
        %2219 = vst [vmem:[%s427 + $0x8] sm:$0xf] %v2211
        %2220 = vst [vmem:[%s427 + $0xc] sm:$0xf] %v2212
        %2221 = vst [vmem:[%s427 + $0x10] sm:$0xf] %v2213
        %2222 = vst [vmem:[%s427 + $0x14] sm:$0xf] %v2214
        %2223 = vst [vmem:[%s427 + $0x18] sm:$0xf] %v2215
        %2224 = vst [vmem:[%s427 + $0x1c] sm:$0xf] %v2216
        %s2225 = sand.u32 %s185, 1
        %s2226 = scalar_lea.sflag [#allocation5], %s2225
        %s2227 = sand.u32 %s185, 1
        %s2228 = smul.addr %s2227, 32
        %s2229 = scalar_lea.vmem [#allocation12], %s2228
        %s2230 = sand.u32 %s213, 1
        %s2231 = scalar_lea.sflag [#allocation14], %s2230
        %s2232 = sand.u32 %s213, 1
        %s2233 = smul.addr %s2232, 2
        %s2234 = scalar_lea.vmem [#allocation13], %s2233
        // Predicated region
        $region61: #{_lambda_.3} parent=39 // pred_check
          %p2235 = pneg %p195
        $region62: #{_lambda_.3} parent=39 // pred_check_branch
          %2237 = sbr.rel (%p2235) target = $region64
        $region63: #{_lambda_.3} parent=39 // pred_region
          %s2239 = ssub.s32 512, 512
          %2240 = vsyncadd %s2226, %s2239
          %s2241 = smul.addr %s37, 8
          %s2242 = sadd.s32 %s38, %s2241
          %s2243 = smul.addr %s2242, 64
          %s2244 = scalar_lea.hbm %s5, %s2243
          %s2245 = sshll.u32 %s2229, 4
          %s2246 = int_to_ptr.vmem [resolvable:$true] %s2245
          %2251 = dma.vmem_to_hbm [thread:$0]  %s2246, 512, %s2244, %s2226, 64, 64, 4
        $region64: #{_lambda_.3} parent=39 // pred_fallthru
          _
        // Predicated region
        $region65: #{_lambda_.3} parent=39 // pred_check
          %p2252 = pneg %p223
        $region66: #{_lambda_.3} parent=39 // pred_check_branch
          %2254 = sbr.rel (%p2252) target = $region68
        $region67: #{_lambda_.3} parent=39 // pred_region
          %s2256 = ssub.s32 32, 32
          %2257 = vsyncadd %s2231, %s2256
          %s2258 = sadd.s32 %s38, %s37
          %s2259 = smul.addr %s2258, 32
          %s2260 = scalar_lea.hbm %s6, %s2259
          %s2262 = sshll.u32 %s2234, 4
          %s2263 = int_to_ptr.vmem [resolvable:$true] %s2262
          %2265 = dma.vmem_to_hbm [thread:$0]  %s2263, 32, %s2260, %s2231
        $region68: #{_lambda_.3} parent=39 // pred_fallthru
          _
      $region40: #{_lambda_.3} parent=5 // pred_fallthru
        _
      %p2266 = scmp.le.s32.totalorder 2, %s28
      // Predicated region
      $region69: #{_lambda_.3} parent=5 // pred_check
        %p2267 = pneg %p2266
      $region70: #{_lambda_.3} parent=5 // pred_check_branch
        %2269 = sbr.rel (%p2267) target = $region72
      $region71: #{_lambda_.3} parent=5 // pred_region
        %s2270 = ssub.s32 %s28, 2
        // Predicated region
        $region73: #{_lambda_.3} parent=71 // pred_check
          %p2271 = pneg %p201
        $region74: #{_lambda_.3} parent=71 // pred_check_branch
          %2273 = sbr.rel (%p2271) target = $region76
        $region75: #{_lambda_.3} parent=71 // pred_region
          %s2274 = sand.u32 %s186, 1
          %s2275 = scalar_lea.sflag [#allocation5], %s2274
          %s2276 = sand.u32 %s186, 1
          %s2277 = smul.addr %s2276, 32
          %s2278 = scalar_lea.vmem [#allocation12], %s2277
          %2279 = dma.done %s2275, 512
        $region76: #{_lambda_.3} parent=71 // pred_fallthru
          _
        // Predicated region
        $region77: #{_lambda_.3} parent=71 // pred_check
          %p2280 = pneg %p229
        $region78: #{_lambda_.3} parent=71 // pred_check_branch
          %2282 = sbr.rel (%p2280) target = $region80
        $region79: #{_lambda_.3} parent=71 // pred_region
          %s2283 = sand.u32 %s214, 1
          %s2284 = scalar_lea.sflag [#allocation14], %s2283
          %s2285 = sand.u32 %s214, 1
          %s2286 = smul.addr %s2285, 2
          %s2287 = scalar_lea.vmem [#allocation13], %s2286
          %2288 = dma.done %s2284, 32
        $region80: #{_lambda_.3} parent=71 // pred_fallthru
          _
      $region72: #{_lambda_.3} parent=5 // pred_fallthru
        _
    $region6: #{_lambda_.3} parent=1 // loop_footer
      %s32 = sadd.s32 1, %s28
    $region7: #{_lambda_.3} parent=1 // loop_footer_branch
      %27 = sbr.rel target = $region3
    $region8: #{_lambda_.3} parent=1 // loop_exit
      _
    %2289 = vsyncpa [#allocation4], 1
    %s2290 = scalar_lea.sflag [#allocation4], 1
    %2291 = vsyncpa %s2290, 1
    %2292 = vsyncpa [#allocation7], 1
    %s2293 = scalar_lea.sflag [#allocation7], 1
    %2294 = vsyncpa %s2293, 1
    %2295 = vsyncpa [#allocation10], 1
    %s2296 = scalar_lea.sflag [#allocation10], 1
    %2297 = vsyncpa %s2296, 1
    %2298 = vsyncpa [#allocation5], 1
    %s2299 = scalar_lea.sflag [#allocation5], 1
    %2300 = vsyncpa %s2299, 1
    %2301 = vsyncpa [#allocation14], 1
    %s2302 = scalar_lea.sflag [#allocation14], 1
    %2303 = vsyncpa %s2302, 1

// kernel: _lambda_.4
$region0: #{_lambda_.4}
  #allocation0 [shape = 'u32[]', space=smem, size = 0x4, offset = 0x4, fixed_abs, tag = 'smem constant byte address 0x4 - core index']
  #allocation1 [shape = 'u32[144,128]{1,0:T(1,128)}', space=vmem, size = 0x12000, scoped, tag = 'internal scratch']
  #allocation2 [shape = 'bf16[32,2048]{1,0:T(16,128)(2,1)}', space=vmem, size = 0x20000, scoped, tag = 'scratch operand']
  %s0 = inlined_call_operand.hbm [shape: bf16[2,5,9,128], index: 0, kind: input, shape index: {}]
  %s1 = inlined_call_operand.hbm [shape: bf16[2,5,9,128], index: 1, kind: input, shape index: {}]
  %s2 = inlined_call_operand.hbm [shape: bf16[2,5,9,128], index: 2, kind: input, shape index: {}]
  %s3 = inlined_call_operand.hbm [shape: bf16[2,5,9,128], index: 3, kind: input, shape index: {}]
  %s4 = inlined_call_operand.hbm [shape: bf16[2048,128], index: 4, kind: input, shape index: {}]
  %s5 = inlined_call_operand.hbm [shape: bf16[2,4,8,128], index: 5, kind: output, shape index: {0}]
  %s6 = inlined_call_operand.hbm [shape: f32[2,2,128], index: 6, kind: output, shape index: {1}]
  %7 = xla_tuple %s5, %s6
  %s8 = sld [smem:[#allocation0]]
  $region81: #{_lambda_.4} parent=0
    _
  %s10 = ssub.s32 1, %s8
  %s11 = scalar_select 0, %s10, %s8
  $region1: #{_lambda_.4} parent=0
    #allocation3 [shape = 'u8[40960]{0}', space=vmem, size = 0xa000, scoped, tag = 'input window, operand 0']
    #allocation4 [shape = 's32[2]{0}', space=sflag, size = 0x8, scoped, tag = 'scoped memory for _lambda_.4']
    #allocation5 [shape = 's32[2]{0}', space=sflag, size = 0x8, scoped, tag = 'scoped memory for _lambda_.4']
    #allocation6 [shape = 'u8[40960]{0}', space=vmem, size = 0xa000, scoped, tag = 'input window, operand 1']
    #allocation7 [shape = 's32[2]{0}', space=sflag, size = 0x8, scoped, tag = 'scoped memory for _lambda_.4']
    #allocation8 [shape = 'u8[40960]{0}', space=vmem, size = 0xa000, scoped, tag = 'input window, operand 2']
    #allocation9 [shape = 'u8[40960]{0}', space=vmem, size = 0xa000, scoped, tag = 'input window, operand 3']
    #allocation10 [shape = 's32[2]{0}', space=sflag, size = 0x8, scoped, tag = 'scoped memory for _lambda_.4']
    #allocation11 [shape = 'u8[524288]{0}', space=vmem, size = 0x80000, scoped, tag = 'input window, operand 4, single buffered']
    #allocation12 [shape = 'u8[16384]{0}', space=vmem, size = 0x4000, scoped, tag = 'output window, operand 0']
    #allocation13 [shape = 'u8[2048]{0}', space=vmem, size = 0x800, scoped, tag = 'output window, operand 1']
    #allocation14 [shape = 's32[2]{0}', space=sflag, size = 0x8, scoped, tag = 'scoped memory for _lambda_.4']
    %12 = vsyncpa [#allocation4], 0
    %s13 = scalar_lea.sflag [#allocation4], 1
    %14 = vsyncpa %s13, 0
    %15 = vsyncpa [#allocation7], 0
    %s16 = scalar_lea.sflag [#allocation7], 1
    %17 = vsyncpa %s16, 0
    %18 = vsyncpa [#allocation10], 0
    %s19 = scalar_lea.sflag [#allocation10], 1
    %20 = vsyncpa %s19, 0
    %21 = vsyncpa [#allocation5], 0
    %s22 = scalar_lea.sflag [#allocation5], 1
    %23 = vsyncpa %s22, 0
    %24 = vsyncpa [#allocation14], 0
    %s25 = scalar_lea.sflag [#allocation14], 1
    %26 = vsyncpa %s25, 0
    loop: start=0, step=1, limit=4
    $region2: #{_lambda_.4} parent=1 // loop_pre_header
      _
    $region3: #{_lambda_.4} parent=1 // loop_header
      %s28 = sphi 0, %s32
      %p29 = scmp.ge.s32.totalorder %s28, 4
      %s35 = sphi 0, %s47
      %s36 = sphi 0, %s43
      %s37 = sphi 0, %s35
      %s38 = sphi 0, %s36
      %s39 = sphi 0, %s37
      %s40 = sphi 0, %s38
      %s50 = sphi 0, %s52
      %s53 = sphi 0, %s50
      %s54 = sphi 0, %s53
      %s70 = sphi 0, %s54
      %s76 = sphi 0, %s78
      %s79 = sphi 0, %s76
      %s80 = sphi 0, %s79
      %s96 = sphi 0, %s80
      %s102 = sphi 0, %s104
      %s105 = sphi 0, %s102
      %s106 = sphi 0, %s105
      %s122 = sphi 0, %s106
      %s128 = sphi 0, %s130
      %s131 = sphi 0, %s128
      %s132 = sphi 0, %s131
      %s148 = sphi 0, %s132
      %s154 = sphi 0, %s156
      %s157 = sphi 0, %s154
      %s158 = sphi 0, %s157
      %s174 = sphi 0, %s158
      %s182 = sphi 0, %s184
      %s185 = sphi 0, %s182
      %s186 = sphi 0, %s185
      %s202 = sphi 0, %s186
      %s210 = sphi 0, %s212
      %s213 = sphi 0, %s210
      %s214 = sphi 0, %s213
      %s230 = sphi 0, %s214
    $region4: #{_lambda_.4} parent=1 // loop_header_branch
      %31 = sbr.rel (%p29) target = $region8
    $region5: #{_lambda_.4} parent=1 // loop_body
      %s33 = ssub.s32 %s28, 1
      %s34 = ssub.s32 %s28, 2
      %s41 = sadd.s32 1, %s36
      %p42 = scmp.ge.s32.totalorder %s41, 1
      %s43 = scalar_select %p42, 0, %s41
      %s44 = sadd.s32 1, %s35
      %s45 = scalar_select %p42, %s44, %s35
      %p46 = scmp.ge.s32.totalorder %s45, 2
      %s47 = scalar_select %p46, 0, %s45
      %s48 = ssub.s32 %s35, %s47
      %p49 = scmp.eq.s32.totalorder %s48, 0
      %s51 = sadd.s32 %s50, 1
      %s52 = scalar_select %p49, %s50, %s51
      %p55 = pneg %p49
      %p56 = scmp.eq.s32.totalorder %s28, 1
      %p57 = por %p55, %p56
      %p58 = scmp.ne.s32.totalorder %s50, %s53
      %p59 = scmp.eq.s32.totalorder %s28, 0
      %p60 = por %p58, %p59
      %p61 = scmp.ne.s32.totalorder %s50, %s53
      %p62 = scmp.eq.s32.totalorder %s33, 1
      %p63 = por %p61, %p62
      %p64 = scmp.ne.s32.totalorder %s53, %s54
      %p65 = scmp.eq.s32.totalorder %s33, 0
      %p66 = por %p64, %p65
      %p67 = scmp.ne.s32.totalorder %s53, %s54
      %p68 = scmp.eq.s32.totalorder %s34, 1
      %p69 = por %p67, %p68
      %p71 = scmp.ne.s32.totalorder %s54, %s70
      %p72 = scmp.eq.s32.totalorder %s34, 0
      %p73 = por %p71, %p72
      %s74 = ssub.s32 %s35, %s47
      %p75 = scmp.eq.s32.totalorder %s74, 0
      %s77 = sadd.s32 %s76, 1
      %s78 = scalar_select %p75, %s76, %s77
      %p81 = pneg %p75
      %p82 = scmp.eq.s32.totalorder %s28, 1
      %p83 = por %p81, %p82
      %p84 = scmp.ne.s32.totalorder %s76, %s79
      %p85 = scmp.eq.s32.totalorder %s28, 0
      %p86 = por %p84, %p85
      %p87 = scmp.ne.s32.totalorder %s76, %s79
      %p88 = scmp.eq.s32.totalorder %s33, 1
      %p89 = por %p87, %p88
      %p90 = scmp.ne.s32.totalorder %s79, %s80
      %p91 = scmp.eq.s32.totalorder %s33, 0
      %p92 = por %p90, %p91
      %p93 = scmp.ne.s32.totalorder %s79, %s80
      %p94 = scmp.eq.s32.totalorder %s34, 1
      %p95 = por %p93, %p94
      %p97 = scmp.ne.s32.totalorder %s80, %s96
      %p98 = scmp.eq.s32.totalorder %s34, 0
      %p99 = por %p97, %p98
      %s100 = ssub.s32 %s35, %s47
      %p101 = scmp.eq.s32.totalorder %s100, 0
      %s103 = sadd.s32 %s102, 1
      %s104 = scalar_select %p101, %s102, %s103
      %p107 = pneg %p101
      %p108 = scmp.eq.s32.totalorder %s28, 1
      %p109 = por %p107, %p108
      %p110 = scmp.ne.s32.totalorder %s102, %s105
      %p111 = scmp.eq.s32.totalorder %s28, 0
      %p112 = por %p110, %p111
      %p113 = scmp.ne.s32.totalorder %s102, %s105
      %p114 = scmp.eq.s32.totalorder %s33, 1
      %p115 = por %p113, %p114
      %p116 = scmp.ne.s32.totalorder %s105, %s106
      %p117 = scmp.eq.s32.totalorder %s33, 0
      %p118 = por %p116, %p117
      %p119 = scmp.ne.s32.totalorder %s105, %s106
      %p120 = scmp.eq.s32.totalorder %s34, 1
      %p121 = por %p119, %p120
      %p123 = scmp.ne.s32.totalorder %s106, %s122
      %p124 = scmp.eq.s32.totalorder %s34, 0
      %p125 = por %p123, %p124
      %s126 = ssub.s32 %s35, %s47
      %p127 = scmp.eq.s32.totalorder %s126, 0
      %s129 = sadd.s32 %s128, 1
      %s130 = scalar_select %p127, %s128, %s129
      %p133 = pneg %p127
      %p134 = scmp.eq.s32.totalorder %s28, 1
      %p135 = por %p133, %p134
      %p136 = scmp.ne.s32.totalorder %s128, %s131
      %p137 = scmp.eq.s32.totalorder %s28, 0
      %p138 = por %p136, %p137
      %p139 = scmp.ne.s32.totalorder %s128, %s131
      %p140 = scmp.eq.s32.totalorder %s33, 1
      %p141 = por %p139, %p140
      %p142 = scmp.ne.s32.totalorder %s131, %s132
      %p143 = scmp.eq.s32.totalorder %s33, 0
      %p144 = por %p142, %p143
      %p145 = scmp.ne.s32.totalorder %s131, %s132
      %p146 = scmp.eq.s32.totalorder %s34, 1
      %p147 = por %p145, %p146
      %p149 = scmp.ne.s32.totalorder %s132, %s148
      %p150 = scmp.eq.s32.totalorder %s34, 0
      %p151 = por %p149, %p150
      %s152 = ssub.s32 %s36, %s43
      %p153 = scmp.eq.s32.totalorder %s152, 0
      %s155 = sadd.s32 %s154, 1
      %s156 = scalar_select %p153, %s154, %s155
      %p159 = pneg %p153
      %p160 = scmp.eq.s32.totalorder %s28, 1
      %p161 = por %p159, %p160
      %p162 = scmp.ne.s32.totalorder %s154, %s157
      %p163 = scmp.eq.s32.totalorder %s28, 0
      %p164 = por %p162, %p163
      %p165 = scmp.ne.s32.totalorder %s154, %s157
      %p166 = scmp.eq.s32.totalorder %s33, 1
      %p167 = por %p165, %p166
      %p168 = scmp.ne.s32.totalorder %s157, %s158
      %p169 = scmp.eq.s32.totalorder %s33, 0
      %p170 = por %p168, %p169
      %p171 = scmp.ne.s32.totalorder %s157, %s158
      %p172 = scmp.eq.s32.totalorder %s34, 1
      %p173 = por %p171, %p172
      %p175 = scmp.ne.s32.totalorder %s158, %s174
      %p176 = scmp.eq.s32.totalorder %s34, 0
      %p177 = por %p175, %p176
      %s178 = ssub.s32 %s35, %s47
      %s179 = ssub.s32 %s36, %s43
      %s180 = sor.u32 %s178, %s179
      %p181 = scmp.eq.s32.totalorder %s180, 0
      %s183 = sadd.s32 %s182, 1
      %s184 = scalar_select %p181, %s182, %s183
      %p187 = pneg %p181
      %p188 = scmp.eq.s32.totalorder %s28, 1
      %p189 = por %p187, %p188
      %p190 = scmp.ne.s32.totalorder %s182, %s185
      %p191 = scmp.eq.s32.totalorder %s28, 0
      %p192 = por %p190, %p191
      %p193 = scmp.ne.s32.totalorder %s182, %s185
      %p194 = scmp.eq.s32.totalorder %s33, 1
      %p195 = por %p193, %p194
      %p196 = scmp.ne.s32.totalorder %s185, %s186
      %p197 = scmp.eq.s32.totalorder %s33, 0
      %p198 = por %p196, %p197
      %p199 = scmp.ne.s32.totalorder %s185, %s186
      %p200 = scmp.eq.s32.totalorder %s34, 1
      %p201 = por %p199, %p200
      %p203 = scmp.ne.s32.totalorder %s186, %s202
      %p204 = scmp.eq.s32.totalorder %s34, 0
      %p205 = por %p203, %p204
      %s206 = ssub.s32 %s35, %s47
      %s207 = ssub.s32 %s36, %s43
      %s208 = sor.u32 %s206, %s207
      %p209 = scmp.eq.s32.totalorder %s208, 0
      %s211 = sadd.s32 %s210, 1
      %s212 = scalar_select %p209, %s210, %s211
      %p215 = pneg %p209
      %p216 = scmp.eq.s32.totalorder %s28, 1
      %p217 = por %p215, %p216
      %p218 = scmp.ne.s32.totalorder %s210, %s213
      %p219 = scmp.eq.s32.totalorder %s28, 0
      %p220 = por %p218, %p219
      %p221 = scmp.ne.s32.totalorder %s210, %s213
      %p222 = scmp.eq.s32.totalorder %s33, 1
      %p223 = por %p221, %p222
      %p224 = scmp.ne.s32.totalorder %s213, %s214
      %p225 = scmp.eq.s32.totalorder %s33, 0
      %p226 = por %p224, %p225
      %p227 = scmp.ne.s32.totalorder %s213, %s214
      %p228 = scmp.eq.s32.totalorder %s34, 1
      %p229 = por %p227, %p228
      %p231 = scmp.ne.s32.totalorder %s214, %s230
      %p232 = scmp.eq.s32.totalorder %s34, 0
      %p233 = por %p231, %p232
      %p234 = scmp.le.s32.totalorder 1, %s28
      %p235 = scmp.lt.s32.totalorder %s28, 3
      %p236 = pnand %p234, %p235
      %p237 = pneg %p236
      // Predicated region
      $region9: #{_lambda_.4} parent=5 // pred_check
        _
      $region10: #{_lambda_.4} parent=5 // pred_check_branch
        %239 = sbr.rel (%p236) target = $region12
      $region11: #{_lambda_.4} parent=5 // pred_region
        %s240 = ssub.s32 %s28, 1
        // Predicated region
        $region13: #{_lambda_.4} parent=11 // pred_check
          %p241 = pneg %p170
        $region14: #{_lambda_.4} parent=11 // pred_check_branch
          %243 = sbr.rel (%p241) target = $region16
        $region15: #{_lambda_.4} parent=11 // pred_region
          %s245 = ssub.s32 16384, 16384
          %246 = vsyncadd [#allocation10], %s245
          %s247 = smul.addr %s38, 64
          %s248 = scalar_lea.hbm %s4, %s247
          %s249 = sshll.u32 [#allocation11], 4
          %s250 = int_to_ptr.vmem [resolvable:$true] %s249
          %255 = dma.hbm_to_vmem [thread:$0]  %s248, 16384, %s250, [#allocation10], 64, 64, 4
        $region16: #{_lambda_.4} parent=11 // pred_fallthru
          _
      $region12: #{_lambda_.4} parent=5 // pred_fallthru
        _
      %p256 = scmp.lt.s32.totalorder %s28, 2
      // Predicated region
      $region17: #{_lambda_.4} parent=5 // pred_check
        %p257 = pneg %p256
      $region18: #{_lambda_.4} parent=5 // pred_check_branch
        %259 = sbr.rel (%p257) target = $region20
      $region19: #{_lambda_.4} parent=5 // pred_region
        // Predicated region
        $region21: #{_lambda_.4} parent=19 // pred_check
          %p260 = pneg %p60
        $region22: #{_lambda_.4} parent=19 // pred_check_branch
          %262 = sbr.rel (%p260) target = $region24
        $region23: #{_lambda_.4} parent=19 // pred_region
          %s263 = sand.u32 %s50, 1
          %s264 = scalar_lea.sflag [#allocation4], %s263
          %s265 = sand.u32 %s50, 1
          %s266 = smul.addr %s265, 40
          %s267 = scalar_lea.vmem [#allocation3], %s266
          %s269 = ssub.s32 640, 640
          %270 = vsyncadd %s264, %s269
          %s271 = smul.addr %s35, 10
          %s272 = smul.addr %s271, 64
          %s273 = scalar_lea.hbm %s0, %s272
          %s274 = sshll.u32 %s267, 4
          %s275 = int_to_ptr.vmem [resolvable:$true] %s274
          %280 = dma.hbm_to_vmem [thread:$0]  %s273, 640, %s275, %s264, 64, 64, 4
        $region24: #{_lambda_.4} parent=19 // pred_fallthru
          _
        // Predicated region
        $region25: #{_lambda_.4} parent=19 // pred_check
          %p281 = pneg %p86
        $region26: #{_lambda_.4} parent=19 // pred_check_branch
          %283 = sbr.rel (%p281) target = $region28
        $region27: #{_lambda_.4} parent=19 // pred_region
          %s284 = sand.u32 %s28, 1
          %s285 = scalar_lea.sflag [#allocation7], %s284
          %s286 = sand.u32 %s76, 1
          %s287 = smul.addr %s286, 40
          %s288 = scalar_lea.vmem [#allocation6], %s287
          %s290 = ssub.s32 640, 640
          %291 = vsyncadd %s285, %s290
          %s292 = smul.addr %s35, 10
          %s293 = smul.addr %s292, 64
          %s294 = scalar_lea.hbm %s1, %s293
          %s295 = sshll.u32 %s288, 4
          %s296 = int_to_ptr.vmem [resolvable:$true] %s295
          %301 = dma.hbm_to_vmem [thread:$0]  %s294, 640, %s296, %s285, 64, 64, 4
        $region28: #{_lambda_.4} parent=19 // pred_fallthru
          _
        // Predicated region
        $region29: #{_lambda_.4} parent=19 // pred_check
          %p302 = pneg %p112
        $region30: #{_lambda_.4} parent=19 // pred_check_branch
          %304 = sbr.rel (%p302) target = $region32
        $region31: #{_lambda_.4} parent=19 // pred_region
          %s305 = sand.u32 %s28, 1
          %s306 = scalar_lea.sflag [#allocation7], %s305
          %s307 = sand.u32 %s102, 1
          %s308 = smul.addr %s307, 40
          %s309 = scalar_lea.vmem [#allocation8], %s308
          %s311 = ssub.s32 640, 640
          %312 = vsyncadd %s306, %s311
          %s313 = smul.addr %s35, 10
          %s314 = smul.addr %s313, 64
          %s315 = scalar_lea.hbm %s2, %s314
          %s316 = sshll.u32 %s309, 4
          %s317 = int_to_ptr.vmem [resolvable:$true] %s316
          %322 = dma.hbm_to_vmem [thread:$0]  %s315, 640, %s317, %s306, 64, 64, 4
        $region32: #{_lambda_.4} parent=19 // pred_fallthru
          _
        // Predicated region
        $region33: #{_lambda_.4} parent=19 // pred_check
          %p323 = pneg %p138
        $region34: #{_lambda_.4} parent=19 // pred_check_branch
          %325 = sbr.rel (%p323) target = $region36
        $region35: #{_lambda_.4} parent=19 // pred_region
          %s326 = sand.u32 %s28, 1
          %s327 = scalar_lea.sflag [#allocation10], %s326
          %s328 = sand.u32 %s128, 1
          %s329 = smul.addr %s328, 40
          %s330 = scalar_lea.vmem [#allocation9], %s329
          %s332 = ssub.s32 640, 640
          %333 = vsyncadd %s327, %s332
          %s334 = smul.addr %s35, 10
          %s335 = smul.addr %s334, 64
          %s336 = scalar_lea.hbm %s3, %s335
          %s337 = sshll.u32 %s330, 4
          %s338 = int_to_ptr.vmem [resolvable:$true] %s337
          %343 = dma.hbm_to_vmem [thread:$0]  %s336, 640, %s338, %s327, 64, 64, 4
        $region36: #{_lambda_.4} parent=19 // pred_fallthru
          _
      $region20: #{_lambda_.4} parent=5 // pred_fallthru
        _
      %p344 = scmp.le.s32.totalorder 1, %s28
      %p345 = scmp.lt.s32.totalorder %s28, 3
      %p346 = pnand %p344, %p345
      %p347 = pneg %p346
      // Predicated region
      $region37: #{_lambda_.4} parent=5 // pred_check
        _
      $region38: #{_lambda_.4} parent=5 // pred_check_branch
        %349 = sbr.rel (%p346) target = $region40
      $region39: #{_lambda_.4} parent=5 // pred_region
        %s350 = ssub.s32 %s28, 1
        %s351 = sand.u32 %s53, 1
        %s352 = scalar_lea.sflag [#allocation4], %s351
        %s353 = sand.u32 %s53, 1
        %s354 = smul.addr %s353, 40
        %s355 = scalar_lea.vmem [#allocation3], %s354
        // Predicated region
        $region41: #{_lambda_.4} parent=39 // pred_check
          %p356 = pneg %p66
        $region42: #{_lambda_.4} parent=39 // pred_check_branch
          %358 = sbr.rel (%p356) target = $region44
        $region43: #{_lambda_.4} parent=39 // pred_region
          %359 = dma.done %s352, 640
        $region44: #{_lambda_.4} parent=39 // pred_fallthru
          _
        %s360 = sand.u32 %s33, 1
        %s361 = scalar_lea.sflag [#allocation7], %s360
        %s362 = sand.u32 %s79, 1
        %s363 = smul.addr %s362, 40
        %s364 = scalar_lea.vmem [#allocation6], %s363
        // Predicated region
        $region45: #{_lambda_.4} parent=39 // pred_check
          %p365 = pneg %p92
        $region46: #{_lambda_.4} parent=39 // pred_check_branch
          %367 = sbr.rel (%p365) target = $region48
        $region47: #{_lambda_.4} parent=39 // pred_region
          %368 = dma.done %s361, 640
        $region48: #{_lambda_.4} parent=39 // pred_fallthru
          _
        %s369 = sand.u32 %s33, 1
        %s370 = scalar_lea.sflag [#allocation7], %s369
        %s371 = sand.u32 %s105, 1
        %s372 = smul.addr %s371, 40
        %s373 = scalar_lea.vmem [#allocation8], %s372
        // Predicated region
        $region49: #{_lambda_.4} parent=39 // pred_check
          %p374 = pneg %p118
        $region50: #{_lambda_.4} parent=39 // pred_check_branch
          %376 = sbr.rel (%p374) target = $region52
        $region51: #{_lambda_.4} parent=39 // pred_region
          %377 = dma.done %s370, 640
        $region52: #{_lambda_.4} parent=39 // pred_fallthru
          _
        %s378 = sand.u32 %s33, 1
        %s379 = scalar_lea.sflag [#allocation10], %s378
        %s380 = sand.u32 %s131, 1
        %s381 = smul.addr %s380, 40
        %s382 = scalar_lea.vmem [#allocation9], %s381
        // Predicated region
        $region53: #{_lambda_.4} parent=39 // pred_check
          %p383 = pneg %p144
        $region54: #{_lambda_.4} parent=39 // pred_check_branch
          %385 = sbr.rel (%p383) target = $region56
        $region55: #{_lambda_.4} parent=39 // pred_region
          %386 = dma.done %s379, 640
        $region56: #{_lambda_.4} parent=39 // pred_fallthru
          _
        // Predicated region
        $region57: #{_lambda_.4} parent=39 // pred_check
          %p387 = pneg %p170
        $region58: #{_lambda_.4} parent=39 // pred_check_branch
          %389 = sbr.rel (%p387) target = $region60
        $region59: #{_lambda_.4} parent=39 // pred_region
          %390 = dma.done [#allocation10], 16384
        $region60: #{_lambda_.4} parent=39 // pred_fallthru
          _
        %s391 = sand.u32 %s53, 1
        %s392 = scalar_lea.sflag [#allocation4], %s391
        %s393 = sand.u32 %s53, 1
        %s394 = smul.addr %s393, 40
        %s395 = scalar_lea.vmem [#allocation3], %s394
        %p396 = pneg %p66
        %p397 = pneg %p63
        %s398 = sand.u32 %s33, 1
        %s399 = scalar_lea.sflag [#allocation7], %s398
        %s400 = sand.u32 %s79, 1
        %s401 = smul.addr %s400, 40
        %s402 = scalar_lea.vmem [#allocation6], %s401
        %p403 = pneg %p92
        %p404 = pneg %p89
        %s405 = sand.u32 %s33, 1
        %s406 = scalar_lea.sflag [#allocation7], %s405
        %s407 = sand.u32 %s105, 1
        %s408 = smul.addr %s407, 40
        %s409 = scalar_lea.vmem [#allocation8], %s408
        %p410 = pneg %p118
        %p411 = pneg %p115
        %s412 = sand.u32 %s33, 1
        %s413 = scalar_lea.sflag [#allocation10], %s412
        %s414 = sand.u32 %s131, 1
        %s415 = smul.addr %s414, 40
        %s416 = scalar_lea.vmem [#allocation9], %s415
        %p417 = pneg %p144
        %p418 = pneg %p141
        %p419 = pneg %p170
        %p420 = pneg %p167
        %p421 = pneg %p198
        %p422 = pneg %p195
        %s423 = sand.u32 %s185, 1
        %s424 = scalar_lea.sflag [#allocation5], %s423
        %s425 = sand.u32 %s185, 1
        %s426 = smul.addr %s425, 16
        %s427 = scalar_lea.vmem [#allocation12], %s426
        %p428 = pneg %p226
        %p429 = pneg %p223
        %s430 = sand.u32 %s213, 1
        %s431 = scalar_lea.sflag [#allocation14], %s430
        %s432 = sand.u32 %s213, 1
        %s433 = smul.addr %s432, 2
        %s434 = scalar_lea.vmem [#allocation13], %s433
        %v436 = vld [vmem:[%s355] sm:$0xf]
        %v437 = vld [vmem:[%s355 + $0x8] sm:$0xf]
        %v438 = vld [vmem:[%s355 + $0x10] sm:$0xf]
        %v439 = vld [vmem:[%s355 + $0x18] sm:$0xf]
        %v444 = vunpack.c.l.b16 %v436
        %v445 = vunpack.c.l.b16 %v437
        %v446 = vunpack.c.l.b16 %v438
        %v447 = vunpack.c.l.b16 %v439
        %v448 = vpack.c.b16 %v445, %v444
        %v449 = vpack.c.b16 %v447, %v446
        %452 = vst [vmem:[#allocation2] sm:$0xff] %v448
        %453 = vst [vmem:[#allocation2 + $0x80] sm:$0xff] %v449
        %v454 = vld [vmem:[%s355] sm:$0xf]
        %v455 = vld [vmem:[%s355 + $0x4] sm:$0x1]
        %v456 = vld [vmem:[%s355 + $0x8] sm:$0xf]
        %v457 = vld [vmem:[%s355 + $0xc] sm:$0x1]
        %v458 = vld [vmem:[%s355 + $0x10] sm:$0xf]
        %v459 = vld [vmem:[%s355 + $0x14] sm:$0x1]
        %v460 = vld [vmem:[%s355 + $0x18] sm:$0xf]
        %v461 = vld [vmem:[%s355 + $0x1c] sm:$0x1]
        %vm462 = vsmask.f32 3328
        %vm463 = vsmask.f32 7440
        %vm464 = vmor %vm462, %vm463
        %v466 = vshrl.u32 %v454, 16
        %v468 = vrot.slane %v466, 4
        %v469 = vshll.u32 %v454, 16
        %v471 = vrot.slane %v469, 5
        %v472 = vor.u32 %v468, %v471
        %v473 = vrot.slane %v472, 4
        %v475 = vshll.u32 %v455, 16
        %v477 = vrot.slane %v475, 5
        %v478 = vsel %vm464, %v473, %v477
        %v480 = vshrl.u32 %v456, 16
        %v482 = vrot.slane %v480, 4
        %v483 = vshll.u32 %v456, 16
        %v485 = vrot.slane %v483, 5
        %v486 = vor.u32 %v482, %v485
        %v487 = vrot.slane %v486, 4
        %v489 = vshll.u32 %v457, 16
        %v491 = vrot.slane %v489, 5
        %v492 = vsel %vm464, %v487, %v491
        %v494 = vshrl.u32 %v458, 16
        %v496 = vrot.slane %v494, 4
        %v497 = vshll.u32 %v458, 16
        %v499 = vrot.slane %v497, 5
        %v500 = vor.u32 %v496, %v499
        %v501 = vrot.slane %v500, 4
        %v503 = vshll.u32 %v459, 16
        %v505 = vrot.slane %v503, 5
        %v506 = vsel %vm464, %v501, %v505
        %v508 = vshrl.u32 %v460, 16
        %v510 = vrot.slane %v508, 4
        %v511 = vshll.u32 %v460, 16
        %v513 = vrot.slane %v511, 5
        %v514 = vor.u32 %v510, %v513
        %v515 = vrot.slane %v514, 4
        %v517 = vshll.u32 %v461, 16
        %v519 = vrot.slane %v517, 5
        %v520 = vsel %vm464, %v515, %v519
        %v521 = vunpack.c.l.b16 %v478
        %v522 = vunpack.c.l.b16 %v492
        %v523 = vunpack.c.l.b16 %v506
        %v524 = vunpack.c.l.b16 %v520
        %v525 = vpack.c.b16 %v522, %v521
        %v526 = vpack.c.b16 %v524, %v523
        %529 = vst [vmem:[#allocation2 + $0x10] sm:$0xff] %v525
        %530 = vst [vmem:[#allocation2 + $0x90] sm:$0xff] %v526
        %s531 = scalar_lea.vmem %s355, 8 [#allocation3]
        %v532 = vld [vmem:[%s531] sm:$0xf]
        %v533 = vld [vmem:[%s531 + $0x8] sm:$0xf]
        %v534 = vld [vmem:[%s531 + $0x10] sm:$0xf]
        %v535 = vld [vmem:[%s531 + $0x18] sm:$0xf]
        %v540 = vunpack.c.l.b16 %v532
        %v541 = vunpack.c.l.b16 %v533
        %v542 = vunpack.c.l.b16 %v534
        %v543 = vunpack.c.l.b16 %v535
        %v544 = vpack.c.b16 %v541, %v540
        %v545 = vpack.c.b16 %v543, %v542
        %548 = vst [vmem:[#allocation2 + $0x40] sm:$0xff] %v544
        %549 = vst [vmem:[#allocation2 + $0xc0] sm:$0xff] %v545
        %v550 = vld [vmem:[%s531] sm:$0xf]
        %v551 = vld [vmem:[%s531 + $0x4] sm:$0x1]
        %v552 = vld [vmem:[%s531 + $0x8] sm:$0xf]
        %v553 = vld [vmem:[%s531 + $0xc] sm:$0x1]
        %v554 = vld [vmem:[%s531 + $0x10] sm:$0xf]
        %v555 = vld [vmem:[%s531 + $0x14] sm:$0x1]
        %v556 = vld [vmem:[%s531 + $0x18] sm:$0xf]
        %v557 = vld [vmem:[%s531 + $0x1c] sm:$0x1]
        %v559 = vshrl.u32 %v550, 16
        %v561 = vrot.slane %v559, 4
        %v562 = vshll.u32 %v550, 16
        %v564 = vrot.slane %v562, 5
        %v565 = vor.u32 %v561, %v564
        %v566 = vrot.slane %v565, 4
        %v568 = vshll.u32 %v551, 16
        %v570 = vrot.slane %v568, 5
        %v571 = vsel %vm464, %v566, %v570
        %v573 = vshrl.u32 %v552, 16
        %v575 = vrot.slane %v573, 4
        %v576 = vshll.u32 %v552, 16
        %v578 = vrot.slane %v576, 5
        %v579 = vor.u32 %v575, %v578
        %v580 = vrot.slane %v579, 4
        %v582 = vshll.u32 %v553, 16
        %v584 = vrot.slane %v582, 5
        %v585 = vsel %vm464, %v580, %v584
        %v587 = vshrl.u32 %v554, 16
        %v589 = vrot.slane %v587, 4
        %v590 = vshll.u32 %v554, 16
        %v592 = vrot.slane %v590, 5
        %v593 = vor.u32 %v589, %v592
        %v594 = vrot.slane %v593, 4
        %v596 = vshll.u32 %v555, 16
        %v598 = vrot.slane %v596, 5
        %v599 = vsel %vm464, %v594, %v598
        %v601 = vshrl.u32 %v556, 16
        %v603 = vrot.slane %v601, 4
        %v604 = vshll.u32 %v556, 16
        %v606 = vrot.slane %v604, 5
        %v607 = vor.u32 %v603, %v606
        %v608 = vrot.slane %v607, 4
        %v610 = vshll.u32 %v557, 16
        %v612 = vrot.slane %v610, 5
        %v613 = vsel %vm464, %v608, %v612
        %v614 = vunpack.c.l.b16 %v571
        %v615 = vunpack.c.l.b16 %v585
        %v616 = vunpack.c.l.b16 %v599
        %v617 = vunpack.c.l.b16 %v613
        %v618 = vpack.c.b16 %v615, %v614
        %v619 = vpack.c.b16 %v617, %v616
        %622 = vst [vmem:[#allocation2 + $0x50] sm:$0xff] %v618
        %623 = vst [vmem:[#allocation2 + $0xd0] sm:$0xff] %v619
        %v624 = vld [vmem:[%s364] sm:$0xf]
        %v625 = vld [vmem:[%s364 + $0x8] sm:$0xf]
        %v626 = vld [vmem:[%s364 + $0x10] sm:$0xf]
        %v627 = vld [vmem:[%s364 + $0x18] sm:$0xf]
        %v632 = vunpack.c.l.b16 %v624
        %v633 = vunpack.c.l.b16 %v625
        %v634 = vunpack.c.l.b16 %v626
        %v635 = vunpack.c.l.b16 %v627
        %v636 = vpack.c.b16 %v633, %v632
        %v637 = vpack.c.b16 %v635, %v634
        %640 = vst [vmem:[#allocation2 + $0x8] sm:$0xff] %v636
        %641 = vst [vmem:[#allocation2 + $0x88] sm:$0xff] %v637
        %v642 = vld [vmem:[%s364] sm:$0xf]
        %v643 = vld [vmem:[%s364 + $0x4] sm:$0x1]
        %v644 = vld [vmem:[%s364 + $0x8] sm:$0xf]
        %v645 = vld [vmem:[%s364 + $0xc] sm:$0x1]
        %v646 = vld [vmem:[%s364 + $0x10] sm:$0xf]
        %v647 = vld [vmem:[%s364 + $0x14] sm:$0x1]
        %v648 = vld [vmem:[%s364 + $0x18] sm:$0xf]
        %v649 = vld [vmem:[%s364 + $0x1c] sm:$0x1]
        %v651 = vshrl.u32 %v642, 16
        %v653 = vrot.slane %v651, 4
        %v654 = vshll.u32 %v642, 16
        %v656 = vrot.slane %v654, 5
        %v657 = vor.u32 %v653, %v656
        %v658 = vrot.slane %v657, 4
        %v660 = vshll.u32 %v643, 16
        %v662 = vrot.slane %v660, 5
        %v663 = vsel %vm464, %v658, %v662
        %v665 = vshrl.u32 %v644, 16
        %v667 = vrot.slane %v665, 4
        %v668 = vshll.u32 %v644, 16
        %v670 = vrot.slane %v668, 5
        %v671 = vor.u32 %v667, %v670
        %v672 = vrot.slane %v671, 4
        %v674 = vshll.u32 %v645, 16
        %v676 = vrot.slane %v674, 5
        %v677 = vsel %vm464, %v672, %v676
        %v679 = vshrl.u32 %v646, 16
        %v681 = vrot.slane %v679, 4
        %v682 = vshll.u32 %v646, 16
        %v684 = vrot.slane %v682, 5
        %v685 = vor.u32 %v681, %v684
        %v686 = vrot.slane %v685, 4
        %v688 = vshll.u32 %v647, 16
        %v690 = vrot.slane %v688, 5
        %v691 = vsel %vm464, %v686, %v690
        %v693 = vshrl.u32 %v648, 16
        %v695 = vrot.slane %v693, 4
        %v696 = vshll.u32 %v648, 16
        %v698 = vrot.slane %v696, 5
        %v699 = vor.u32 %v695, %v698
        %v700 = vrot.slane %v699, 4
        %v702 = vshll.u32 %v649, 16
        %v704 = vrot.slane %v702, 5
        %v705 = vsel %vm464, %v700, %v704
        %v706 = vunpack.c.l.b16 %v663
        %v707 = vunpack.c.l.b16 %v677
        %v708 = vunpack.c.l.b16 %v691
        %v709 = vunpack.c.l.b16 %v705
        %v710 = vpack.c.b16 %v707, %v706
        %v711 = vpack.c.b16 %v709, %v708
        %714 = vst [vmem:[#allocation2 + $0x18] sm:$0xff] %v710
        %715 = vst [vmem:[#allocation2 + $0x98] sm:$0xff] %v711
        %s716 = scalar_lea.vmem %s364, 8 [#allocation6]
        %v717 = vld [vmem:[%s716] sm:$0xf]
        %v718 = vld [vmem:[%s716 + $0x8] sm:$0xf]
        %v719 = vld [vmem:[%s716 + $0x10] sm:$0xf]
        %v720 = vld [vmem:[%s716 + $0x18] sm:$0xf]
        %v725 = vunpack.c.l.b16 %v717
        %v726 = vunpack.c.l.b16 %v718
        %v727 = vunpack.c.l.b16 %v719
        %v728 = vunpack.c.l.b16 %v720
        %v729 = vpack.c.b16 %v726, %v725
        %v730 = vpack.c.b16 %v728, %v727
        %733 = vst [vmem:[#allocation2 + $0x48] sm:$0xff] %v729
        %734 = vst [vmem:[#allocation2 + $0xc8] sm:$0xff] %v730
        %v735 = vld [vmem:[%s716] sm:$0xf]
        %v736 = vld [vmem:[%s716 + $0x4] sm:$0x1]
        %v737 = vld [vmem:[%s716 + $0x8] sm:$0xf]
        %v738 = vld [vmem:[%s716 + $0xc] sm:$0x1]
        %v739 = vld [vmem:[%s716 + $0x10] sm:$0xf]
        %v740 = vld [vmem:[%s716 + $0x14] sm:$0x1]
        %v741 = vld [vmem:[%s716 + $0x18] sm:$0xf]
        %v742 = vld [vmem:[%s716 + $0x1c] sm:$0x1]
        %v744 = vshrl.u32 %v735, 16
        %v746 = vrot.slane %v744, 4
        %v747 = vshll.u32 %v735, 16
        %v749 = vrot.slane %v747, 5
        %v750 = vor.u32 %v746, %v749
        %v751 = vrot.slane %v750, 4
        %v753 = vshll.u32 %v736, 16
        %v755 = vrot.slane %v753, 5
        %v756 = vsel %vm464, %v751, %v755
        %v758 = vshrl.u32 %v737, 16
        %v760 = vrot.slane %v758, 4
        %v761 = vshll.u32 %v737, 16
        %v763 = vrot.slane %v761, 5
        %v764 = vor.u32 %v760, %v763
        %v765 = vrot.slane %v764, 4
        %v767 = vshll.u32 %v738, 16
        %v769 = vrot.slane %v767, 5
        %v770 = vsel %vm464, %v765, %v769
        %v772 = vshrl.u32 %v739, 16
        %v774 = vrot.slane %v772, 4
        %v775 = vshll.u32 %v739, 16
        %v777 = vrot.slane %v775, 5
        %v778 = vor.u32 %v774, %v777
        %v779 = vrot.slane %v778, 4
        %v781 = vshll.u32 %v740, 16
        %v783 = vrot.slane %v781, 5
        %v784 = vsel %vm464, %v779, %v783
        %v786 = vshrl.u32 %v741, 16
        %v788 = vrot.slane %v786, 4
        %v789 = vshll.u32 %v741, 16
        %v791 = vrot.slane %v789, 5
        %v792 = vor.u32 %v788, %v791
        %v793 = vrot.slane %v792, 4
        %v795 = vshll.u32 %v742, 16
        %v797 = vrot.slane %v795, 5
        %v798 = vsel %vm464, %v793, %v797
        %v799 = vunpack.c.l.b16 %v756
        %v800 = vunpack.c.l.b16 %v770
        %v801 = vunpack.c.l.b16 %v784
        %v802 = vunpack.c.l.b16 %v798
        %v803 = vpack.c.b16 %v800, %v799
        %v804 = vpack.c.b16 %v802, %v801
        %807 = vst [vmem:[#allocation2 + $0x58] sm:$0xff] %v803
        %808 = vst [vmem:[#allocation2 + $0xd8] sm:$0xff] %v804
        %v809 = vld [vmem:[%s373] sm:$0xf]
        %v810 = vld [vmem:[%s373 + $0x8] sm:$0xf]
        %v811 = vld [vmem:[%s373 + $0x10] sm:$0xf]
        %v812 = vld [vmem:[%s373 + $0x18] sm:$0xf]
        %v817 = vunpack.c.l.b16 %v809
        %v818 = vunpack.c.l.b16 %v810
        %v819 = vunpack.c.l.b16 %v811
        %v820 = vunpack.c.l.b16 %v812
        %v821 = vpack.c.b16 %v818, %v817
        %v822 = vpack.c.b16 %v820, %v819
        %825 = vst [vmem:[#allocation2 + $0x20] sm:$0xff] %v821
        %826 = vst [vmem:[#allocation2 + $0xa0] sm:$0xff] %v822
        %v827 = vld [vmem:[%s373] sm:$0xf]
        %v828 = vld [vmem:[%s373 + $0x4] sm:$0x1]
        %v829 = vld [vmem:[%s373 + $0x8] sm:$0xf]
        %v830 = vld [vmem:[%s373 + $0xc] sm:$0x1]
        %v831 = vld [vmem:[%s373 + $0x10] sm:$0xf]
        %v832 = vld [vmem:[%s373 + $0x14] sm:$0x1]
        %v833 = vld [vmem:[%s373 + $0x18] sm:$0xf]
        %v834 = vld [vmem:[%s373 + $0x1c] sm:$0x1]
        %v836 = vshrl.u32 %v827, 16
        %v838 = vrot.slane %v836, 4
        %v839 = vshll.u32 %v827, 16
        %v841 = vrot.slane %v839, 5
        %v842 = vor.u32 %v838, %v841
        %v843 = vrot.slane %v842, 4
        %v845 = vshll.u32 %v828, 16
        %v847 = vrot.slane %v845, 5
        %v848 = vsel %vm464, %v843, %v847
        %v850 = vshrl.u32 %v829, 16
        %v852 = vrot.slane %v850, 4
        %v853 = vshll.u32 %v829, 16
        %v855 = vrot.slane %v853, 5
        %v856 = vor.u32 %v852, %v855
        %v857 = vrot.slane %v856, 4
        %v859 = vshll.u32 %v830, 16
        %v861 = vrot.slane %v859, 5
        %v862 = vsel %vm464, %v857, %v861
        %v864 = vshrl.u32 %v831, 16
        %v866 = vrot.slane %v864, 4
        %v867 = vshll.u32 %v831, 16
        %v869 = vrot.slane %v867, 5
        %v870 = vor.u32 %v866, %v869
        %v871 = vrot.slane %v870, 4
        %v873 = vshll.u32 %v832, 16
        %v875 = vrot.slane %v873, 5
        %v876 = vsel %vm464, %v871, %v875
        %v878 = vshrl.u32 %v833, 16
        %v880 = vrot.slane %v878, 4
        %v881 = vshll.u32 %v833, 16
        %v883 = vrot.slane %v881, 5
        %v884 = vor.u32 %v880, %v883
        %v885 = vrot.slane %v884, 4
        %v887 = vshll.u32 %v834, 16
        %v889 = vrot.slane %v887, 5
        %v890 = vsel %vm464, %v885, %v889
        %v891 = vunpack.c.l.b16 %v848
        %v892 = vunpack.c.l.b16 %v862
        %v893 = vunpack.c.l.b16 %v876
        %v894 = vunpack.c.l.b16 %v890
        %v895 = vpack.c.b16 %v892, %v891
        %v896 = vpack.c.b16 %v894, %v893
        %899 = vst [vmem:[#allocation2 + $0x30] sm:$0xff] %v895
        %900 = vst [vmem:[#allocation2 + $0xb0] sm:$0xff] %v896
        %s901 = scalar_lea.vmem %s373, 8 [#allocation8]
        %v902 = vld [vmem:[%s901] sm:$0xf]
        %v903 = vld [vmem:[%s901 + $0x8] sm:$0xf]
        %v904 = vld [vmem:[%s901 + $0x10] sm:$0xf]
        %v905 = vld [vmem:[%s901 + $0x18] sm:$0xf]
        %v910 = vunpack.c.l.b16 %v902
        %v911 = vunpack.c.l.b16 %v903
        %v912 = vunpack.c.l.b16 %v904
        %v913 = vunpack.c.l.b16 %v905
        %v914 = vpack.c.b16 %v911, %v910
        %v915 = vpack.c.b16 %v913, %v912
        %918 = vst [vmem:[#allocation2 + $0x60] sm:$0xff] %v914
        %919 = vst [vmem:[#allocation2 + $0xe0] sm:$0xff] %v915
        %v920 = vld [vmem:[%s901] sm:$0xf]
        %v921 = vld [vmem:[%s901 + $0x4] sm:$0x1]
        %v922 = vld [vmem:[%s901 + $0x8] sm:$0xf]
        %v923 = vld [vmem:[%s901 + $0xc] sm:$0x1]
        %v924 = vld [vmem:[%s901 + $0x10] sm:$0xf]
        %v925 = vld [vmem:[%s901 + $0x14] sm:$0x1]
        %v926 = vld [vmem:[%s901 + $0x18] sm:$0xf]
        %v927 = vld [vmem:[%s901 + $0x1c] sm:$0x1]
        %v929 = vshrl.u32 %v920, 16
        %v931 = vrot.slane %v929, 4
        %v932 = vshll.u32 %v920, 16
        %v934 = vrot.slane %v932, 5
        %v935 = vor.u32 %v931, %v934
        %v936 = vrot.slane %v935, 4
        %v938 = vshll.u32 %v921, 16
        %v940 = vrot.slane %v938, 5
        %v941 = vsel %vm464, %v936, %v940
        %v943 = vshrl.u32 %v922, 16
        %v945 = vrot.slane %v943, 4
        %v946 = vshll.u32 %v922, 16
        %v948 = vrot.slane %v946, 5
        %v949 = vor.u32 %v945, %v948
        %v950 = vrot.slane %v949, 4
        %v952 = vshll.u32 %v923, 16
        %v954 = vrot.slane %v952, 5
        %v955 = vsel %vm464, %v950, %v954
        %v957 = vshrl.u32 %v924, 16
        %v959 = vrot.slane %v957, 4
        %v960 = vshll.u32 %v924, 16
        %v962 = vrot.slane %v960, 5
        %v963 = vor.u32 %v959, %v962
        %v964 = vrot.slane %v963, 4
        %v966 = vshll.u32 %v925, 16
        %v968 = vrot.slane %v966, 5
        %v969 = vsel %vm464, %v964, %v968
        %v971 = vshrl.u32 %v926, 16
        %v973 = vrot.slane %v971, 4
        %v974 = vshll.u32 %v926, 16
        %v976 = vrot.slane %v974, 5
        %v977 = vor.u32 %v973, %v976
        %v978 = vrot.slane %v977, 4
        %v980 = vshll.u32 %v927, 16
        %v982 = vrot.slane %v980, 5
        %v983 = vsel %vm464, %v978, %v982
        %v984 = vunpack.c.l.b16 %v941
        %v985 = vunpack.c.l.b16 %v955
        %v986 = vunpack.c.l.b16 %v969
        %v987 = vunpack.c.l.b16 %v983
        %v988 = vpack.c.b16 %v985, %v984
        %v989 = vpack.c.b16 %v987, %v986
        %992 = vst [vmem:[#allocation2 + $0x70] sm:$0xff] %v988
        %993 = vst [vmem:[#allocation2 + $0xf0] sm:$0xff] %v989
        %v994 = vld [vmem:[%s382] sm:$0xf]
        %v995 = vld [vmem:[%s382 + $0x8] sm:$0xf]
        %v996 = vld [vmem:[%s382 + $0x10] sm:$0xf]
        %v997 = vld [vmem:[%s382 + $0x18] sm:$0xf]
        %v1002 = vunpack.c.l.b16 %v994
        %v1003 = vunpack.c.l.b16 %v995
        %v1004 = vunpack.c.l.b16 %v996
        %v1005 = vunpack.c.l.b16 %v997
        %v1006 = vpack.c.b16 %v1003, %v1002
        %v1007 = vpack.c.b16 %v1005, %v1004
        %1010 = vst [vmem:[#allocation2 + $0x28] sm:$0xff] %v1006
        %1011 = vst [vmem:[#allocation2 + $0xa8] sm:$0xff] %v1007
        %v1012 = vld [vmem:[%s382] sm:$0xf]
        %v1013 = vld [vmem:[%s382 + $0x4] sm:$0x1]
        %v1014 = vld [vmem:[%s382 + $0x8] sm:$0xf]
        %v1015 = vld [vmem:[%s382 + $0xc] sm:$0x1]
        %v1016 = vld [vmem:[%s382 + $0x10] sm:$0xf]
        %v1017 = vld [vmem:[%s382 + $0x14] sm:$0x1]
        %v1018 = vld [vmem:[%s382 + $0x18] sm:$0xf]
        %v1019 = vld [vmem:[%s382 + $0x1c] sm:$0x1]
        %v1021 = vshrl.u32 %v1012, 16
        %v1023 = vrot.slane %v1021, 4
        %v1024 = vshll.u32 %v1012, 16
        %v1026 = vrot.slane %v1024, 5
        %v1027 = vor.u32 %v1023, %v1026
        %v1028 = vrot.slane %v1027, 4
        %v1030 = vshll.u32 %v1013, 16
        %v1032 = vrot.slane %v1030, 5
        %v1033 = vsel %vm464, %v1028, %v1032
        %v1035 = vshrl.u32 %v1014, 16
        %v1037 = vrot.slane %v1035, 4
        %v1038 = vshll.u32 %v1014, 16
        %v1040 = vrot.slane %v1038, 5
        %v1041 = vor.u32 %v1037, %v1040
        %v1042 = vrot.slane %v1041, 4
        %v1044 = vshll.u32 %v1015, 16
        %v1046 = vrot.slane %v1044, 5
        %v1047 = vsel %vm464, %v1042, %v1046
        %v1049 = vshrl.u32 %v1016, 16
        %v1051 = vrot.slane %v1049, 4
        %v1052 = vshll.u32 %v1016, 16
        %v1054 = vrot.slane %v1052, 5
        %v1055 = vor.u32 %v1051, %v1054
        %v1056 = vrot.slane %v1055, 4
        %v1058 = vshll.u32 %v1017, 16
        %v1060 = vrot.slane %v1058, 5
        %v1061 = vsel %vm464, %v1056, %v1060
        %v1063 = vshrl.u32 %v1018, 16
        %v1065 = vrot.slane %v1063, 4
        %v1066 = vshll.u32 %v1018, 16
        %v1068 = vrot.slane %v1066, 5
        %v1069 = vor.u32 %v1065, %v1068
        %v1070 = vrot.slane %v1069, 4
        %v1072 = vshll.u32 %v1019, 16
        %v1074 = vrot.slane %v1072, 5
        %v1075 = vsel %vm464, %v1070, %v1074
        %v1076 = vunpack.c.l.b16 %v1033
        %v1077 = vunpack.c.l.b16 %v1047
        %v1078 = vunpack.c.l.b16 %v1061
        %v1079 = vunpack.c.l.b16 %v1075
        %v1080 = vpack.c.b16 %v1077, %v1076
        %v1081 = vpack.c.b16 %v1079, %v1078
        %1084 = vst [vmem:[#allocation2 + $0x38] sm:$0xff] %v1080
        %1085 = vst [vmem:[#allocation2 + $0xb8] sm:$0xff] %v1081
        %s1086 = scalar_lea.vmem %s382, 8 [#allocation9]
        %v1087 = vld [vmem:[%s1086] sm:$0xf]
        %v1088 = vld [vmem:[%s1086 + $0x8] sm:$0xf]
        %v1089 = vld [vmem:[%s1086 + $0x10] sm:$0xf]
        %v1090 = vld [vmem:[%s1086 + $0x18] sm:$0xf]
        %v1095 = vunpack.c.l.b16 %v1087
        %v1096 = vunpack.c.l.b16 %v1088
        %v1097 = vunpack.c.l.b16 %v1089
        %v1098 = vunpack.c.l.b16 %v1090
        %v1099 = vpack.c.b16 %v1096, %v1095
        %v1100 = vpack.c.b16 %v1098, %v1097
        %1103 = vst [vmem:[#allocation2 + $0x68] sm:$0xff] %v1099
        %1104 = vst [vmem:[#allocation2 + $0xe8] sm:$0xff] %v1100
        %v1105 = vld [vmem:[%s1086] sm:$0xf]
        %v1106 = vld [vmem:[%s1086 + $0x4] sm:$0x1]
        %v1107 = vld [vmem:[%s1086 + $0x8] sm:$0xf]
        %v1108 = vld [vmem:[%s1086 + $0xc] sm:$0x1]
        %v1109 = vld [vmem:[%s1086 + $0x10] sm:$0xf]
        %v1110 = vld [vmem:[%s1086 + $0x14] sm:$0x1]
        %v1111 = vld [vmem:[%s1086 + $0x18] sm:$0xf]
        %v1112 = vld [vmem:[%s1086 + $0x1c] sm:$0x1]
        %v1114 = vshrl.u32 %v1105, 16
        %v1116 = vrot.slane %v1114, 4
        %v1117 = vshll.u32 %v1105, 16
        %v1119 = vrot.slane %v1117, 5
        %v1120 = vor.u32 %v1116, %v1119
        %v1121 = vrot.slane %v1120, 4
        %v1123 = vshll.u32 %v1106, 16
        %v1125 = vrot.slane %v1123, 5
        %v1126 = vsel %vm464, %v1121, %v1125
        %v1128 = vshrl.u32 %v1107, 16
        %v1130 = vrot.slane %v1128, 4
        %v1131 = vshll.u32 %v1107, 16
        %v1133 = vrot.slane %v1131, 5
        %v1134 = vor.u32 %v1130, %v1133
        %v1135 = vrot.slane %v1134, 4
        %v1137 = vshll.u32 %v1108, 16
        %v1139 = vrot.slane %v1137, 5
        %v1140 = vsel %vm464, %v1135, %v1139
        %v1142 = vshrl.u32 %v1109, 16
        %v1144 = vrot.slane %v1142, 4
        %v1145 = vshll.u32 %v1109, 16
        %v1147 = vrot.slane %v1145, 5
        %v1148 = vor.u32 %v1144, %v1147
        %v1149 = vrot.slane %v1148, 4
        %v1151 = vshll.u32 %v1110, 16
        %v1153 = vrot.slane %v1151, 5
        %v1154 = vsel %vm464, %v1149, %v1153
        %v1156 = vshrl.u32 %v1111, 16
        %v1158 = vrot.slane %v1156, 4
        %v1159 = vshll.u32 %v1111, 16
        %v1161 = vrot.slane %v1159, 5
        %v1162 = vor.u32 %v1158, %v1161
        %v1163 = vrot.slane %v1162, 4
        %v1165 = vshll.u32 %v1112, 16
        %v1167 = vrot.slane %v1165, 5
        %v1168 = vsel %vm464, %v1163, %v1167
        %v1169 = vunpack.c.l.b16 %v1126
        %v1170 = vunpack.c.l.b16 %v1140
        %v1171 = vunpack.c.l.b16 %v1154
        %v1172 = vunpack.c.l.b16 %v1168
        %v1173 = vpack.c.b16 %v1170, %v1169
        %v1174 = vpack.c.b16 %v1172, %v1171
        %1177 = vst [vmem:[#allocation2 + $0x78] sm:$0xff] %v1173
        %1178 = vst [vmem:[#allocation2 + $0xf8] sm:$0xff] %v1174
        %v1179 = vld [vmem:[#allocation2] sm:$0xff]
        %v1180 = vld [vmem:[#allocation2 + $0x8] sm:$0xff]
        %v1181 = vld [vmem:[#allocation2 + $0x10] sm:$0xff]
        %v1182 = vld [vmem:[#allocation2 + $0x18] sm:$0xff]
        %v1183 = vld [vmem:[#allocation2 + $0x20] sm:$0xff]
        %v1184 = vld [vmem:[#allocation2 + $0x28] sm:$0xff]
        %v1185 = vld [vmem:[#allocation2 + $0x30] sm:$0xff]
        %v1186 = vld [vmem:[#allocation2 + $0x38] sm:$0xff]
        %v1187 = vld [vmem:[#allocation2 + $0x40] sm:$0xff]
        %v1188 = vld [vmem:[#allocation2 + $0x48] sm:$0xff]
        %v1189 = vld [vmem:[#allocation2 + $0x50] sm:$0xff]
        %v1190 = vld [vmem:[#allocation2 + $0x58] sm:$0xff]
        %v1191 = vld [vmem:[#allocation2 + $0x60] sm:$0xff]
        %v1192 = vld [vmem:[#allocation2 + $0x68] sm:$0xff]
        %v1193 = vld [vmem:[#allocation2 + $0x70] sm:$0xff]
        %v1194 = vld [vmem:[#allocation2 + $0x78] sm:$0xff]
        %v1195 = vld [vmem:[#allocation2 + $0x80] sm:$0xff]
        %v1196 = vld [vmem:[#allocation2 + $0x88] sm:$0xff]
        %v1197 = vld [vmem:[#allocation2 + $0x90] sm:$0xff]
        %v1198 = vld [vmem:[#allocation2 + $0x98] sm:$0xff]
        %v1199 = vld [vmem:[#allocation2 + $0xa0] sm:$0xff]
        %v1200 = vld [vmem:[#allocation2 + $0xa8] sm:$0xff]
        %v1201 = vld [vmem:[#allocation2 + $0xb0] sm:$0xff]
        %v1202 = vld [vmem:[#allocation2 + $0xb8] sm:$0xff]
        %v1203 = vld [vmem:[#allocation2 + $0xc0] sm:$0xff]
        %v1204 = vld [vmem:[#allocation2 + $0xc8] sm:$0xff]
        %v1205 = vld [vmem:[#allocation2 + $0xd0] sm:$0xff]
        %v1206 = vld [vmem:[#allocation2 + $0xd8] sm:$0xff]
        %v1207 = vld [vmem:[#allocation2 + $0xe0] sm:$0xff]
        %v1208 = vld [vmem:[#allocation2 + $0xe8] sm:$0xff]
        %v1209 = vld [vmem:[#allocation2 + $0xf0] sm:$0xff]
        %v1210 = vld [vmem:[#allocation2 + $0xf8] sm:$0xff]
        %v1211 = vld [vmem:[#allocation11] sm:$0xf]
        %v1212 = vld [vmem:[#allocation11 + $0x4] sm:$0xf]
        %v1213 = vld [vmem:[#allocation11 + $0x8] sm:$0xf]
        %v1214 = vld [vmem:[#allocation11 + $0xc] sm:$0xf]
        %v1215 = vld [vmem:[#allocation11 + $0x10] sm:$0xf]
        %v1216 = vld [vmem:[#allocation11 + $0x14] sm:$0xf]
        %v1217 = vld [vmem:[#allocation11 + $0x18] sm:$0xf]
        %v1218 = vld [vmem:[#allocation11 + $0x1c] sm:$0xf]
        %v1219 = vld [vmem:[#allocation11 + $0x20] sm:$0xf]
        %v1220 = vld [vmem:[#allocation11 + $0x24] sm:$0xf]
        %v1221 = vld [vmem:[#allocation11 + $0x28] sm:$0xf]
        %v1222 = vld [vmem:[#allocation11 + $0x2c] sm:$0xf]
        %v1223 = vld [vmem:[#allocation11 + $0x30] sm:$0xf]
        %v1224 = vld [vmem:[#allocation11 + $0x34] sm:$0xf]
        %v1225 = vld [vmem:[#allocation11 + $0x38] sm:$0xf]
        %v1226 = vld [vmem:[#allocation11 + $0x3c] sm:$0xf]
        %v1227 = vld [vmem:[#allocation11 + $0x40] sm:$0xf]
        %v1228 = vld [vmem:[#allocation11 + $0x44] sm:$0xf]
        %v1229 = vld [vmem:[#allocation11 + $0x48] sm:$0xf]
        %v1230 = vld [vmem:[#allocation11 + $0x4c] sm:$0xf]
        %v1231 = vld [vmem:[#allocation11 + $0x50] sm:$0xf]
        %v1232 = vld [vmem:[#allocation11 + $0x54] sm:$0xf]
        %v1233 = vld [vmem:[#allocation11 + $0x58] sm:$0xf]
        %v1234 = vld [vmem:[#allocation11 + $0x5c] sm:$0xf]
        %v1235 = vld [vmem:[#allocation11 + $0x60] sm:$0xf]
        %v1236 = vld [vmem:[#allocation11 + $0x64] sm:$0xf]
        %v1237 = vld [vmem:[#allocation11 + $0x68] sm:$0xf]
        %v1238 = vld [vmem:[#allocation11 + $0x6c] sm:$0xf]
        %v1239 = vld [vmem:[#allocation11 + $0x70] sm:$0xf]
        %v1240 = vld [vmem:[#allocation11 + $0x74] sm:$0xf]
        %v1241 = vld [vmem:[#allocation11 + $0x78] sm:$0xf]
        %v1242 = vld [vmem:[#allocation11 + $0x7c] sm:$0xf]
        %v1243 = vld [vmem:[#allocation11 + $0x80] sm:$0xf]
        %v1244 = vld [vmem:[#allocation11 + $0x84] sm:$0xf]
        %v1245 = vld [vmem:[#allocation11 + $0x88] sm:$0xf]
        %v1246 = vld [vmem:[#allocation11 + $0x8c] sm:$0xf]
        %v1247 = vld [vmem:[#allocation11 + $0x90] sm:$0xf]
        %v1248 = vld [vmem:[#allocation11 + $0x94] sm:$0xf]
        %v1249 = vld [vmem:[#allocation11 + $0x98] sm:$0xf]
        %v1250 = vld [vmem:[#allocation11 + $0x9c] sm:$0xf]
        %v1251 = vld [vmem:[#allocation11 + $0xa0] sm:$0xf]
        %v1252 = vld [vmem:[#allocation11 + $0xa4] sm:$0xf]
        %v1253 = vld [vmem:[#allocation11 + $0xa8] sm:$0xf]
        %v1254 = vld [vmem:[#allocation11 + $0xac] sm:$0xf]
        %v1255 = vld [vmem:[#allocation11 + $0xb0] sm:$0xf]
        %v1256 = vld [vmem:[#allocation11 + $0xb4] sm:$0xf]
        %v1257 = vld [vmem:[#allocation11 + $0xb8] sm:$0xf]
        %v1258 = vld [vmem:[#allocation11 + $0xbc] sm:$0xf]
        %v1259 = vld [vmem:[#allocation11 + $0xc0] sm:$0xf]
        %v1260 = vld [vmem:[#allocation11 + $0xc4] sm:$0xf]
        %v1261 = vld [vmem:[#allocation11 + $0xc8] sm:$0xf]
        %v1262 = vld [vmem:[#allocation11 + $0xcc] sm:$0xf]
        %v1263 = vld [vmem:[#allocation11 + $0xd0] sm:$0xf]
        %v1264 = vld [vmem:[#allocation11 + $0xd4] sm:$0xf]
        %v1265 = vld [vmem:[#allocation11 + $0xd8] sm:$0xf]
        %v1266 = vld [vmem:[#allocation11 + $0xdc] sm:$0xf]
        %v1267 = vld [vmem:[#allocation11 + $0xe0] sm:$0xf]
        %v1268 = vld [vmem:[#allocation11 + $0xe4] sm:$0xf]
        %v1269 = vld [vmem:[#allocation11 + $0xe8] sm:$0xf]
        %v1270 = vld [vmem:[#allocation11 + $0xec] sm:$0xf]
        %v1271 = vld [vmem:[#allocation11 + $0xf0] sm:$0xf]
        %v1272 = vld [vmem:[#allocation11 + $0xf4] sm:$0xf]
        %v1273 = vld [vmem:[#allocation11 + $0xf8] sm:$0xf]
        %v1274 = vld [vmem:[#allocation11 + $0xfc] sm:$0xf]
        %v1275 = vld [vmem:[#allocation11 + $0x100] sm:$0xf]
        %v1276 = vld [vmem:[#allocation11 + $0x104] sm:$0xf]
        %v1277 = vld [vmem:[#allocation11 + $0x108] sm:$0xf]
        %v1278 = vld [vmem:[#allocation11 + $0x10c] sm:$0xf]
        %v1279 = vld [vmem:[#allocation11 + $0x110] sm:$0xf]
        %v1280 = vld [vmem:[#allocation11 + $0x114] sm:$0xf]
        %v1281 = vld [vmem:[#allocation11 + $0x118] sm:$0xf]
        %v1282 = vld [vmem:[#allocation11 + $0x11c] sm:$0xf]
        %v1283 = vld [vmem:[#allocation11 + $0x120] sm:$0xf]
        %v1284 = vld [vmem:[#allocation11 + $0x124] sm:$0xf]
        %v1285 = vld [vmem:[#allocation11 + $0x128] sm:$0xf]
        %v1286 = vld [vmem:[#allocation11 + $0x12c] sm:$0xf]
        %v1287 = vld [vmem:[#allocation11 + $0x130] sm:$0xf]
        %v1288 = vld [vmem:[#allocation11 + $0x134] sm:$0xf]
        %v1289 = vld [vmem:[#allocation11 + $0x138] sm:$0xf]
        %v1290 = vld [vmem:[#allocation11 + $0x13c] sm:$0xf]
        %v1291 = vld [vmem:[#allocation11 + $0x140] sm:$0xf]
        %v1292 = vld [vmem:[#allocation11 + $0x144] sm:$0xf]
        %v1293 = vld [vmem:[#allocation11 + $0x148] sm:$0xf]
        %v1294 = vld [vmem:[#allocation11 + $0x14c] sm:$0xf]
        %v1295 = vld [vmem:[#allocation11 + $0x150] sm:$0xf]
        %v1296 = vld [vmem:[#allocation11 + $0x154] sm:$0xf]
        %v1297 = vld [vmem:[#allocation11 + $0x158] sm:$0xf]
        %v1298 = vld [vmem:[#allocation11 + $0x15c] sm:$0xf]
        %v1299 = vld [vmem:[#allocation11 + $0x160] sm:$0xf]
        %v1300 = vld [vmem:[#allocation11 + $0x164] sm:$0xf]
        %v1301 = vld [vmem:[#allocation11 + $0x168] sm:$0xf]
        %v1302 = vld [vmem:[#allocation11 + $0x16c] sm:$0xf]
        %v1303 = vld [vmem:[#allocation11 + $0x170] sm:$0xf]
        %v1304 = vld [vmem:[#allocation11 + $0x174] sm:$0xf]
        %v1305 = vld [vmem:[#allocation11 + $0x178] sm:$0xf]
        %v1306 = vld [vmem:[#allocation11 + $0x17c] sm:$0xf]
        %v1307 = vld [vmem:[#allocation11 + $0x180] sm:$0xf]
        %v1308 = vld [vmem:[#allocation11 + $0x184] sm:$0xf]
        %v1309 = vld [vmem:[#allocation11 + $0x188] sm:$0xf]
        %v1310 = vld [vmem:[#allocation11 + $0x18c] sm:$0xf]
        %v1311 = vld [vmem:[#allocation11 + $0x190] sm:$0xf]
        %v1312 = vld [vmem:[#allocation11 + $0x194] sm:$0xf]
        %v1313 = vld [vmem:[#allocation11 + $0x198] sm:$0xf]
        %v1314 = vld [vmem:[#allocation11 + $0x19c] sm:$0xf]
        %v1315 = vld [vmem:[#allocation11 + $0x1a0] sm:$0xf]
        %v1316 = vld [vmem:[#allocation11 + $0x1a4] sm:$0xf]
        %v1317 = vld [vmem:[#allocation11 + $0x1a8] sm:$0xf]
        %v1318 = vld [vmem:[#allocation11 + $0x1ac] sm:$0xf]
        %v1319 = vld [vmem:[#allocation11 + $0x1b0] sm:$0xf]
        %v1320 = vld [vmem:[#allocation11 + $0x1b4] sm:$0xf]
        %v1321 = vld [vmem:[#allocation11 + $0x1b8] sm:$0xf]
        %v1322 = vld [vmem:[#allocation11 + $0x1bc] sm:$0xf]
        %v1323 = vld [vmem:[#allocation11 + $0x1c0] sm:$0xf]
        %v1324 = vld [vmem:[#allocation11 + $0x1c4] sm:$0xf]
        %v1325 = vld [vmem:[#allocation11 + $0x1c8] sm:$0xf]
        %v1326 = vld [vmem:[#allocation11 + $0x1cc] sm:$0xf]
        %v1327 = vld [vmem:[#allocation11 + $0x1d0] sm:$0xf]
        %v1328 = vld [vmem:[#allocation11 + $0x1d4] sm:$0xf]
        %v1329 = vld [vmem:[#allocation11 + $0x1d8] sm:$0xf]
        %v1330 = vld [vmem:[#allocation11 + $0x1dc] sm:$0xf]
        %v1331 = vld [vmem:[#allocation11 + $0x1e0] sm:$0xf]
        %v1332 = vld [vmem:[#allocation11 + $0x1e4] sm:$0xf]
        %v1333 = vld [vmem:[#allocation11 + $0x1e8] sm:$0xf]
        %v1334 = vld [vmem:[#allocation11 + $0x1ec] sm:$0xf]
        %v1335 = vld [vmem:[#allocation11 + $0x1f0] sm:$0xf]
        %v1336 = vld [vmem:[#allocation11 + $0x1f4] sm:$0xf]
        %v1337 = vld [vmem:[#allocation11 + $0x1f8] sm:$0xf]
        %v1338 = vld [vmem:[#allocation11 + $0x1fc] sm:$0xf]
        %v1339 = vld [vmem:[#allocation11 + $0x200] sm:$0xf]
        %v1340 = vld [vmem:[#allocation11 + $0x204] sm:$0xf]
        %v1341 = vld [vmem:[#allocation11 + $0x208] sm:$0xf]
        %v1342 = vld [vmem:[#allocation11 + $0x20c] sm:$0xf]
        %v1343 = vld [vmem:[#allocation11 + $0x210] sm:$0xf]
        %v1344 = vld [vmem:[#allocation11 + $0x214] sm:$0xf]
        %v1345 = vld [vmem:[#allocation11 + $0x218] sm:$0xf]
        %v1346 = vld [vmem:[#allocation11 + $0x21c] sm:$0xf]
        %v1347 = vld [vmem:[#allocation11 + $0x220] sm:$0xf]
        %v1348 = vld [vmem:[#allocation11 + $0x224] sm:$0xf]
        %v1349 = vld [vmem:[#allocation11 + $0x228] sm:$0xf]
        %v1350 = vld [vmem:[#allocation11 + $0x22c] sm:$0xf]
        %v1351 = vld [vmem:[#allocation11 + $0x230] sm:$0xf]
        %v1352 = vld [vmem:[#allocation11 + $0x234] sm:$0xf]
        %v1353 = vld [vmem:[#allocation11 + $0x238] sm:$0xf]
        %v1354 = vld [vmem:[#allocation11 + $0x23c] sm:$0xf]
        %v1355 = vld [vmem:[#allocation11 + $0x240] sm:$0xf]
        %v1356 = vld [vmem:[#allocation11 + $0x244] sm:$0xf]
        %v1357 = vld [vmem:[#allocation11 + $0x248] sm:$0xf]
        %v1358 = vld [vmem:[#allocation11 + $0x24c] sm:$0xf]
        %v1359 = vld [vmem:[#allocation11 + $0x250] sm:$0xf]
        %v1360 = vld [vmem:[#allocation11 + $0x254] sm:$0xf]
        %v1361 = vld [vmem:[#allocation11 + $0x258] sm:$0xf]
        %v1362 = vld [vmem:[#allocation11 + $0x25c] sm:$0xf]
        %v1363 = vld [vmem:[#allocation11 + $0x260] sm:$0xf]
        %v1364 = vld [vmem:[#allocation11 + $0x264] sm:$0xf]
        %v1365 = vld [vmem:[#allocation11 + $0x268] sm:$0xf]
        %v1366 = vld [vmem:[#allocation11 + $0x26c] sm:$0xf]
        %v1367 = vld [vmem:[#allocation11 + $0x270] sm:$0xf]
        %v1368 = vld [vmem:[#allocation11 + $0x274] sm:$0xf]
        %v1369 = vld [vmem:[#allocation11 + $0x278] sm:$0xf]
        %v1370 = vld [vmem:[#allocation11 + $0x27c] sm:$0xf]
        %v1371 = vld [vmem:[#allocation11 + $0x280] sm:$0xf]
        %v1372 = vld [vmem:[#allocation11 + $0x284] sm:$0xf]
        %v1373 = vld [vmem:[#allocation11 + $0x288] sm:$0xf]
        %v1374 = vld [vmem:[#allocation11 + $0x28c] sm:$0xf]
        %v1375 = vld [vmem:[#allocation11 + $0x290] sm:$0xf]
        %v1376 = vld [vmem:[#allocation11 + $0x294] sm:$0xf]
        %v1377 = vld [vmem:[#allocation11 + $0x298] sm:$0xf]
        %v1378 = vld [vmem:[#allocation11 + $0x29c] sm:$0xf]
        %v1379 = vld [vmem:[#allocation11 + $0x2a0] sm:$0xf]
        %v1380 = vld [vmem:[#allocation11 + $0x2a4] sm:$0xf]
        %v1381 = vld [vmem:[#allocation11 + $0x2a8] sm:$0xf]
        %v1382 = vld [vmem:[#allocation11 + $0x2ac] sm:$0xf]
        %v1383 = vld [vmem:[#allocation11 + $0x2b0] sm:$0xf]
        %v1384 = vld [vmem:[#allocation11 + $0x2b4] sm:$0xf]
        %v1385 = vld [vmem:[#allocation11 + $0x2b8] sm:$0xf]
        %v1386 = vld [vmem:[#allocation11 + $0x2bc] sm:$0xf]
        %v1387 = vld [vmem:[#allocation11 + $0x2c0] sm:$0xf]
        %v1388 = vld [vmem:[#allocation11 + $0x2c4] sm:$0xf]
        %v1389 = vld [vmem:[#allocation11 + $0x2c8] sm:$0xf]
        %v1390 = vld [vmem:[#allocation11 + $0x2cc] sm:$0xf]
        %v1391 = vld [vmem:[#allocation11 + $0x2d0] sm:$0xf]
        %v1392 = vld [vmem:[#allocation11 + $0x2d4] sm:$0xf]
        %v1393 = vld [vmem:[#allocation11 + $0x2d8] sm:$0xf]
        %v1394 = vld [vmem:[#allocation11 + $0x2dc] sm:$0xf]
        %v1395 = vld [vmem:[#allocation11 + $0x2e0] sm:$0xf]
        %v1396 = vld [vmem:[#allocation11 + $0x2e4] sm:$0xf]
        %v1397 = vld [vmem:[#allocation11 + $0x2e8] sm:$0xf]
        %v1398 = vld [vmem:[#allocation11 + $0x2ec] sm:$0xf]
        %v1399 = vld [vmem:[#allocation11 + $0x2f0] sm:$0xf]
        %v1400 = vld [vmem:[#allocation11 + $0x2f4] sm:$0xf]
        %v1401 = vld [vmem:[#allocation11 + $0x2f8] sm:$0xf]
        %v1402 = vld [vmem:[#allocation11 + $0x2fc] sm:$0xf]
        %v1403 = vld [vmem:[#allocation11 + $0x300] sm:$0xf]
        %v1404 = vld [vmem:[#allocation11 + $0x304] sm:$0xf]
        %v1405 = vld [vmem:[#allocation11 + $0x308] sm:$0xf]
        %v1406 = vld [vmem:[#allocation11 + $0x30c] sm:$0xf]
        %v1407 = vld [vmem:[#allocation11 + $0x310] sm:$0xf]
        %v1408 = vld [vmem:[#allocation11 + $0x314] sm:$0xf]
        %v1409 = vld [vmem:[#allocation11 + $0x318] sm:$0xf]
        %v1410 = vld [vmem:[#allocation11 + $0x31c] sm:$0xf]
        %v1411 = vld [vmem:[#allocation11 + $0x320] sm:$0xf]
        %v1412 = vld [vmem:[#allocation11 + $0x324] sm:$0xf]
        %v1413 = vld [vmem:[#allocation11 + $0x328] sm:$0xf]
        %v1414 = vld [vmem:[#allocation11 + $0x32c] sm:$0xf]
        %v1415 = vld [vmem:[#allocation11 + $0x330] sm:$0xf]
        %v1416 = vld [vmem:[#allocation11 + $0x334] sm:$0xf]
        %v1417 = vld [vmem:[#allocation11 + $0x338] sm:$0xf]
        %v1418 = vld [vmem:[#allocation11 + $0x33c] sm:$0xf]
        %v1419 = vld [vmem:[#allocation11 + $0x340] sm:$0xf]
        %v1420 = vld [vmem:[#allocation11 + $0x344] sm:$0xf]
        %v1421 = vld [vmem:[#allocation11 + $0x348] sm:$0xf]
        %v1422 = vld [vmem:[#allocation11 + $0x34c] sm:$0xf]
        %v1423 = vld [vmem:[#allocation11 + $0x350] sm:$0xf]
        %v1424 = vld [vmem:[#allocation11 + $0x354] sm:$0xf]
        %v1425 = vld [vmem:[#allocation11 + $0x358] sm:$0xf]
        %v1426 = vld [vmem:[#allocation11 + $0x35c] sm:$0xf]
        %v1427 = vld [vmem:[#allocation11 + $0x360] sm:$0xf]
        %v1428 = vld [vmem:[#allocation11 + $0x364] sm:$0xf]
        %v1429 = vld [vmem:[#allocation11 + $0x368] sm:$0xf]
        %v1430 = vld [vmem:[#allocation11 + $0x36c] sm:$0xf]
        %v1431 = vld [vmem:[#allocation11 + $0x370] sm:$0xf]
        %v1432 = vld [vmem:[#allocation11 + $0x374] sm:$0xf]
        %v1433 = vld [vmem:[#allocation11 + $0x378] sm:$0xf]
        %v1434 = vld [vmem:[#allocation11 + $0x37c] sm:$0xf]
        %v1435 = vld [vmem:[#allocation11 + $0x380] sm:$0xf]
        %v1436 = vld [vmem:[#allocation11 + $0x384] sm:$0xf]
        %v1437 = vld [vmem:[#allocation11 + $0x388] sm:$0xf]
        %v1438 = vld [vmem:[#allocation11 + $0x38c] sm:$0xf]
        %v1439 = vld [vmem:[#allocation11 + $0x390] sm:$0xf]
        %v1440 = vld [vmem:[#allocation11 + $0x394] sm:$0xf]
        %v1441 = vld [vmem:[#allocation11 + $0x398] sm:$0xf]
        %v1442 = vld [vmem:[#allocation11 + $0x39c] sm:$0xf]
        %v1443 = vld [vmem:[#allocation11 + $0x3a0] sm:$0xf]
        %v1444 = vld [vmem:[#allocation11 + $0x3a4] sm:$0xf]
        %v1445 = vld [vmem:[#allocation11 + $0x3a8] sm:$0xf]
        %v1446 = vld [vmem:[#allocation11 + $0x3ac] sm:$0xf]
        %v1447 = vld [vmem:[#allocation11 + $0x3b0] sm:$0xf]
        %v1448 = vld [vmem:[#allocation11 + $0x3b4] sm:$0xf]
        %v1449 = vld [vmem:[#allocation11 + $0x3b8] sm:$0xf]
        %v1450 = vld [vmem:[#allocation11 + $0x3bc] sm:$0xf]
        %v1451 = vld [vmem:[#allocation11 + $0x3c0] sm:$0xf]
        %v1452 = vld [vmem:[#allocation11 + $0x3c4] sm:$0xf]
        %v1453 = vld [vmem:[#allocation11 + $0x3c8] sm:$0xf]
        %v1454 = vld [vmem:[#allocation11 + $0x3cc] sm:$0xf]
        %v1455 = vld [vmem:[#allocation11 + $0x3d0] sm:$0xf]
        %v1456 = vld [vmem:[#allocation11 + $0x3d4] sm:$0xf]
        %v1457 = vld [vmem:[#allocation11 + $0x3d8] sm:$0xf]
        %v1458 = vld [vmem:[#allocation11 + $0x3dc] sm:$0xf]
        %v1459 = vld [vmem:[#allocation11 + $0x3e0] sm:$0xf]
        %v1460 = vld [vmem:[#allocation11 + $0x3e4] sm:$0xf]
        %v1461 = vld [vmem:[#allocation11 + $0x3e8] sm:$0xf]
        %v1462 = vld [vmem:[#allocation11 + $0x3ec] sm:$0xf]
        %v1463 = vld [vmem:[#allocation11 + $0x3f0] sm:$0xf]
        %v1464 = vld [vmem:[#allocation11 + $0x3f4] sm:$0xf]
        %v1465 = vld [vmem:[#allocation11 + $0x3f8] sm:$0xf]
        %v1466 = vld [vmem:[#allocation11 + $0x3fc] sm:$0xf]
        %v1723 = vunpack.c.l.b16 %v1211
        %v1724 = vunpack.c.l.b16 %v1212
        %v1725 = vunpack.c.l.b16 %v1213
        %v1726 = vunpack.c.l.b16 %v1214
        %v1727 = vunpack.c.l.b16 %v1215
        %v1728 = vunpack.c.l.b16 %v1216
        %v1729 = vunpack.c.l.b16 %v1217
        %v1730 = vunpack.c.l.b16 %v1218
        %v1731 = vunpack.c.l.b16 %v1219
        %v1732 = vunpack.c.l.b16 %v1220
        %v1733 = vunpack.c.l.b16 %v1221
        %v1734 = vunpack.c.l.b16 %v1222
        %v1735 = vunpack.c.l.b16 %v1223
        %v1736 = vunpack.c.l.b16 %v1224
        %v1737 = vunpack.c.l.b16 %v1225
        %v1738 = vunpack.c.l.b16 %v1226
        %v1739 = vunpack.c.l.b16 %v1227
        %v1740 = vunpack.c.l.b16 %v1228
        %v1741 = vunpack.c.l.b16 %v1229
        %v1742 = vunpack.c.l.b16 %v1230
        %v1743 = vunpack.c.l.b16 %v1231
        %v1744 = vunpack.c.l.b16 %v1232
        %v1745 = vunpack.c.l.b16 %v1233
        %v1746 = vunpack.c.l.b16 %v1234
        %v1747 = vunpack.c.l.b16 %v1235
        %v1748 = vunpack.c.l.b16 %v1236
        %v1749 = vunpack.c.l.b16 %v1237
        %v1750 = vunpack.c.l.b16 %v1238
        %v1751 = vunpack.c.l.b16 %v1239
        %v1752 = vunpack.c.l.b16 %v1240
        %v1753 = vunpack.c.l.b16 %v1241
        %v1754 = vunpack.c.l.b16 %v1242
        %v1755 = vunpack.c.l.b16 %v1243
        %v1756 = vunpack.c.l.b16 %v1244
        %v1757 = vunpack.c.l.b16 %v1245
        %v1758 = vunpack.c.l.b16 %v1246
        %v1759 = vunpack.c.l.b16 %v1247
        %v1760 = vunpack.c.l.b16 %v1248
        %v1761 = vunpack.c.l.b16 %v1249
        %v1762 = vunpack.c.l.b16 %v1250
        %v1763 = vunpack.c.l.b16 %v1251
        %v1764 = vunpack.c.l.b16 %v1252
        %v1765 = vunpack.c.l.b16 %v1253
        %v1766 = vunpack.c.l.b16 %v1254
        %v1767 = vunpack.c.l.b16 %v1255
        %v1768 = vunpack.c.l.b16 %v1256
        %v1769 = vunpack.c.l.b16 %v1257
        %v1770 = vunpack.c.l.b16 %v1258
        %v1771 = vunpack.c.l.b16 %v1259
        %v1772 = vunpack.c.l.b16 %v1260
        %v1773 = vunpack.c.l.b16 %v1261
        %v1774 = vunpack.c.l.b16 %v1262
        %v1775 = vunpack.c.l.b16 %v1263
        %v1776 = vunpack.c.l.b16 %v1264
        %v1777 = vunpack.c.l.b16 %v1265
        %v1778 = vunpack.c.l.b16 %v1266
        %v1779 = vunpack.c.l.b16 %v1267
        %v1780 = vunpack.c.l.b16 %v1268
        %v1781 = vunpack.c.l.b16 %v1269
        %v1782 = vunpack.c.l.b16 %v1270
        %v1783 = vunpack.c.l.b16 %v1271
        %v1784 = vunpack.c.l.b16 %v1272
        %v1785 = vunpack.c.l.b16 %v1273
        %v1786 = vunpack.c.l.b16 %v1274
        %v1787 = vunpack.c.l.b16 %v1275
        %v1788 = vunpack.c.l.b16 %v1276
        %v1789 = vunpack.c.l.b16 %v1277
        %v1790 = vunpack.c.l.b16 %v1278
        %v1791 = vunpack.c.l.b16 %v1279
        %v1792 = vunpack.c.l.b16 %v1280
        %v1793 = vunpack.c.l.b16 %v1281
        %v1794 = vunpack.c.l.b16 %v1282
        %v1795 = vunpack.c.l.b16 %v1283
        %v1796 = vunpack.c.l.b16 %v1284
        %v1797 = vunpack.c.l.b16 %v1285
        %v1798 = vunpack.c.l.b16 %v1286
        %v1799 = vunpack.c.l.b16 %v1287
        %v1800 = vunpack.c.l.b16 %v1288
        %v1801 = vunpack.c.l.b16 %v1289
        %v1802 = vunpack.c.l.b16 %v1290
        %v1803 = vunpack.c.l.b16 %v1291
        %v1804 = vunpack.c.l.b16 %v1292
        %v1805 = vunpack.c.l.b16 %v1293
        %v1806 = vunpack.c.l.b16 %v1294
        %v1807 = vunpack.c.l.b16 %v1295
        %v1808 = vunpack.c.l.b16 %v1296
        %v1809 = vunpack.c.l.b16 %v1297
        %v1810 = vunpack.c.l.b16 %v1298
        %v1811 = vunpack.c.l.b16 %v1299
        %v1812 = vunpack.c.l.b16 %v1300
        %v1813 = vunpack.c.l.b16 %v1301
        %v1814 = vunpack.c.l.b16 %v1302
        %v1815 = vunpack.c.l.b16 %v1303
        %v1816 = vunpack.c.l.b16 %v1304
        %v1817 = vunpack.c.l.b16 %v1305
        %v1818 = vunpack.c.l.b16 %v1306
        %v1819 = vunpack.c.l.b16 %v1307
        %v1820 = vunpack.c.l.b16 %v1308
        %v1821 = vunpack.c.l.b16 %v1309
        %v1822 = vunpack.c.l.b16 %v1310
        %v1823 = vunpack.c.l.b16 %v1311
        %v1824 = vunpack.c.l.b16 %v1312
        %v1825 = vunpack.c.l.b16 %v1313
        %v1826 = vunpack.c.l.b16 %v1314
        %v1827 = vunpack.c.l.b16 %v1315
        %v1828 = vunpack.c.l.b16 %v1316
        %v1829 = vunpack.c.l.b16 %v1317
        %v1830 = vunpack.c.l.b16 %v1318
        %v1831 = vunpack.c.l.b16 %v1319
        %v1832 = vunpack.c.l.b16 %v1320
        %v1833 = vunpack.c.l.b16 %v1321
        %v1834 = vunpack.c.l.b16 %v1322
        %v1835 = vunpack.c.l.b16 %v1323
        %v1836 = vunpack.c.l.b16 %v1324
        %v1837 = vunpack.c.l.b16 %v1325
        %v1838 = vunpack.c.l.b16 %v1326
        %v1839 = vunpack.c.l.b16 %v1327
        %v1840 = vunpack.c.l.b16 %v1328
        %v1841 = vunpack.c.l.b16 %v1329
        %v1842 = vunpack.c.l.b16 %v1330
        %v1843 = vunpack.c.l.b16 %v1331
        %v1844 = vunpack.c.l.b16 %v1332
        %v1845 = vunpack.c.l.b16 %v1333
        %v1846 = vunpack.c.l.b16 %v1334
        %v1847 = vunpack.c.l.b16 %v1335
        %v1848 = vunpack.c.l.b16 %v1336
        %v1849 = vunpack.c.l.b16 %v1337
        %v1850 = vunpack.c.l.b16 %v1338
        %v1851 = vunpack.c.l.b16 %v1339
        %v1852 = vunpack.c.l.b16 %v1340
        %v1853 = vunpack.c.l.b16 %v1341
        %v1854 = vunpack.c.l.b16 %v1342
        %v1855 = vunpack.c.l.b16 %v1343
        %v1856 = vunpack.c.l.b16 %v1344
        %v1857 = vunpack.c.l.b16 %v1345
        %v1858 = vunpack.c.l.b16 %v1346
        %v1859 = vunpack.c.l.b16 %v1347
        %v1860 = vunpack.c.l.b16 %v1348
        %v1861 = vunpack.c.l.b16 %v1349
        %v1862 = vunpack.c.l.b16 %v1350
        %v1863 = vunpack.c.l.b16 %v1351
        %v1864 = vunpack.c.l.b16 %v1352
        %v1865 = vunpack.c.l.b16 %v1353
        %v1866 = vunpack.c.l.b16 %v1354
        %v1867 = vunpack.c.l.b16 %v1355
        %v1868 = vunpack.c.l.b16 %v1356
        %v1869 = vunpack.c.l.b16 %v1357
        %v1870 = vunpack.c.l.b16 %v1358
        %v1871 = vunpack.c.l.b16 %v1359
        %v1872 = vunpack.c.l.b16 %v1360
        %v1873 = vunpack.c.l.b16 %v1361
        %v1874 = vunpack.c.l.b16 %v1362
        %v1875 = vunpack.c.l.b16 %v1363
        %v1876 = vunpack.c.l.b16 %v1364
        %v1877 = vunpack.c.l.b16 %v1365
        %v1878 = vunpack.c.l.b16 %v1366
        %v1879 = vunpack.c.l.b16 %v1367
        %v1880 = vunpack.c.l.b16 %v1368
        %v1881 = vunpack.c.l.b16 %v1369
        %v1882 = vunpack.c.l.b16 %v1370
        %v1883 = vunpack.c.l.b16 %v1371
        %v1884 = vunpack.c.l.b16 %v1372
        %v1885 = vunpack.c.l.b16 %v1373
        %v1886 = vunpack.c.l.b16 %v1374
        %v1887 = vunpack.c.l.b16 %v1375
        %v1888 = vunpack.c.l.b16 %v1376
        %v1889 = vunpack.c.l.b16 %v1377
        %v1890 = vunpack.c.l.b16 %v1378
        %v1891 = vunpack.c.l.b16 %v1379
        %v1892 = vunpack.c.l.b16 %v1380
        %v1893 = vunpack.c.l.b16 %v1381
        %v1894 = vunpack.c.l.b16 %v1382
        %v1895 = vunpack.c.l.b16 %v1383
        %v1896 = vunpack.c.l.b16 %v1384
        %v1897 = vunpack.c.l.b16 %v1385
        %v1898 = vunpack.c.l.b16 %v1386
        %v1899 = vunpack.c.l.b16 %v1387
        %v1900 = vunpack.c.l.b16 %v1388
        %v1901 = vunpack.c.l.b16 %v1389
        %v1902 = vunpack.c.l.b16 %v1390
        %v1903 = vunpack.c.l.b16 %v1391
        %v1904 = vunpack.c.l.b16 %v1392
        %v1905 = vunpack.c.l.b16 %v1393
        %v1906 = vunpack.c.l.b16 %v1394
        %v1907 = vunpack.c.l.b16 %v1395
        %v1908 = vunpack.c.l.b16 %v1396
        %v1909 = vunpack.c.l.b16 %v1397
        %v1910 = vunpack.c.l.b16 %v1398
        %v1911 = vunpack.c.l.b16 %v1399
        %v1912 = vunpack.c.l.b16 %v1400
        %v1913 = vunpack.c.l.b16 %v1401
        %v1914 = vunpack.c.l.b16 %v1402
        %v1915 = vunpack.c.l.b16 %v1403
        %v1916 = vunpack.c.l.b16 %v1404
        %v1917 = vunpack.c.l.b16 %v1405
        %v1918 = vunpack.c.l.b16 %v1406
        %v1919 = vunpack.c.l.b16 %v1407
        %v1920 = vunpack.c.l.b16 %v1408
        %v1921 = vunpack.c.l.b16 %v1409
        %v1922 = vunpack.c.l.b16 %v1410
        %v1923 = vunpack.c.l.b16 %v1411
        %v1924 = vunpack.c.l.b16 %v1412
        %v1925 = vunpack.c.l.b16 %v1413
        %v1926 = vunpack.c.l.b16 %v1414
        %v1927 = vunpack.c.l.b16 %v1415
        %v1928 = vunpack.c.l.b16 %v1416
        %v1929 = vunpack.c.l.b16 %v1417
        %v1930 = vunpack.c.l.b16 %v1418
        %v1931 = vunpack.c.l.b16 %v1419
        %v1932 = vunpack.c.l.b16 %v1420
        %v1933 = vunpack.c.l.b16 %v1421
        %v1934 = vunpack.c.l.b16 %v1422
        %v1935 = vunpack.c.l.b16 %v1423
        %v1936 = vunpack.c.l.b16 %v1424
        %v1937 = vunpack.c.l.b16 %v1425
        %v1938 = vunpack.c.l.b16 %v1426
        %v1939 = vunpack.c.l.b16 %v1427
        %v1940 = vunpack.c.l.b16 %v1428
        %v1941 = vunpack.c.l.b16 %v1429
        %v1942 = vunpack.c.l.b16 %v1430
        %v1943 = vunpack.c.l.b16 %v1431
        %v1944 = vunpack.c.l.b16 %v1432
        %v1945 = vunpack.c.l.b16 %v1433
        %v1946 = vunpack.c.l.b16 %v1434
        %v1947 = vunpack.c.l.b16 %v1435
        %v1948 = vunpack.c.l.b16 %v1436
        %v1949 = vunpack.c.l.b16 %v1437
        %v1950 = vunpack.c.l.b16 %v1438
        %v1951 = vunpack.c.l.b16 %v1439
        %v1952 = vunpack.c.l.b16 %v1440
        %v1953 = vunpack.c.l.b16 %v1441
        %v1954 = vunpack.c.l.b16 %v1442
        %v1955 = vunpack.c.l.b16 %v1443
        %v1956 = vunpack.c.l.b16 %v1444
        %v1957 = vunpack.c.l.b16 %v1445
        %v1958 = vunpack.c.l.b16 %v1446
        %v1959 = vunpack.c.l.b16 %v1447
        %v1960 = vunpack.c.l.b16 %v1448
        %v1961 = vunpack.c.l.b16 %v1449
        %v1962 = vunpack.c.l.b16 %v1450
        %v1963 = vunpack.c.l.b16 %v1451
        %v1964 = vunpack.c.l.b16 %v1452
        %v1965 = vunpack.c.l.b16 %v1453
        %v1966 = vunpack.c.l.b16 %v1454
        %v1967 = vunpack.c.l.b16 %v1455
        %v1968 = vunpack.c.l.b16 %v1456
        %v1969 = vunpack.c.l.b16 %v1457
        %v1970 = vunpack.c.l.b16 %v1458
        %v1971 = vunpack.c.l.b16 %v1459
        %v1972 = vunpack.c.l.b16 %v1460
        %v1973 = vunpack.c.l.b16 %v1461
        %v1974 = vunpack.c.l.b16 %v1462
        %v1975 = vunpack.c.l.b16 %v1463
        %v1976 = vunpack.c.l.b16 %v1464
        %v1977 = vunpack.c.l.b16 %v1465
        %v1978 = vunpack.c.l.b16 %v1466
        %v1979 = vpack.c.b16 %v1724, %v1723
        %v1980 = vpack.c.b16 %v1726, %v1725
        %v1981 = vpack.c.b16 %v1728, %v1727
        %v1982 = vpack.c.b16 %v1730, %v1729
        %v1983 = vpack.c.b16 %v1732, %v1731
        %v1984 = vpack.c.b16 %v1734, %v1733
        %v1985 = vpack.c.b16 %v1736, %v1735
        %v1986 = vpack.c.b16 %v1738, %v1737
        %v1987 = vpack.c.b16 %v1740, %v1739
        %v1988 = vpack.c.b16 %v1742, %v1741
        %v1989 = vpack.c.b16 %v1744, %v1743
        %v1990 = vpack.c.b16 %v1746, %v1745
        %v1991 = vpack.c.b16 %v1748, %v1747
        %v1992 = vpack.c.b16 %v1750, %v1749
        %v1993 = vpack.c.b16 %v1752, %v1751
        %v1994 = vpack.c.b16 %v1754, %v1753
        %v1995 = vpack.c.b16 %v1756, %v1755
        %v1996 = vpack.c.b16 %v1758, %v1757
        %v1997 = vpack.c.b16 %v1760, %v1759
        %v1998 = vpack.c.b16 %v1762, %v1761
        %v1999 = vpack.c.b16 %v1764, %v1763
        %v2000 = vpack.c.b16 %v1766, %v1765
        %v2001 = vpack.c.b16 %v1768, %v1767
        %v2002 = vpack.c.b16 %v1770, %v1769
        %v2003 = vpack.c.b16 %v1772, %v1771
        %v2004 = vpack.c.b16 %v1774, %v1773
        %v2005 = vpack.c.b16 %v1776, %v1775
        %v2006 = vpack.c.b16 %v1778, %v1777
        %v2007 = vpack.c.b16 %v1780, %v1779
        %v2008 = vpack.c.b16 %v1782, %v1781
        %v2009 = vpack.c.b16 %v1784, %v1783
        %v2010 = vpack.c.b16 %v1786, %v1785
        %v2011 = vpack.c.b16 %v1788, %v1787
        %v2012 = vpack.c.b16 %v1790, %v1789
        %v2013 = vpack.c.b16 %v1792, %v1791
        %v2014 = vpack.c.b16 %v1794, %v1793
        %v2015 = vpack.c.b16 %v1796, %v1795
        %v2016 = vpack.c.b16 %v1798, %v1797
        %v2017 = vpack.c.b16 %v1800, %v1799
        %v2018 = vpack.c.b16 %v1802, %v1801
        %v2019 = vpack.c.b16 %v1804, %v1803
        %v2020 = vpack.c.b16 %v1806, %v1805
        %v2021 = vpack.c.b16 %v1808, %v1807
        %v2022 = vpack.c.b16 %v1810, %v1809
        %v2023 = vpack.c.b16 %v1812, %v1811
        %v2024 = vpack.c.b16 %v1814, %v1813
        %v2025 = vpack.c.b16 %v1816, %v1815
        %v2026 = vpack.c.b16 %v1818, %v1817
        %v2027 = vpack.c.b16 %v1820, %v1819
        %v2028 = vpack.c.b16 %v1822, %v1821
        %v2029 = vpack.c.b16 %v1824, %v1823
        %v2030 = vpack.c.b16 %v1826, %v1825
        %v2031 = vpack.c.b16 %v1828, %v1827
        %v2032 = vpack.c.b16 %v1830, %v1829
        %v2033 = vpack.c.b16 %v1832, %v1831
        %v2034 = vpack.c.b16 %v1834, %v1833
        %v2035 = vpack.c.b16 %v1836, %v1835
        %v2036 = vpack.c.b16 %v1838, %v1837
        %v2037 = vpack.c.b16 %v1840, %v1839
        %v2038 = vpack.c.b16 %v1842, %v1841
        %v2039 = vpack.c.b16 %v1844, %v1843
        %v2040 = vpack.c.b16 %v1846, %v1845
        %v2041 = vpack.c.b16 %v1848, %v1847
        %v2042 = vpack.c.b16 %v1850, %v1849
        %v2043 = vpack.c.b16 %v1852, %v1851
        %v2044 = vpack.c.b16 %v1854, %v1853
        %v2045 = vpack.c.b16 %v1856, %v1855
        %v2046 = vpack.c.b16 %v1858, %v1857
        %v2047 = vpack.c.b16 %v1860, %v1859
        %v2048 = vpack.c.b16 %v1862, %v1861
        %v2049 = vpack.c.b16 %v1864, %v1863
        %v2050 = vpack.c.b16 %v1866, %v1865
        %v2051 = vpack.c.b16 %v1868, %v1867
        %v2052 = vpack.c.b16 %v1870, %v1869
        %v2053 = vpack.c.b16 %v1872, %v1871
        %v2054 = vpack.c.b16 %v1874, %v1873
        %v2055 = vpack.c.b16 %v1876, %v1875
        %v2056 = vpack.c.b16 %v1878, %v1877
        %v2057 = vpack.c.b16 %v1880, %v1879
        %v2058 = vpack.c.b16 %v1882, %v1881
        %v2059 = vpack.c.b16 %v1884, %v1883
        %v2060 = vpack.c.b16 %v1886, %v1885
        %v2061 = vpack.c.b16 %v1888, %v1887
        %v2062 = vpack.c.b16 %v1890, %v1889
        %v2063 = vpack.c.b16 %v1892, %v1891
        %v2064 = vpack.c.b16 %v1894, %v1893
        %v2065 = vpack.c.b16 %v1896, %v1895
        %v2066 = vpack.c.b16 %v1898, %v1897
        %v2067 = vpack.c.b16 %v1900, %v1899
        %v2068 = vpack.c.b16 %v1902, %v1901
        %v2069 = vpack.c.b16 %v1904, %v1903
        %v2070 = vpack.c.b16 %v1906, %v1905
        %v2071 = vpack.c.b16 %v1908, %v1907
        %v2072 = vpack.c.b16 %v1910, %v1909
        %v2073 = vpack.c.b16 %v1912, %v1911
        %v2074 = vpack.c.b16 %v1914, %v1913
        %v2075 = vpack.c.b16 %v1916, %v1915
        %v2076 = vpack.c.b16 %v1918, %v1917
        %v2077 = vpack.c.b16 %v1920, %v1919
        %v2078 = vpack.c.b16 %v1922, %v1921
        %v2079 = vpack.c.b16 %v1924, %v1923
        %v2080 = vpack.c.b16 %v1926, %v1925
        %v2081 = vpack.c.b16 %v1928, %v1927
        %v2082 = vpack.c.b16 %v1930, %v1929
        %v2083 = vpack.c.b16 %v1932, %v1931
        %v2084 = vpack.c.b16 %v1934, %v1933
        %v2085 = vpack.c.b16 %v1936, %v1935
        %v2086 = vpack.c.b16 %v1938, %v1937
        %v2087 = vpack.c.b16 %v1940, %v1939
        %v2088 = vpack.c.b16 %v1942, %v1941
        %v2089 = vpack.c.b16 %v1944, %v1943
        %v2090 = vpack.c.b16 %v1946, %v1945
        %v2091 = vpack.c.b16 %v1948, %v1947
        %v2092 = vpack.c.b16 %v1950, %v1949
        %v2093 = vpack.c.b16 %v1952, %v1951
        %v2094 = vpack.c.b16 %v1954, %v1953
        %v2095 = vpack.c.b16 %v1956, %v1955
        %v2096 = vpack.c.b16 %v1958, %v1957
        %v2097 = vpack.c.b16 %v1960, %v1959
        %v2098 = vpack.c.b16 %v1962, %v1961
        %v2099 = vpack.c.b16 %v1964, %v1963
        %v2100 = vpack.c.b16 %v1966, %v1965
        %v2101 = vpack.c.b16 %v1968, %v1967
        %v2102 = vpack.c.b16 %v1970, %v1969
        %v2103 = vpack.c.b16 %v1972, %v1971
        %v2104 = vpack.c.b16 %v1974, %v1973
        %v2105 = vpack.c.b16 %v1976, %v1975
        %v2106 = vpack.c.b16 %v1978, %v1977
        %2235 = vmatprep.subr.bf16.mxu0 0
        %2236 = vmatpush1.bf16.msra.mxu0 %v1979
        %2237 = vmatprep.subr.bf16.mxu0 0
        %2238 = vmatpush1.bf16.msra.mxu0 %v1980
        %2239 = vmatprep.subr.bf16.mxu0 0
        %2240 = vmatpush1.bf16.msra.mxu0 %v1981
        %2241 = vmatprep.subr.bf16.mxu0 0
        %2242 = vmatpush1.bf16.msra.mxu0 %v1982
        %2243 = vmatprep.subr.bf16.mxu0 0
        %2244 = vmatpush1.bf16.msra.mxu0 %v1983
        %2245 = vmatprep.subr.bf16.mxu0 0
        %2246 = vmatpush1.bf16.msra.mxu0 %v1984
        %2247 = vmatprep.subr.bf16.mxu0 0
        %2248 = vmatpush1.bf16.msra.mxu0 %v1985
        %2249 = vmatprep.subr.bf16.mxu0 0
        %2250 = vmatpush1.bf16.msra.mxu0 %v1986
        %2251 = vmatprep.subr.bf16.mxu0 0
        %2252 = vmatpush1.bf16.msra.mxu0 %v1987
        %2253 = vmatprep.subr.bf16.mxu0 0
        %2254 = vmatpush1.bf16.msra.mxu0 %v1988
        %2255 = vmatprep.subr.bf16.mxu0 0
        %2256 = vmatpush1.bf16.msra.mxu0 %v1989
        %2257 = vmatprep.subr.bf16.mxu0 0
        %2258 = vmatpush1.bf16.msra.mxu0 %v1990
        %2259 = vmatprep.subr.bf16.mxu0 0
        %2260 = vmatpush1.bf16.msra.mxu0 %v1991
        %2261 = vmatprep.subr.bf16.mxu0 0
        %2262 = vmatpush1.bf16.msra.mxu0 %v1992
        %2263 = vmatprep.subr.bf16.mxu0 0
        %2264 = vmatpush1.bf16.msra.mxu0 %v1993
        %2265 = vmatprep.subr.bf16.mxu0 0
        %2266 = vmatpush1.bf16.msra.mxu0 %v1994
        %2267 = vmatprep.mubr.bf16.mxu0 %v1180
        %2268 = vmatmul.mubr.bf16.gmra.mrb[0].mxu0 %v1179
        %v2269 = vpop.f32.mrb[0].mxu0
        %v2270 = vadd.f32 0.0, %v2269
        %v2271 = vpop.f32.mrb[0].mxu0
        %v2272 = vpop.f32.mrb[0].mxu0
        %v2273 = vadd.f32 0.0, %v2272
        %v2274 = vpop.f32.mrb[0].mxu0
        %2275 = vmatprep.mubr.bf16.mxu0 %v1196
        %2276 = vmatmul.mubr.bf16.gmra.mrb[0].mxu0 %v1195
        %v2277 = vpop.f32.mrb[0].mxu0
        %v2278 = vadd.f32 0.0, %v2277
        %v2279 = vpop.f32.mrb[0].mxu0
        %v2280 = vpop.f32.mrb[0].mxu0
        %v2281 = vadd.f32 0.0, %v2280
        %v2282 = vpop.f32.mrb[0].mxu0
        %2283 = vdwg.mxu0
        %2284 = vmatprep.subr.bf16.mxu0 0
        %2285 = vmatpush1.bf16.msra.mxu0 %v1995
        %2286 = vmatprep.subr.bf16.mxu0 0
        %2287 = vmatpush1.bf16.msra.mxu0 %v1996
        %2288 = vmatprep.subr.bf16.mxu0 0
        %2289 = vmatpush1.bf16.msra.mxu0 %v1997
        %2290 = vmatprep.subr.bf16.mxu0 0
        %2291 = vmatpush1.bf16.msra.mxu0 %v1998
        %2292 = vmatprep.subr.bf16.mxu0 0
        %2293 = vmatpush1.bf16.msra.mxu0 %v1999
        %2294 = vmatprep.subr.bf16.mxu0 0
        %2295 = vmatpush1.bf16.msra.mxu0 %v2000
        %2296 = vmatprep.subr.bf16.mxu0 0
        %2297 = vmatpush1.bf16.msra.mxu0 %v2001
        %2298 = vmatprep.subr.bf16.mxu0 0
        %2299 = vmatpush1.bf16.msra.mxu0 %v2002
        %2300 = vmatprep.subr.bf16.mxu0 0
        %2301 = vmatpush1.bf16.msra.mxu0 %v2003
        %2302 = vmatprep.subr.bf16.mxu0 0
        %2303 = vmatpush1.bf16.msra.mxu0 %v2004
        %2304 = vmatprep.subr.bf16.mxu0 0
        %2305 = vmatpush1.bf16.msra.mxu0 %v2005
        %2306 = vmatprep.subr.bf16.mxu0 0
        %2307 = vmatpush1.bf16.msra.mxu0 %v2006
        %2308 = vmatprep.subr.bf16.mxu0 0
        %2309 = vmatpush1.bf16.msra.mxu0 %v2007
        %2310 = vmatprep.subr.bf16.mxu0 0
        %2311 = vmatpush1.bf16.msra.mxu0 %v2008
        %2312 = vmatprep.subr.bf16.mxu0 0
        %2313 = vmatpush1.bf16.msra.mxu0 %v2009
        %2314 = vmatprep.subr.bf16.mxu0 0
        %2315 = vmatpush1.bf16.msra.mxu0 %v2010
        %2316 = vmatprep.mubr.bf16.mxu0 %v1182
        %2317 = vmatmul.mubr.bf16.gmra.mrb[0].mxu0 %v1181
        %v2318 = vpop.f32.mrb[0].mxu0
        %v2319 = vadd.f32 %v2270, %v2318
        %v2320 = vpop.f32.mrb[0].mxu0
        %v2321 = vpop.f32.mrb[0].mxu0
        %v2322 = vadd.f32 %v2273, %v2321
        %v2323 = vpop.f32.mrb[0].mxu0
        %2324 = vmatprep.mubr.bf16.mxu0 %v1198
        %2325 = vmatmul.mubr.bf16.gmra.mrb[0].mxu0 %v1197
        %v2326 = vpop.f32.mrb[0].mxu0
        %v2327 = vadd.f32 %v2278, %v2326
        %v2328 = vpop.f32.mrb[0].mxu0
        %v2329 = vpop.f32.mrb[0].mxu0
        %v2330 = vadd.f32 %v2281, %v2329
        %v2331 = vpop.f32.mrb[0].mxu0
        %2332 = vdwg.mxu0
        %2333 = vmatprep.subr.bf16.mxu0 0
        %2334 = vmatpush1.bf16.msra.mxu0 %v2011
        %2335 = vmatprep.subr.bf16.mxu0 0
        %2336 = vmatpush1.bf16.msra.mxu0 %v2012
        %2337 = vmatprep.subr.bf16.mxu0 0
        %2338 = vmatpush1.bf16.msra.mxu0 %v2013
        %2339 = vmatprep.subr.bf16.mxu0 0
        %2340 = vmatpush1.bf16.msra.mxu0 %v2014
        %2341 = vmatprep.subr.bf16.mxu0 0
        %2342 = vmatpush1.bf16.msra.mxu0 %v2015
        %2343 = vmatprep.subr.bf16.mxu0 0
        %2344 = vmatpush1.bf16.msra.mxu0 %v2016
        %2345 = vmatprep.subr.bf16.mxu0 0
        %2346 = vmatpush1.bf16.msra.mxu0 %v2017
        %2347 = vmatprep.subr.bf16.mxu0 0
        %2348 = vmatpush1.bf16.msra.mxu0 %v2018
        %2349 = vmatprep.subr.bf16.mxu0 0
        %2350 = vmatpush1.bf16.msra.mxu0 %v2019
        %2351 = vmatprep.subr.bf16.mxu0 0
        %2352 = vmatpush1.bf16.msra.mxu0 %v2020
        %2353 = vmatprep.subr.bf16.mxu0 0
        %2354 = vmatpush1.bf16.msra.mxu0 %v2021
        %2355 = vmatprep.subr.bf16.mxu0 0
        %2356 = vmatpush1.bf16.msra.mxu0 %v2022
        %2357 = vmatprep.subr.bf16.mxu0 0
        %2358 = vmatpush1.bf16.msra.mxu0 %v2023
        %2359 = vmatprep.subr.bf16.mxu0 0
        %2360 = vmatpush1.bf16.msra.mxu0 %v2024
        %2361 = vmatprep.subr.bf16.mxu0 0
        %2362 = vmatpush1.bf16.msra.mxu0 %v2025
        %2363 = vmatprep.subr.bf16.mxu0 0
        %2364 = vmatpush1.bf16.msra.mxu0 %v2026
        %2365 = vmatprep.mubr.bf16.mxu0 %v1184
        %2366 = vmatmul.mubr.bf16.gmra.mrb[0].mxu0 %v1183
        %v2367 = vpop.f32.mrb[0].mxu0
        %v2368 = vadd.f32 %v2319, %v2367
        %v2369 = vpop.f32.mrb[0].mxu0
        %v2370 = vpop.f32.mrb[0].mxu0
        %v2371 = vadd.f32 %v2322, %v2370
        %v2372 = vpop.f32.mrb[0].mxu0
        %2373 = vmatprep.mubr.bf16.mxu0 %v1200
        %2374 = vmatmul.mubr.bf16.gmra.mrb[0].mxu0 %v1199
        %v2375 = vpop.f32.mrb[0].mxu0
        %v2376 = vadd.f32 %v2327, %v2375
        %v2377 = vpop.f32.mrb[0].mxu0
        %v2378 = vpop.f32.mrb[0].mxu0
        %v2379 = vadd.f32 %v2330, %v2378
        %v2380 = vpop.f32.mrb[0].mxu0
        %2381 = vdwg.mxu0
        %2382 = vmatprep.subr.bf16.mxu0 0
        %2383 = vmatpush1.bf16.msra.mxu0 %v2027
        %2384 = vmatprep.subr.bf16.mxu0 0
        %2385 = vmatpush1.bf16.msra.mxu0 %v2028
        %2386 = vmatprep.subr.bf16.mxu0 0
        %2387 = vmatpush1.bf16.msra.mxu0 %v2029
        %2388 = vmatprep.subr.bf16.mxu0 0
        %2389 = vmatpush1.bf16.msra.mxu0 %v2030
        %2390 = vmatprep.subr.bf16.mxu0 0
        %2391 = vmatpush1.bf16.msra.mxu0 %v2031
        %2392 = vmatprep.subr.bf16.mxu0 0
        %2393 = vmatpush1.bf16.msra.mxu0 %v2032
        %2394 = vmatprep.subr.bf16.mxu0 0
        %2395 = vmatpush1.bf16.msra.mxu0 %v2033
        %2396 = vmatprep.subr.bf16.mxu0 0
        %2397 = vmatpush1.bf16.msra.mxu0 %v2034
        %2398 = vmatprep.subr.bf16.mxu0 0
        %2399 = vmatpush1.bf16.msra.mxu0 %v2035
        %2400 = vmatprep.subr.bf16.mxu0 0
        %2401 = vmatpush1.bf16.msra.mxu0 %v2036
        %2402 = vmatprep.subr.bf16.mxu0 0
        %2403 = vmatpush1.bf16.msra.mxu0 %v2037
        %2404 = vmatprep.subr.bf16.mxu0 0
        %2405 = vmatpush1.bf16.msra.mxu0 %v2038
        %2406 = vmatprep.subr.bf16.mxu0 0
        %2407 = vmatpush1.bf16.msra.mxu0 %v2039
        %2408 = vmatprep.subr.bf16.mxu0 0
        %2409 = vmatpush1.bf16.msra.mxu0 %v2040
        %2410 = vmatprep.subr.bf16.mxu0 0
        %2411 = vmatpush1.bf16.msra.mxu0 %v2041
        %2412 = vmatprep.subr.bf16.mxu0 0
        %2413 = vmatpush1.bf16.msra.mxu0 %v2042
        %2414 = vmatprep.mubr.bf16.mxu0 %v1186
        %2415 = vmatmul.mubr.bf16.gmra.mrb[0].mxu0 %v1185
        %v2416 = vpop.f32.mrb[0].mxu0
        %v2417 = vadd.f32 %v2368, %v2416
        %v2418 = vpop.f32.mrb[0].mxu0
        %v2419 = vpop.f32.mrb[0].mxu0
        %v2420 = vadd.f32 %v2371, %v2419
        %v2421 = vpop.f32.mrb[0].mxu0
        %2422 = vmatprep.mubr.bf16.mxu0 %v1202
        %2423 = vmatmul.mubr.bf16.gmra.mrb[0].mxu0 %v1201
        %v2424 = vpop.f32.mrb[0].mxu0
        %v2425 = vadd.f32 %v2376, %v2424
        %v2426 = vpop.f32.mrb[0].mxu0
        %v2427 = vpop.f32.mrb[0].mxu0
        %v2428 = vadd.f32 %v2379, %v2427
        %v2429 = vpop.f32.mrb[0].mxu0
        %2430 = vdwg.mxu0
        %2431 = vmatprep.subr.bf16.mxu0 0
        %2432 = vmatpush1.bf16.msra.mxu0 %v2043
        %2433 = vmatprep.subr.bf16.mxu0 0
        %2434 = vmatpush1.bf16.msra.mxu0 %v2044
        %2435 = vmatprep.subr.bf16.mxu0 0
        %2436 = vmatpush1.bf16.msra.mxu0 %v2045
        %2437 = vmatprep.subr.bf16.mxu0 0
        %2438 = vmatpush1.bf16.msra.mxu0 %v2046
        %2439 = vmatprep.subr.bf16.mxu0 0
        %2440 = vmatpush1.bf16.msra.mxu0 %v2047
        %2441 = vmatprep.subr.bf16.mxu0 0
        %2442 = vmatpush1.bf16.msra.mxu0 %v2048
        %2443 = vmatprep.subr.bf16.mxu0 0
        %2444 = vmatpush1.bf16.msra.mxu0 %v2049
        %2445 = vmatprep.subr.bf16.mxu0 0
        %2446 = vmatpush1.bf16.msra.mxu0 %v2050
        %2447 = vmatprep.subr.bf16.mxu0 0
        %2448 = vmatpush1.bf16.msra.mxu0 %v2051
        %2449 = vmatprep.subr.bf16.mxu0 0
        %2450 = vmatpush1.bf16.msra.mxu0 %v2052
        %2451 = vmatprep.subr.bf16.mxu0 0
        %2452 = vmatpush1.bf16.msra.mxu0 %v2053
        %2453 = vmatprep.subr.bf16.mxu0 0
        %2454 = vmatpush1.bf16.msra.mxu0 %v2054
        %2455 = vmatprep.subr.bf16.mxu0 0
        %2456 = vmatpush1.bf16.msra.mxu0 %v2055
        %2457 = vmatprep.subr.bf16.mxu0 0
        %2458 = vmatpush1.bf16.msra.mxu0 %v2056
        %2459 = vmatprep.subr.bf16.mxu0 0
        %2460 = vmatpush1.bf16.msra.mxu0 %v2057
        %2461 = vmatprep.subr.bf16.mxu0 0
        %2462 = vmatpush1.bf16.msra.mxu0 %v2058
        %2463 = vmatprep.mubr.bf16.mxu0 %v1188
        %2464 = vmatmul.mubr.bf16.gmra.mrb[0].mxu0 %v1187
        %v2465 = vpop.f32.mrb[0].mxu0
        %v2466 = vadd.f32 %v2417, %v2465
        %v2467 = vpop.f32.mrb[0].mxu0
        %v2468 = vpop.f32.mrb[0].mxu0
        %v2469 = vadd.f32 %v2420, %v2468
        %v2470 = vpop.f32.mrb[0].mxu0
        %2471 = vmatprep.mubr.bf16.mxu0 %v1204
        %2472 = vmatmul.mubr.bf16.gmra.mrb[0].mxu0 %v1203
        %v2473 = vpop.f32.mrb[0].mxu0
        %v2474 = vadd.f32 %v2425, %v2473
        %v2475 = vpop.f32.mrb[0].mxu0
        %v2476 = vpop.f32.mrb[0].mxu0
        %v2477 = vadd.f32 %v2428, %v2476
        %v2478 = vpop.f32.mrb[0].mxu0
        %2479 = vdwg.mxu0
        %2480 = vmatprep.subr.bf16.mxu0 0
        %2481 = vmatpush1.bf16.msra.mxu0 %v2059
        %2482 = vmatprep.subr.bf16.mxu0 0
        %2483 = vmatpush1.bf16.msra.mxu0 %v2060
        %2484 = vmatprep.subr.bf16.mxu0 0
        %2485 = vmatpush1.bf16.msra.mxu0 %v2061
        %2486 = vmatprep.subr.bf16.mxu0 0
        %2487 = vmatpush1.bf16.msra.mxu0 %v2062
        %2488 = vmatprep.subr.bf16.mxu0 0
        %2489 = vmatpush1.bf16.msra.mxu0 %v2063
        %2490 = vmatprep.subr.bf16.mxu0 0
        %2491 = vmatpush1.bf16.msra.mxu0 %v2064
        %2492 = vmatprep.subr.bf16.mxu0 0
        %2493 = vmatpush1.bf16.msra.mxu0 %v2065
        %2494 = vmatprep.subr.bf16.mxu0 0
        %2495 = vmatpush1.bf16.msra.mxu0 %v2066
        %2496 = vmatprep.subr.bf16.mxu0 0
        %2497 = vmatpush1.bf16.msra.mxu0 %v2067
        %2498 = vmatprep.subr.bf16.mxu0 0
        %2499 = vmatpush1.bf16.msra.mxu0 %v2068
        %2500 = vmatprep.subr.bf16.mxu0 0
        %2501 = vmatpush1.bf16.msra.mxu0 %v2069
        %2502 = vmatprep.subr.bf16.mxu0 0
        %2503 = vmatpush1.bf16.msra.mxu0 %v2070
        %2504 = vmatprep.subr.bf16.mxu0 0
        %2505 = vmatpush1.bf16.msra.mxu0 %v2071
        %2506 = vmatprep.subr.bf16.mxu0 0
        %2507 = vmatpush1.bf16.msra.mxu0 %v2072
        %2508 = vmatprep.subr.bf16.mxu0 0
        %2509 = vmatpush1.bf16.msra.mxu0 %v2073
        %2510 = vmatprep.subr.bf16.mxu0 0
        %2511 = vmatpush1.bf16.msra.mxu0 %v2074
        %2512 = vmatprep.mubr.bf16.mxu0 %v1190
        %2513 = vmatmul.mubr.bf16.gmra.mrb[0].mxu0 %v1189
        %v2514 = vpop.f32.mrb[0].mxu0
        %v2515 = vadd.f32 %v2466, %v2514
        %v2516 = vpop.f32.mrb[0].mxu0
        %v2517 = vpop.f32.mrb[0].mxu0
        %v2518 = vadd.f32 %v2469, %v2517
        %v2519 = vpop.f32.mrb[0].mxu0
        %2520 = vmatprep.mubr.bf16.mxu0 %v1206
        %2521 = vmatmul.mubr.bf16.gmra.mrb[0].mxu0 %v1205
        %v2522 = vpop.f32.mrb[0].mxu0
        %v2523 = vadd.f32 %v2474, %v2522
        %v2524 = vpop.f32.mrb[0].mxu0
        %v2525 = vpop.f32.mrb[0].mxu0
        %v2526 = vadd.f32 %v2477, %v2525
        %v2527 = vpop.f32.mrb[0].mxu0
        %2528 = vdwg.mxu0
        %2529 = vmatprep.subr.bf16.mxu0 0
        %2530 = vmatpush1.bf16.msra.mxu0 %v2075
        %2531 = vmatprep.subr.bf16.mxu0 0
        %2532 = vmatpush1.bf16.msra.mxu0 %v2076
        %2533 = vmatprep.subr.bf16.mxu0 0
        %2534 = vmatpush1.bf16.msra.mxu0 %v2077
        %2535 = vmatprep.subr.bf16.mxu0 0
        %2536 = vmatpush1.bf16.msra.mxu0 %v2078
        %2537 = vmatprep.subr.bf16.mxu0 0
        %2538 = vmatpush1.bf16.msra.mxu0 %v2079
        %2539 = vmatprep.subr.bf16.mxu0 0
        %2540 = vmatpush1.bf16.msra.mxu0 %v2080
        %2541 = vmatprep.subr.bf16.mxu0 0
        %2542 = vmatpush1.bf16.msra.mxu0 %v2081
        %2543 = vmatprep.subr.bf16.mxu0 0
        %2544 = vmatpush1.bf16.msra.mxu0 %v2082
        %2545 = vmatprep.subr.bf16.mxu0 0
        %2546 = vmatpush1.bf16.msra.mxu0 %v2083
        %2547 = vmatprep.subr.bf16.mxu0 0
        %2548 = vmatpush1.bf16.msra.mxu0 %v2084
        %2549 = vmatprep.subr.bf16.mxu0 0
        %2550 = vmatpush1.bf16.msra.mxu0 %v2085
        %2551 = vmatprep.subr.bf16.mxu0 0
        %2552 = vmatpush1.bf16.msra.mxu0 %v2086
        %2553 = vmatprep.subr.bf16.mxu0 0
        %2554 = vmatpush1.bf16.msra.mxu0 %v2087
        %2555 = vmatprep.subr.bf16.mxu0 0
        %2556 = vmatpush1.bf16.msra.mxu0 %v2088
        %2557 = vmatprep.subr.bf16.mxu0 0
        %2558 = vmatpush1.bf16.msra.mxu0 %v2089
        %2559 = vmatprep.subr.bf16.mxu0 0
        %2560 = vmatpush1.bf16.msra.mxu0 %v2090
        %2561 = vmatprep.mubr.bf16.mxu0 %v1192
        %2562 = vmatmul.mubr.bf16.gmra.mrb[0].mxu0 %v1191
        %v2563 = vpop.f32.mrb[0].mxu0
        %v2564 = vadd.f32 %v2515, %v2563
        %v2565 = vpop.f32.mrb[0].mxu0
        %v2566 = vpop.f32.mrb[0].mxu0
        %v2567 = vadd.f32 %v2518, %v2566
        %v2568 = vpop.f32.mrb[0].mxu0
        %2569 = vmatprep.mubr.bf16.mxu0 %v1208
        %2570 = vmatmul.mubr.bf16.gmra.mrb[0].mxu0 %v1207
        %v2571 = vpop.f32.mrb[0].mxu0
        %v2572 = vadd.f32 %v2523, %v2571
        %v2573 = vpop.f32.mrb[0].mxu0
        %v2574 = vpop.f32.mrb[0].mxu0
        %v2575 = vadd.f32 %v2526, %v2574
        %v2576 = vpop.f32.mrb[0].mxu0
        %2577 = vdwg.mxu0
        %2578 = vmatprep.subr.bf16.mxu0 0
        %2579 = vmatpush1.bf16.msra.mxu0 %v2091
        %2580 = vmatprep.subr.bf16.mxu0 0
        %2581 = vmatpush1.bf16.msra.mxu0 %v2092
        %2582 = vmatprep.subr.bf16.mxu0 0
        %2583 = vmatpush1.bf16.msra.mxu0 %v2093
        %2584 = vmatprep.subr.bf16.mxu0 0
        %2585 = vmatpush1.bf16.msra.mxu0 %v2094
        %2586 = vmatprep.subr.bf16.mxu0 0
        %2587 = vmatpush1.bf16.msra.mxu0 %v2095
        %2588 = vmatprep.subr.bf16.mxu0 0
        %2589 = vmatpush1.bf16.msra.mxu0 %v2096
        %2590 = vmatprep.subr.bf16.mxu0 0
        %2591 = vmatpush1.bf16.msra.mxu0 %v2097
        %2592 = vmatprep.subr.bf16.mxu0 0
        %2593 = vmatpush1.bf16.msra.mxu0 %v2098
        %2594 = vmatprep.subr.bf16.mxu0 0
        %2595 = vmatpush1.bf16.msra.mxu0 %v2099
        %2596 = vmatprep.subr.bf16.mxu0 0
        %2597 = vmatpush1.bf16.msra.mxu0 %v2100
        %2598 = vmatprep.subr.bf16.mxu0 0
        %2599 = vmatpush1.bf16.msra.mxu0 %v2101
        %2600 = vmatprep.subr.bf16.mxu0 0
        %2601 = vmatpush1.bf16.msra.mxu0 %v2102
        %2602 = vmatprep.subr.bf16.mxu0 0
        %2603 = vmatpush1.bf16.msra.mxu0 %v2103
        %2604 = vmatprep.subr.bf16.mxu0 0
        %2605 = vmatpush1.bf16.msra.mxu0 %v2104
        %2606 = vmatprep.subr.bf16.mxu0 0
        %2607 = vmatpush1.bf16.msra.mxu0 %v2105
        %2608 = vmatprep.subr.bf16.mxu0 0
        %2609 = vmatpush1.bf16.msra.mxu0 %v2106
        %2610 = vmatprep.mubr.bf16.mxu0 %v1194
        %2611 = vmatmul.mubr.bf16.gmra.mrb[0].mxu0 %v1193
        %v2612 = vpop.f32.mrb[0].mxu0
        %v2613 = vadd.f32 %v2564, %v2612
        %v2614 = vpop.f32.mrb[0].mxu0
        %v2615 = vpop.f32.mrb[0].mxu0
        %v2616 = vadd.f32 %v2567, %v2615
        %v2617 = vpop.f32.mrb[0].mxu0
        %2618 = vmatprep.mubr.bf16.mxu0 %v1210
        %2619 = vmatmul.mubr.bf16.gmra.mrb[0].mxu0 %v1209
        %v2620 = vpop.f32.mrb[0].mxu0
        %v2621 = vadd.f32 %v2572, %v2620
        %v2622 = vpop.f32.mrb[0].mxu0
        %v2623 = vpop.f32.mrb[0].mxu0
        %v2624 = vadd.f32 %v2575, %v2623
        %v2625 = vpop.f32.mrb[0].mxu0
        %2626 = vdwg.mxu0
        %v2627 = vlaneseq
        %v2628 = vshrl.u32 %v2627, 7
        %vm2629 = vcmp.lt.s32.totalorder %v2628, 4
        %v2630 = vsel %vm2629, 1, 0
        %vm2631 = vcmp.eq.s32.totalorder %v2630, 1
        %v2632 = vsel %vm2631, %v2613, 0.0
        %v2633 = vsel %vm2631, %v2616, 0.0
        %v2634 = vsel %vm2631, %v2621, 0.0
        %v2635 = vsel %vm2631, %v2624, 0.0
        %v2636 = vadd.f32 %v2632, %v2633
        %v2637 = vadd.f32 %v2636, %v2634
        %v2638 = vadd.f32 %v2637, %v2635
        %v2639 = vrot.slane %v2638, 4
        %v2640 = vadd.f32 %v2638, %v2639
        %v2641 = vrot.slane %v2640, 2
        %v2642 = vadd.f32 %v2640, %v2641
        %v2643 = vrot.slane %v2642, 1
        %v2644 = vadd.f32 %v2642, %v2643
        %2645 = vst [vmem:[%s434] sm:$0x1] %v2644
        %v2646 = vmul.f32 %v2632, %v2632
        %v2647 = vmul.f32 %v2633, %v2633
        %v2648 = vmul.f32 %v2634, %v2634
        %v2649 = vmul.f32 %v2635, %v2635
        %v2650 = vadd.f32 %v2646, %v2647
        %v2651 = vadd.f32 %v2650, %v2648
        %v2652 = vadd.f32 %v2651, %v2649
        %v2653 = vrot.slane %v2652, 4
        %v2654 = vadd.f32 %v2652, %v2653
        %v2655 = vrot.slane %v2654, 2
        %v2656 = vadd.f32 %v2654, %v2655
        %v2657 = vrot.slane %v2656, 1
        %v2658 = vadd.f32 %v2656, %v2657
        %2659 = vst [vmem:[%s434 + $0x1] sm:$0x1] %v2658
        %v2660 = vpack.c.bf16 %v2632, %v2632
        %v2661 = vpack.c.bf16 %v2633, %v2633
        %v2662 = vpack.c.bf16 %v2634, %v2634
        %v2663 = vpack.c.bf16 %v2635, %v2635
        %2664 = vst [vmem:[%s427] sm:$0xf] %v2660
        %2665 = vst [vmem:[%s427 + $0x4] sm:$0xf] %v2661
        %2666 = vst [vmem:[%s427 + $0x8] sm:$0xf] %v2662
        %2667 = vst [vmem:[%s427 + $0xc] sm:$0xf] %v2663
        %s2668 = sand.u32 %s185, 1
        %s2669 = scalar_lea.sflag [#allocation5], %s2668
        %s2670 = sand.u32 %s185, 1
        %s2671 = smul.addr %s2670, 16
        %s2672 = scalar_lea.vmem [#allocation12], %s2671
        %s2673 = sand.u32 %s213, 1
        %s2674 = scalar_lea.sflag [#allocation14], %s2673
        %s2675 = sand.u32 %s213, 1
        %s2676 = smul.addr %s2675, 2
        %s2677 = scalar_lea.vmem [#allocation13], %s2676
        // Predicated region
        $region61: #{_lambda_.4} parent=39 // pred_check
          %p2678 = pneg %p195
        $region62: #{_lambda_.4} parent=39 // pred_check_branch
          %2680 = sbr.rel (%p2678) target = $region64
        $region63: #{_lambda_.4} parent=39 // pred_region
          %s2682 = ssub.s32 256, 256
          %2683 = vsyncadd %s2669, %s2682
          %s2684 = smul.addr %s37, 4
          %s2685 = sadd.s32 %s38, %s2684
          %s2686 = smul.addr %s2685, 64
          %s2687 = scalar_lea.hbm %s5, %s2686
          %s2688 = sshll.u32 %s2672, 4
          %s2689 = int_to_ptr.vmem [resolvable:$true] %s2688
          %2694 = dma.vmem_to_hbm [thread:$0]  %s2689, 256, %s2687, %s2669, 64, 64, 4
        $region64: #{_lambda_.4} parent=39 // pred_fallthru
          _
        // Predicated region
        $region65: #{_lambda_.4} parent=39 // pred_check
          %p2695 = pneg %p223
        $region66: #{_lambda_.4} parent=39 // pred_check_branch
          %2697 = sbr.rel (%p2695) target = $region68
        $region67: #{_lambda_.4} parent=39 // pred_region
          %s2699 = ssub.s32 32, 32
          %2700 = vsyncadd %s2674, %s2699
          %s2701 = sadd.s32 %s38, %s37
          %s2702 = smul.addr %s2701, 32
          %s2703 = scalar_lea.hbm %s6, %s2702
          %s2705 = sshll.u32 %s2677, 4
          %s2706 = int_to_ptr.vmem [resolvable:$true] %s2705
          %2708 = dma.vmem_to_hbm [thread:$0]  %s2706, 32, %s2703, %s2674
        $region68: #{_lambda_.4} parent=39 // pred_fallthru
          _
      $region40: #{_lambda_.4} parent=5 // pred_fallthru
        _
      %p2709 = scmp.le.s32.totalorder 2, %s28
      // Predicated region
      $region69: #{_lambda_.4} parent=5 // pred_check
        %p2710 = pneg %p2709
      $region70: #{_lambda_.4} parent=5 // pred_check_branch
        %2712 = sbr.rel (%p2710) target = $region72
      $region71: #{_lambda_.4} parent=5 // pred_region
        %s2713 = ssub.s32 %s28, 2
        // Predicated region
        $region73: #{_lambda_.4} parent=71 // pred_check
          %p2714 = pneg %p201
        $region74: #{_lambda_.4} parent=71 // pred_check_branch
          %2716 = sbr.rel (%p2714) target = $region76
        $region75: #{_lambda_.4} parent=71 // pred_region
          %s2717 = sand.u32 %s186, 1
          %s2718 = scalar_lea.sflag [#allocation5], %s2717
          %s2719 = sand.u32 %s186, 1
          %s2720 = smul.addr %s2719, 16
          %s2721 = scalar_lea.vmem [#allocation12], %s2720
          %2722 = dma.done %s2718, 256
        $region76: #{_lambda_.4} parent=71 // pred_fallthru
          _
        // Predicated region
        $region77: #{_lambda_.4} parent=71 // pred_check
          %p2723 = pneg %p229
        $region78: #{_lambda_.4} parent=71 // pred_check_branch
          %2725 = sbr.rel (%p2723) target = $region80
        $region79: #{_lambda_.4} parent=71 // pred_region
          %s2726 = sand.u32 %s214, 1
          %s2727 = scalar_lea.sflag [#allocation14], %s2726
          %s2728 = sand.u32 %s214, 1
          %s2729 = smul.addr %s2728, 2
          %s2730 = scalar_lea.vmem [#allocation13], %s2729
          %2731 = dma.done %s2727, 32
        $region80: #{_lambda_.4} parent=71 // pred_fallthru
          _
      $region72: #{_lambda_.4} parent=5 // pred_fallthru
        _
    $region6: #{_lambda_.4} parent=1 // loop_footer
      %s32 = sadd.s32 1, %s28
    $region7: #{_lambda_.4} parent=1 // loop_footer_branch
      %27 = sbr.rel target = $region3
    $region8: #{_lambda_.4} parent=1 // loop_exit
      _
    %2732 = vsyncpa [#allocation4], 1
    %s2733 = scalar_lea.sflag [#allocation4], 1
    %2734 = vsyncpa %s2733, 1
    %2735 = vsyncpa [#allocation7], 1
    %s2736 = scalar_lea.sflag [#allocation7], 1
    %2737 = vsyncpa %s2736, 1
    %2738 = vsyncpa [#allocation10], 1
    %s2739 = scalar_lea.sflag [#allocation10], 1
    %2740 = vsyncpa %s2739, 1
    %2741 = vsyncpa [#allocation5], 1
    %s2742 = scalar_lea.sflag [#allocation5], 1
    %2743 = vsyncpa %s2742, 1
    %2744 = vsyncpa [#allocation14], 1
    %s2745 = scalar_lea.sflag [#allocation14], 1
    %2746 = vsyncpa %s2745, 1

// kernel: _lambda_.5
$region0: #{_lambda_.5}
  #allocation0 [shape = 'u32[]', space=smem, size = 0x4, offset = 0x4, fixed_abs, tag = 'smem constant byte address 0x4 - core index']
  #allocation1 [shape = 'u32[144,128]{1,0:T(1,128)}', space=vmem, size = 0x12000, scoped, tag = 'internal scratch']
  #allocation2 [shape = 'bf16[8,2048]{1,0:T(8,128)(2,1)}', space=vmem, size = 0x8000, scoped, tag = 'scratch operand']
  #allocation3 [shape = 'bf16[1,4,11,128]{3,2,1,0:T(8,128)(2,1)}', space=vmem, size = 0x4000, scoped, tag = 'scratch operand']
  %s0 = inlined_call_operand.hbm [shape: bf16[2,4,11,128], index: 0, kind: input, shape index: {}]
  %s1 = inlined_call_operand.hbm [shape: bf16[2048,128], index: 1, kind: input, shape index: {}]
  %s2 = inlined_call_operand.hbm [shape: f32[1,128], index: 2, kind: input, shape index: {}]
  %s3 = inlined_call_operand.hbm [shape: f32[1,128], index: 3, kind: input, shape index: {}]
  %s4 = inlined_call_operand.hbm [shape: f32[2,1,8,128], index: 4, kind: output, shape index: {0}]
  %s5 = inlined_call_operand.hbm [shape: f32[2,2,128], index: 5, kind: output, shape index: {1}]
  %6 = xla_tuple %s4, %s5
  %s7 = sld [smem:[#allocation0]]
  $region73: #{_lambda_.5} parent=0
    _
  %s9 = ssub.s32 1, %s7
  %s10 = scalar_select 0, %s9, %s7
  $region1: #{_lambda_.5} parent=0
    #allocation4 [shape = 'u8[32768]{0}', space=vmem, size = 0x8000, scoped, tag = 'input window, operand 0']
    #allocation5 [shape = 's32[2]{0}', space=sflag, size = 0x8, scoped, tag = 'scoped memory for _lambda_.5']
    #allocation6 [shape = 's32[2]{0}', space=sflag, size = 0x8, scoped, tag = 'scoped memory for _lambda_.5']
    #allocation7 [shape = 'u8[524288]{0}', space=vmem, size = 0x80000, scoped, tag = 'input window, operand 1, single buffered']
    #allocation8 [shape = 's32[1]{0}', space=sflag, size = 0x4, scoped, tag = 'scoped memory for _lambda_.5']
    #allocation9 [shape = 'u8[512]{0}', space=vmem, size = 0x400, scoped, tag = 'input window, operand 2, single buffered']
    #allocation10 [shape = 'u8[512]{0}', space=vmem, size = 0x400, scoped, tag = 'input window, operand 3, single buffered']
    #allocation11 [shape = 's32[1]{0}', space=sflag, size = 0x4, scoped, tag = 'scoped memory for _lambda_.5']
    #allocation12 [shape = 'u8[8192]{0}', space=vmem, size = 0x2000, scoped, tag = 'output window, operand 0']
    #allocation13 [shape = 'u8[2048]{0}', space=vmem, size = 0x800, scoped, tag = 'output window, operand 1']
    #allocation14 [shape = 's32[2]{0}', space=sflag, size = 0x8, scoped, tag = 'scoped memory for _lambda_.5']
    %11 = vsyncpa [#allocation5], 0
    %s12 = scalar_lea.sflag [#allocation5], 1
    %13 = vsyncpa %s12, 0
    %14 = vsyncpa [#allocation8], 0
    %15 = vsyncpa [#allocation11], 0
    %16 = vsyncpa [#allocation6], 0
    %s17 = scalar_lea.sflag [#allocation6], 1
    %18 = vsyncpa %s17, 0
    %19 = vsyncpa [#allocation14], 0
    %s20 = scalar_lea.sflag [#allocation14], 1
    %21 = vsyncpa %s20, 0
    loop: start=0, step=1, limit=4
    $region2: #{_lambda_.5} parent=1 // loop_pre_header
      _
    $region3: #{_lambda_.5} parent=1 // loop_header
      %s23 = sphi 0, %s27
      %p24 = scmp.ge.s32.totalorder %s23, 4
      %s30 = sphi 0, %s42
      %s31 = sphi 0, %s38
      %s32 = sphi 0, %s30
      %s33 = sphi 0, %s31
      %s34 = sphi 0, %s32
      %s35 = sphi 0, %s33
      %s45 = sphi 0, %s47
      %s48 = sphi 0, %s45
      %s49 = sphi 0, %s48
      %s65 = sphi 0, %s49
      %s71 = sphi 0, %s73
      %s74 = sphi 0, %s71
      %s75 = sphi 0, %s74
      %s91 = sphi 0, %s75
      %s95 = sphi 0, %s95
      %s97 = sphi 0, %s95
      %s98 = sphi 0, %s97
      %s112 = sphi 0, %s98
      %s116 = sphi 0, %s116
      %s118 = sphi 0, %s116
      %s119 = sphi 0, %s118
      %s133 = sphi 0, %s119
      %s141 = sphi 0, %s143
      %s144 = sphi 0, %s141
      %s145 = sphi 0, %s144
      %s161 = sphi 0, %s145
      %s169 = sphi 0, %s171
      %s172 = sphi 0, %s169
      %s173 = sphi 0, %s172
      %s189 = sphi 0, %s173
    $region4: #{_lambda_.5} parent=1 // loop_header_branch
      %26 = sbr.rel (%p24) target = $region8
    $region5: #{_lambda_.5} parent=1 // loop_body
      %s28 = ssub.s32 %s23, 1
      %s29 = ssub.s32 %s23, 2
      %s36 = sadd.s32 1, %s31
      %p37 = scmp.ge.s32.totalorder %s36, 1
      %s38 = scalar_select %p37, 0, %s36
      %s39 = sadd.s32 1, %s30
      %s40 = scalar_select %p37, %s39, %s30
      %p41 = scmp.ge.s32.totalorder %s40, 2
      %s42 = scalar_select %p41, 0, %s40
      %s43 = ssub.s32 %s30, %s42
      %p44 = scmp.eq.s32.totalorder %s43, 0
      %s46 = sadd.s32 %s45, 1
      %s47 = scalar_select %p44, %s45, %s46
      %p50 = pneg %p44
      %p51 = scmp.eq.s32.totalorder %s23, 1
      %p52 = por %p50, %p51
      %p53 = scmp.ne.s32.totalorder %s45, %s48
      %p54 = scmp.eq.s32.totalorder %s23, 0
      %p55 = por %p53, %p54
      %p56 = scmp.ne.s32.totalorder %s45, %s48
      %p57 = scmp.eq.s32.totalorder %s28, 1
      %p58 = por %p56, %p57
      %p59 = scmp.ne.s32.totalorder %s48, %s49
      %p60 = scmp.eq.s32.totalorder %s28, 0
      %p61 = por %p59, %p60
      %p62 = scmp.ne.s32.totalorder %s48, %s49
      %p63 = scmp.eq.s32.totalorder %s29, 1
      %p64 = por %p62, %p63
      %p66 = scmp.ne.s32.totalorder %s49, %s65
      %p67 = scmp.eq.s32.totalorder %s29, 0
      %p68 = por %p66, %p67
      %s69 = ssub.s32 %s31, %s38
      %p70 = scmp.eq.s32.totalorder %s69, 0
      %s72 = sadd.s32 %s71, 1
      %s73 = scalar_select %p70, %s71, %s72
      %p76 = pneg %p70
      %p77 = scmp.eq.s32.totalorder %s23, 1
      %p78 = por %p76, %p77
      %p79 = scmp.ne.s32.totalorder %s71, %s74
      %p80 = scmp.eq.s32.totalorder %s23, 0
      %p81 = por %p79, %p80
      %p82 = scmp.ne.s32.totalorder %s71, %s74
      %p83 = scmp.eq.s32.totalorder %s28, 1
      %p84 = por %p82, %p83
      %p85 = scmp.ne.s32.totalorder %s74, %s75
      %p86 = scmp.eq.s32.totalorder %s28, 0
      %p87 = por %p85, %p86
      %p88 = scmp.ne.s32.totalorder %s74, %s75
      %p89 = scmp.eq.s32.totalorder %s29, 1
      %p90 = por %p88, %p89
      %p92 = scmp.ne.s32.totalorder %s75, %s91
      %p93 = scmp.eq.s32.totalorder %s29, 0
      %p94 = por %p92, %p93
      %s96 = sadd.s32 %s95, 1
      %p99 = scmp.eq.s32.totalorder %s23, 1
      %p100 = scmp.ne.s32.totalorder %s95, %s97
      %p101 = scmp.eq.s32.totalorder %s23, 0
      %p102 = por %p100, %p101
      %p103 = scmp.ne.s32.totalorder %s95, %s97
      %p104 = scmp.eq.s32.totalorder %s28, 1
      %p105 = por %p103, %p104
      %p106 = scmp.ne.s32.totalorder %s97, %s98
      %p107 = scmp.eq.s32.totalorder %s28, 0
      %p108 = por %p106, %p107
      %p109 = scmp.ne.s32.totalorder %s97, %s98
      %p110 = scmp.eq.s32.totalorder %s29, 1
      %p111 = por %p109, %p110
      %p113 = scmp.ne.s32.totalorder %s98, %s112
      %p114 = scmp.eq.s32.totalorder %s29, 0
      %p115 = por %p113, %p114
      %s117 = sadd.s32 %s116, 1
      %p120 = scmp.eq.s32.totalorder %s23, 1
      %p121 = scmp.ne.s32.totalorder %s116, %s118
      %p122 = scmp.eq.s32.totalorder %s23, 0
      %p123 = por %p121, %p122
      %p124 = scmp.ne.s32.totalorder %s116, %s118
      %p125 = scmp.eq.s32.totalorder %s28, 1
      %p126 = por %p124, %p125
      %p127 = scmp.ne.s32.totalorder %s118, %s119
      %p128 = scmp.eq.s32.totalorder %s28, 0
      %p129 = por %p127, %p128
      %p130 = scmp.ne.s32.totalorder %s118, %s119
      %p131 = scmp.eq.s32.totalorder %s29, 1
      %p132 = por %p130, %p131
      %p134 = scmp.ne.s32.totalorder %s119, %s133
      %p135 = scmp.eq.s32.totalorder %s29, 0
      %p136 = por %p134, %p135
      %s137 = ssub.s32 %s30, %s42
      %s138 = ssub.s32 %s31, %s38
      %s139 = sor.u32 %s137, %s138
      %p140 = scmp.eq.s32.totalorder %s139, 0
      %s142 = sadd.s32 %s141, 1
      %s143 = scalar_select %p140, %s141, %s142
      %p146 = pneg %p140
      %p147 = scmp.eq.s32.totalorder %s23, 1
      %p148 = por %p146, %p147
      %p149 = scmp.ne.s32.totalorder %s141, %s144
      %p150 = scmp.eq.s32.totalorder %s23, 0
      %p151 = por %p149, %p150
      %p152 = scmp.ne.s32.totalorder %s141, %s144
      %p153 = scmp.eq.s32.totalorder %s28, 1
      %p154 = por %p152, %p153
      %p155 = scmp.ne.s32.totalorder %s144, %s145
      %p156 = scmp.eq.s32.totalorder %s28, 0
      %p157 = por %p155, %p156
      %p158 = scmp.ne.s32.totalorder %s144, %s145
      %p159 = scmp.eq.s32.totalorder %s29, 1
      %p160 = por %p158, %p159
      %p162 = scmp.ne.s32.totalorder %s145, %s161
      %p163 = scmp.eq.s32.totalorder %s29, 0
      %p164 = por %p162, %p163
      %s165 = ssub.s32 %s30, %s42
      %s166 = ssub.s32 %s31, %s38
      %s167 = sor.u32 %s165, %s166
      %p168 = scmp.eq.s32.totalorder %s167, 0
      %s170 = sadd.s32 %s169, 1
      %s171 = scalar_select %p168, %s169, %s170
      %p174 = pneg %p168
      %p175 = scmp.eq.s32.totalorder %s23, 1
      %p176 = por %p174, %p175
      %p177 = scmp.ne.s32.totalorder %s169, %s172
      %p178 = scmp.eq.s32.totalorder %s23, 0
      %p179 = por %p177, %p178
      %p180 = scmp.ne.s32.totalorder %s169, %s172
      %p181 = scmp.eq.s32.totalorder %s28, 1
      %p182 = por %p180, %p181
      %p183 = scmp.ne.s32.totalorder %s172, %s173
      %p184 = scmp.eq.s32.totalorder %s28, 0
      %p185 = por %p183, %p184
      %p186 = scmp.ne.s32.totalorder %s172, %s173
      %p187 = scmp.eq.s32.totalorder %s29, 1
      %p188 = por %p186, %p187
      %p190 = scmp.ne.s32.totalorder %s173, %s189
      %p191 = scmp.eq.s32.totalorder %s29, 0
      %p192 = por %p190, %p191
      %p193 = scmp.le.s32.totalorder 1, %s23
      %p194 = scmp.lt.s32.totalorder %s23, 3
      %p195 = pnand %p193, %p194
      %p196 = pneg %p195
      // Predicated region
      $region9: #{_lambda_.5} parent=5 // pred_check
        _
      $region10: #{_lambda_.5} parent=5 // pred_check_branch
        %198 = sbr.rel (%p195) target = $region12
      $region11: #{_lambda_.5} parent=5 // pred_region
        %s199 = ssub.s32 %s23, 1
        // Predicated region
        $region13: #{_lambda_.5} parent=11 // pred_check
          %p200 = pneg %p87
        $region14: #{_lambda_.5} parent=11 // pred_check_branch
          %202 = sbr.rel (%p200) target = $region16
        $region15: #{_lambda_.5} parent=11 // pred_region
          %s204 = ssub.s32 16384, 16384
          %205 = vsyncadd [#allocation8], %s204
          %s206 = smul.addr %s33, 64
          %s207 = scalar_lea.hbm %s1, %s206
          %s208 = sshll.u32 [#allocation7], 4
          %s209 = int_to_ptr.vmem [resolvable:$true] %s208
          %214 = dma.hbm_to_vmem [thread:$0]  %s207, 16384, %s209, [#allocation8], 64, 64, 4
        $region16: #{_lambda_.5} parent=11 // pred_fallthru
          _
        // Predicated region
        $region17: #{_lambda_.5} parent=11 // pred_check
          %p215 = pneg %p108
        $region18: #{_lambda_.5} parent=11 // pred_check_branch
          %217 = sbr.rel (%p215) target = $region20
        $region19: #{_lambda_.5} parent=11 // pred_region
          %s219 = ssub.s32 16, 16
          %220 = vsyncadd [#allocation8], %s219
          %s222 = sshll.u32 [#allocation9], 4
          %s223 = int_to_ptr.vmem [resolvable:$true] %s222
          %225 = dma.hbm_to_vmem [thread:$0]  %s2, 16, %s223, [#allocation8]
        $region20: #{_lambda_.5} parent=11 // pred_fallthru
          _
        // Predicated region
        $region21: #{_lambda_.5} parent=11 // pred_check
          %p226 = pneg %p129
        $region22: #{_lambda_.5} parent=11 // pred_check_branch
          %228 = sbr.rel (%p226) target = $region24
        $region23: #{_lambda_.5} parent=11 // pred_region
          %s230 = ssub.s32 16, 16
          %231 = vsyncadd [#allocation11], %s230
          %s233 = sshll.u32 [#allocation10], 4
          %s234 = int_to_ptr.vmem [resolvable:$true] %s233
          %236 = dma.hbm_to_vmem [thread:$0]  %s3, 16, %s234, [#allocation11]
        $region24: #{_lambda_.5} parent=11 // pred_fallthru
          _
      $region12: #{_lambda_.5} parent=5 // pred_fallthru
        _
      %p237 = scmp.lt.s32.totalorder %s23, 2
      // Predicated region
      $region25: #{_lambda_.5} parent=5 // pred_check
        %p238 = pneg %p237
      $region26: #{_lambda_.5} parent=5 // pred_check_branch
        %240 = sbr.rel (%p238) target = $region28
      $region27: #{_lambda_.5} parent=5 // pred_region
        // Predicated region
        $region29: #{_lambda_.5} parent=27 // pred_check
          %p241 = pneg %p55
        $region30: #{_lambda_.5} parent=27 // pred_check_branch
          %243 = sbr.rel (%p241) target = $region32
        $region31: #{_lambda_.5} parent=27 // pred_region
          %s244 = sand.u32 %s45, 1
          %s245 = scalar_lea.sflag [#allocation5], %s244
          %s246 = sand.u32 %s45, 1
          %s247 = smul.addr %s246, 32
          %s248 = scalar_lea.vmem [#allocation4], %s247
          %s250 = ssub.s32 512, 512
          %251 = vsyncadd %s245, %s250
          %s252 = smul.addr %s30, 8
          %s253 = smul.addr %s252, 64
          %s254 = scalar_lea.hbm %s0, %s253
          %s255 = sshll.u32 %s248, 4
          %s256 = int_to_ptr.vmem [resolvable:$true] %s255
          %261 = dma.hbm_to_vmem [thread:$0]  %s254, 512, %s256, %s245, 64, 64, 4
        $region32: #{_lambda_.5} parent=27 // pred_fallthru
          _
      $region28: #{_lambda_.5} parent=5 // pred_fallthru
        _
      %p262 = scmp.le.s32.totalorder 1, %s23
      %p263 = scmp.lt.s32.totalorder %s23, 3
      %p264 = pnand %p262, %p263
      %p265 = pneg %p264
      // Predicated region
      $region33: #{_lambda_.5} parent=5 // pred_check
        _
      $region34: #{_lambda_.5} parent=5 // pred_check_branch
        %267 = sbr.rel (%p264) target = $region36
      $region35: #{_lambda_.5} parent=5 // pred_region
        %s268 = ssub.s32 %s23, 1
        %s269 = sand.u32 %s48, 1
        %s270 = scalar_lea.sflag [#allocation5], %s269
        %s271 = sand.u32 %s48, 1
        %s272 = smul.addr %s271, 32
        %s273 = scalar_lea.vmem [#allocation4], %s272
        // Predicated region
        $region37: #{_lambda_.5} parent=35 // pred_check
          %p274 = pneg %p61
        $region38: #{_lambda_.5} parent=35 // pred_check_branch
          %276 = sbr.rel (%p274) target = $region40
        $region39: #{_lambda_.5} parent=35 // pred_region
          %277 = dma.done %s270, 512
        $region40: #{_lambda_.5} parent=35 // pred_fallthru
          _
        // Predicated region
        $region41: #{_lambda_.5} parent=35 // pred_check
          %p278 = pneg %p87
        $region42: #{_lambda_.5} parent=35 // pred_check_branch
          %280 = sbr.rel (%p278) target = $region44
        $region43: #{_lambda_.5} parent=35 // pred_region
          %281 = dma.done [#allocation8], 16384
        $region44: #{_lambda_.5} parent=35 // pred_fallthru
          _
        // Predicated region
        $region45: #{_lambda_.5} parent=35 // pred_check
          %p282 = pneg %p108
        $region46: #{_lambda_.5} parent=35 // pred_check_branch
          %284 = sbr.rel (%p282) target = $region48
        $region47: #{_lambda_.5} parent=35 // pred_region
          %285 = dma.done [#allocation8], 16
        $region48: #{_lambda_.5} parent=35 // pred_fallthru
          _
        // Predicated region
        $region49: #{_lambda_.5} parent=35 // pred_check
          %p286 = pneg %p129
        $region50: #{_lambda_.5} parent=35 // pred_check_branch
          %288 = sbr.rel (%p286) target = $region52
        $region51: #{_lambda_.5} parent=35 // pred_region
          %289 = dma.done [#allocation11], 16
        $region52: #{_lambda_.5} parent=35 // pred_fallthru
          _
        %s290 = sand.u32 %s48, 1
        %s291 = scalar_lea.sflag [#allocation5], %s290
        %s292 = sand.u32 %s48, 1
        %s293 = smul.addr %s292, 32
        %s294 = scalar_lea.vmem [#allocation4], %s293
        %p295 = pneg %p61
        %p296 = pneg %p58
        %p297 = pneg %p87
        %p298 = pneg %p84
        %p299 = pneg %p108
        %p300 = pneg %p105
        %p301 = pneg %p129
        %p302 = pneg %p126
        %p303 = pneg %p157
        %p304 = pneg %p154
        %s305 = sand.u32 %s144, 1
        %s306 = scalar_lea.sflag [#allocation6], %s305
        %s307 = sand.u32 %s144, 1
        %s308 = smul.addr %s307, 8
        %s309 = scalar_lea.vmem [#allocation12], %s308
        %p310 = pneg %p185
        %p311 = pneg %p182
        %s312 = sand.u32 %s172, 1
        %s313 = scalar_lea.sflag [#allocation14], %s312
        %s314 = sand.u32 %s172, 1
        %s315 = smul.addr %s314, 2
        %s316 = scalar_lea.vmem [#allocation13], %s315
        %v318 = vld [vmem:[#allocation9] sm:$0x1]
        %v319 = vld [vmem:[#allocation10] sm:$0x1]
        %v320 = vld [vmem:[%s273] sm:$0xf]
        %v321 = vld [vmem:[%s273 + $0x4] sm:$0x3]
        %v322 = vld [vmem:[%s273 + $0x8] sm:$0xf]
        %v323 = vld [vmem:[%s273 + $0xc] sm:$0x3]
        %v324 = vld [vmem:[%s273 + $0x10] sm:$0xf]
        %v325 = vld [vmem:[%s273 + $0x14] sm:$0x3]
        %v326 = vld [vmem:[%s273 + $0x18] sm:$0xf]
        %v327 = vld [vmem:[%s273 + $0x1c] sm:$0x3]
        %v328 = vunpack.c.l.bf16 %v320
        %v329 = vunpack.c.l.bf16 %v321
        %v330 = vunpack.c.l.bf16 %v322
        %v331 = vunpack.c.l.bf16 %v323
        %v332 = vunpack.c.l.bf16 %v324
        %v333 = vunpack.c.l.bf16 %v325
        %v334 = vunpack.c.l.bf16 %v326
        %v335 = vunpack.c.l.bf16 %v327
        %v337 = vlaneseq
        %v338 = vshrl.u32 %v337, 7
        %v339 = vsub.s32 0, %v338
        %v340 = vrot.slane %v318, %v339
        %v342 = vmul.f32 %v328, %v340
        %v343 = vmul.f32 %v329, %v340
        %v344 = vmul.f32 %v330, %v340
        %v345 = vmul.f32 %v331, %v340
        %v346 = vmul.f32 %v332, %v340
        %v347 = vmul.f32 %v333, %v340
        %v348 = vmul.f32 %v334, %v340
        %v349 = vmul.f32 %v335, %v340
        %v351 = vlaneseq
        %v352 = vshrl.u32 %v351, 7
        %v353 = vsub.s32 0, %v352
        %v354 = vrot.slane %v319, %v353
        %v356 = vadd.f32 %v342, %v354
        %v357 = vadd.f32 %v343, %v354
        %v358 = vadd.f32 %v344, %v354
        %v359 = vadd.f32 %v345, %v354
        %v360 = vadd.f32 %v346, %v354
        %v361 = vadd.f32 %v347, %v354
        %v362 = vadd.f32 %v348, %v354
        %v363 = vadd.f32 %v349, %v354
        %vm364 = vcmp.ge.f32.partialorder %v356, 0.0
        %vm365 = vcmp.ge.f32.partialorder %v357, 0.0
        %vm366 = vcmp.ge.f32.partialorder %v358, 0.0
        %vm367 = vcmp.ge.f32.partialorder %v359, 0.0
        %vm368 = vcmp.ge.f32.partialorder %v360, 0.0
        %vm369 = vcmp.ge.f32.partialorder %v361, 0.0
        %vm370 = vcmp.ge.f32.partialorder %v362, 0.0
        %vm371 = vcmp.ge.f32.partialorder %v363, 0.0
        %v372 = vmul.f32 %v356, 0.2
        %v373 = vmul.f32 %v357, 0.2
        %v374 = vmul.f32 %v358, 0.2
        %v375 = vmul.f32 %v359, 0.2
        %v376 = vmul.f32 %v360, 0.2
        %v377 = vmul.f32 %v361, 0.2
        %v378 = vmul.f32 %v362, 0.2
        %v379 = vmul.f32 %v363, 0.2
        %v380 = vsel %vm364, %v356, %v372
        %v381 = vsel %vm365, %v357, %v373
        %v382 = vsel %vm366, %v358, %v374
        %v383 = vsel %vm367, %v359, %v375
        %v384 = vsel %vm368, %v360, %v376
        %v385 = vsel %vm369, %v361, %v377
        %v386 = vsel %vm370, %v362, %v378
        %v387 = vsel %vm371, %v363, %v379
        %v388 = vlaneseq
        %v389 = vshrl.u32 %v388, 7
        %v390 = vadd.s32 %v389, 8
        %vm391 = vcmp.ge.s32.totalorder %v389, 0
        %vm392 = vcmp.ge.s32.totalorder %v390, 0
        %vm393 = vmand 1, %vm391
        %vm394 = vmand 1, %vm392
        %vm395 = vcmp.lt.s32.totalorder %v389, 4
        %vm396 = vcmp.lt.s32.totalorder %v390, 4
        %vm397 = vmand %vm393, %vm395
        %vm398 = vmand %vm394, %vm396
        %v399 = vsel %vm397, %v380, 0.0
        %v400 = vsel %vm398, %v381, 0.0
        %v401 = vsel %vm397, %v382, 0.0
        %v402 = vsel %vm398, %v383, 0.0
        %v403 = vsel %vm397, %v384, 0.0
        %v404 = vsel %vm398, %v385, 0.0
        %v405 = vsel %vm397, %v386, 0.0
        %v406 = vsel %vm398, %v387, 0.0
        %v407 = vpack.c.bf16 %v400, %v399
        %v408 = vpack.c.bf16 %v402, %v401
        %v409 = vpack.c.bf16 %v404, %v403
        %v410 = vpack.c.bf16 %v406, %v405
        %v415 = vunpack.c.l.b16 %v407
        %v416 = vunpack.c.h.b16 %v407
        %v417 = vunpack.c.l.b16 %v408
        %v418 = vunpack.c.h.b16 %v408
        %v419 = vunpack.c.l.b16 %v409
        %v420 = vunpack.c.h.b16 %v409
        %v421 = vunpack.c.l.b16 %v410
        %v422 = vunpack.c.h.b16 %v410
        %v423 = vpack.c.b16 %v415, %v415
        %v424 = vpack.c.b16 %v416, %v416
        %v425 = vpack.c.b16 %v417, %v417
        %v426 = vpack.c.b16 %v418, %v418
        %v427 = vpack.c.b16 %v419, %v419
        %v428 = vpack.c.b16 %v420, %v420
        %v429 = vpack.c.b16 %v421, %v421
        %v430 = vpack.c.b16 %v422, %v422
        %439 = vst [vmem:[#allocation3] sm:$0xf] %v423
        %vm440 = vcmask 1041408
        %vm441 = vsmask.f32 1280
        %vm442 = vmand %vm440, %vm441
        %v443 = vld [vmem:[#allocation3 + $0x4] sm:$0x3]
        %v444 = vsel %vm442, %v424, %v443
        %445 = vst [vmem:[#allocation3 + $0x4] sm:$0x3] %v444
        %446 = vst [vmem:[#allocation3 + $0x8] sm:$0xf] %v425
        %v447 = vld [vmem:[#allocation3 + $0xc] sm:$0x3]
        %v448 = vsel %vm442, %v426, %v447
        %449 = vst [vmem:[#allocation3 + $0xc] sm:$0x3] %v448
        %450 = vst [vmem:[#allocation3 + $0x10] sm:$0xf] %v427
        %v451 = vld [vmem:[#allocation3 + $0x14] sm:$0x3]
        %v452 = vsel %vm442, %v428, %v451
        %453 = vst [vmem:[#allocation3 + $0x14] sm:$0x3] %v452
        %454 = vst [vmem:[#allocation3 + $0x18] sm:$0xf] %v429
        %v455 = vld [vmem:[#allocation3 + $0x1c] sm:$0x3]
        %v456 = vsel %vm442, %v430, %v455
        %457 = vst [vmem:[#allocation3 + $0x1c] sm:$0x3] %v456
        %v458 = vld [vmem:[#allocation3] sm:$0xf]
        %459 = vst [vmem:[#allocation2] sm:$0xf] %v458
        %v460 = vld [vmem:[#allocation3] sm:$0xf]
        %v461 = vld [vmem:[#allocation3 + $0x4] sm:$0x1]
        %vm462 = vsmask.f32 3328
        %vm463 = vsmask.f32 7440
        %vm464 = vmor %vm462, %vm463
        %v466 = vshrl.u32 %v460, 16
        %v468 = vrot.slane %v466, 4
        %v469 = vshll.u32 %v460, 16
        %v471 = vrot.slane %v469, 5
        %v472 = vor.u32 %v468, %v471
        %v473 = vrot.slane %v472, 4
        %v475 = vshll.u32 %v461, 16
        %v477 = vrot.slane %v475, 5
        %v478 = vsel %vm464, %v473, %v477
        %480 = vst [vmem:[#allocation2 + $0x4] sm:$0xf] %v478
        %v481 = vld [vmem:[#allocation3] sm:$0xe]
        %v482 = vld [vmem:[#allocation3 + $0x4] sm:$0x1]
        %vm485 = vcmask 1042432
        %vm486 = vcmask 1046532
        %vm487 = vmor %vm485, %vm486
        %v488 = vrot.slane %v481, 5
        %v489 = vrot.slane %v488, 4
        %v490 = vrot.slane %v482, 5
        %v491 = vsel %vm487, %v489, %v490
        %493 = vst [vmem:[#allocation2 + $0x8] sm:$0xf] %v491
        %v494 = vld [vmem:[#allocation3] sm:$0xe]
        %v495 = vld [vmem:[#allocation3 + $0x4] sm:$0x3]
        %vm496 = vsmask.f32 2304
        %vm497 = vsmask.f32 6416
        %vm498 = vmor %vm496, %vm497
        %v500 = vshrl.u32 %v494, 16
        %v502 = vrot.slane %v500, 5
        %v503 = vshll.u32 %v494, 16
        %v505 = vrot.slane %v503, 6
        %v506 = vor.u32 %v502, %v505
        %v507 = vrot.slane %v506, 4
        %v509 = vshrl.u32 %v495, 16
        %v511 = vrot.slane %v509, 5
        %v512 = vshll.u32 %v495, 16
        %v514 = vrot.slane %v512, 6
        %v515 = vor.u32 %v511, %v514
        %v516 = vsel %vm498, %v507, %v515
        %518 = vst [vmem:[#allocation2 + $0xc] sm:$0xf] %v516
        %s519 = scalar_lea.vmem [#allocation3], 8
        %v520 = vld [vmem:[%s519] sm:$0xf]
        %521 = vst [vmem:[#allocation2 + $0x10] sm:$0xf] %v520
        %v522 = vld [vmem:[%s519] sm:$0xf]
        %v523 = vld [vmem:[%s519 + $0x4] sm:$0x1]
        %v525 = vshrl.u32 %v522, 16
        %v527 = vrot.slane %v525, 4
        %v528 = vshll.u32 %v522, 16
        %v530 = vrot.slane %v528, 5
        %v531 = vor.u32 %v527, %v530
        %v532 = vrot.slane %v531, 4
        %v534 = vshll.u32 %v523, 16
        %v536 = vrot.slane %v534, 5
        %v537 = vsel %vm464, %v532, %v536
        %539 = vst [vmem:[#allocation2 + $0x14] sm:$0xf] %v537
        %v540 = vld [vmem:[%s519] sm:$0xe]
        %v541 = vld [vmem:[%s519 + $0x4] sm:$0x1]
        %v544 = vrot.slane %v540, 5
        %v545 = vrot.slane %v544, 4
        %v546 = vrot.slane %v541, 5
        %v547 = vsel %vm487, %v545, %v546
        %549 = vst [vmem:[#allocation2 + $0x18] sm:$0xf] %v547
        %v550 = vld [vmem:[%s519] sm:$0xe]
        %v551 = vld [vmem:[%s519 + $0x4] sm:$0x3]
        %v553 = vshrl.u32 %v550, 16
        %v555 = vrot.slane %v553, 5
        %v556 = vshll.u32 %v550, 16
        %v558 = vrot.slane %v556, 6
        %v559 = vor.u32 %v555, %v558
        %v560 = vrot.slane %v559, 4
        %v562 = vshrl.u32 %v551, 16
        %v564 = vrot.slane %v562, 5
        %v565 = vshll.u32 %v551, 16
        %v567 = vrot.slane %v565, 6
        %v568 = vor.u32 %v564, %v567
        %v569 = vsel %vm498, %v560, %v568
        %571 = vst [vmem:[#allocation2 + $0x1c] sm:$0xf] %v569
        %s572 = scalar_lea.vmem [#allocation3], 16
        %v573 = vld [vmem:[%s572] sm:$0xf]
        %574 = vst [vmem:[#allocation2 + $0x20] sm:$0xf] %v573
        %v575 = vld [vmem:[%s572] sm:$0xf]
        %v576 = vld [vmem:[%s572 + $0x4] sm:$0x1]
        %v578 = vshrl.u32 %v575, 16
        %v580 = vrot.slane %v578, 4
        %v581 = vshll.u32 %v575, 16
        %v583 = vrot.slane %v581, 5
        %v584 = vor.u32 %v580, %v583
        %v585 = vrot.slane %v584, 4
        %v587 = vshll.u32 %v576, 16
        %v589 = vrot.slane %v587, 5
        %v590 = vsel %vm464, %v585, %v589
        %592 = vst [vmem:[#allocation2 + $0x24] sm:$0xf] %v590
        %v593 = vld [vmem:[%s572] sm:$0xe]
        %v594 = vld [vmem:[%s572 + $0x4] sm:$0x1]
        %v597 = vrot.slane %v593, 5
        %v598 = vrot.slane %v597, 4
        %v599 = vrot.slane %v594, 5
        %v600 = vsel %vm487, %v598, %v599
        %602 = vst [vmem:[#allocation2 + $0x28] sm:$0xf] %v600
        %v603 = vld [vmem:[%s572] sm:$0xe]
        %v604 = vld [vmem:[%s572 + $0x4] sm:$0x3]
        %v606 = vshrl.u32 %v603, 16
        %v608 = vrot.slane %v606, 5
        %v609 = vshll.u32 %v603, 16
        %v611 = vrot.slane %v609, 6
        %v612 = vor.u32 %v608, %v611
        %v613 = vrot.slane %v612, 4
        %v615 = vshrl.u32 %v604, 16
        %v617 = vrot.slane %v615, 5
        %v618 = vshll.u32 %v604, 16
        %v620 = vrot.slane %v618, 6
        %v621 = vor.u32 %v617, %v620
        %v622 = vsel %vm498, %v613, %v621
        %624 = vst [vmem:[#allocation2 + $0x2c] sm:$0xf] %v622
        %s625 = scalar_lea.vmem [#allocation3], 24
        %v626 = vld [vmem:[%s625] sm:$0xf]
        %627 = vst [vmem:[#allocation2 + $0x30] sm:$0xf] %v626
        %v628 = vld [vmem:[%s625] sm:$0xf]
        %v629 = vld [vmem:[%s625 + $0x4] sm:$0x1]
        %v631 = vshrl.u32 %v628, 16
        %v633 = vrot.slane %v631, 4
        %v634 = vshll.u32 %v628, 16
        %v636 = vrot.slane %v634, 5
        %v637 = vor.u32 %v633, %v636
        %v638 = vrot.slane %v637, 4
        %v640 = vshll.u32 %v629, 16
        %v642 = vrot.slane %v640, 5
        %v643 = vsel %vm464, %v638, %v642
        %645 = vst [vmem:[#allocation2 + $0x34] sm:$0xf] %v643
        %v646 = vld [vmem:[%s625] sm:$0xe]
        %v647 = vld [vmem:[%s625 + $0x4] sm:$0x1]
        %v650 = vrot.slane %v646, 5
        %v651 = vrot.slane %v650, 4
        %v652 = vrot.slane %v647, 5
        %v653 = vsel %vm487, %v651, %v652
        %655 = vst [vmem:[#allocation2 + $0x38] sm:$0xf] %v653
        %v656 = vld [vmem:[%s625] sm:$0xe]
        %v657 = vld [vmem:[%s625 + $0x4] sm:$0x3]
        %v659 = vshrl.u32 %v656, 16
        %v661 = vrot.slane %v659, 5
        %v662 = vshll.u32 %v656, 16
        %v664 = vrot.slane %v662, 6
        %v665 = vor.u32 %v661, %v664
        %v666 = vrot.slane %v665, 4
        %v668 = vshrl.u32 %v657, 16
        %v670 = vrot.slane %v668, 5
        %v671 = vshll.u32 %v657, 16
        %v673 = vrot.slane %v671, 6
        %v674 = vor.u32 %v670, %v673
        %v675 = vsel %vm498, %v666, %v674
        %677 = vst [vmem:[#allocation2 + $0x3c] sm:$0xf] %v675
        %v678 = vld [vmem:[#allocation2] sm:$0xff]
        %v679 = vld [vmem:[#allocation2 + $0x8] sm:$0xff]
        %v680 = vld [vmem:[#allocation2 + $0x10] sm:$0xff]
        %v681 = vld [vmem:[#allocation2 + $0x18] sm:$0xff]
        %v682 = vld [vmem:[#allocation2 + $0x20] sm:$0xff]
        %v683 = vld [vmem:[#allocation2 + $0x28] sm:$0xff]
        %v684 = vld [vmem:[#allocation2 + $0x30] sm:$0xff]
        %v685 = vld [vmem:[#allocation2 + $0x38] sm:$0xff]
        %v686 = vld [vmem:[#allocation7] sm:$0xf]
        %v687 = vld [vmem:[#allocation7 + $0x4] sm:$0xf]
        %v688 = vld [vmem:[#allocation7 + $0x8] sm:$0xf]
        %v689 = vld [vmem:[#allocation7 + $0xc] sm:$0xf]
        %v690 = vld [vmem:[#allocation7 + $0x10] sm:$0xf]
        %v691 = vld [vmem:[#allocation7 + $0x14] sm:$0xf]
        %v692 = vld [vmem:[#allocation7 + $0x18] sm:$0xf]
        %v693 = vld [vmem:[#allocation7 + $0x1c] sm:$0xf]
        %v694 = vld [vmem:[#allocation7 + $0x20] sm:$0xf]
        %v695 = vld [vmem:[#allocation7 + $0x24] sm:$0xf]
        %v696 = vld [vmem:[#allocation7 + $0x28] sm:$0xf]
        %v697 = vld [vmem:[#allocation7 + $0x2c] sm:$0xf]
        %v698 = vld [vmem:[#allocation7 + $0x30] sm:$0xf]
        %v699 = vld [vmem:[#allocation7 + $0x34] sm:$0xf]
        %v700 = vld [vmem:[#allocation7 + $0x38] sm:$0xf]
        %v701 = vld [vmem:[#allocation7 + $0x3c] sm:$0xf]
        %v702 = vld [vmem:[#allocation7 + $0x40] sm:$0xf]
        %v703 = vld [vmem:[#allocation7 + $0x44] sm:$0xf]
        %v704 = vld [vmem:[#allocation7 + $0x48] sm:$0xf]
        %v705 = vld [vmem:[#allocation7 + $0x4c] sm:$0xf]
        %v706 = vld [vmem:[#allocation7 + $0x50] sm:$0xf]
        %v707 = vld [vmem:[#allocation7 + $0x54] sm:$0xf]
        %v708 = vld [vmem:[#allocation7 + $0x58] sm:$0xf]
        %v709 = vld [vmem:[#allocation7 + $0x5c] sm:$0xf]
        %v710 = vld [vmem:[#allocation7 + $0x60] sm:$0xf]
        %v711 = vld [vmem:[#allocation7 + $0x64] sm:$0xf]
        %v712 = vld [vmem:[#allocation7 + $0x68] sm:$0xf]
        %v713 = vld [vmem:[#allocation7 + $0x6c] sm:$0xf]
        %v714 = vld [vmem:[#allocation7 + $0x70] sm:$0xf]
        %v715 = vld [vmem:[#allocation7 + $0x74] sm:$0xf]
        %v716 = vld [vmem:[#allocation7 + $0x78] sm:$0xf]
        %v717 = vld [vmem:[#allocation7 + $0x7c] sm:$0xf]
        %v718 = vld [vmem:[#allocation7 + $0x80] sm:$0xf]
        %v719 = vld [vmem:[#allocation7 + $0x84] sm:$0xf]
        %v720 = vld [vmem:[#allocation7 + $0x88] sm:$0xf]
        %v721 = vld [vmem:[#allocation7 + $0x8c] sm:$0xf]
        %v722 = vld [vmem:[#allocation7 + $0x90] sm:$0xf]
        %v723 = vld [vmem:[#allocation7 + $0x94] sm:$0xf]
        %v724 = vld [vmem:[#allocation7 + $0x98] sm:$0xf]
        %v725 = vld [vmem:[#allocation7 + $0x9c] sm:$0xf]
        %v726 = vld [vmem:[#allocation7 + $0xa0] sm:$0xf]
        %v727 = vld [vmem:[#allocation7 + $0xa4] sm:$0xf]
        %v728 = vld [vmem:[#allocation7 + $0xa8] sm:$0xf]
        %v729 = vld [vmem:[#allocation7 + $0xac] sm:$0xf]
        %v730 = vld [vmem:[#allocation7 + $0xb0] sm:$0xf]
        %v731 = vld [vmem:[#allocation7 + $0xb4] sm:$0xf]
        %v732 = vld [vmem:[#allocation7 + $0xb8] sm:$0xf]
        %v733 = vld [vmem:[#allocation7 + $0xbc] sm:$0xf]
        %v734 = vld [vmem:[#allocation7 + $0xc0] sm:$0xf]
        %v735 = vld [vmem:[#allocation7 + $0xc4] sm:$0xf]
        %v736 = vld [vmem:[#allocation7 + $0xc8] sm:$0xf]
        %v737 = vld [vmem:[#allocation7 + $0xcc] sm:$0xf]
        %v738 = vld [vmem:[#allocation7 + $0xd0] sm:$0xf]
        %v739 = vld [vmem:[#allocation7 + $0xd4] sm:$0xf]
        %v740 = vld [vmem:[#allocation7 + $0xd8] sm:$0xf]
        %v741 = vld [vmem:[#allocation7 + $0xdc] sm:$0xf]
        %v742 = vld [vmem:[#allocation7 + $0xe0] sm:$0xf]
        %v743 = vld [vmem:[#allocation7 + $0xe4] sm:$0xf]
        %v744 = vld [vmem:[#allocation7 + $0xe8] sm:$0xf]
        %v745 = vld [vmem:[#allocation7 + $0xec] sm:$0xf]
        %v746 = vld [vmem:[#allocation7 + $0xf0] sm:$0xf]
        %v747 = vld [vmem:[#allocation7 + $0xf4] sm:$0xf]
        %v748 = vld [vmem:[#allocation7 + $0xf8] sm:$0xf]
        %v749 = vld [vmem:[#allocation7 + $0xfc] sm:$0xf]
        %v750 = vld [vmem:[#allocation7 + $0x100] sm:$0xf]
        %v751 = vld [vmem:[#allocation7 + $0x104] sm:$0xf]
        %v752 = vld [vmem:[#allocation7 + $0x108] sm:$0xf]
        %v753 = vld [vmem:[#allocation7 + $0x10c] sm:$0xf]
        %v754 = vld [vmem:[#allocation7 + $0x110] sm:$0xf]
        %v755 = vld [vmem:[#allocation7 + $0x114] sm:$0xf]
        %v756 = vld [vmem:[#allocation7 + $0x118] sm:$0xf]
        %v757 = vld [vmem:[#allocation7 + $0x11c] sm:$0xf]
        %v758 = vld [vmem:[#allocation7 + $0x120] sm:$0xf]
        %v759 = vld [vmem:[#allocation7 + $0x124] sm:$0xf]
        %v760 = vld [vmem:[#allocation7 + $0x128] sm:$0xf]
        %v761 = vld [vmem:[#allocation7 + $0x12c] sm:$0xf]
        %v762 = vld [vmem:[#allocation7 + $0x130] sm:$0xf]
        %v763 = vld [vmem:[#allocation7 + $0x134] sm:$0xf]
        %v764 = vld [vmem:[#allocation7 + $0x138] sm:$0xf]
        %v765 = vld [vmem:[#allocation7 + $0x13c] sm:$0xf]
        %v766 = vld [vmem:[#allocation7 + $0x140] sm:$0xf]
        %v767 = vld [vmem:[#allocation7 + $0x144] sm:$0xf]
        %v768 = vld [vmem:[#allocation7 + $0x148] sm:$0xf]
        %v769 = vld [vmem:[#allocation7 + $0x14c] sm:$0xf]
        %v770 = vld [vmem:[#allocation7 + $0x150] sm:$0xf]
        %v771 = vld [vmem:[#allocation7 + $0x154] sm:$0xf]
        %v772 = vld [vmem:[#allocation7 + $0x158] sm:$0xf]
        %v773 = vld [vmem:[#allocation7 + $0x15c] sm:$0xf]
        %v774 = vld [vmem:[#allocation7 + $0x160] sm:$0xf]
        %v775 = vld [vmem:[#allocation7 + $0x164] sm:$0xf]
        %v776 = vld [vmem:[#allocation7 + $0x168] sm:$0xf]
        %v777 = vld [vmem:[#allocation7 + $0x16c] sm:$0xf]
        %v778 = vld [vmem:[#allocation7 + $0x170] sm:$0xf]
        %v779 = vld [vmem:[#allocation7 + $0x174] sm:$0xf]
        %v780 = vld [vmem:[#allocation7 + $0x178] sm:$0xf]
        %v781 = vld [vmem:[#allocation7 + $0x17c] sm:$0xf]
        %v782 = vld [vmem:[#allocation7 + $0x180] sm:$0xf]
        %v783 = vld [vmem:[#allocation7 + $0x184] sm:$0xf]
        %v784 = vld [vmem:[#allocation7 + $0x188] sm:$0xf]
        %v785 = vld [vmem:[#allocation7 + $0x18c] sm:$0xf]
        %v786 = vld [vmem:[#allocation7 + $0x190] sm:$0xf]
        %v787 = vld [vmem:[#allocation7 + $0x194] sm:$0xf]
        %v788 = vld [vmem:[#allocation7 + $0x198] sm:$0xf]
        %v789 = vld [vmem:[#allocation7 + $0x19c] sm:$0xf]
        %v790 = vld [vmem:[#allocation7 + $0x1a0] sm:$0xf]
        %v791 = vld [vmem:[#allocation7 + $0x1a4] sm:$0xf]
        %v792 = vld [vmem:[#allocation7 + $0x1a8] sm:$0xf]
        %v793 = vld [vmem:[#allocation7 + $0x1ac] sm:$0xf]
        %v794 = vld [vmem:[#allocation7 + $0x1b0] sm:$0xf]
        %v795 = vld [vmem:[#allocation7 + $0x1b4] sm:$0xf]
        %v796 = vld [vmem:[#allocation7 + $0x1b8] sm:$0xf]
        %v797 = vld [vmem:[#allocation7 + $0x1bc] sm:$0xf]
        %v798 = vld [vmem:[#allocation7 + $0x1c0] sm:$0xf]
        %v799 = vld [vmem:[#allocation7 + $0x1c4] sm:$0xf]
        %v800 = vld [vmem:[#allocation7 + $0x1c8] sm:$0xf]
        %v801 = vld [vmem:[#allocation7 + $0x1cc] sm:$0xf]
        %v802 = vld [vmem:[#allocation7 + $0x1d0] sm:$0xf]
        %v803 = vld [vmem:[#allocation7 + $0x1d4] sm:$0xf]
        %v804 = vld [vmem:[#allocation7 + $0x1d8] sm:$0xf]
        %v805 = vld [vmem:[#allocation7 + $0x1dc] sm:$0xf]
        %v806 = vld [vmem:[#allocation7 + $0x1e0] sm:$0xf]
        %v807 = vld [vmem:[#allocation7 + $0x1e4] sm:$0xf]
        %v808 = vld [vmem:[#allocation7 + $0x1e8] sm:$0xf]
        %v809 = vld [vmem:[#allocation7 + $0x1ec] sm:$0xf]
        %v810 = vld [vmem:[#allocation7 + $0x1f0] sm:$0xf]
        %v811 = vld [vmem:[#allocation7 + $0x1f4] sm:$0xf]
        %v812 = vld [vmem:[#allocation7 + $0x1f8] sm:$0xf]
        %v813 = vld [vmem:[#allocation7 + $0x1fc] sm:$0xf]
        %v814 = vld [vmem:[#allocation7 + $0x200] sm:$0xf]
        %v815 = vld [vmem:[#allocation7 + $0x204] sm:$0xf]
        %v816 = vld [vmem:[#allocation7 + $0x208] sm:$0xf]
        %v817 = vld [vmem:[#allocation7 + $0x20c] sm:$0xf]
        %v818 = vld [vmem:[#allocation7 + $0x210] sm:$0xf]
        %v819 = vld [vmem:[#allocation7 + $0x214] sm:$0xf]
        %v820 = vld [vmem:[#allocation7 + $0x218] sm:$0xf]
        %v821 = vld [vmem:[#allocation7 + $0x21c] sm:$0xf]
        %v822 = vld [vmem:[#allocation7 + $0x220] sm:$0xf]
        %v823 = vld [vmem:[#allocation7 + $0x224] sm:$0xf]
        %v824 = vld [vmem:[#allocation7 + $0x228] sm:$0xf]
        %v825 = vld [vmem:[#allocation7 + $0x22c] sm:$0xf]
        %v826 = vld [vmem:[#allocation7 + $0x230] sm:$0xf]
        %v827 = vld [vmem:[#allocation7 + $0x234] sm:$0xf]
        %v828 = vld [vmem:[#allocation7 + $0x238] sm:$0xf]
        %v829 = vld [vmem:[#allocation7 + $0x23c] sm:$0xf]
        %v830 = vld [vmem:[#allocation7 + $0x240] sm:$0xf]
        %v831 = vld [vmem:[#allocation7 + $0x244] sm:$0xf]
        %v832 = vld [vmem:[#allocation7 + $0x248] sm:$0xf]
        %v833 = vld [vmem:[#allocation7 + $0x24c] sm:$0xf]
        %v834 = vld [vmem:[#allocation7 + $0x250] sm:$0xf]
        %v835 = vld [vmem:[#allocation7 + $0x254] sm:$0xf]
        %v836 = vld [vmem:[#allocation7 + $0x258] sm:$0xf]
        %v837 = vld [vmem:[#allocation7 + $0x25c] sm:$0xf]
        %v838 = vld [vmem:[#allocation7 + $0x260] sm:$0xf]
        %v839 = vld [vmem:[#allocation7 + $0x264] sm:$0xf]
        %v840 = vld [vmem:[#allocation7 + $0x268] sm:$0xf]
        %v841 = vld [vmem:[#allocation7 + $0x26c] sm:$0xf]
        %v842 = vld [vmem:[#allocation7 + $0x270] sm:$0xf]
        %v843 = vld [vmem:[#allocation7 + $0x274] sm:$0xf]
        %v844 = vld [vmem:[#allocation7 + $0x278] sm:$0xf]
        %v845 = vld [vmem:[#allocation7 + $0x27c] sm:$0xf]
        %v846 = vld [vmem:[#allocation7 + $0x280] sm:$0xf]
        %v847 = vld [vmem:[#allocation7 + $0x284] sm:$0xf]
        %v848 = vld [vmem:[#allocation7 + $0x288] sm:$0xf]
        %v849 = vld [vmem:[#allocation7 + $0x28c] sm:$0xf]
        %v850 = vld [vmem:[#allocation7 + $0x290] sm:$0xf]
        %v851 = vld [vmem:[#allocation7 + $0x294] sm:$0xf]
        %v852 = vld [vmem:[#allocation7 + $0x298] sm:$0xf]
        %v853 = vld [vmem:[#allocation7 + $0x29c] sm:$0xf]
        %v854 = vld [vmem:[#allocation7 + $0x2a0] sm:$0xf]
        %v855 = vld [vmem:[#allocation7 + $0x2a4] sm:$0xf]
        %v856 = vld [vmem:[#allocation7 + $0x2a8] sm:$0xf]
        %v857 = vld [vmem:[#allocation7 + $0x2ac] sm:$0xf]
        %v858 = vld [vmem:[#allocation7 + $0x2b0] sm:$0xf]
        %v859 = vld [vmem:[#allocation7 + $0x2b4] sm:$0xf]
        %v860 = vld [vmem:[#allocation7 + $0x2b8] sm:$0xf]
        %v861 = vld [vmem:[#allocation7 + $0x2bc] sm:$0xf]
        %v862 = vld [vmem:[#allocation7 + $0x2c0] sm:$0xf]
        %v863 = vld [vmem:[#allocation7 + $0x2c4] sm:$0xf]
        %v864 = vld [vmem:[#allocation7 + $0x2c8] sm:$0xf]
        %v865 = vld [vmem:[#allocation7 + $0x2cc] sm:$0xf]
        %v866 = vld [vmem:[#allocation7 + $0x2d0] sm:$0xf]
        %v867 = vld [vmem:[#allocation7 + $0x2d4] sm:$0xf]
        %v868 = vld [vmem:[#allocation7 + $0x2d8] sm:$0xf]
        %v869 = vld [vmem:[#allocation7 + $0x2dc] sm:$0xf]
        %v870 = vld [vmem:[#allocation7 + $0x2e0] sm:$0xf]
        %v871 = vld [vmem:[#allocation7 + $0x2e4] sm:$0xf]
        %v872 = vld [vmem:[#allocation7 + $0x2e8] sm:$0xf]
        %v873 = vld [vmem:[#allocation7 + $0x2ec] sm:$0xf]
        %v874 = vld [vmem:[#allocation7 + $0x2f0] sm:$0xf]
        %v875 = vld [vmem:[#allocation7 + $0x2f4] sm:$0xf]
        %v876 = vld [vmem:[#allocation7 + $0x2f8] sm:$0xf]
        %v877 = vld [vmem:[#allocation7 + $0x2fc] sm:$0xf]
        %v878 = vld [vmem:[#allocation7 + $0x300] sm:$0xf]
        %v879 = vld [vmem:[#allocation7 + $0x304] sm:$0xf]
        %v880 = vld [vmem:[#allocation7 + $0x308] sm:$0xf]
        %v881 = vld [vmem:[#allocation7 + $0x30c] sm:$0xf]
        %v882 = vld [vmem:[#allocation7 + $0x310] sm:$0xf]
        %v883 = vld [vmem:[#allocation7 + $0x314] sm:$0xf]
        %v884 = vld [vmem:[#allocation7 + $0x318] sm:$0xf]
        %v885 = vld [vmem:[#allocation7 + $0x31c] sm:$0xf]
        %v886 = vld [vmem:[#allocation7 + $0x320] sm:$0xf]
        %v887 = vld [vmem:[#allocation7 + $0x324] sm:$0xf]
        %v888 = vld [vmem:[#allocation7 + $0x328] sm:$0xf]
        %v889 = vld [vmem:[#allocation7 + $0x32c] sm:$0xf]
        %v890 = vld [vmem:[#allocation7 + $0x330] sm:$0xf]
        %v891 = vld [vmem:[#allocation7 + $0x334] sm:$0xf]
        %v892 = vld [vmem:[#allocation7 + $0x338] sm:$0xf]
        %v893 = vld [vmem:[#allocation7 + $0x33c] sm:$0xf]
        %v894 = vld [vmem:[#allocation7 + $0x340] sm:$0xf]
        %v895 = vld [vmem:[#allocation7 + $0x344] sm:$0xf]
        %v896 = vld [vmem:[#allocation7 + $0x348] sm:$0xf]
        %v897 = vld [vmem:[#allocation7 + $0x34c] sm:$0xf]
        %v898 = vld [vmem:[#allocation7 + $0x350] sm:$0xf]
        %v899 = vld [vmem:[#allocation7 + $0x354] sm:$0xf]
        %v900 = vld [vmem:[#allocation7 + $0x358] sm:$0xf]
        %v901 = vld [vmem:[#allocation7 + $0x35c] sm:$0xf]
        %v902 = vld [vmem:[#allocation7 + $0x360] sm:$0xf]
        %v903 = vld [vmem:[#allocation7 + $0x364] sm:$0xf]
        %v904 = vld [vmem:[#allocation7 + $0x368] sm:$0xf]
        %v905 = vld [vmem:[#allocation7 + $0x36c] sm:$0xf]
        %v906 = vld [vmem:[#allocation7 + $0x370] sm:$0xf]
        %v907 = vld [vmem:[#allocation7 + $0x374] sm:$0xf]
        %v908 = vld [vmem:[#allocation7 + $0x378] sm:$0xf]
        %v909 = vld [vmem:[#allocation7 + $0x37c] sm:$0xf]
        %v910 = vld [vmem:[#allocation7 + $0x380] sm:$0xf]
        %v911 = vld [vmem:[#allocation7 + $0x384] sm:$0xf]
        %v912 = vld [vmem:[#allocation7 + $0x388] sm:$0xf]
        %v913 = vld [vmem:[#allocation7 + $0x38c] sm:$0xf]
        %v914 = vld [vmem:[#allocation7 + $0x390] sm:$0xf]
        %v915 = vld [vmem:[#allocation7 + $0x394] sm:$0xf]
        %v916 = vld [vmem:[#allocation7 + $0x398] sm:$0xf]
        %v917 = vld [vmem:[#allocation7 + $0x39c] sm:$0xf]
        %v918 = vld [vmem:[#allocation7 + $0x3a0] sm:$0xf]
        %v919 = vld [vmem:[#allocation7 + $0x3a4] sm:$0xf]
        %v920 = vld [vmem:[#allocation7 + $0x3a8] sm:$0xf]
        %v921 = vld [vmem:[#allocation7 + $0x3ac] sm:$0xf]
        %v922 = vld [vmem:[#allocation7 + $0x3b0] sm:$0xf]
        %v923 = vld [vmem:[#allocation7 + $0x3b4] sm:$0xf]
        %v924 = vld [vmem:[#allocation7 + $0x3b8] sm:$0xf]
        %v925 = vld [vmem:[#allocation7 + $0x3bc] sm:$0xf]
        %v926 = vld [vmem:[#allocation7 + $0x3c0] sm:$0xf]
        %v927 = vld [vmem:[#allocation7 + $0x3c4] sm:$0xf]
        %v928 = vld [vmem:[#allocation7 + $0x3c8] sm:$0xf]
        %v929 = vld [vmem:[#allocation7 + $0x3cc] sm:$0xf]
        %v930 = vld [vmem:[#allocation7 + $0x3d0] sm:$0xf]
        %v931 = vld [vmem:[#allocation7 + $0x3d4] sm:$0xf]
        %v932 = vld [vmem:[#allocation7 + $0x3d8] sm:$0xf]
        %v933 = vld [vmem:[#allocation7 + $0x3dc] sm:$0xf]
        %v934 = vld [vmem:[#allocation7 + $0x3e0] sm:$0xf]
        %v935 = vld [vmem:[#allocation7 + $0x3e4] sm:$0xf]
        %v936 = vld [vmem:[#allocation7 + $0x3e8] sm:$0xf]
        %v937 = vld [vmem:[#allocation7 + $0x3ec] sm:$0xf]
        %v938 = vld [vmem:[#allocation7 + $0x3f0] sm:$0xf]
        %v939 = vld [vmem:[#allocation7 + $0x3f4] sm:$0xf]
        %v940 = vld [vmem:[#allocation7 + $0x3f8] sm:$0xf]
        %v941 = vld [vmem:[#allocation7 + $0x3fc] sm:$0xf]
        %v950 = vunpack.c.l.b16 %v678
        %v951 = vunpack.c.h.b16 %v678
        %v952 = vunpack.c.l.b16 %v679
        %v953 = vunpack.c.h.b16 %v679
        %v954 = vunpack.c.l.b16 %v680
        %v955 = vunpack.c.h.b16 %v680
        %v956 = vunpack.c.l.b16 %v681
        %v957 = vunpack.c.h.b16 %v681
        %v958 = vunpack.c.l.b16 %v682
        %v959 = vunpack.c.h.b16 %v682
        %v960 = vunpack.c.l.b16 %v683
        %v961 = vunpack.c.h.b16 %v683
        %v962 = vunpack.c.l.b16 %v684
        %v963 = vunpack.c.h.b16 %v684
        %v964 = vunpack.c.l.b16 %v685
        %v965 = vunpack.c.h.b16 %v685
        %v966 = vpack.c.b16 %v950, %v950
        %v967 = vpack.c.b16 %v951, %v951
        %v968 = vpack.c.b16 %v952, %v952
        %v969 = vpack.c.b16 %v953, %v953
        %v970 = vpack.c.b16 %v954, %v954
        %v971 = vpack.c.b16 %v955, %v955
        %v972 = vpack.c.b16 %v956, %v956
        %v973 = vpack.c.b16 %v957, %v957
        %v974 = vpack.c.b16 %v958, %v958
        %v975 = vpack.c.b16 %v959, %v959
        %v976 = vpack.c.b16 %v960, %v960
        %v977 = vpack.c.b16 %v961, %v961
        %v978 = vpack.c.b16 %v962, %v962
        %v979 = vpack.c.b16 %v963, %v963
        %v980 = vpack.c.b16 %v964, %v964
        %v981 = vpack.c.b16 %v965, %v965
        %v1254 = vunpack.c.l.b16 %v686
        %v1255 = vunpack.c.l.b16 %v687
        %v1256 = vunpack.c.l.b16 %v688
        %v1257 = vunpack.c.l.b16 %v689
        %v1258 = vunpack.c.l.b16 %v690
        %v1259 = vunpack.c.l.b16 %v691
        %v1260 = vunpack.c.l.b16 %v692
        %v1261 = vunpack.c.l.b16 %v693
        %v1262 = vunpack.c.l.b16 %v694
        %v1263 = vunpack.c.l.b16 %v695
        %v1264 = vunpack.c.l.b16 %v696
        %v1265 = vunpack.c.l.b16 %v697
        %v1266 = vunpack.c.l.b16 %v698
        %v1267 = vunpack.c.l.b16 %v699
        %v1268 = vunpack.c.l.b16 %v700
        %v1269 = vunpack.c.l.b16 %v701
        %v1270 = vunpack.c.l.b16 %v702
        %v1271 = vunpack.c.l.b16 %v703
        %v1272 = vunpack.c.l.b16 %v704
        %v1273 = vunpack.c.l.b16 %v705
        %v1274 = vunpack.c.l.b16 %v706
        %v1275 = vunpack.c.l.b16 %v707
        %v1276 = vunpack.c.l.b16 %v708
        %v1277 = vunpack.c.l.b16 %v709
        %v1278 = vunpack.c.l.b16 %v710
        %v1279 = vunpack.c.l.b16 %v711
        %v1280 = vunpack.c.l.b16 %v712
        %v1281 = vunpack.c.l.b16 %v713
        %v1282 = vunpack.c.l.b16 %v714
        %v1283 = vunpack.c.l.b16 %v715
        %v1284 = vunpack.c.l.b16 %v716
        %v1285 = vunpack.c.l.b16 %v717
        %v1286 = vunpack.c.l.b16 %v718
        %v1287 = vunpack.c.l.b16 %v719
        %v1288 = vunpack.c.l.b16 %v720
        %v1289 = vunpack.c.l.b16 %v721
        %v1290 = vunpack.c.l.b16 %v722
        %v1291 = vunpack.c.l.b16 %v723
        %v1292 = vunpack.c.l.b16 %v724
        %v1293 = vunpack.c.l.b16 %v725
        %v1294 = vunpack.c.l.b16 %v726
        %v1295 = vunpack.c.l.b16 %v727
        %v1296 = vunpack.c.l.b16 %v728
        %v1297 = vunpack.c.l.b16 %v729
        %v1298 = vunpack.c.l.b16 %v730
        %v1299 = vunpack.c.l.b16 %v731
        %v1300 = vunpack.c.l.b16 %v732
        %v1301 = vunpack.c.l.b16 %v733
        %v1302 = vunpack.c.l.b16 %v734
        %v1303 = vunpack.c.l.b16 %v735
        %v1304 = vunpack.c.l.b16 %v736
        %v1305 = vunpack.c.l.b16 %v737
        %v1306 = vunpack.c.l.b16 %v738
        %v1307 = vunpack.c.l.b16 %v739
        %v1308 = vunpack.c.l.b16 %v740
        %v1309 = vunpack.c.l.b16 %v741
        %v1310 = vunpack.c.l.b16 %v742
        %v1311 = vunpack.c.l.b16 %v743
        %v1312 = vunpack.c.l.b16 %v744
        %v1313 = vunpack.c.l.b16 %v745
        %v1314 = vunpack.c.l.b16 %v746
        %v1315 = vunpack.c.l.b16 %v747
        %v1316 = vunpack.c.l.b16 %v748
        %v1317 = vunpack.c.l.b16 %v749
        %v1318 = vunpack.c.l.b16 %v750
        %v1319 = vunpack.c.l.b16 %v751
        %v1320 = vunpack.c.l.b16 %v752
        %v1321 = vunpack.c.l.b16 %v753
        %v1322 = vunpack.c.l.b16 %v754
        %v1323 = vunpack.c.l.b16 %v755
        %v1324 = vunpack.c.l.b16 %v756
        %v1325 = vunpack.c.l.b16 %v757
        %v1326 = vunpack.c.l.b16 %v758
        %v1327 = vunpack.c.l.b16 %v759
        %v1328 = vunpack.c.l.b16 %v760
        %v1329 = vunpack.c.l.b16 %v761
        %v1330 = vunpack.c.l.b16 %v762
        %v1331 = vunpack.c.l.b16 %v763
        %v1332 = vunpack.c.l.b16 %v764
        %v1333 = vunpack.c.l.b16 %v765
        %v1334 = vunpack.c.l.b16 %v766
        %v1335 = vunpack.c.l.b16 %v767
        %v1336 = vunpack.c.l.b16 %v768
        %v1337 = vunpack.c.l.b16 %v769
        %v1338 = vunpack.c.l.b16 %v770
        %v1339 = vunpack.c.l.b16 %v771
        %v1340 = vunpack.c.l.b16 %v772
        %v1341 = vunpack.c.l.b16 %v773
        %v1342 = vunpack.c.l.b16 %v774
        %v1343 = vunpack.c.l.b16 %v775
        %v1344 = vunpack.c.l.b16 %v776
        %v1345 = vunpack.c.l.b16 %v777
        %v1346 = vunpack.c.l.b16 %v778
        %v1347 = vunpack.c.l.b16 %v779
        %v1348 = vunpack.c.l.b16 %v780
        %v1349 = vunpack.c.l.b16 %v781
        %v1350 = vunpack.c.l.b16 %v782
        %v1351 = vunpack.c.l.b16 %v783
        %v1352 = vunpack.c.l.b16 %v784
        %v1353 = vunpack.c.l.b16 %v785
        %v1354 = vunpack.c.l.b16 %v786
        %v1355 = vunpack.c.l.b16 %v787
        %v1356 = vunpack.c.l.b16 %v788
        %v1357 = vunpack.c.l.b16 %v789
        %v1358 = vunpack.c.l.b16 %v790
        %v1359 = vunpack.c.l.b16 %v791
        %v1360 = vunpack.c.l.b16 %v792
        %v1361 = vunpack.c.l.b16 %v793
        %v1362 = vunpack.c.l.b16 %v794
        %v1363 = vunpack.c.l.b16 %v795
        %v1364 = vunpack.c.l.b16 %v796
        %v1365 = vunpack.c.l.b16 %v797
        %v1366 = vunpack.c.l.b16 %v798
        %v1367 = vunpack.c.l.b16 %v799
        %v1368 = vunpack.c.l.b16 %v800
        %v1369 = vunpack.c.l.b16 %v801
        %v1370 = vunpack.c.l.b16 %v802
        %v1371 = vunpack.c.l.b16 %v803
        %v1372 = vunpack.c.l.b16 %v804
        %v1373 = vunpack.c.l.b16 %v805
        %v1374 = vunpack.c.l.b16 %v806
        %v1375 = vunpack.c.l.b16 %v807
        %v1376 = vunpack.c.l.b16 %v808
        %v1377 = vunpack.c.l.b16 %v809
        %v1378 = vunpack.c.l.b16 %v810
        %v1379 = vunpack.c.l.b16 %v811
        %v1380 = vunpack.c.l.b16 %v812
        %v1381 = vunpack.c.l.b16 %v813
        %v1382 = vunpack.c.l.b16 %v814
        %v1383 = vunpack.c.l.b16 %v815
        %v1384 = vunpack.c.l.b16 %v816
        %v1385 = vunpack.c.l.b16 %v817
        %v1386 = vunpack.c.l.b16 %v818
        %v1387 = vunpack.c.l.b16 %v819
        %v1388 = vunpack.c.l.b16 %v820
        %v1389 = vunpack.c.l.b16 %v821
        %v1390 = vunpack.c.l.b16 %v822
        %v1391 = vunpack.c.l.b16 %v823
        %v1392 = vunpack.c.l.b16 %v824
        %v1393 = vunpack.c.l.b16 %v825
        %v1394 = vunpack.c.l.b16 %v826
        %v1395 = vunpack.c.l.b16 %v827
        %v1396 = vunpack.c.l.b16 %v828
        %v1397 = vunpack.c.l.b16 %v829
        %v1398 = vunpack.c.l.b16 %v830
        %v1399 = vunpack.c.l.b16 %v831
        %v1400 = vunpack.c.l.b16 %v832
        %v1401 = vunpack.c.l.b16 %v833
        %v1402 = vunpack.c.l.b16 %v834
        %v1403 = vunpack.c.l.b16 %v835
        %v1404 = vunpack.c.l.b16 %v836
        %v1405 = vunpack.c.l.b16 %v837
        %v1406 = vunpack.c.l.b16 %v838
        %v1407 = vunpack.c.l.b16 %v839
        %v1408 = vunpack.c.l.b16 %v840
        %v1409 = vunpack.c.l.b16 %v841
        %v1410 = vunpack.c.l.b16 %v842
        %v1411 = vunpack.c.l.b16 %v843
        %v1412 = vunpack.c.l.b16 %v844
        %v1413 = vunpack.c.l.b16 %v845
        %v1414 = vunpack.c.l.b16 %v846
        %v1415 = vunpack.c.l.b16 %v847
        %v1416 = vunpack.c.l.b16 %v848
        %v1417 = vunpack.c.l.b16 %v849
        %v1418 = vunpack.c.l.b16 %v850
        %v1419 = vunpack.c.l.b16 %v851
        %v1420 = vunpack.c.l.b16 %v852
        %v1421 = vunpack.c.l.b16 %v853
        %v1422 = vunpack.c.l.b16 %v854
        %v1423 = vunpack.c.l.b16 %v855
        %v1424 = vunpack.c.l.b16 %v856
        %v1425 = vunpack.c.l.b16 %v857
        %v1426 = vunpack.c.l.b16 %v858
        %v1427 = vunpack.c.l.b16 %v859
        %v1428 = vunpack.c.l.b16 %v860
        %v1429 = vunpack.c.l.b16 %v861
        %v1430 = vunpack.c.l.b16 %v862
        %v1431 = vunpack.c.l.b16 %v863
        %v1432 = vunpack.c.l.b16 %v864
        %v1433 = vunpack.c.l.b16 %v865
        %v1434 = vunpack.c.l.b16 %v866
        %v1435 = vunpack.c.l.b16 %v867
        %v1436 = vunpack.c.l.b16 %v868
        %v1437 = vunpack.c.l.b16 %v869
        %v1438 = vunpack.c.l.b16 %v870
        %v1439 = vunpack.c.l.b16 %v871
        %v1440 = vunpack.c.l.b16 %v872
        %v1441 = vunpack.c.l.b16 %v873
        %v1442 = vunpack.c.l.b16 %v874
        %v1443 = vunpack.c.l.b16 %v875
        %v1444 = vunpack.c.l.b16 %v876
        %v1445 = vunpack.c.l.b16 %v877
        %v1446 = vunpack.c.l.b16 %v878
        %v1447 = vunpack.c.l.b16 %v879
        %v1448 = vunpack.c.l.b16 %v880
        %v1449 = vunpack.c.l.b16 %v881
        %v1450 = vunpack.c.l.b16 %v882
        %v1451 = vunpack.c.l.b16 %v883
        %v1452 = vunpack.c.l.b16 %v884
        %v1453 = vunpack.c.l.b16 %v885
        %v1454 = vunpack.c.l.b16 %v886
        %v1455 = vunpack.c.l.b16 %v887
        %v1456 = vunpack.c.l.b16 %v888
        %v1457 = vunpack.c.l.b16 %v889
        %v1458 = vunpack.c.l.b16 %v890
        %v1459 = vunpack.c.l.b16 %v891
        %v1460 = vunpack.c.l.b16 %v892
        %v1461 = vunpack.c.l.b16 %v893
        %v1462 = vunpack.c.l.b16 %v894
        %v1463 = vunpack.c.l.b16 %v895
        %v1464 = vunpack.c.l.b16 %v896
        %v1465 = vunpack.c.l.b16 %v897
        %v1466 = vunpack.c.l.b16 %v898
        %v1467 = vunpack.c.l.b16 %v899
        %v1468 = vunpack.c.l.b16 %v900
        %v1469 = vunpack.c.l.b16 %v901
        %v1470 = vunpack.c.l.b16 %v902
        %v1471 = vunpack.c.l.b16 %v903
        %v1472 = vunpack.c.l.b16 %v904
        %v1473 = vunpack.c.l.b16 %v905
        %v1474 = vunpack.c.l.b16 %v906
        %v1475 = vunpack.c.l.b16 %v907
        %v1476 = vunpack.c.l.b16 %v908
        %v1477 = vunpack.c.l.b16 %v909
        %v1478 = vunpack.c.l.b16 %v910
        %v1479 = vunpack.c.l.b16 %v911
        %v1480 = vunpack.c.l.b16 %v912
        %v1481 = vunpack.c.l.b16 %v913
        %v1482 = vunpack.c.l.b16 %v914
        %v1483 = vunpack.c.l.b16 %v915
        %v1484 = vunpack.c.l.b16 %v916
        %v1485 = vunpack.c.l.b16 %v917
        %v1486 = vunpack.c.l.b16 %v918
        %v1487 = vunpack.c.l.b16 %v919
        %v1488 = vunpack.c.l.b16 %v920
        %v1489 = vunpack.c.l.b16 %v921
        %v1490 = vunpack.c.l.b16 %v922
        %v1491 = vunpack.c.l.b16 %v923
        %v1492 = vunpack.c.l.b16 %v924
        %v1493 = vunpack.c.l.b16 %v925
        %v1494 = vunpack.c.l.b16 %v926
        %v1495 = vunpack.c.l.b16 %v927
        %v1496 = vunpack.c.l.b16 %v928
        %v1497 = vunpack.c.l.b16 %v929
        %v1498 = vunpack.c.l.b16 %v930
        %v1499 = vunpack.c.l.b16 %v931
        %v1500 = vunpack.c.l.b16 %v932
        %v1501 = vunpack.c.l.b16 %v933
        %v1502 = vunpack.c.l.b16 %v934
        %v1503 = vunpack.c.l.b16 %v935
        %v1504 = vunpack.c.l.b16 %v936
        %v1505 = vunpack.c.l.b16 %v937
        %v1506 = vunpack.c.l.b16 %v938
        %v1507 = vunpack.c.l.b16 %v939
        %v1508 = vunpack.c.l.b16 %v940
        %v1509 = vunpack.c.l.b16 %v941
        %v1510 = vpack.c.b16 %v1255, %v1254
        %v1511 = vpack.c.b16 %v1257, %v1256
        %v1512 = vpack.c.b16 %v1259, %v1258
        %v1513 = vpack.c.b16 %v1261, %v1260
        %v1514 = vpack.c.b16 %v1263, %v1262
        %v1515 = vpack.c.b16 %v1265, %v1264
        %v1516 = vpack.c.b16 %v1267, %v1266
        %v1517 = vpack.c.b16 %v1269, %v1268
        %v1518 = vpack.c.b16 %v1271, %v1270
        %v1519 = vpack.c.b16 %v1273, %v1272
        %v1520 = vpack.c.b16 %v1275, %v1274
        %v1521 = vpack.c.b16 %v1277, %v1276
        %v1522 = vpack.c.b16 %v1279, %v1278
        %v1523 = vpack.c.b16 %v1281, %v1280
        %v1524 = vpack.c.b16 %v1283, %v1282
        %v1525 = vpack.c.b16 %v1285, %v1284
        %v1526 = vpack.c.b16 %v1287, %v1286
        %v1527 = vpack.c.b16 %v1289, %v1288
        %v1528 = vpack.c.b16 %v1291, %v1290
        %v1529 = vpack.c.b16 %v1293, %v1292
        %v1530 = vpack.c.b16 %v1295, %v1294
        %v1531 = vpack.c.b16 %v1297, %v1296
        %v1532 = vpack.c.b16 %v1299, %v1298
        %v1533 = vpack.c.b16 %v1301, %v1300
        %v1534 = vpack.c.b16 %v1303, %v1302
        %v1535 = vpack.c.b16 %v1305, %v1304
        %v1536 = vpack.c.b16 %v1307, %v1306
        %v1537 = vpack.c.b16 %v1309, %v1308
        %v1538 = vpack.c.b16 %v1311, %v1310
        %v1539 = vpack.c.b16 %v1313, %v1312
        %v1540 = vpack.c.b16 %v1315, %v1314
        %v1541 = vpack.c.b16 %v1317, %v1316
        %v1542 = vpack.c.b16 %v1319, %v1318
        %v1543 = vpack.c.b16 %v1321, %v1320
        %v1544 = vpack.c.b16 %v1323, %v1322
        %v1545 = vpack.c.b16 %v1325, %v1324
        %v1546 = vpack.c.b16 %v1327, %v1326
        %v1547 = vpack.c.b16 %v1329, %v1328
        %v1548 = vpack.c.b16 %v1331, %v1330
        %v1549 = vpack.c.b16 %v1333, %v1332
        %v1550 = vpack.c.b16 %v1335, %v1334
        %v1551 = vpack.c.b16 %v1337, %v1336
        %v1552 = vpack.c.b16 %v1339, %v1338
        %v1553 = vpack.c.b16 %v1341, %v1340
        %v1554 = vpack.c.b16 %v1343, %v1342
        %v1555 = vpack.c.b16 %v1345, %v1344
        %v1556 = vpack.c.b16 %v1347, %v1346
        %v1557 = vpack.c.b16 %v1349, %v1348
        %v1558 = vpack.c.b16 %v1351, %v1350
        %v1559 = vpack.c.b16 %v1353, %v1352
        %v1560 = vpack.c.b16 %v1355, %v1354
        %v1561 = vpack.c.b16 %v1357, %v1356
        %v1562 = vpack.c.b16 %v1359, %v1358
        %v1563 = vpack.c.b16 %v1361, %v1360
        %v1564 = vpack.c.b16 %v1363, %v1362
        %v1565 = vpack.c.b16 %v1365, %v1364
        %v1566 = vpack.c.b16 %v1367, %v1366
        %v1567 = vpack.c.b16 %v1369, %v1368
        %v1568 = vpack.c.b16 %v1371, %v1370
        %v1569 = vpack.c.b16 %v1373, %v1372
        %v1570 = vpack.c.b16 %v1375, %v1374
        %v1571 = vpack.c.b16 %v1377, %v1376
        %v1572 = vpack.c.b16 %v1379, %v1378
        %v1573 = vpack.c.b16 %v1381, %v1380
        %v1574 = vpack.c.b16 %v1383, %v1382
        %v1575 = vpack.c.b16 %v1385, %v1384
        %v1576 = vpack.c.b16 %v1387, %v1386
        %v1577 = vpack.c.b16 %v1389, %v1388
        %v1578 = vpack.c.b16 %v1391, %v1390
        %v1579 = vpack.c.b16 %v1393, %v1392
        %v1580 = vpack.c.b16 %v1395, %v1394
        %v1581 = vpack.c.b16 %v1397, %v1396
        %v1582 = vpack.c.b16 %v1399, %v1398
        %v1583 = vpack.c.b16 %v1401, %v1400
        %v1584 = vpack.c.b16 %v1403, %v1402
        %v1585 = vpack.c.b16 %v1405, %v1404
        %v1586 = vpack.c.b16 %v1407, %v1406
        %v1587 = vpack.c.b16 %v1409, %v1408
        %v1588 = vpack.c.b16 %v1411, %v1410
        %v1589 = vpack.c.b16 %v1413, %v1412
        %v1590 = vpack.c.b16 %v1415, %v1414
        %v1591 = vpack.c.b16 %v1417, %v1416
        %v1592 = vpack.c.b16 %v1419, %v1418
        %v1593 = vpack.c.b16 %v1421, %v1420
        %v1594 = vpack.c.b16 %v1423, %v1422
        %v1595 = vpack.c.b16 %v1425, %v1424
        %v1596 = vpack.c.b16 %v1427, %v1426
        %v1597 = vpack.c.b16 %v1429, %v1428
        %v1598 = vpack.c.b16 %v1431, %v1430
        %v1599 = vpack.c.b16 %v1433, %v1432
        %v1600 = vpack.c.b16 %v1435, %v1434
        %v1601 = vpack.c.b16 %v1437, %v1436
        %v1602 = vpack.c.b16 %v1439, %v1438
        %v1603 = vpack.c.b16 %v1441, %v1440
        %v1604 = vpack.c.b16 %v1443, %v1442
        %v1605 = vpack.c.b16 %v1445, %v1444
        %v1606 = vpack.c.b16 %v1447, %v1446
        %v1607 = vpack.c.b16 %v1449, %v1448
        %v1608 = vpack.c.b16 %v1451, %v1450
        %v1609 = vpack.c.b16 %v1453, %v1452
        %v1610 = vpack.c.b16 %v1455, %v1454
        %v1611 = vpack.c.b16 %v1457, %v1456
        %v1612 = vpack.c.b16 %v1459, %v1458
        %v1613 = vpack.c.b16 %v1461, %v1460
        %v1614 = vpack.c.b16 %v1463, %v1462
        %v1615 = vpack.c.b16 %v1465, %v1464
        %v1616 = vpack.c.b16 %v1467, %v1466
        %v1617 = vpack.c.b16 %v1469, %v1468
        %v1618 = vpack.c.b16 %v1471, %v1470
        %v1619 = vpack.c.b16 %v1473, %v1472
        %v1620 = vpack.c.b16 %v1475, %v1474
        %v1621 = vpack.c.b16 %v1477, %v1476
        %v1622 = vpack.c.b16 %v1479, %v1478
        %v1623 = vpack.c.b16 %v1481, %v1480
        %v1624 = vpack.c.b16 %v1483, %v1482
        %v1625 = vpack.c.b16 %v1485, %v1484
        %v1626 = vpack.c.b16 %v1487, %v1486
        %v1627 = vpack.c.b16 %v1489, %v1488
        %v1628 = vpack.c.b16 %v1491, %v1490
        %v1629 = vpack.c.b16 %v1493, %v1492
        %v1630 = vpack.c.b16 %v1495, %v1494
        %v1631 = vpack.c.b16 %v1497, %v1496
        %v1632 = vpack.c.b16 %v1499, %v1498
        %v1633 = vpack.c.b16 %v1501, %v1500
        %v1634 = vpack.c.b16 %v1503, %v1502
        %v1635 = vpack.c.b16 %v1505, %v1504
        %v1636 = vpack.c.b16 %v1507, %v1506
        %v1637 = vpack.c.b16 %v1509, %v1508
        %1766 = vmatprep.subr.bf16.mxu0 0
        %1767 = vmatpush1.bf16.msra.mxu0 %v1510
        %1768 = vmatprep.subr.bf16.mxu0 0
        %1769 = vmatpush1.bf16.msra.mxu0 %v1511
        %1770 = vmatprep.subr.bf16.mxu0 0
        %1771 = vmatpush1.bf16.msra.mxu0 %v1512
        %1772 = vmatprep.subr.bf16.mxu0 0
        %1773 = vmatpush1.bf16.msra.mxu0 %v1513
        %1774 = vmatprep.subr.bf16.mxu0 0
        %1775 = vmatpush1.bf16.msra.mxu0 %v1514
        %1776 = vmatprep.subr.bf16.mxu0 0
        %1777 = vmatpush1.bf16.msra.mxu0 %v1515
        %1778 = vmatprep.subr.bf16.mxu0 0
        %1779 = vmatpush1.bf16.msra.mxu0 %v1516
        %1780 = vmatprep.subr.bf16.mxu0 0
        %1781 = vmatpush1.bf16.msra.mxu0 %v1517
        %1782 = vmatprep.subr.bf16.mxu0 0
        %1783 = vmatpush1.bf16.msra.mxu0 %v1518
        %1784 = vmatprep.subr.bf16.mxu0 0
        %1785 = vmatpush1.bf16.msra.mxu0 %v1519
        %1786 = vmatprep.subr.bf16.mxu0 0
        %1787 = vmatpush1.bf16.msra.mxu0 %v1520
        %1788 = vmatprep.subr.bf16.mxu0 0
        %1789 = vmatpush1.bf16.msra.mxu0 %v1521
        %1790 = vmatprep.subr.bf16.mxu0 0
        %1791 = vmatpush1.bf16.msra.mxu0 %v1522
        %1792 = vmatprep.subr.bf16.mxu0 0
        %1793 = vmatpush1.bf16.msra.mxu0 %v1523
        %1794 = vmatprep.subr.bf16.mxu0 0
        %1795 = vmatpush1.bf16.msra.mxu0 %v1524
        %1796 = vmatprep.subr.bf16.mxu0 0
        %1797 = vmatpush1.bf16.msra.mxu0 %v1525
        %1798 = vmatprep.mubr.bf16.mxu0 %v967
        %1799 = vmatmul.mubr.bf16.gmra.mrb[0].mxu0 %v966
        %v1800 = vpop.f32.mrb[0].mxu0
        %v1801 = vadd.f32 0.0, %v1800
        %v1802 = vpop.f32.mrb[0].mxu0
        %v1803 = vpop.f32.mrb[0].mxu0
        %v1804 = vpop.f32.mrb[0].mxu0
        %1805 = vdwg.mxu0
        %1806 = vmatprep.subr.bf16.mxu0 0
        %1807 = vmatpush1.bf16.msra.mxu0 %v1526
        %1808 = vmatprep.subr.bf16.mxu0 0
        %1809 = vmatpush1.bf16.msra.mxu0 %v1527
        %1810 = vmatprep.subr.bf16.mxu0 0
        %1811 = vmatpush1.bf16.msra.mxu0 %v1528
        %1812 = vmatprep.subr.bf16.mxu0 0
        %1813 = vmatpush1.bf16.msra.mxu0 %v1529
        %1814 = vmatprep.subr.bf16.mxu0 0
        %1815 = vmatpush1.bf16.msra.mxu0 %v1530
        %1816 = vmatprep.subr.bf16.mxu0 0
        %1817 = vmatpush1.bf16.msra.mxu0 %v1531
        %1818 = vmatprep.subr.bf16.mxu0 0
        %1819 = vmatpush1.bf16.msra.mxu0 %v1532
        %1820 = vmatprep.subr.bf16.mxu0 0
        %1821 = vmatpush1.bf16.msra.mxu0 %v1533
        %1822 = vmatprep.subr.bf16.mxu0 0
        %1823 = vmatpush1.bf16.msra.mxu0 %v1534
        %1824 = vmatprep.subr.bf16.mxu0 0
        %1825 = vmatpush1.bf16.msra.mxu0 %v1535
        %1826 = vmatprep.subr.bf16.mxu0 0
        %1827 = vmatpush1.bf16.msra.mxu0 %v1536
        %1828 = vmatprep.subr.bf16.mxu0 0
        %1829 = vmatpush1.bf16.msra.mxu0 %v1537
        %1830 = vmatprep.subr.bf16.mxu0 0
        %1831 = vmatpush1.bf16.msra.mxu0 %v1538
        %1832 = vmatprep.subr.bf16.mxu0 0
        %1833 = vmatpush1.bf16.msra.mxu0 %v1539
        %1834 = vmatprep.subr.bf16.mxu0 0
        %1835 = vmatpush1.bf16.msra.mxu0 %v1540
        %1836 = vmatprep.subr.bf16.mxu0 0
        %1837 = vmatpush1.bf16.msra.mxu0 %v1541
        %1838 = vmatprep.mubr.bf16.mxu0 %v969
        %1839 = vmatmul.mubr.bf16.gmra.mrb[0].mxu0 %v968
        %v1840 = vpop.f32.mrb[0].mxu0
        %v1841 = vadd.f32 %v1801, %v1840
        %v1842 = vpop.f32.mrb[0].mxu0
        %v1843 = vpop.f32.mrb[0].mxu0
        %v1844 = vpop.f32.mrb[0].mxu0
        %1845 = vdwg.mxu0
        %1846 = vmatprep.subr.bf16.mxu0 0
        %1847 = vmatpush1.bf16.msra.mxu0 %v1542
        %1848 = vmatprep.subr.bf16.mxu0 0
        %1849 = vmatpush1.bf16.msra.mxu0 %v1543
        %1850 = vmatprep.subr.bf16.mxu0 0
        %1851 = vmatpush1.bf16.msra.mxu0 %v1544
        %1852 = vmatprep.subr.bf16.mxu0 0
        %1853 = vmatpush1.bf16.msra.mxu0 %v1545
        %1854 = vmatprep.subr.bf16.mxu0 0
        %1855 = vmatpush1.bf16.msra.mxu0 %v1546
        %1856 = vmatprep.subr.bf16.mxu0 0
        %1857 = vmatpush1.bf16.msra.mxu0 %v1547
        %1858 = vmatprep.subr.bf16.mxu0 0
        %1859 = vmatpush1.bf16.msra.mxu0 %v1548
        %1860 = vmatprep.subr.bf16.mxu0 0
        %1861 = vmatpush1.bf16.msra.mxu0 %v1549
        %1862 = vmatprep.subr.bf16.mxu0 0
        %1863 = vmatpush1.bf16.msra.mxu0 %v1550
        %1864 = vmatprep.subr.bf16.mxu0 0
        %1865 = vmatpush1.bf16.msra.mxu0 %v1551
        %1866 = vmatprep.subr.bf16.mxu0 0
        %1867 = vmatpush1.bf16.msra.mxu0 %v1552
        %1868 = vmatprep.subr.bf16.mxu0 0
        %1869 = vmatpush1.bf16.msra.mxu0 %v1553
        %1870 = vmatprep.subr.bf16.mxu0 0
        %1871 = vmatpush1.bf16.msra.mxu0 %v1554
        %1872 = vmatprep.subr.bf16.mxu0 0
        %1873 = vmatpush1.bf16.msra.mxu0 %v1555
        %1874 = vmatprep.subr.bf16.mxu0 0
        %1875 = vmatpush1.bf16.msra.mxu0 %v1556
        %1876 = vmatprep.subr.bf16.mxu0 0
        %1877 = vmatpush1.bf16.msra.mxu0 %v1557
        %1878 = vmatprep.mubr.bf16.mxu0 %v971
        %1879 = vmatmul.mubr.bf16.gmra.mrb[0].mxu0 %v970
        %v1880 = vpop.f32.mrb[0].mxu0
        %v1881 = vadd.f32 %v1841, %v1880
        %v1882 = vpop.f32.mrb[0].mxu0
        %v1883 = vpop.f32.mrb[0].mxu0
        %v1884 = vpop.f32.mrb[0].mxu0
        %1885 = vdwg.mxu0
        %1886 = vmatprep.subr.bf16.mxu0 0
        %1887 = vmatpush1.bf16.msra.mxu0 %v1558
        %1888 = vmatprep.subr.bf16.mxu0 0
        %1889 = vmatpush1.bf16.msra.mxu0 %v1559
        %1890 = vmatprep.subr.bf16.mxu0 0
        %1891 = vmatpush1.bf16.msra.mxu0 %v1560
        %1892 = vmatprep.subr.bf16.mxu0 0
        %1893 = vmatpush1.bf16.msra.mxu0 %v1561
        %1894 = vmatprep.subr.bf16.mxu0 0
        %1895 = vmatpush1.bf16.msra.mxu0 %v1562
        %1896 = vmatprep.subr.bf16.mxu0 0
        %1897 = vmatpush1.bf16.msra.mxu0 %v1563
        %1898 = vmatprep.subr.bf16.mxu0 0
        %1899 = vmatpush1.bf16.msra.mxu0 %v1564
        %1900 = vmatprep.subr.bf16.mxu0 0
        %1901 = vmatpush1.bf16.msra.mxu0 %v1565
        %1902 = vmatprep.subr.bf16.mxu0 0
        %1903 = vmatpush1.bf16.msra.mxu0 %v1566
        %1904 = vmatprep.subr.bf16.mxu0 0
        %1905 = vmatpush1.bf16.msra.mxu0 %v1567
        %1906 = vmatprep.subr.bf16.mxu0 0
        %1907 = vmatpush1.bf16.msra.mxu0 %v1568
        %1908 = vmatprep.subr.bf16.mxu0 0
        %1909 = vmatpush1.bf16.msra.mxu0 %v1569
        %1910 = vmatprep.subr.bf16.mxu0 0
        %1911 = vmatpush1.bf16.msra.mxu0 %v1570
        %1912 = vmatprep.subr.bf16.mxu0 0
        %1913 = vmatpush1.bf16.msra.mxu0 %v1571
        %1914 = vmatprep.subr.bf16.mxu0 0
        %1915 = vmatpush1.bf16.msra.mxu0 %v1572
        %1916 = vmatprep.subr.bf16.mxu0 0
        %1917 = vmatpush1.bf16.msra.mxu0 %v1573
        %1918 = vmatprep.mubr.bf16.mxu0 %v973
        %1919 = vmatmul.mubr.bf16.gmra.mrb[0].mxu0 %v972
        %v1920 = vpop.f32.mrb[0].mxu0
        %v1921 = vadd.f32 %v1881, %v1920
        %v1922 = vpop.f32.mrb[0].mxu0
        %v1923 = vpop.f32.mrb[0].mxu0
        %v1924 = vpop.f32.mrb[0].mxu0
        %1925 = vdwg.mxu0
        %1926 = vmatprep.subr.bf16.mxu0 0
        %1927 = vmatpush1.bf16.msra.mxu0 %v1574
        %1928 = vmatprep.subr.bf16.mxu0 0
        %1929 = vmatpush1.bf16.msra.mxu0 %v1575
        %1930 = vmatprep.subr.bf16.mxu0 0
        %1931 = vmatpush1.bf16.msra.mxu0 %v1576
        %1932 = vmatprep.subr.bf16.mxu0 0
        %1933 = vmatpush1.bf16.msra.mxu0 %v1577
        %1934 = vmatprep.subr.bf16.mxu0 0
        %1935 = vmatpush1.bf16.msra.mxu0 %v1578
        %1936 = vmatprep.subr.bf16.mxu0 0
        %1937 = vmatpush1.bf16.msra.mxu0 %v1579
        %1938 = vmatprep.subr.bf16.mxu0 0
        %1939 = vmatpush1.bf16.msra.mxu0 %v1580
        %1940 = vmatprep.subr.bf16.mxu0 0
        %1941 = vmatpush1.bf16.msra.mxu0 %v1581
        %1942 = vmatprep.subr.bf16.mxu0 0
        %1943 = vmatpush1.bf16.msra.mxu0 %v1582
        %1944 = vmatprep.subr.bf16.mxu0 0
        %1945 = vmatpush1.bf16.msra.mxu0 %v1583
        %1946 = vmatprep.subr.bf16.mxu0 0
        %1947 = vmatpush1.bf16.msra.mxu0 %v1584
        %1948 = vmatprep.subr.bf16.mxu0 0
        %1949 = vmatpush1.bf16.msra.mxu0 %v1585
        %1950 = vmatprep.subr.bf16.mxu0 0
        %1951 = vmatpush1.bf16.msra.mxu0 %v1586
        %1952 = vmatprep.subr.bf16.mxu0 0
        %1953 = vmatpush1.bf16.msra.mxu0 %v1587
        %1954 = vmatprep.subr.bf16.mxu0 0
        %1955 = vmatpush1.bf16.msra.mxu0 %v1588
        %1956 = vmatprep.subr.bf16.mxu0 0
        %1957 = vmatpush1.bf16.msra.mxu0 %v1589
        %1958 = vmatprep.mubr.bf16.mxu0 %v975
        %1959 = vmatmul.mubr.bf16.gmra.mrb[0].mxu0 %v974
        %v1960 = vpop.f32.mrb[0].mxu0
        %v1961 = vadd.f32 %v1921, %v1960
        %v1962 = vpop.f32.mrb[0].mxu0
        %v1963 = vpop.f32.mrb[0].mxu0
        %v1964 = vpop.f32.mrb[0].mxu0
        %1965 = vdwg.mxu0
        %1966 = vmatprep.subr.bf16.mxu0 0
        %1967 = vmatpush1.bf16.msra.mxu0 %v1590
        %1968 = vmatprep.subr.bf16.mxu0 0
        %1969 = vmatpush1.bf16.msra.mxu0 %v1591
        %1970 = vmatprep.subr.bf16.mxu0 0
        %1971 = vmatpush1.bf16.msra.mxu0 %v1592
        %1972 = vmatprep.subr.bf16.mxu0 0
        %1973 = vmatpush1.bf16.msra.mxu0 %v1593
        %1974 = vmatprep.subr.bf16.mxu0 0
        %1975 = vmatpush1.bf16.msra.mxu0 %v1594
        %1976 = vmatprep.subr.bf16.mxu0 0
        %1977 = vmatpush1.bf16.msra.mxu0 %v1595
        %1978 = vmatprep.subr.bf16.mxu0 0
        %1979 = vmatpush1.bf16.msra.mxu0 %v1596
        %1980 = vmatprep.subr.bf16.mxu0 0
        %1981 = vmatpush1.bf16.msra.mxu0 %v1597
        %1982 = vmatprep.subr.bf16.mxu0 0
        %1983 = vmatpush1.bf16.msra.mxu0 %v1598
        %1984 = vmatprep.subr.bf16.mxu0 0
        %1985 = vmatpush1.bf16.msra.mxu0 %v1599
        %1986 = vmatprep.subr.bf16.mxu0 0
        %1987 = vmatpush1.bf16.msra.mxu0 %v1600
        %1988 = vmatprep.subr.bf16.mxu0 0
        %1989 = vmatpush1.bf16.msra.mxu0 %v1601
        %1990 = vmatprep.subr.bf16.mxu0 0
        %1991 = vmatpush1.bf16.msra.mxu0 %v1602
        %1992 = vmatprep.subr.bf16.mxu0 0
        %1993 = vmatpush1.bf16.msra.mxu0 %v1603
        %1994 = vmatprep.subr.bf16.mxu0 0
        %1995 = vmatpush1.bf16.msra.mxu0 %v1604
        %1996 = vmatprep.subr.bf16.mxu0 0
        %1997 = vmatpush1.bf16.msra.mxu0 %v1605
        %1998 = vmatprep.mubr.bf16.mxu0 %v977
        %1999 = vmatmul.mubr.bf16.gmra.mrb[0].mxu0 %v976
        %v2000 = vpop.f32.mrb[0].mxu0
        %v2001 = vadd.f32 %v1961, %v2000
        %v2002 = vpop.f32.mrb[0].mxu0
        %v2003 = vpop.f32.mrb[0].mxu0
        %v2004 = vpop.f32.mrb[0].mxu0
        %2005 = vdwg.mxu0
        %2006 = vmatprep.subr.bf16.mxu0 0
        %2007 = vmatpush1.bf16.msra.mxu0 %v1606
        %2008 = vmatprep.subr.bf16.mxu0 0
        %2009 = vmatpush1.bf16.msra.mxu0 %v1607
        %2010 = vmatprep.subr.bf16.mxu0 0
        %2011 = vmatpush1.bf16.msra.mxu0 %v1608
        %2012 = vmatprep.subr.bf16.mxu0 0
        %2013 = vmatpush1.bf16.msra.mxu0 %v1609
        %2014 = vmatprep.subr.bf16.mxu0 0
        %2015 = vmatpush1.bf16.msra.mxu0 %v1610
        %2016 = vmatprep.subr.bf16.mxu0 0
        %2017 = vmatpush1.bf16.msra.mxu0 %v1611
        %2018 = vmatprep.subr.bf16.mxu0 0
        %2019 = vmatpush1.bf16.msra.mxu0 %v1612
        %2020 = vmatprep.subr.bf16.mxu0 0
        %2021 = vmatpush1.bf16.msra.mxu0 %v1613
        %2022 = vmatprep.subr.bf16.mxu0 0
        %2023 = vmatpush1.bf16.msra.mxu0 %v1614
        %2024 = vmatprep.subr.bf16.mxu0 0
        %2025 = vmatpush1.bf16.msra.mxu0 %v1615
        %2026 = vmatprep.subr.bf16.mxu0 0
        %2027 = vmatpush1.bf16.msra.mxu0 %v1616
        %2028 = vmatprep.subr.bf16.mxu0 0
        %2029 = vmatpush1.bf16.msra.mxu0 %v1617
        %2030 = vmatprep.subr.bf16.mxu0 0
        %2031 = vmatpush1.bf16.msra.mxu0 %v1618
        %2032 = vmatprep.subr.bf16.mxu0 0
        %2033 = vmatpush1.bf16.msra.mxu0 %v1619
        %2034 = vmatprep.subr.bf16.mxu0 0
        %2035 = vmatpush1.bf16.msra.mxu0 %v1620
        %2036 = vmatprep.subr.bf16.mxu0 0
        %2037 = vmatpush1.bf16.msra.mxu0 %v1621
        %2038 = vmatprep.mubr.bf16.mxu0 %v979
        %2039 = vmatmul.mubr.bf16.gmra.mrb[0].mxu0 %v978
        %v2040 = vpop.f32.mrb[0].mxu0
        %v2041 = vadd.f32 %v2001, %v2040
        %v2042 = vpop.f32.mrb[0].mxu0
        %v2043 = vpop.f32.mrb[0].mxu0
        %v2044 = vpop.f32.mrb[0].mxu0
        %2045 = vdwg.mxu0
        %2046 = vmatprep.subr.bf16.mxu0 0
        %2047 = vmatpush1.bf16.msra.mxu0 %v1622
        %2048 = vmatprep.subr.bf16.mxu0 0
        %2049 = vmatpush1.bf16.msra.mxu0 %v1623
        %2050 = vmatprep.subr.bf16.mxu0 0
        %2051 = vmatpush1.bf16.msra.mxu0 %v1624
        %2052 = vmatprep.subr.bf16.mxu0 0
        %2053 = vmatpush1.bf16.msra.mxu0 %v1625
        %2054 = vmatprep.subr.bf16.mxu0 0
        %2055 = vmatpush1.bf16.msra.mxu0 %v1626
        %2056 = vmatprep.subr.bf16.mxu0 0
        %2057 = vmatpush1.bf16.msra.mxu0 %v1627
        %2058 = vmatprep.subr.bf16.mxu0 0
        %2059 = vmatpush1.bf16.msra.mxu0 %v1628
        %2060 = vmatprep.subr.bf16.mxu0 0
        %2061 = vmatpush1.bf16.msra.mxu0 %v1629
        %2062 = vmatprep.subr.bf16.mxu0 0
        %2063 = vmatpush1.bf16.msra.mxu0 %v1630
        %2064 = vmatprep.subr.bf16.mxu0 0
        %2065 = vmatpush1.bf16.msra.mxu0 %v1631
        %2066 = vmatprep.subr.bf16.mxu0 0
        %2067 = vmatpush1.bf16.msra.mxu0 %v1632
        %2068 = vmatprep.subr.bf16.mxu0 0
        %2069 = vmatpush1.bf16.msra.mxu0 %v1633
        %2070 = vmatprep.subr.bf16.mxu0 0
        %2071 = vmatpush1.bf16.msra.mxu0 %v1634
        %2072 = vmatprep.subr.bf16.mxu0 0
        %2073 = vmatpush1.bf16.msra.mxu0 %v1635
        %2074 = vmatprep.subr.bf16.mxu0 0
        %2075 = vmatpush1.bf16.msra.mxu0 %v1636
        %2076 = vmatprep.subr.bf16.mxu0 0
        %2077 = vmatpush1.bf16.msra.mxu0 %v1637
        %2078 = vmatprep.mubr.bf16.mxu0 %v981
        %2079 = vmatmul.mubr.bf16.gmra.mrb[0].mxu0 %v980
        %v2080 = vpop.f32.mrb[0].mxu0
        %v2081 = vadd.f32 %v2041, %v2080
        %v2082 = vpop.f32.mrb[0].mxu0
        %v2083 = vpop.f32.mrb[0].mxu0
        %v2084 = vpop.f32.mrb[0].mxu0
        %2085 = vdwg.mxu0
        %vm2086 = vcmp.lt.s32.totalorder %v389, 1
        %v2087 = vsel %vm2086, %v2081, 0.0
        %2088 = vst [vmem:[%s316] sm:$0x3] 0.0
        %2089 = vst [vmem:[%s309] sm:$0xff] %v2087
        %s2090 = sand.u32 %s144, 1
        %s2091 = scalar_lea.sflag [#allocation6], %s2090
        %s2092 = sand.u32 %s144, 1
        %s2093 = smul.addr %s2092, 8
        %s2094 = scalar_lea.vmem [#allocation12], %s2093
        %s2095 = sand.u32 %s172, 1
        %s2096 = scalar_lea.sflag [#allocation14], %s2095
        %s2097 = sand.u32 %s172, 1
        %s2098 = smul.addr %s2097, 2
        %s2099 = scalar_lea.vmem [#allocation13], %s2098
        // Predicated region
        $region53: #{_lambda_.5} parent=35 // pred_check
          %p2100 = pneg %p154
        $region54: #{_lambda_.5} parent=35 // pred_check_branch
          %2102 = sbr.rel (%p2100) target = $region56
        $region55: #{_lambda_.5} parent=35 // pred_region
          %s2104 = ssub.s32 128, 128
          %2105 = vsyncadd %s2091, %s2104
          %s2106 = sadd.s32 %s33, %s32
          %s2107 = smul.addr %s2106, 128
          %s2108 = scalar_lea.hbm %s4, %s2107
          %s2110 = sshll.u32 %s2094, 4
          %s2111 = int_to_ptr.vmem [resolvable:$true] %s2110
          %2113 = dma.vmem_to_hbm [thread:$0]  %s2111, 128, %s2108, %s2091
        $region56: #{_lambda_.5} parent=35 // pred_fallthru
          _
        // Predicated region
        $region57: #{_lambda_.5} parent=35 // pred_check
          %p2114 = pneg %p182
        $region58: #{_lambda_.5} parent=35 // pred_check_branch
          %2116 = sbr.rel (%p2114) target = $region60
        $region59: #{_lambda_.5} parent=35 // pred_region
          %s2118 = ssub.s32 32, 32
          %2119 = vsyncadd %s2096, %s2118
          %s2120 = sadd.s32 %s33, %s32
          %s2121 = smul.addr %s2120, 32
          %s2122 = scalar_lea.hbm %s5, %s2121
          %s2124 = sshll.u32 %s2099, 4
          %s2125 = int_to_ptr.vmem [resolvable:$true] %s2124
          %2127 = dma.vmem_to_hbm [thread:$0]  %s2125, 32, %s2122, %s2096
        $region60: #{_lambda_.5} parent=35 // pred_fallthru
          _
      $region36: #{_lambda_.5} parent=5 // pred_fallthru
        _
      %p2128 = scmp.le.s32.totalorder 2, %s23
      // Predicated region
      $region61: #{_lambda_.5} parent=5 // pred_check
        %p2129 = pneg %p2128
      $region62: #{_lambda_.5} parent=5 // pred_check_branch
        %2131 = sbr.rel (%p2129) target = $region64
      $region63: #{_lambda_.5} parent=5 // pred_region
        %s2132 = ssub.s32 %s23, 2
        // Predicated region
        $region65: #{_lambda_.5} parent=63 // pred_check
          %p2133 = pneg %p160
        $region66: #{_lambda_.5} parent=63 // pred_check_branch
          %2135 = sbr.rel (%p2133) target = $region68
        $region67: #{_lambda_.5} parent=63 // pred_region
          %s2136 = sand.u32 %s145, 1
          %s2137 = scalar_lea.sflag [#allocation6], %s2136
          %s2138 = sand.u32 %s145, 1
          %s2139 = smul.addr %s2138, 8
          %s2140 = scalar_lea.vmem [#allocation12], %s2139
          %2141 = dma.done %s2137, 128
        $region68: #{_lambda_.5} parent=63 // pred_fallthru
          _
        // Predicated region
        $region69: #{_lambda_.5} parent=63 // pred_check
          %p2142 = pneg %p188
        $region70: #{_lambda_.5} parent=63 // pred_check_branch
          %2144 = sbr.rel (%p2142) target = $region72
        $region71: #{_lambda_.5} parent=63 // pred_region
          %s2145 = sand.u32 %s173, 1
          %s2146 = scalar_lea.sflag [#allocation14], %s2145
          %s2147 = sand.u32 %s173, 1
          %s2148 = smul.addr %s2147, 2
          %s2149 = scalar_lea.vmem [#allocation13], %s2148
          %2150 = dma.done %s2146, 32
        $region72: #{_lambda_.5} parent=63 // pred_fallthru
          _
      $region64: #{_lambda_.5} parent=5 // pred_fallthru
        _
    $region6: #{_lambda_.5} parent=1 // loop_footer
      %s27 = sadd.s32 1, %s23
    $region7: #{_lambda_.5} parent=1 // loop_footer_branch
      %22 = sbr.rel target = $region3
    $region8: #{_lambda_.5} parent=1 // loop_exit
      _
    %2151 = vsyncpa [#allocation5], 1
    %s2152 = scalar_lea.sflag [#allocation5], 1
    %2153 = vsyncpa %s2152, 1
    %2154 = vsyncpa [#allocation8], 1
    %2155 = vsyncpa [#allocation11], 1
    %2156 = vsyncpa [#allocation6], 1
    %s2157 = scalar_lea.sflag [#allocation6], 1
    %2158 = vsyncpa %s2157, 1
    %2159 = vsyncpa [#allocation14], 1
    %s2160 = scalar_lea.sflag [#allocation14], 1
    %2161 = vsyncpa %s2160, 1

</llo_original>
